<compile_context>
chip_gen: v7x
topology: tpu7x:2x2x1
jax: 0.10.0
libtpu: 0.0.40
codegen_flags: <defaults>
</compile_context>

<pallas_src>
import functools
import numpy as np
import jax
import jax.numpy as jnp
from jax.experimental import pallas as pl
from jax.experimental.pallas import tpu as pltpu

PAD = 0
NEG = -1e9
LN_EPS = 1e-5
VMEM_LIMIT = 48 * 1024 * 1024  # fits v7x's 64 MiB VMEM with headroom


# ----------------------------------------------------------------------------
# In-kernel building blocks (plain functions traced inside the Pallas kernels)
# ----------------------------------------------------------------------------
def _layernorm(y, g_ref, b_ref):
    mu = jnp.mean(y, axis=-1, keepdims=True)
    var = jnp.mean(jnp.square(y - mu), axis=-1, keepdims=True)
    return (y - mu) * jax.lax.rsqrt(var + LN_EPS) * g_ref[...] + b_ref[...]


def _mha_sublayer(x_q32, x_kv16, add_mask,
                  wq_ref, bq_ref, wk_ref, bk_ref, wv_ref, bv_ref,
                  wfc_ref, bfc_ref, g_ref, b_ref, *, n_head, scale):
    """Multi-head attention + residual + LayerNorm.

    x_q32   : (Lq, D) f32  query-side input (also the residual)
    x_kv16  : (Lk, D) bf16 key/value-side input
    add_mask: additive float mask broadcastable to (Lq, Lk) (0 or -1e9)
    weights : head-major, wq/wk: (H, D, dk), wv: (H, D, dv), wfc: (H, dv, D)
    """
    xq16 = x_q32.astype(jnp.bfloat16)
    acc = None
    for h in range(n_head):  # static loop; per-head scaled-dot-product attention
        q = (jnp.dot(xq16, wq_ref[h], preferred_element_type=jnp.float32)
             + bq_ref[h]) * scale                                        # (Lq, dk)
        k = jnp.dot(x_kv16, wk_ref[h],
                    preferred_element_type=jnp.float32) + bk_ref[h]      # (Lk, dk)
        v = jnp.dot(x_kv16, wv_ref[h],
                    preferred_element_type=jnp.float32) + bv_ref[h]      # (Lk, dv)

        # scores = q @ k^T without emitting an explicit transpose.
        s = jax.lax.dot_general(q.astype(jnp.bfloat16), k.astype(jnp.bfloat16),
                                (((1,), (1,)), ((), ())),
                                preferred_element_type=jnp.float32)      # (Lq, Lk)
        s = s + add_mask
        s = s - jnp.max(s, axis=-1, keepdims=True)
        e = jnp.exp(s)
        p = e * pl.reciprocal(jnp.sum(e, axis=-1, keepdims=True), approx=True)
        ctx = jnp.dot(p.astype(jnp.bfloat16), v.astype(jnp.bfloat16),
                      preferred_element_type=jnp.float32)                # (Lq, dv)
        # Accumulate the output projection per head -> no concat / lane slicing.
        contrib = jnp.dot(ctx.astype(jnp.bfloat16), wfc_ref[h],
                          preferred_element_type=jnp.float32)            # (Lq, D)
        acc = contrib if acc is None else acc + contrib

    y = acc + bfc_ref[...] + x_q32
    return _layernorm(y, g_ref, b_ref)


def _ffn_sublayer(x32, w1_ref, b1_ref, w2_ref, b2_ref, g_ref, b_ref):
    h = jnp.dot(x32.astype(jnp.bfloat16), w1_ref[...],
                preferred_element_type=jnp.float32) + b1_ref[...]
    h = jnp.maximum(h, 0.0)
    o = jnp.dot(h.astype(jnp.bfloat16), w2_ref[...],
                preferred_element_type=jnp.float32) + b2_ref[...]
    return _layernorm(o + x32, g_ref, b_ref)


# ----------------------------------------------------------------------------
# Pallas kernels (one per encoder layer, one per decoder layer, one for vocab)
# ----------------------------------------------------------------------------
def _enc_layer_kernel(
    x_ref, kpad_ref, npm_ref,
    wq_ref, bq_ref, wk_ref, bk_ref, wv_ref, bv_ref, wfc_ref, bfc_ref,
    ln1g_ref, ln1b_ref,
    w1_ref, b1_ref, w2_ref, b2_ref, ln2g_ref, ln2b_ref,
    o_ref, *, n_head, scale,
):
    """Whole encoder layer for one batch element: self-MHA + FFN, both with
    residual+LN, and non-pad masking fused in."""
    x16 = x_ref[0]                       # (L, D) bf16
    x32 = x16.astype(jnp.float32)
    add_mask = kpad_ref[0]               # (1, Lk) additive key-pad mask
    npm = npm_ref[0]                     # (L, 1) non-pad multiplier

    y = _mha_sublayer(x32, x16, add_mask,
                      wq_ref, bq_ref, wk_ref, bk_ref, wv_ref, bv_ref,
                      wfc_ref, bfc_ref, ln1g_ref, ln1b_ref,
                      n_head=n_head, scale=scale)
    y = y * npm
    z = _ffn_sublayer(y, w1_ref, b1_ref, w2_ref, b2_ref, ln2g_ref, ln2b_ref)
    z = z * npm
    o_ref[0] = z.astype(o_ref.dtype)


def _dec_layer_kernel(
    x_ref, enc_ref, skpad_ref, ckpad_ref, npm_ref,
    s_wq, s_bq, s_wk, s_bk, s_wv, s_bv, s_wfc, s_bfc, s_g, s_b,
    c_wq, c_bq, c_wk, c_bk, c_wv, c_bv, c_wfc, c_bfc, c_g, c_b,
    w1_ref, b1_ref, w2_ref, b2_ref, f_g, f_b,
    o_ref, *, n_head, scale,
):
    """Whole decoder layer for one batch element: masked self-MHA + cross-MHA
    + FFN (each with residual+LN and non-pad masking)."""
    x16 = x_ref[0]                       # (Lt, D) bf16
    x32 = x16.astype(jnp.float32)
    enc16 = enc_ref[0]                   # (Ls, D) bf16
    npm = npm_ref[0]                     # (Lt, 1)

    # Causal (subsequent) mask built in-kernel; key-pad part is the O(L) row.
    Lt = x32.shape[0]
    row = jax.lax.broadcasted_iota(jnp.int32, (Lt, Lt), 0)
    col = jax.lax.broadcasted_iota(jnp.int32, (Lt, Lt), 1)
    causal_add = jnp.where(col > row, jnp.float32(NEG), jnp.float32(0.0))
    slf_mask = causal_add + skpad_ref[0]                       # (Lt, Lt)

    y = _mha_sublayer(x32, x16, slf_mask,
                      s_wq, s_bq, s_wk, s_bk, s_wv, s_bv, s_wfc, s_bfc, s_g, s_b,
                      n_head=n_head, scale=scale)
    y = y * npm
    y2 = _mha_sublayer(y, enc16, ckpad_ref[0],
                       c_wq, c_bq, c_wk, c_bk, c_wv, c_bv, c_wfc, c_bfc, c_g, c_b,
                       n_head=n_head, scale=scale)
    y2 = y2 * npm
    z = _ffn_sublayer(y2, w1_ref, b1_ref, w2_ref, b2_ref, f_g, f_b)
    z = z * npm
    o_ref[0] = z.astype(o_ref.dtype)


def _vocab_proj_kernel(x_ref, w_ref, o_ref, *, scale):
    """Shared-embedding output projection tile, no bias, x_logit_scale folded in."""
    o_ref[...] = (
        jnp.dot(x_ref[...], w_ref[...], preferred_element_type=jnp.float32) * scale
    )


# ----------------------------------------------------------------------------
# Pallas wrappers
# ----------------------------------------------------------------------------
def _weight_spec(arr):
    nd = arr.ndim
    return pl.BlockSpec(arr.shape, lambda *_: (0,) * nd)


def _mha_args(p):
    return (p["wq"], p["bq"], p["wk"], p["bk"], p["wv"], p["bv"],
            p["wfc"], p["bfc"], p["ln_g"], p["ln_b"])


def _ffn_args(p):
    return (p["w1"], p["b1"], p["w2"], p["b2"], p["ln_g"], p["ln_b"])


def enc_layer_call(x, kpad_add, npm, layer, cfg):
    """x: (B, L, D) bf16, kpad_add: (B, 1, L) f32, npm: (B, L, 1) f32."""
    B, L, D = x.shape
    kernel = functools.partial(_enc_layer_kernel, n_head=cfg["n_head"],
                               scale=1.0 / float(np.sqrt(cfg["d_k"])))
    weights = _mha_args(layer["slf"]) + _ffn_args(layer["ffn"])
    in_specs = [
        pl.BlockSpec((1, L, D), lambda b: (b, 0, 0)),
        pl.BlockSpec((1, 1, L), lambda b: (b, 0, 0)),
        pl.BlockSpec((1, L, 1), lambda b: (b, 0, 0)),
    ] + [_weight_spec(w) for w in weights]
    return pl.pallas_call(
        kernel,
        grid=(B,),
        out_shape=jax.ShapeDtypeStruct((B, L, D), jnp.bfloat16),
        in_specs=in_specs,
        out_specs=pl.BlockSpec((1, L, D), lambda b: (b, 0, 0)),
        compiler_params=pltpu.CompilerParams(
            dimension_semantics=("parallel",),
            vmem_limit_bytes=VMEM_LIMIT),
    )(x, kpad_add, npm, *weights)


def dec_layer_call(x, enc_out, skpad_add, ckpad_add, npm, layer, cfg):
    """x: (B, Lt, D) bf16, enc_out: (B, Ls, D) bf16,
    skpad_add: (B, 1, Lt) f32, ckpad_add: (B, 1, Ls) f32, npm: (B, Lt, 1) f32."""
    B, Lt, D = x.shape
    Ls = enc_out.shape[1]
    kernel = functools.partial(_dec_layer_kernel, n_head=cfg["n_head"],
                               scale=1.0 / float(np.sqrt(cfg["d_k"])))
    weights = (_mha_args(layer["slf"]) + _mha_args(layer["enc"])
               + _ffn_args(layer["ffn"]))
    in_specs = [
        pl.BlockSpec((1, Lt, D), lambda b: (b, 0, 0)),
        pl.BlockSpec((1, Ls, D), lambda b: (b, 0, 0)),
        pl.BlockSpec((1, 1, Lt), lambda b: (b, 0, 0)),
        pl.BlockSpec((1, 1, Ls), lambda b: (b, 0, 0)),
        pl.BlockSpec((1, Lt, 1), lambda b: (b, 0, 0)),
    ] + [_weight_spec(w) for w in weights]
    return pl.pallas_call(
        kernel,
        grid=(B,),
        out_shape=jax.ShapeDtypeStruct((B, Lt, D), jnp.bfloat16),
        in_specs=in_specs,
        out_specs=pl.BlockSpec((1, Lt, D), lambda b: (b, 0, 0)),
        compiler_params=pltpu.CompilerParams(
            dimension_semantics=("parallel",),
            vmem_limit_bytes=VMEM_LIMIT),
    )(x, enc_out, skpad_add, ckpad_add, npm, *weights)


def vocab_projection(x, w_t, scale, *, tm=256, tn=512):
    """x: (M, D) bf16, w_t: (D, V) bf16 (pre-transposed shared embedding).
    Tiled over (M, N) with a parallel grid; weights stay resident per N-tile."""
    M, K = x.shape
    N = w_t.shape[1]
    tm = min(tm, M)
    tn = min(tn, N)
    grid = (pl.cdiv(M, tm), pl.cdiv(N, tn))
    return pl.pallas_call(
        functools.partial(_vocab_proj_kernel, scale=float(scale)),
        grid=grid,
        out_shape=jax.ShapeDtypeStruct((M, N), jnp.float32),
        in_specs=[
            pl.BlockSpec((tm, K), lambda i, j: (i, 0)),
            pl.BlockSpec((K, tn), lambda i, j: (0, j)),
        ],
        out_specs=pl.BlockSpec((tm, tn), lambda i, j: (i, j)),
        compiler_params=pltpu.CompilerParams(
            dimension_semantics=("parallel", "parallel"),
            vmem_limit_bytes=VMEM_LIMIT),
    )(x, w_t)


# ----------------------------------------------------------------------------
# Plain-JAX glue: pad flags, embeddings, layer stacks
# ----------------------------------------------------------------------------
def _key_pad_add(seq):
    """Additive key-pad row (B, 1, Lk): -1e9 where key is PAD, else 0."""
    return jnp.where(seq == PAD, NEG, 0.0).astype(jnp.float32)[:, None, :]


def _non_pad_col(seq):
    """Non-pad multiplier column (B, L, 1)."""
    return (seq != PAD).astype(jnp.float32)[:, :, None]


def encoder_fwd(src_seq, src_pos, src_seg, params, cfg):
    kpad = _key_pad_add(src_seq)
    npm = _non_pad_col(src_seq)
    x = (
        params["word_emb"][src_seq]
        + params["pos_table_enc"][src_pos]
        + params["seg_emb"][src_seg]
    ).astype(jnp.bfloat16)
    for layer in params["enc_layers"]:
        x = enc_layer_call(x, kpad, npm, layer, cfg)
    return x


def decoder_fwd(tgt_seq, tgt_pos, src_seq, enc_output, params, cfg):
    skpad = _key_pad_add(tgt_seq)
    ckpad = _key_pad_add(src_seq)
    npm = _non_pad_col(tgt_seq)
    x = (params["word_emb"][tgt_seq]
         + params["pos_table_dec"][tgt_pos]).astype(jnp.bfloat16)
    for layer in params["dec_layers"]:
        x = dec_layer_call(x, enc_output, skpad, ckpad, npm, layer, cfg)
    return x


def transformer_forward(params, src_seq, src_pos, src_seg, tgt_seq, tgt_pos, cfg):
    # tgt_seq, tgt_pos = tgt_seq[:, :-1], tgt_pos[:, :-1]
    tgt_seq = tgt_seq[:, :-1]
    tgt_pos = tgt_pos[:, :-1]

    enc_output = encoder_fwd(src_seq, src_pos, src_seg, params, cfg)
    dec_output = decoder_fwd(tgt_seq, tgt_pos, src_seq, enc_output, params, cfg)

    d_model = cfg["d_model"]
    x_logit_scale = d_model ** (-0.5)  # tgt_emb_prj_weight_sharing=True
    dec_flat = dec_output.reshape(-1, d_model)  # bf16 (M, D)
    # shared projection: weight = (pre-transposed) tgt word embedding table, no bias
    logits = vocab_projection(dec_flat, params["word_emb_prj_T"], x_logit_scale)
    return logits  # (B*(Lt-1), n_vocab) f32


# ----------------------------------------------------------------------------
# Deterministic parameter init
# ----------------------------------------------------------------------------
class KeyGen:
    def __init__(self, key):
        self.key = key

    def __call__(self):
        self.key, sub = jax.random.split(self.key)
        return sub


def _xavier(key, shape):
    fan_in, fan_out = shape
    std = np.sqrt(2.0 / (fan_in + fan_out))
    return std * jax.random.normal(key, shape, dtype=jnp.float32)


def sinusoid_table(n_position, d_hid):
    pos = np.arange(n_position)[:, None].astype(np.float64)
    i = np.arange(d_hid)[None, :]
    angle = pos / np.power(10000, 2 * (i // 2) / d_hid)
    table = np.zeros((n_position, d_hid))
    table[:, 0::2] = np.sin(angle[:, 0::2])
    table[:, 1::2] = np.cos(angle[:, 1::2])
    table[0] = 0.0  # padding_idx = 0
    return jnp.asarray(table, jnp.float32)


def init_mha_params(kg, d_model, n_head, d_k, d_v):
    def head_major_in(d_out):
        # (D, H*d_out) xavier -> (H, D, d_out) head-major, consistent with
        # the reference's view(sz_b, len, n_head, d_out).
        w = _xavier(kg(), (d_model, n_head * d_out))
        return jnp.transpose(w.reshape(d_model, n_head, d_out), (1, 0, 2))

    w_q = head_major_in(d_k)
    w_k = head_major_in(d_k)
    w_v = head_major_in(d_v)
    w_fc = _xavier(kg(), (n_head * d_v, d_model)).reshape(n_head, d_v, d_model)
    return dict(
        wq=w_q.astype(jnp.bfloat16),
        bq=jnp.zeros((n_head, 1, d_k), jnp.float32),
        wk=w_k.astype(jnp.bfloat16),
        bk=jnp.zeros((n_head, 1, d_k), jnp.float32),
        wv=w_v.astype(jnp.bfloat16),
        bv=jnp.zeros((n_head, 1, d_v), jnp.float32),
        wfc=w_fc.astype(jnp.bfloat16),
        bfc=jnp.zeros((1, d_model), jnp.float32),
        ln_g=jnp.ones((1, d_model), jnp.float32),
        ln_b=jnp.zeros((1, d_model), jnp.float32),
    )


def init_ffn_params(kg, d_model, d_inner):
    return dict(
        w1=_xavier(kg(), (d_model, d_inner)).astype(jnp.bfloat16),
        b1=jnp.zeros((1, d_inner), jnp.float32),
        w2=_xavier(kg(), (d_inner, d_model)).astype(jnp.bfloat16),
        b2=jnp.zeros((1, d_model), jnp.float32),
        ln_g=jnp.ones((1, d_model), jnp.float32),
        ln_b=jnp.zeros((1, d_model), jnp.float32),
    )


def init_params(key, cfg):
    kg = KeyGen(key)
    d_model, d_inner = cfg["d_model"], cfg["d_inner"]
    n_head, d_k, d_v = cfg["n_head"], cfg["d_k"], cfg["d_v"]
    n_vocab, n_seg = cfg["n_vocab"], cfg["n_seg"]

    # shared word embedding table (src emb == tgt emb == output proj weight)
    word_emb = 0.1 * jax.random.normal(kg(), (n_vocab, d_model), dtype=jnp.float32)
    word_emb = word_emb.at[PAD].set(0.0)  # padding_idx=0
    seg_emb = 0.1 * jax.random.normal(kg(), (n_seg, d_model), dtype=jnp.float32)
    seg_emb = seg_emb.at[PAD].set(0.0)

    params = dict(
        word_emb=word_emb,
        # pre-transposed shared projection weight, stored once (bf16 MXU operand)
        word_emb_prj_T=word_emb.T.astype(jnp.bfloat16),
        seg_emb=seg_emb,
        pos_table_enc=sinusoid_table(cfg["len_max_seq_enc"] + 1, d_model),
        pos_table_dec=sinusoid_table(cfg["len_max_seq_dec"] + 1, d_model),
        enc_layers=[
            dict(
                slf=init_mha_params(kg, d_model, n_head, d_k, d_v),
                ffn=init_ffn_params(kg, d_model, d_inner),
            )
            for _ in range(cfg["n_layers"])
        ],
        dec_layers=[
            dict(
                slf=init_mha_params(kg, d_model, n_head, d_k, d_v),
                enc=init_mha_params(kg, d_model, n_head, d_k, d_v),
                ffn=init_ffn_params(kg, d_model, d_inner),
            )
            for _ in range(cfg["n_layers"])
        ],
    )
    return params


# ----------------------------------------------------------------------------
# Main
# ----------------------------------------------------------------------------
if __name__ == "__main__":
    cfg = dict(
        n_vocab=48,
        n_seg=4,
        d_model=32,
        d_inner=64,
        n_layers=2,
        n_head=4,
        d_k=8,
        d_v=8,
        len_max_seq_enc=10,
        len_max_seq_dec=10,
    )
    B, Ls, Lt = 2, 8, 8

    key = jax.random.PRNGKey(0)
    k_par, k_src, k_tgt, k_seg = jax.random.split(key, 4)

    params = init_params(k_par, cfg)

    # token sequences in [1, n_vocab); add some PAD=0 at the tail of batch 1
    src_seq = jax.random.randint(k_src, (B, Ls), 1, cfg["n_vocab"], dtype=jnp.int32)
    src_seq = src_seq.at[1, Ls - 2:].set(PAD)
    src_pos = jnp.where(src_seq != PAD, jnp.arange(1, Ls + 1, dtype=jnp.int32)[None, :], 0)
    src_seg = jax.random.randint(k_seg, (B, Ls), 1, cfg["n_seg"], dtype=jnp.int32)
    src_seg = jnp.where(src_seq != PAD, src_seg, 0)

    tgt_seq = jax.random.randint(k_tgt, (B, Lt), 1, cfg["n_vocab"], dtype=jnp.int32)
    tgt_seq = tgt_seq.at[1, Lt - 1:].set(PAD)
    tgt_pos = jnp.where(tgt_seq != PAD, jnp.arange(1, Lt + 1, dtype=jnp.int32)[None, :], 0)

    fwd = jax.jit(functools.partial(transformer_forward, cfg=cfg))
    out = fwd(params, src_seq, src_pos, src_seg, tgt_seq, tgt_pos)
    out = jax.block_until_ready(out)

    assert out.shape == (B * (Lt - 1), cfg["n_vocab"]), out.shape
    assert bool(jnp.all(jnp.isfinite(out)))
    print("KERNEL_OK")
</pallas_src>

<mosaic_0001>
module attributes {stable_mosaic.version = 11 : i64} {
  func.func @_enc_layer_kernel(%arg0: i32, %arg1: memref<1x8x32xbf16, #tpu.memory_space<vmem>>, %arg2: memref<1x1x8xf32, #tpu.memory_space<vmem>>, %arg3: memref<1x8x1xf32, #tpu.memory_space<vmem>>, %arg4: memref<4x32x8xbf16, #tpu.memory_space<vmem>>, %arg5: memref<4x1x8xf32, #tpu.memory_space<vmem>>, %arg6: memref<4x32x8xbf16, #tpu.memory_space<vmem>>, %arg7: memref<4x1x8xf32, #tpu.memory_space<vmem>>, %arg8: memref<4x32x8xbf16, #tpu.memory_space<vmem>>, %arg9: memref<4x1x8xf32, #tpu.memory_space<vmem>>, %arg10: memref<4x8x32xbf16, #tpu.memory_space<vmem>>, %arg11: memref<1x32xf32, #tpu.memory_space<vmem>>, %arg12: memref<1x32xf32, #tpu.memory_space<vmem>>, %arg13: memref<1x32xf32, #tpu.memory_space<vmem>>, %arg14: memref<32x64xbf16, #tpu.memory_space<vmem>>, %arg15: memref<1x64xf32, #tpu.memory_space<vmem>>, %arg16: memref<64x32xbf16, #tpu.memory_space<vmem>>, %arg17: memref<1x32xf32, #tpu.memory_space<vmem>>, %arg18: memref<1x32xf32, #tpu.memory_space<vmem>>, %arg19: memref<1x32xf32, #tpu.memory_space<vmem>>, %arg20: memref<1x8x32xbf16, #tpu.memory_space<vmem>>) attributes {dimension_semantics = [#tpu.dimension_semantics<parallel>], iteration_bounds = array<i64: 2>, scalar_prefetch = 0 : i64, scratch_operands = 0 : i64, tpu.core_type = #tpu.core_type<tc>, window_params = [{transform_indices = @transform_0, window_bounds = array<i64: 1, 8, 32>}, {transform_indices = @transform_1, window_bounds = array<i64: 1, 1, 8>}, {transform_indices = @transform_2, window_bounds = array<i64: 1, 8, 1>}, {pipeline_mode = #tpu.pipeline_mode<synchronous>, transform_indices = @transform_3, window_bounds = array<i64: 4, 32, 8>}, {pipeline_mode = #tpu.pipeline_mode<synchronous>, transform_indices = @transform_4, window_bounds = array<i64: 4, 1, 8>}, {pipeline_mode = #tpu.pipeline_mode<synchronous>, transform_indices = @transform_5, window_bounds = array<i64: 4, 32, 8>}, {pipeline_mode = #tpu.pipeline_mode<synchronous>, transform_indices = @transform_6, window_bounds = array<i64: 4, 1, 8>}, {pipeline_mode = #tpu.pipeline_mode<synchronous>, transform_indices = @transform_7, window_bounds = array<i64: 4, 32, 8>}, {pipeline_mode = #tpu.pipeline_mode<synchronous>, transform_indices = @transform_8, window_bounds = array<i64: 4, 1, 8>}, {pipeline_mode = #tpu.pipeline_mode<synchronous>, transform_indices = @transform_9, window_bounds = array<i64: 4, 8, 32>}, {pipeline_mode = #tpu.pipeline_mode<synchronous>, transform_indices = @transform_10, window_bounds = array<i64: 1, 32>}, {pipeline_mode = #tpu.pipeline_mode<synchronous>, transform_indices = @transform_11, window_bounds = array<i64: 1, 32>}, {pipeline_mode = #tpu.pipeline_mode<synchronous>, transform_indices = @transform_12, window_bounds = array<i64: 1, 32>}, {pipeline_mode = #tpu.pipeline_mode<synchronous>, transform_indices = @transform_13, window_bounds = array<i64: 32, 64>}, {pipeline_mode = #tpu.pipeline_mode<synchronous>, transform_indices = @transform_14, window_bounds = array<i64: 1, 64>}, {pipeline_mode = #tpu.pipeline_mode<synchronous>, transform_indices = @transform_15, window_bounds = array<i64: 64, 32>}, {pipeline_mode = #tpu.pipeline_mode<synchronous>, transform_indices = @transform_16, window_bounds = array<i64: 1, 32>}, {pipeline_mode = #tpu.pipeline_mode<synchronous>, transform_indices = @transform_17, window_bounds = array<i64: 1, 32>}, {pipeline_mode = #tpu.pipeline_mode<synchronous>, transform_indices = @transform_18, window_bounds = array<i64: 1, 32>}, {transform_indices = @transform_19, window_bounds = array<i64: 1, 8, 32>}]} {
    %c0 = arith.constant 0 : index
    %c0_0 = arith.constant 0 : index
    %c0_1 = arith.constant 0 : index
    %0 = vector.load %arg1[%c0, %c0_0, %c0_1] : memref<1x8x32xbf16, #tpu.memory_space<vmem>>, vector<1x8x32xbf16>
    %1 = vector.shape_cast %0 : vector<1x8x32xbf16> to vector<8x32xbf16>
    %2 = arith.extf %1 : vector<8x32xbf16> to vector<8x32xf32>
    %c0_2 = arith.constant 0 : index
    %c0_3 = arith.constant 0 : index
    %c0_4 = arith.constant 0 : index
    %3 = vector.load %arg2[%c0_2, %c0_3, %c0_4] : memref<1x1x8xf32, #tpu.memory_space<vmem>>, vector<1x1x8xf32>
    %4 = vector.shape_cast %3 : vector<1x1x8xf32> to vector<1x8xf32>
    %c0_5 = arith.constant 0 : index
    %c0_6 = arith.constant 0 : index
    %c0_7 = arith.constant 0 : index
    %5 = vector.load %arg3[%c0_5, %c0_6, %c0_7] : memref<1x8x1xf32, #tpu.memory_space<vmem>>, vector<1x8x1xf32>
    %6 = vector.shape_cast %5 : vector<1x8x1xf32> to vector<8x1xf32>
    %7 = arith.truncf %2 : vector<8x32xf32> to vector<8x32xbf16>
    %c0_8 = arith.constant 0 : index
    %c0_9 = arith.constant 0 : index
    %c0_10 = arith.constant 0 : index
    %8 = vector.load %arg4[%c0_8, %c0_9, %c0_10] : memref<4x32x8xbf16, #tpu.memory_space<vmem>>, vector<1x32x8xbf16>
    %9 = vector.shape_cast %8 : vector<1x32x8xbf16> to vector<32x8xbf16>
    %cst = arith.constant dense<0.000000e+00> : vector<8x8xf32>
    %10 = tpu.matmul %7, %9, %cst {dimension_numbers = #tpu.dot_dimension_numbers<[1], [0], [0], [1], [0, 0, 1, 1], [], []>} : vector<8x32xbf16>, vector<32x8xbf16>, vector<8x8xf32> -> vector<8x8xf32>
    %c0_11 = arith.constant 0 : index
    %c0_12 = arith.constant 0 : index
    %c0_13 = arith.constant 0 : index
    %11 = vector.load %arg5[%c0_11, %c0_12, %c0_13] : memref<4x1x8xf32, #tpu.memory_space<vmem>>, vector<1x1x8xf32>
    %12 = vector.shape_cast %11 : vector<1x1x8xf32> to vector<1x8xf32>
    %13 = vector.broadcast %12 : vector<1x8xf32> to vector<8x8xf32>
    %14 = arith.addf %10, %13 : vector<8x8xf32>
    %cst_14 = arith.constant 0.353553385 : f32
    %15 = vector.broadcast %cst_14 : f32 to vector<8x8xf32>
    %16 = arith.mulf %14, %15 : vector<8x8xf32>
    %c0_15 = arith.constant 0 : index
    %c0_16 = arith.constant 0 : index
    %c0_17 = arith.constant 0 : index
    %17 = vector.load %arg6[%c0_15, %c0_16, %c0_17] : memref<4x32x8xbf16, #tpu.memory_space<vmem>>, vector<1x32x8xbf16>
    %18 = vector.shape_cast %17 : vector<1x32x8xbf16> to vector<32x8xbf16>
    %cst_18 = arith.constant dense<0.000000e+00> : vector<8x8xf32>
    %19 = tpu.matmul %1, %18, %cst_18 {dimension_numbers = #tpu.dot_dimension_numbers<[1], [0], [0], [1], [0, 0, 1, 1], [], []>} : vector<8x32xbf16>, vector<32x8xbf16>, vector<8x8xf32> -> vector<8x8xf32>
    %c0_19 = arith.constant 0 : index
    %c0_20 = arith.constant 0 : index
    %c0_21 = arith.constant 0 : index
    %20 = vector.load %arg7[%c0_19, %c0_20, %c0_21] : memref<4x1x8xf32, #tpu.memory_space<vmem>>, vector<1x1x8xf32>
    %21 = vector.shape_cast %20 : vector<1x1x8xf32> to vector<1x8xf32>
    %22 = vector.broadcast %21 : vector<1x8xf32> to vector<8x8xf32>
    %23 = arith.addf %19, %22 : vector<8x8xf32>
    %c0_22 = arith.constant 0 : index
    %c0_23 = arith.constant 0 : index
    %c0_24 = arith.constant 0 : index
    %24 = vector.load %arg8[%c0_22, %c0_23, %c0_24] : memref<4x32x8xbf16, #tpu.memory_space<vmem>>, vector<1x32x8xbf16>
    %25 = vector.shape_cast %24 : vector<1x32x8xbf16> to vector<32x8xbf16>
    %cst_25 = arith.constant dense<0.000000e+00> : vector<8x8xf32>
    %26 = tpu.matmul %1, %25, %cst_25 {dimension_numbers = #tpu.dot_dimension_numbers<[1], [0], [0], [1], [0, 0, 1, 1], [], []>} : vector<8x32xbf16>, vector<32x8xbf16>, vector<8x8xf32> -> vector<8x8xf32>
    %c0_26 = arith.constant 0 : index
    %c0_27 = arith.constant 0 : index
    %c0_28 = arith.constant 0 : index
    %27 = vector.load %arg9[%c0_26, %c0_27, %c0_28] : memref<4x1x8xf32, #tpu.memory_space<vmem>>, vector<1x1x8xf32>
    %28 = vector.shape_cast %27 : vector<1x1x8xf32> to vector<1x8xf32>
    %29 = vector.broadcast %28 : vector<1x8xf32> to vector<8x8xf32>
    %30 = arith.addf %26, %29 : vector<8x8xf32>
    %31 = arith.truncf %16 : vector<8x8xf32> to vector<8x8xbf16>
    %32 = arith.truncf %23 : vector<8x8xf32> to vector<8x8xbf16>
    %cst_29 = arith.constant dense<0.000000e+00> : vector<8x8xf32>
    %33 = tpu.matmul %31, %32, %cst_29 {dimension_numbers = #tpu.dot_dimension_numbers<[1], [1], [0], [0], [0, 0, 1, 0], [], []>} : vector<8x8xbf16>, vector<8x8xbf16>, vector<8x8xf32> -> vector<8x8xf32>
    %34 = vector.broadcast %4 : vector<1x8xf32> to vector<8x8xf32>
    %35 = arith.addf %33, %34 : vector<8x8xf32>
    %cst_30 = arith.constant dense<0xFF800000> : vector<8xf32>
    %36 = vector.multi_reduction <maximumf>, %35, %cst_30 [1] : vector<8x8xf32> to vector<8xf32>
    %37 = vector.shape_cast %36 : vector<8xf32> to vector<8x1xf32>
    %38 = vector.broadcast %37 : vector<8x1xf32> to vector<8x8xf32>
    %39 = arith.subf %35, %38 : vector<8x8xf32>
    %40 = math.exp %39 : vector<8x8xf32>
    %cst_31 = arith.constant dense<0.000000e+00> : vector<8xf32>
    %41 = vector.multi_reduction <add>, %40, %cst_31 [1] : vector<8x8xf32> to vector<8xf32>
    %42 = vector.shape_cast %41 : vector<8xf32> to vector<8x1xf32>
    %43 = tpu.reciprocal %42 {approx = true} : vector<8x1xf32> -> vector<8x1xf32>
    %44 = vector.broadcast %43 : vector<8x1xf32> to vector<8x8xf32>
    %45 = arith.mulf %40, %44 : vector<8x8xf32>
    %46 = arith.truncf %45 : vector<8x8xf32> to vector<8x8xbf16>
    %47 = arith.truncf %30 : vector<8x8xf32> to vector<8x8xbf16>
    %cst_32 = arith.constant dense<0.000000e+00> : vector<8x8xf32>
    %48 = tpu.matmul %46, %47, %cst_32 {dimension_numbers = #tpu.dot_dimension_numbers<[1], [0], [0], [1], [0, 0, 1, 1], [], []>} : vector<8x8xbf16>, vector<8x8xbf16>, vector<8x8xf32> -> vector<8x8xf32>
    %49 = arith.truncf %48 : vector<8x8xf32> to vector<8x8xbf16>
    %c0_33 = arith.constant 0 : index
    %c0_34 = arith.constant 0 : index
    %c0_35 = arith.constant 0 : index
    %50 = vector.load %arg10[%c0_33, %c0_34, %c0_35] : memref<4x8x32xbf16, #tpu.memory_space<vmem>>, vector<1x8x32xbf16>
    %51 = vector.shape_cast %50 : vector<1x8x32xbf16> to vector<8x32xbf16>
    %cst_36 = arith.constant dense<0.000000e+00> : vector<8x32xf32>
    %52 = tpu.matmul %49, %51, %cst_36 {dimension_numbers = #tpu.dot_dimension_numbers<[1], [0], [0], [1], [0, 0, 1, 1], [], []>} : vector<8x8xbf16>, vector<8x32xbf16>, vector<8x32xf32> -> vector<8x32xf32>
    %c1 = arith.constant 1 : index
    %c0_37 = arith.constant 0 : index
    %c0_38 = arith.constant 0 : index
    %53 = vector.load %arg4[%c1, %c0_37, %c0_38] : memref<4x32x8xbf16, #tpu.memory_space<vmem>>, vector<1x32x8xbf16>
    %54 = vector.shape_cast %53 : vector<1x32x8xbf16> to vector<32x8xbf16>
    %cst_39 = arith.constant dense<0.000000e+00> : vector<8x8xf32>
    %55 = tpu.matmul %7, %54, %cst_39 {dimension_numbers = #tpu.dot_dimension_numbers<[1], [0], [0], [1], [0, 0, 1, 1], [], []>} : vector<8x32xbf16>, vector<32x8xbf16>, vector<8x8xf32> -> vector<8x8xf32>
    %c1_40 = arith.constant 1 : index
    %c0_41 = arith.constant 0 : index
    %c0_42 = arith.constant 0 : index
    %56 = vector.load %arg5[%c1_40, %c0_41, %c0_42] : memref<4x1x8xf32, #tpu.memory_space<vmem>>, vector<1x1x8xf32>
    %57 = vector.shape_cast %56 : vector<1x1x8xf32> to vector<1x8xf32>
    %58 = vector.broadcast %57 : vector<1x8xf32> to vector<8x8xf32>
    %59 = arith.addf %55, %58 : vector<8x8xf32>
    %cst_43 = arith.constant 0.353553385 : f32
    %60 = vector.broadcast %cst_43 : f32 to vector<8x8xf32>
    %61 = arith.mulf %59, %60 : vector<8x8xf32>
    %c1_44 = arith.constant 1 : index
    %c0_45 = arith.constant 0 : index
    %c0_46 = arith.constant 0 : index
    %62 = vector.load %arg6[%c1_44, %c0_45, %c0_46] : memref<4x32x8xbf16, #tpu.memory_space<vmem>>, vector<1x32x8xbf16>
    %63 = vector.shape_cast %62 : vector<1x32x8xbf16> to vector<32x8xbf16>
    %cst_47 = arith.constant dense<0.000000e+00> : vector<8x8xf32>
    %64 = tpu.matmul %1, %63, %cst_47 {dimension_numbers = #tpu.dot_dimension_numbers<[1], [0], [0], [1], [0, 0, 1, 1], [], []>} : vector<8x32xbf16>, vector<32x8xbf16>, vector<8x8xf32> -> vector<8x8xf32>
    %c1_48 = arith.constant 1 : index
    %c0_49 = arith.constant 0 : index
    %c0_50 = arith.constant 0 : index
    %65 = vector.load %arg7[%c1_48, %c0_49, %c0_50] : memref<4x1x8xf32, #tpu.memory_space<vmem>>, vector<1x1x8xf32>
    %66 = vector.shape_cast %65 : vector<1x1x8xf32> to vector<1x8xf32>
    %67 = vector.broadcast %66 : vector<1x8xf32> to vector<8x8xf32>
    %68 = arith.addf %64, %67 : vector<8x8xf32>
    %c1_51 = arith.constant 1 : index
    %c0_52 = arith.constant 0 : index
    %c0_53 = arith.constant 0 : index
    %69 = vector.load %arg8[%c1_51, %c0_52, %c0_53] : memref<4x32x8xbf16, #tpu.memory_space<vmem>>, vector<1x32x8xbf16>
    %70 = vector.shape_cast %69 : vector<1x32x8xbf16> to vector<32x8xbf16>
    %cst_54 = arith.constant dense<0.000000e+00> : vector<8x8xf32>
    %71 = tpu.matmul %1, %70, %cst_54 {dimension_numbers = #tpu.dot_dimension_numbers<[1], [0], [0], [1], [0, 0, 1, 1], [], []>} : vector<8x32xbf16>, vector<32x8xbf16>, vector<8x8xf32> -> vector<8x8xf32>
    %c1_55 = arith.constant 1 : index
    %c0_56 = arith.constant 0 : index
    %c0_57 = arith.constant 0 : index
    %72 = vector.load %arg9[%c1_55, %c0_56, %c0_57] : memref<4x1x8xf32, #tpu.memory_space<vmem>>, vector<1x1x8xf32>
    %73 = vector.shape_cast %72 : vector<1x1x8xf32> to vector<1x8xf32>
    %74 = vector.broadcast %73 : vector<1x8xf32> to vector<8x8xf32>
    %75 = arith.addf %71, %74 : vector<8x8xf32>
    %76 = arith.truncf %61 : vector<8x8xf32> to vector<8x8xbf16>
    %77 = arith.truncf %68 : vector<8x8xf32> to vector<8x8xbf16>
    %cst_58 = arith.constant dense<0.000000e+00> : vector<8x8xf32>
    %78 = tpu.matmul %76, %77, %cst_58 {dimension_numbers = #tpu.dot_dimension_numbers<[1], [1], [0], [0], [0, 0, 1, 0], [], []>} : vector<8x8xbf16>, vector<8x8xbf16>, vector<8x8xf32> -> vector<8x8xf32>
    %79 = vector.broadcast %4 : vector<1x8xf32> to vector<8x8xf32>
    %80 = arith.addf %78, %79 : vector<8x8xf32>
    %cst_59 = arith.constant dense<0xFF800000> : vector<8xf32>
    %81 = vector.multi_reduction <maximumf>, %80, %cst_59 [1] : vector<8x8xf32> to vector<8xf32>
    %82 = vector.shape_cast %81 : vector<8xf32> to vector<8x1xf32>
    %83 = vector.broadcast %82 : vector<8x1xf32> to vector<8x8xf32>
    %84 = arith.subf %80, %83 : vector<8x8xf32>
    %85 = math.exp %84 : vector<8x8xf32>
    %cst_60 = arith.constant dense<0.000000e+00> : vector<8xf32>
    %86 = vector.multi_reduction <add>, %85, %cst_60 [1] : vector<8x8xf32> to vector<8xf32>
    %87 = vector.shape_cast %86 : vector<8xf32> to vector<8x1xf32>
    %88 = tpu.reciprocal %87 {approx = true} : vector<8x1xf32> -> vector<8x1xf32>
    %89 = vector.broadcast %88 : vector<8x1xf32> to vector<8x8xf32>
    %90 = arith.mulf %85, %89 : vector<8x8xf32>
    %91 = arith.truncf %90 : vector<8x8xf32> to vector<8x8xbf16>
    %92 = arith.truncf %75 : vector<8x8xf32> to vector<8x8xbf16>
    %cst_61 = arith.constant dense<0.000000e+00> : vector<8x8xf32>
    %93 = tpu.matmul %91, %92, %cst_61 {dimension_numbers = #tpu.dot_dimension_numbers<[1], [0], [0], [1], [0, 0, 1, 1], [], []>} : vector<8x8xbf16>, vector<8x8xbf16>, vector<8x8xf32> -> vector<8x8xf32>
    %94 = arith.truncf %93 : vector<8x8xf32> to vector<8x8xbf16>
    %c1_62 = arith.constant 1 : index
    %c0_63 = arith.constant 0 : index
    %c0_64 = arith.constant 0 : index
    %95 = vector.load %arg10[%c1_62, %c0_63, %c0_64] : memref<4x8x32xbf16, #tpu.memory_space<vmem>>, vector<1x8x32xbf16>
    %96 = vector.shape_cast %95 : vector<1x8x32xbf16> to vector<8x32xbf16>
    %cst_65 = arith.constant dense<0.000000e+00> : vector<8x32xf32>
    %97 = tpu.matmul %94, %96, %cst_65 {dimension_numbers = #tpu.dot_dimension_numbers<[1], [0], [0], [1], [0, 0, 1, 1], [], []>} : vector<8x8xbf16>, vector<8x32xbf16>, vector<8x32xf32> -> vector<8x32xf32>
    %98 = arith.addf %52, %97 : vector<8x32xf32>
    %c2 = arith.constant 2 : index
    %c0_66 = arith.constant 0 : index
    %c0_67 = arith.constant 0 : index
    %99 = vector.load %arg4[%c2, %c0_66, %c0_67] : memref<4x32x8xbf16, #tpu.memory_space<vmem>>, vector<1x32x8xbf16>
    %100 = vector.shape_cast %99 : vector<1x32x8xbf16> to vector<32x8xbf16>
    %cst_68 = arith.constant dense<0.000000e+00> : vector<8x8xf32>
    %101 = tpu.matmul %7, %100, %cst_68 {dimension_numbers = #tpu.dot_dimension_numbers<[1], [0], [0], [1], [0, 0, 1, 1], [], []>} : vector<8x32xbf16>, vector<32x8xbf16>, vector<8x8xf32> -> vector<8x8xf32>
    %c2_69 = arith.constant 2 : index
    %c0_70 = arith.constant 0 : index
    %c0_71 = arith.constant 0 : index
    %102 = vector.load %arg5[%c2_69, %c0_70, %c0_71] : memref<4x1x8xf32, #tpu.memory_space<vmem>>, vector<1x1x8xf32>
    %103 = vector.shape_cast %102 : vector<1x1x8xf32> to vector<1x8xf32>
    %104 = vector.broadcast %103 : vector<1x8xf32> to vector<8x8xf32>
    %105 = arith.addf %101, %104 : vector<8x8xf32>
    %cst_72 = arith.constant 0.353553385 : f32
    %106 = vector.broadcast %cst_72 : f32 to vector<8x8xf32>
    %107 = arith.mulf %105, %106 : vector<8x8xf32>
    %c2_73 = arith.constant 2 : index
    %c0_74 = arith.constant 0 : index
    %c0_75 = arith.constant 0 : index
    %108 = vector.load %arg6[%c2_73, %c0_74, %c0_75] : memref<4x32x8xbf16, #tpu.memory_space<vmem>>, vector<1x32x8xbf16>
    %109 = vector.shape_cast %108 : vector<1x32x8xbf16> to vector<32x8xbf16>
    %cst_76 = arith.constant dense<0.000000e+00> : vector<8x8xf32>
    %110 = tpu.matmul %1, %109, %cst_76 {dimension_numbers = #tpu.dot_dimension_numbers<[1], [0], [0], [1], [0, 0, 1, 1], [], []>} : vector<8x32xbf16>, vector<32x8xbf16>, vector<8x8xf32> -> vector<8x8xf32>
    %c2_77 = arith.constant 2 : index
    %c0_78 = arith.constant 0 : index
    %c0_79 = arith.constant 0 : index
    %111 = vector.load %arg7[%c2_77, %c0_78, %c0_79] : memref<4x1x8xf32, #tpu.memory_space<vmem>>, vector<1x1x8xf32>
    %112 = vector.shape_cast %111 : vector<1x1x8xf32> to vector<1x8xf32>
    %113 = vector.broadcast %112 : vector<1x8xf32> to vector<8x8xf32>
    %114 = arith.addf %110, %113 : vector<8x8xf32>
    %c2_80 = arith.constant 2 : index
    %c0_81 = arith.constant 0 : index
    %c0_82 = arith.constant 0 : index
    %115 = vector.load %arg8[%c2_80, %c0_81, %c0_82] : memref<4x32x8xbf16, #tpu.memory_space<vmem>>, vector<1x32x8xbf16>
    %116 = vector.shape_cast %115 : vector<1x32x8xbf16> to vector<32x8xbf16>
    %cst_83 = arith.constant dense<0.000000e+00> : vector<8x8xf32>
    %117 = tpu.matmul %1, %116, %cst_83 {dimension_numbers = #tpu.dot_dimension_numbers<[1], [0], [0], [1], [0, 0, 1, 1], [], []>} : vector<8x32xbf16>, vector<32x8xbf16>, vector<8x8xf32> -> vector<8x8xf32>
    %c2_84 = arith.constant 2 : index
    %c0_85 = arith.constant 0 : index
    %c0_86 = arith.constant 0 : index
    %118 = vector.load %arg9[%c2_84, %c0_85, %c0_86] : memref<4x1x8xf32, #tpu.memory_space<vmem>>, vector<1x1x8xf32>
    %119 = vector.shape_cast %118 : vector<1x1x8xf32> to vector<1x8xf32>
    %120 = vector.broadcast %119 : vector<1x8xf32> to vector<8x8xf32>
    %121 = arith.addf %117, %120 : vector<8x8xf32>
    %122 = arith.truncf %107 : vector<8x8xf32> to vector<8x8xbf16>
    %123 = arith.truncf %114 : vector<8x8xf32> to vector<8x8xbf16>
    %cst_87 = arith.constant dense<0.000000e+00> : vector<8x8xf32>
    %124 = tpu.matmul %122, %123, %cst_87 {dimension_numbers = #tpu.dot_dimension_numbers<[1], [1], [0], [0], [0, 0, 1, 0], [], []>} : vector<8x8xbf16>, vector<8x8xbf16>, vector<8x8xf32> -> vector<8x8xf32>
    %125 = vector.broadcast %4 : vector<1x8xf32> to vector<8x8xf32>
    %126 = arith.addf %124, %125 : vector<8x8xf32>
    %cst_88 = arith.constant dense<0xFF800000> : vector<8xf32>
    %127 = vector.multi_reduction <maximumf>, %126, %cst_88 [1] : vector<8x8xf32> to vector<8xf32>
    %128 = vector.shape_cast %127 : vector<8xf32> to vector<8x1xf32>
    %129 = vector.broadcast %128 : vector<8x1xf32> to vector<8x8xf32>
    %130 = arith.subf %126, %129 : vector<8x8xf32>
    %131 = math.exp %130 : vector<8x8xf32>
    %cst_89 = arith.constant dense<0.000000e+00> : vector<8xf32>
    %132 = vector.multi_reduction <add>, %131, %cst_89 [1] : vector<8x8xf32> to vector<8xf32>
    %133 = vector.shape_cast %132 : vector<8xf32> to vector<8x1xf32>
    %134 = tpu.reciprocal %133 {approx = true} : vector<8x1xf32> -> vector<8x1xf32>
    %135 = vector.broadcast %134 : vector<8x1xf32> to vector<8x8xf32>
    %136 = arith.mulf %131, %135 : vector<8x8xf32>
    %137 = arith.truncf %136 : vector<8x8xf32> to vector<8x8xbf16>
    %138 = arith.truncf %121 : vector<8x8xf32> to vector<8x8xbf16>
    %cst_90 = arith.constant dense<0.000000e+00> : vector<8x8xf32>
    %139 = tpu.matmul %137, %138, %cst_90 {dimension_numbers = #tpu.dot_dimension_numbers<[1], [0], [0], [1], [0, 0, 1, 1], [], []>} : vector<8x8xbf16>, vector<8x8xbf16>, vector<8x8xf32> -> vector<8x8xf32>
    %140 = arith.truncf %139 : vector<8x8xf32> to vector<8x8xbf16>
    %c2_91 = arith.constant 2 : index
    %c0_92 = arith.constant 0 : index
    %c0_93 = arith.constant 0 : index
    %141 = vector.load %arg10[%c2_91, %c0_92, %c0_93] : memref<4x8x32xbf16, #tpu.memory_space<vmem>>, vector<1x8x32xbf16>
    %142 = vector.shape_cast %141 : vector<1x8x32xbf16> to vector<8x32xbf16>
    %cst_94 = arith.constant dense<0.000000e+00> : vector<8x32xf32>
    %143 = tpu.matmul %140, %142, %cst_94 {dimension_numbers = #tpu.dot_dimension_numbers<[1], [0], [0], [1], [0, 0, 1, 1], [], []>} : vector<8x8xbf16>, vector<8x32xbf16>, vector<8x32xf32> -> vector<8x32xf32>
    %144 = arith.addf %98, %143 : vector<8x32xf32>
    %c3 = arith.constant 3 : index
    %c0_95 = arith.constant 0 : index
    %c0_96 = arith.constant 0 : index
    %145 = vector.load %arg4[%c3, %c0_95, %c0_96] : memref<4x32x8xbf16, #tpu.memory_space<vmem>>, vector<1x32x8xbf16>
    %146 = vector.shape_cast %145 : vector<1x32x8xbf16> to vector<32x8xbf16>
    %cst_97 = arith.constant dense<0.000000e+00> : vector<8x8xf32>
    %147 = tpu.matmul %7, %146, %cst_97 {dimension_numbers = #tpu.dot_dimension_numbers<[1], [0], [0], [1], [0, 0, 1, 1], [], []>} : vector<8x32xbf16>, vector<32x8xbf16>, vector<8x8xf32> -> vector<8x8xf32>
    %c3_98 = arith.constant 3 : index
    %c0_99 = arith.constant 0 : index
    %c0_100 = arith.constant 0 : index
    %148 = vector.load %arg5[%c3_98, %c0_99, %c0_100] : memref<4x1x8xf32, #tpu.memory_space<vmem>>, vector<1x1x8xf32>
    %149 = vector.shape_cast %148 : vector<1x1x8xf32> to vector<1x8xf32>
    %150 = vector.broadcast %149 : vector<1x8xf32> to vector<8x8xf32>
    %151 = arith.addf %147, %150 : vector<8x8xf32>
    %cst_101 = arith.constant 0.353553385 : f32
    %152 = vector.broadcast %cst_101 : f32 to vector<8x8xf32>
    %153 = arith.mulf %151, %152 : vector<8x8xf32>
    %c3_102 = arith.constant 3 : index
    %c0_103 = arith.constant 0 : index
    %c0_104 = arith.constant 0 : index
    %154 = vector.load %arg6[%c3_102, %c0_103, %c0_104] : memref<4x32x8xbf16, #tpu.memory_space<vmem>>, vector<1x32x8xbf16>
    %155 = vector.shape_cast %154 : vector<1x32x8xbf16> to vector<32x8xbf16>
    %cst_105 = arith.constant dense<0.000000e+00> : vector<8x8xf32>
    %156 = tpu.matmul %1, %155, %cst_105 {dimension_numbers = #tpu.dot_dimension_numbers<[1], [0], [0], [1], [0, 0, 1, 1], [], []>} : vector<8x32xbf16>, vector<32x8xbf16>, vector<8x8xf32> -> vector<8x8xf32>
    %c3_106 = arith.constant 3 : index
    %c0_107 = arith.constant 0 : index
    %c0_108 = arith.constant 0 : index
    %157 = vector.load %arg7[%c3_106, %c0_107, %c0_108] : memref<4x1x8xf32, #tpu.memory_space<vmem>>, vector<1x1x8xf32>
    %158 = vector.shape_cast %157 : vector<1x1x8xf32> to vector<1x8xf32>
    %159 = vector.broadcast %158 : vector<1x8xf32> to vector<8x8xf32>
    %160 = arith.addf %156, %159 : vector<8x8xf32>
    %c3_109 = arith.constant 3 : index
    %c0_110 = arith.constant 0 : index
    %c0_111 = arith.constant 0 : index
    %161 = vector.load %arg8[%c3_109, %c0_110, %c0_111] : memref<4x32x8xbf16, #tpu.memory_space<vmem>>, vector<1x32x8xbf16>
    %162 = vector.shape_cast %161 : vector<1x32x8xbf16> to vector<32x8xbf16>
    %cst_112 = arith.constant dense<0.000000e+00> : vector<8x8xf32>
    %163 = tpu.matmul %1, %162, %cst_112 {dimension_numbers = #tpu.dot_dimension_numbers<[1], [0], [0], [1], [0, 0, 1, 1], [], []>} : vector<8x32xbf16>, vector<32x8xbf16>, vector<8x8xf32> -> vector<8x8xf32>
    %c3_113 = arith.constant 3 : index
    %c0_114 = arith.constant 0 : index
    %c0_115 = arith.constant 0 : index
    %164 = vector.load %arg9[%c3_113, %c0_114, %c0_115] : memref<4x1x8xf32, #tpu.memory_space<vmem>>, vector<1x1x8xf32>
    %165 = vector.shape_cast %164 : vector<1x1x8xf32> to vector<1x8xf32>
    %166 = vector.broadcast %165 : vector<1x8xf32> to vector<8x8xf32>
    %167 = arith.addf %163, %166 : vector<8x8xf32>
    %168 = arith.truncf %153 : vector<8x8xf32> to vector<8x8xbf16>
    %169 = arith.truncf %160 : vector<8x8xf32> to vector<8x8xbf16>
    %cst_116 = arith.constant dense<0.000000e+00> : vector<8x8xf32>
    %170 = tpu.matmul %168, %169, %cst_116 {dimension_numbers = #tpu.dot_dimension_numbers<[1], [1], [0], [0], [0, 0, 1, 0], [], []>} : vector<8x8xbf16>, vector<8x8xbf16>, vector<8x8xf32> -> vector<8x8xf32>
    %171 = vector.broadcast %4 : vector<1x8xf32> to vector<8x8xf32>
    %172 = arith.addf %170, %171 : vector<8x8xf32>
    %cst_117 = arith.constant dense<0xFF800000> : vector<8xf32>
    %173 = vector.multi_reduction <maximumf>, %172, %cst_117 [1] : vector<8x8xf32> to vector<8xf32>
    %174 = vector.shape_cast %173 : vector<8xf32> to vector<8x1xf32>
    %175 = vector.broadcast %174 : vector<8x1xf32> to vector<8x8xf32>
    %176 = arith.subf %172, %175 : vector<8x8xf32>
    %177 = math.exp %176 : vector<8x8xf32>
    %cst_118 = arith.constant dense<0.000000e+00> : vector<8xf32>
    %178 = vector.multi_reduction <add>, %177, %cst_118 [1] : vector<8x8xf32> to vector<8xf32>
    %179 = vector.shape_cast %178 : vector<8xf32> to vector<8x1xf32>
    %180 = tpu.reciprocal %179 {approx = true} : vector<8x1xf32> -> vector<8x1xf32>
    %181 = vector.broadcast %180 : vector<8x1xf32> to vector<8x8xf32>
    %182 = arith.mulf %177, %181 : vector<8x8xf32>
    %183 = arith.truncf %182 : vector<8x8xf32> to vector<8x8xbf16>
    %184 = arith.truncf %167 : vector<8x8xf32> to vector<8x8xbf16>
    %cst_119 = arith.constant dense<0.000000e+00> : vector<8x8xf32>
    %185 = tpu.matmul %183, %184, %cst_119 {dimension_numbers = #tpu.dot_dimension_numbers<[1], [0], [0], [1], [0, 0, 1, 1], [], []>} : vector<8x8xbf16>, vector<8x8xbf16>, vector<8x8xf32> -> vector<8x8xf32>
    %186 = arith.truncf %185 : vector<8x8xf32> to vector<8x8xbf16>
    %c3_120 = arith.constant 3 : index
    %c0_121 = arith.constant 0 : index
    %c0_122 = arith.constant 0 : index
    %187 = vector.load %arg10[%c3_120, %c0_121, %c0_122] : memref<4x8x32xbf16, #tpu.memory_space<vmem>>, vector<1x8x32xbf16>
    %188 = vector.shape_cast %187 : vector<1x8x32xbf16> to vector<8x32xbf16>
    %cst_123 = arith.constant dense<0.000000e+00> : vector<8x32xf32>
    %189 = tpu.matmul %186, %188, %cst_123 {dimension_numbers = #tpu.dot_dimension_numbers<[1], [0], [0], [1], [0, 0, 1, 1], [], []>} : vector<8x8xbf16>, vector<8x32xbf16>, vector<8x32xf32> -> vector<8x32xf32>
    %190 = arith.addf %144, %189 : vector<8x32xf32>
    %c0_124 = arith.constant 0 : index
    %c0_125 = arith.constant 0 : index
    %191 = vector.load %arg11[%c0_124, %c0_125] : memref<1x32xf32, #tpu.memory_space<vmem>>, vector<1x32xf32>
    %192 = vector.broadcast %191 : vector<1x32xf32> to vector<8x32xf32>
    %193 = arith.addf %190, %192 : vector<8x32xf32>
    %194 = arith.addf %193, %2 : vector<8x32xf32>
    %cst_126 = arith.constant dense<0.000000e+00> : vector<8xf32>
    %195 = vector.multi_reduction <add>, %194, %cst_126 [1] : vector<8x32xf32> to vector<8xf32>
    %196 = vector.shape_cast %195 : vector<8xf32> to vector<8x1xf32>
    %cst_127 = arith.constant 3.200000e+01 : f32
    %197 = vector.broadcast %cst_127 : f32 to vector<8x1xf32>
    %198 = arith.divf %196, %197 : vector<8x1xf32>
    %199 = vector.broadcast %198 : vector<8x1xf32> to vector<8x32xf32>
    %200 = arith.subf %194, %199 : vector<8x32xf32>
    %201 = arith.mulf %200, %200 : vector<8x32xf32>
    %cst_128 = arith.constant dense<0.000000e+00> : vector<8xf32>
    %202 = vector.multi_reduction <add>, %201, %cst_128 [1] : vector<8x32xf32> to vector<8xf32>
    %203 = vector.shape_cast %202 : vector<8xf32> to vector<8x1xf32>
    %cst_129 = arith.constant 3.200000e+01 : f32
    %204 = vector.broadcast %cst_129 : f32 to vector<8x1xf32>
    %205 = arith.divf %203, %204 : vector<8x1xf32>
    %206 = vector.broadcast %198 : vector<8x1xf32> to vector<8x32xf32>
    %207 = arith.subf %194, %206 : vector<8x32xf32>
    %cst_130 = arith.constant 9.99999974E-6 : f32
    %208 = vector.broadcast %cst_130 : f32 to vector<8x1xf32>
    %209 = arith.addf %205, %208 : vector<8x1xf32>
    %210 = math.rsqrt %209 : vector<8x1xf32>
    %211 = vector.broadcast %210 : vector<8x1xf32> to vector<8x32xf32>
    %212 = arith.mulf %207, %211 : vector<8x32xf32>
    %c0_131 = arith.constant 0 : index
    %c0_132 = arith.constant 0 : index
    %213 = vector.load %arg12[%c0_131, %c0_132] : memref<1x32xf32, #tpu.memory_space<vmem>>, vector<1x32xf32>
    %214 = vector.broadcast %213 : vector<1x32xf32> to vector<8x32xf32>
    %215 = arith.mulf %212, %214 : vector<8x32xf32>
    %c0_133 = arith.constant 0 : index
    %c0_134 = arith.constant 0 : index
    %216 = vector.load %arg13[%c0_133, %c0_134] : memref<1x32xf32, #tpu.memory_space<vmem>>, vector<1x32xf32>
    %217 = vector.broadcast %216 : vector<1x32xf32> to vector<8x32xf32>
    %218 = arith.addf %215, %217 : vector<8x32xf32>
    %219 = vector.broadcast %6 : vector<8x1xf32> to vector<8x32xf32>
    %220 = arith.mulf %218, %219 : vector<8x32xf32>
    %221 = arith.truncf %220 : vector<8x32xf32> to vector<8x32xbf16>
    %c0_135 = arith.constant 0 : index
    %c0_136 = arith.constant 0 : index
    %222 = vector.load %arg14[%c0_135, %c0_136] : memref<32x64xbf16, #tpu.memory_space<vmem>>, vector<32x64xbf16>
    %cst_137 = arith.constant dense<0.000000e+00> : vector<8x64xf32>
    %223 = tpu.matmul %221, %222, %cst_137 {dimension_numbers = #tpu.dot_dimension_numbers<[1], [0], [0], [1], [0, 0, 1, 1], [], []>} : vector<8x32xbf16>, vector<32x64xbf16>, vector<8x64xf32> -> vector<8x64xf32>
    %c0_138 = arith.constant 0 : index
    %c0_139 = arith.constant 0 : index
    %224 = vector.load %arg15[%c0_138, %c0_139] : memref<1x64xf32, #tpu.memory_space<vmem>>, vector<1x64xf32>
    %225 = vector.broadcast %224 : vector<1x64xf32> to vector<8x64xf32>
    %226 = arith.addf %223, %225 : vector<8x64xf32>
    %cst_140 = arith.constant 0.000000e+00 : f32
    %227 = vector.broadcast %cst_140 : f32 to vector<8x64xf32>
    %228 = arith.maximumf %226, %227 : vector<8x64xf32>
    %229 = arith.truncf %228 : vector<8x64xf32> to vector<8x64xbf16>
    %c0_141 = arith.constant 0 : index
    %c0_142 = arith.constant 0 : index
    %230 = vector.load %arg16[%c0_141, %c0_142] : memref<64x32xbf16, #tpu.memory_space<vmem>>, vector<64x32xbf16>
    %cst_143 = arith.constant dense<0.000000e+00> : vector<8x32xf32>
    %231 = tpu.matmul %229, %230, %cst_143 {dimension_numbers = #tpu.dot_dimension_numbers<[1], [0], [0], [1], [0, 0, 1, 1], [], []>} : vector<8x64xbf16>, vector<64x32xbf16>, vector<8x32xf32> -> vector<8x32xf32>
    %c0_144 = arith.constant 0 : index
    %c0_145 = arith.constant 0 : index
    %232 = vector.load %arg17[%c0_144, %c0_145] : memref<1x32xf32, #tpu.memory_space<vmem>>, vector<1x32xf32>
    %233 = vector.broadcast %232 : vector<1x32xf32> to vector<8x32xf32>
    %234 = arith.addf %231, %233 : vector<8x32xf32>
    %235 = arith.addf %234, %220 : vector<8x32xf32>
    %cst_146 = arith.constant dense<0.000000e+00> : vector<8xf32>
    %236 = vector.multi_reduction <add>, %235, %cst_146 [1] : vector<8x32xf32> to vector<8xf32>
    %237 = vector.shape_cast %236 : vector<8xf32> to vector<8x1xf32>
    %cst_147 = arith.constant 3.200000e+01 : f32
    %238 = vector.broadcast %cst_147 : f32 to vector<8x1xf32>
    %239 = arith.divf %237, %238 : vector<8x1xf32>
    %240 = vector.broadcast %239 : vector<8x1xf32> to vector<8x32xf32>
    %241 = arith.subf %235, %240 : vector<8x32xf32>
    %242 = arith.mulf %241, %241 : vector<8x32xf32>
    %cst_148 = arith.constant dense<0.000000e+00> : vector<8xf32>
    %243 = vector.multi_reduction <add>, %242, %cst_148 [1] : vector<8x32xf32> to vector<8xf32>
    %244 = vector.shape_cast %243 : vector<8xf32> to vector<8x1xf32>
    %cst_149 = arith.constant 3.200000e+01 : f32
    %245 = vector.broadcast %cst_149 : f32 to vector<8x1xf32>
    %246 = arith.divf %244, %245 : vector<8x1xf32>
    %247 = vector.broadcast %239 : vector<8x1xf32> to vector<8x32xf32>
    %248 = arith.subf %235, %247 : vector<8x32xf32>
    %cst_150 = arith.constant 9.99999974E-6 : f32
    %249 = vector.broadcast %cst_150 : f32 to vector<8x1xf32>
    %250 = arith.addf %246, %249 : vector<8x1xf32>
    %251 = math.rsqrt %250 : vector<8x1xf32>
    %252 = vector.broadcast %251 : vector<8x1xf32> to vector<8x32xf32>
    %253 = arith.mulf %248, %252 : vector<8x32xf32>
    %c0_151 = arith.constant 0 : index
    %c0_152 = arith.constant 0 : index
    %254 = vector.load %arg18[%c0_151, %c0_152] : memref<1x32xf32, #tpu.memory_space<vmem>>, vector<1x32xf32>
    %255 = vector.broadcast %254 : vector<1x32xf32> to vector<8x32xf32>
    %256 = arith.mulf %253, %255 : vector<8x32xf32>
    %c0_153 = arith.constant 0 : index
    %c0_154 = arith.constant 0 : index
    %257 = vector.load %arg19[%c0_153, %c0_154] : memref<1x32xf32, #tpu.memory_space<vmem>>, vector<1x32xf32>
    %258 = vector.broadcast %257 : vector<1x32xf32> to vector<8x32xf32>
    %259 = arith.addf %256, %258 : vector<8x32xf32>
    %260 = vector.broadcast %6 : vector<8x1xf32> to vector<8x32xf32>
    %261 = arith.mulf %259, %260 : vector<8x32xf32>
    %262 = arith.truncf %261 : vector<8x32xf32> to vector<8x32xbf16>
    %c0_155 = arith.constant 0 : index
    %c0_156 = arith.constant 0 : index
    %c0_157 = arith.constant 0 : index
    %263 = vector.load %arg20[%c0_155, %c0_156, %c0_157] : memref<1x8x32xbf16, #tpu.memory_space<vmem>>, vector<1x8x32xbf16>
    %264 = vector.shape_cast %263 : vector<1x8x32xbf16> to vector<8x32xbf16>
    %265 = vector.shape_cast %262 : vector<8x32xbf16> to vector<1x8x32xbf16>
    tpu.vector_store %arg20[%c0_155, %c0_156, %c0_157], %265 {strides = array<i32>} : memref<1x8x32xbf16, #tpu.memory_space<vmem>>, vector<1x8x32xbf16>,
    return
  }
  func.func @transform_0(%arg0: i32) -> (i32, i32, i32) {
    %c0_i32 = arith.constant 0 : i32
    %c0_i32_0 = arith.constant 0 : i32
    %c0_i32_1 = arith.constant 0 : i32
    return %arg0, %c0_i32, %c0_i32_0 : i32, i32, i32
  }
  func.func @transform_1(%arg0: i32) -> (i32, i32, i32) {
    %c0_i32 = arith.constant 0 : i32
    %c0_i32_0 = arith.constant 0 : i32
    %c0_i32_1 = arith.constant 0 : i32
    return %arg0, %c0_i32, %c0_i32_0 : i32, i32, i32
  }
  func.func @transform_2(%arg0: i32) -> (i32, i32, i32) {
    %c0_i32 = arith.constant 0 : i32
    %c0_i32_0 = arith.constant 0 : i32
    %c0_i32_1 = arith.constant 0 : i32
    return %arg0, %c0_i32, %c0_i32_0 : i32, i32, i32
  }
  func.func @transform_3(%arg0: i32) -> (i32, i32, i32) {
    %c0_i32 = arith.constant 0 : i32
    %c0_i32_0 = arith.constant 0 : i32
    %c0_i32_1 = arith.constant 0 : i32
    %c0_i32_2 = arith.constant 0 : i32
    return %c0_i32, %c0_i32_0, %c0_i32_1 : i32, i32, i32
  }
  func.func @transform_4(%arg0: i32) -> (i32, i32, i32) {
    %c0_i32 = arith.constant 0 : i32
    %c0_i32_0 = arith.constant 0 : i32
    %c0_i32_1 = arith.constant 0 : i32
    %c0_i32_2 = arith.constant 0 : i32
    return %c0_i32, %c0_i32_0, %c0_i32_1 : i32, i32, i32
  }
  func.func @transform_5(%arg0: i32) -> (i32, i32, i32) {
    %c0_i32 = arith.constant 0 : i32
    %c0_i32_0 = arith.constant 0 : i32
    %c0_i32_1 = arith.constant 0 : i32
    %c0_i32_2 = arith.constant 0 : i32
    return %c0_i32, %c0_i32_0, %c0_i32_1 : i32, i32, i32
  }
  func.func @transform_6(%arg0: i32) -> (i32, i32, i32) {
    %c0_i32 = arith.constant 0 : i32
    %c0_i32_0 = arith.constant 0 : i32
    %c0_i32_1 = arith.constant 0 : i32
    %c0_i32_2 = arith.constant 0 : i32
    return %c0_i32, %c0_i32_0, %c0_i32_1 : i32, i32, i32
  }
  func.func @transform_7(%arg0: i32) -> (i32, i32, i32) {
    %c0_i32 = arith.constant 0 : i32
    %c0_i32_0 = arith.constant 0 : i32
    %c0_i32_1 = arith.constant 0 : i32
    %c0_i32_2 = arith.constant 0 : i32
    return %c0_i32, %c0_i32_0, %c0_i32_1 : i32, i32, i32
  }
  func.func @transform_8(%arg0: i32) -> (i32, i32, i32) {
    %c0_i32 = arith.constant 0 : i32
    %c0_i32_0 = arith.constant 0 : i32
    %c0_i32_1 = arith.constant 0 : i32
    %c0_i32_2 = arith.constant 0 : i32
    return %c0_i32, %c0_i32_0, %c0_i32_1 : i32, i32, i32
  }
  func.func @transform_9(%arg0: i32) -> (i32, i32, i32) {
    %c0_i32 = arith.constant 0 : i32
    %c0_i32_0 = arith.constant 0 : i32
    %c0_i32_1 = arith.constant 0 : i32
    %c0_i32_2 = arith.constant 0 : i32
    return %c0_i32, %c0_i32_0, %c0_i32_1 : i32, i32, i32
  }
  func.func @transform_10(%arg0: i32) -> (i32, i32) {
    %c0_i32 = arith.constant 0 : i32
    %c0_i32_0 = arith.constant 0 : i32
    %c0_i32_1 = arith.constant 0 : i32
    return %c0_i32, %c0_i32_0 : i32, i32
  }
  func.func @transform_11(%arg0: i32) -> (i32, i32) {
    %c0_i32 = arith.constant 0 : i32
    %c0_i32_0 = arith.constant 0 : i32
    %c0_i32_1 = arith.constant 0 : i32
    return %c0_i32, %c0_i32_0 : i32, i32
  }
  func.func @transform_12(%arg0: i32) -> (i32, i32) {
    %c0_i32 = arith.constant 0 : i32
    %c0_i32_0 = arith.constant 0 : i32
    %c0_i32_1 = arith.constant 0 : i32
    return %c0_i32, %c0_i32_0 : i32, i32
  }
  func.func @transform_13(%arg0: i32) -> (i32, i32) {
    %c0_i32 = arith.constant 0 : i32
    %c0_i32_0 = arith.constant 0 : i32
    %c0_i32_1 = arith.constant 0 : i32
    return %c0_i32, %c0_i32_0 : i32, i32
  }
  func.func @transform_14(%arg0: i32) -> (i32, i32) {
    %c0_i32 = arith.constant 0 : i32
    %c0_i32_0 = arith.constant 0 : i32
    %c0_i32_1 = arith.constant 0 : i32
    return %c0_i32, %c0_i32_0 : i32, i32
  }
  func.func @transform_15(%arg0: i32) -> (i32, i32) {
    %c0_i32 = arith.constant 0 : i32
    %c0_i32_0 = arith.constant 0 : i32
    %c0_i32_1 = arith.constant 0 : i32
    return %c0_i32, %c0_i32_0 : i32, i32
  }
  func.func @transform_16(%arg0: i32) -> (i32, i32) {
    %c0_i32 = arith.constant 0 : i32
    %c0_i32_0 = arith.constant 0 : i32
    %c0_i32_1 = arith.constant 0 : i32
    return %c0_i32, %c0_i32_0 : i32, i32
  }
  func.func @transform_17(%arg0: i32) -> (i32, i32) {
    %c0_i32 = arith.constant 0 : i32
    %c0_i32_0 = arith.constant 0 : i32
    %c0_i32_1 = arith.constant 0 : i32
    return %c0_i32, %c0_i32_0 : i32, i32
  }
  func.func @transform_18(%arg0: i32) -> (i32, i32) {
    %c0_i32 = arith.constant 0 : i32
    %c0_i32_0 = arith.constant 0 : i32
    %c0_i32_1 = arith.constant 0 : i32
    return %c0_i32, %c0_i32_0 : i32, i32
  }
  func.func @transform_19(%arg0: i32) -> (i32, i32, i32) {
    %c0_i32 = arith.constant 0 : i32
    %c0_i32_0 = arith.constant 0 : i32
    %c0_i32_1 = arith.constant 0 : i32
    return %arg0, %c0_i32, %c0_i32_0 : i32, i32, i32
  }
}

module attributes {stable_mosaic.version = 11 : i64} {
  func.func @_vocab_proj_kernel(%arg0: i32, %arg1: i32, %arg2: memref<14x32xbf16, #tpu.memory_space<vmem>>, %arg3: memref<32x48xbf16, #tpu.memory_space<vmem>>, %arg4: memref<14x48xf32, #tpu.memory_space<vmem>>) attributes {dimension_semantics = [#tpu.dimension_semantics<parallel>, #tpu.dimension_semantics<parallel>], iteration_bounds = array<i64: 1, 1>, scalar_prefetch = 0 : i64, scratch_operands = 0 : i64, tpu.core_type = #tpu.core_type<tc>, window_params = [{transform_indices = @transform_0, window_bounds = array<i64: 14, 32>}, {transform_indices = @transform_1, window_bounds = array<i64: 32, 48>}, {transform_indices = @transform_2, window_bounds = array<i64: 14, 48>}]} {
    %c0 = arith.constant 0 : index
    %c0_0 = arith.constant 0 : index
    %0 = vector.load %arg2[%c0, %c0_0] : memref<14x32xbf16, #tpu.memory_space<vmem>>, vector<14x32xbf16>
    %c0_1 = arith.constant 0 : index
    %c0_2 = arith.constant 0 : index
    %1 = vector.load %arg3[%c0_1, %c0_2] : memref<32x48xbf16, #tpu.memory_space<vmem>>, vector<32x48xbf16>
    %cst = arith.constant dense<0.000000e+00> : vector<14x48xf32>
    %2 = tpu.matmul %0, %1, %cst {dimension_numbers = #tpu.dot_dimension_numbers<[1], [0], [0], [1], [0, 0, 1, 1], [], []>} : vector<14x32xbf16>, vector<32x48xbf16>, vector<14x48xf32> -> vector<14x48xf32>
    %cst_3 = arith.constant 0.176776692 : f32
    %3 = vector.broadcast %cst_3 : f32 to vector<14x48xf32>
    %4 = arith.mulf %2, %3 : vector<14x48xf32>
    %c0_4 = arith.constant 0 : index
    %c0_5 = arith.constant 0 : index
    %5 = vector.load %arg4[%c0_4, %c0_5] : memref<14x48xf32, #tpu.memory_space<vmem>>, vector<14x48xf32>
    tpu.vector_store %arg4[%c0_4, %c0_5], %4 {strides = array<i32>} : memref<14x48xf32, #tpu.memory_space<vmem>>, vector<14x48xf32>,
    return
  }
  func.func @transform_0(%arg0: i32, %arg1: i32) -> (i32, i32) {
    %c0_i32 = arith.constant 0 : i32
    %c0_i32_0 = arith.constant 0 : i32
    return %arg0, %c0_i32 : i32, i32
  }
  func.func @transform_1(%arg0: i32, %arg1: i32) -> (i32, i32) {
    %c0_i32 = arith.constant 0 : i32
    %c0_i32_0 = arith.constant 0 : i32
    return %c0_i32, %arg1 : i32, i32
  }
  func.func @transform_2(%arg0: i32, %arg1: i32) -> (i32, i32) {
    %c0_i32 = arith.constant 0 : i32
    return %arg0, %arg1 : i32, i32
  }
}

module attributes {stable_mosaic.version = 11 : i64} {
  func.func @_dec_layer_kernel(%arg0: i32, %arg1: memref<1x7x32xbf16, #tpu.memory_space<vmem>>, %arg2: memref<1x8x32xbf16, #tpu.memory_space<vmem>>, %arg3: memref<1x1x7xf32, #tpu.memory_space<vmem>>, %arg4: memref<1x1x8xf32, #tpu.memory_space<vmem>>, %arg5: memref<1x7x1xf32, #tpu.memory_space<vmem>>, %arg6: memref<4x32x8xbf16, #tpu.memory_space<vmem>>, %arg7: memref<4x1x8xf32, #tpu.memory_space<vmem>>, %arg8: memref<4x32x8xbf16, #tpu.memory_space<vmem>>, %arg9: memref<4x1x8xf32, #tpu.memory_space<vmem>>, %arg10: memref<4x32x8xbf16, #tpu.memory_space<vmem>>, %arg11: memref<4x1x8xf32, #tpu.memory_space<vmem>>, %arg12: memref<4x8x32xbf16, #tpu.memory_space<vmem>>, %arg13: memref<1x32xf32, #tpu.memory_space<vmem>>, %arg14: memref<1x32xf32, #tpu.memory_space<vmem>>, %arg15: memref<1x32xf32, #tpu.memory_space<vmem>>, %arg16: memref<4x32x8xbf16, #tpu.memory_space<vmem>>, %arg17: memref<4x1x8xf32, #tpu.memory_space<vmem>>, %arg18: memref<4x32x8xbf16, #tpu.memory_space<vmem>>, %arg19: memref<4x1x8xf32, #tpu.memory_space<vmem>>, %arg20: memref<4x32x8xbf16, #tpu.memory_space<vmem>>, %arg21: memref<4x1x8xf32, #tpu.memory_space<vmem>>, %arg22: memref<4x8x32xbf16, #tpu.memory_space<vmem>>, %arg23: memref<1x32xf32, #tpu.memory_space<vmem>>, %arg24: memref<1x32xf32, #tpu.memory_space<vmem>>, %arg25: memref<1x32xf32, #tpu.memory_space<vmem>>, %arg26: memref<32x64xbf16, #tpu.memory_space<vmem>>, %arg27: memref<1x64xf32, #tpu.memory_space<vmem>>, %arg28: memref<64x32xbf16, #tpu.memory_space<vmem>>, %arg29: memref<1x32xf32, #tpu.memory_space<vmem>>, %arg30: memref<1x32xf32, #tpu.memory_space<vmem>>, %arg31: memref<1x32xf32, #tpu.memory_space<vmem>>, %arg32: memref<1x7x32xbf16, #tpu.memory_space<vmem>>) attributes {dimension_semantics = [#tpu.dimension_semantics<parallel>], iteration_bounds = array<i64: 2>, scalar_prefetch = 0 : i64, scratch_operands = 0 : i64, tpu.core_type = #tpu.core_type<tc>, window_params = [{transform_indices = @transform_0, window_bounds = array<i64: 1, 7, 32>}, {transform_indices = @transform_1, window_bounds = array<i64: 1, 8, 32>}, {transform_indices = @transform_2, window_bounds = array<i64: 1, 1, 7>}, {transform_indices = @transform_3, window_bounds = array<i64: 1, 1, 8>}, {transform_indices = @transform_4, window_bounds = array<i64: 1, 7, 1>}, {pipeline_mode = #tpu.pipeline_mode<synchronous>, transform_indices = @transform_5, window_bounds = array<i64: 4, 32, 8>}, {pipeline_mode = #tpu.pipeline_mode<synchronous>, transform_indices = @transform_6, window_bounds = array<i64: 4, 1, 8>}, {pipeline_mode = #tpu.pipeline_mode<synchronous>, transform_indices = @transform_7, window_bounds = array<i64: 4, 32, 8>}, {pipeline_mode = #tpu.pipeline_mode<synchronous>, transform_indices = @transform_8, window_bounds = array<i64: 4, 1, 8>}, {pipeline_mode = #tpu.pipeline_mode<synchronous>, transform_indices = @transform_9, window_bounds = array<i64: 4, 32, 8>}, {pipeline_mode = #tpu.pipeline_mode<synchronous>, transform_indices = @transform_10, window_bounds = array<i64: 4, 1, 8>}, {pipeline_mode = #tpu.pipeline_mode<synchronous>, transform_indices = @transform_11, window_bounds = array<i64: 4, 8, 32>}, {pipeline_mode = #tpu.pipeline_mode<synchronous>, transform_indices = @transform_12, window_bounds = array<i64: 1, 32>}, {pipeline_mode = #tpu.pipeline_mode<synchronous>, transform_indices = @transform_13, window_bounds = array<i64: 1, 32>}, {pipeline_mode = #tpu.pipeline_mode<synchronous>, transform_indices = @transform_14, window_bounds = array<i64: 1, 32>}, {pipeline_mode = #tpu.pipeline_mode<synchronous>, transform_indices = @transform_15, window_bounds = array<i64: 4, 32, 8>}, {pipeline_mode = #tpu.pipeline_mode<synchronous>, transform_indices = @transform_16, window_bounds = array<i64: 4, 1, 8>}, {pipeline_mode = #tpu.pipeline_mode<synchronous>, transform_indices = @transform_17, window_bounds = array<i64: 4, 32, 8>}, {pipeline_mode = #tpu.pipeline_mode<synchronous>, transform_indices = @transform_18, window_bounds = array<i64: 4, 1, 8>}, {pipeline_mode = #tpu.pipeline_mode<synchronous>, transform_indices = @transform_19, window_bounds = array<i64: 4, 32, 8>}, {pipeline_mode = #tpu.pipeline_mode<synchronous>, transform_indices = @transform_20, window_bounds = array<i64: 4, 1, 8>}, {pipeline_mode = #tpu.pipeline_mode<synchronous>, transform_indices = @transform_21, window_bounds = array<i64: 4, 8, 32>}, {pipeline_mode = #tpu.pipeline_mode<synchronous>, transform_indices = @transform_22, window_bounds = array<i64: 1, 32>}, {pipeline_mode = #tpu.pipeline_mode<synchronous>, transform_indices = @transform_23, window_bounds = array<i64: 1, 32>}, {pipeline_mode = #tpu.pipeline_mode<synchronous>, transform_indices = @transform_24, window_bounds = array<i64: 1, 32>}, {pipeline_mode = #tpu.pipeline_mode<synchronous>, transform_indices = @transform_25, window_bounds = array<i64: 32, 64>}, {pipeline_mode = #tpu.pipeline_mode<synchronous>, transform_indices = @transform_26, window_bounds = array<i64: 1, 64>}, {pipeline_mode = #tpu.pipeline_mode<synchronous>, transform_indices = @transform_27, window_bounds = array<i64: 64, 32>}, {pipeline_mode = #tpu.pipeline_mode<synchronous>, transform_indices = @transform_28, window_bounds = array<i64: 1, 32>}, {pipeline_mode = #tpu.pipeline_mode<synchronous>, transform_indices = @transform_29, window_bounds = array<i64: 1, 32>}, {pipeline_mode = #tpu.pipeline_mode<synchronous>, transform_indices = @transform_30, window_bounds = array<i64: 1, 32>}, {transform_indices = @transform_31, window_bounds = array<i64: 1, 7, 32>}]} {
    %c0 = arith.constant 0 : index
    %c0_0 = arith.constant 0 : index
    %c0_1 = arith.constant 0 : index
    %0 = vector.load %arg1[%c0, %c0_0, %c0_1] : memref<1x7x32xbf16, #tpu.memory_space<vmem>>, vector<1x7x32xbf16>
    %1 = vector.shape_cast %0 : vector<1x7x32xbf16> to vector<7x32xbf16>
    %2 = arith.extf %1 : vector<7x32xbf16> to vector<7x32xf32>
    %c0_2 = arith.constant 0 : index
    %c0_3 = arith.constant 0 : index
    %c0_4 = arith.constant 0 : index
    %3 = vector.load %arg2[%c0_2, %c0_3, %c0_4] : memref<1x8x32xbf16, #tpu.memory_space<vmem>>, vector<1x8x32xbf16>
    %4 = vector.shape_cast %3 : vector<1x8x32xbf16> to vector<8x32xbf16>
    %c0_5 = arith.constant 0 : index
    %c0_6 = arith.constant 0 : index
    %c0_7 = arith.constant 0 : index
    %5 = vector.load %arg5[%c0_5, %c0_6, %c0_7] : memref<1x7x1xf32, #tpu.memory_space<vmem>>, vector<1x7x1xf32>
    %6 = vector.shape_cast %5 : vector<1x7x1xf32> to vector<7x1xf32>
    %7 = tpu.iota {dimensions = array<i32: 0>} : vector<7x7xi32>
    %8 = tpu.iota {dimensions = array<i32: 1>} : vector<7x7xi32>
    %9 = arith.cmpi sgt, %8, %7 : vector<7x7xi32>
    %cst = arith.constant -1.000000e+09 : f32
    %cst_8 = arith.constant 0.000000e+00 : f32
    %10 = vector.broadcast %cst : f32 to vector<7x7xf32>
    %11 = vector.broadcast %cst_8 : f32 to vector<7x7xf32>
    %12 = arith.select %9, %10, %11 : vector<7x7xi1>, vector<7x7xf32>
    %c0_9 = arith.constant 0 : index
    %c0_10 = arith.constant 0 : index
    %c0_11 = arith.constant 0 : index
    %13 = vector.load %arg3[%c0_9, %c0_10, %c0_11] : memref<1x1x7xf32, #tpu.memory_space<vmem>>, vector<1x1x7xf32>
    %14 = vector.shape_cast %13 : vector<1x1x7xf32> to vector<1x7xf32>
    %15 = vector.broadcast %14 : vector<1x7xf32> to vector<7x7xf32>
    %16 = arith.addf %12, %15 : vector<7x7xf32>
    %17 = arith.truncf %2 : vector<7x32xf32> to vector<7x32xbf16>
    %c0_12 = arith.constant 0 : index
    %c0_13 = arith.constant 0 : index
    %c0_14 = arith.constant 0 : index
    %18 = vector.load %arg6[%c0_12, %c0_13, %c0_14] : memref<4x32x8xbf16, #tpu.memory_space<vmem>>, vector<1x32x8xbf16>
    %19 = vector.shape_cast %18 : vector<1x32x8xbf16> to vector<32x8xbf16>
    %cst_15 = arith.constant dense<0.000000e+00> : vector<7x8xf32>
    %20 = tpu.matmul %17, %19, %cst_15 {dimension_numbers = #tpu.dot_dimension_numbers<[1], [0], [0], [1], [0, 0, 1, 1], [], []>} : vector<7x32xbf16>, vector<32x8xbf16>, vector<7x8xf32> -> vector<7x8xf32>
    %c0_16 = arith.constant 0 : index
    %c0_17 = arith.constant 0 : index
    %c0_18 = arith.constant 0 : index
    %21 = vector.load %arg7[%c0_16, %c0_17, %c0_18] : memref<4x1x8xf32, #tpu.memory_space<vmem>>, vector<1x1x8xf32>
    %22 = vector.shape_cast %21 : vector<1x1x8xf32> to vector<1x8xf32>
    %23 = vector.broadcast %22 : vector<1x8xf32> to vector<7x8xf32>
    %24 = arith.addf %20, %23 : vector<7x8xf32>
    %cst_19 = arith.constant 0.353553385 : f32
    %25 = vector.broadcast %cst_19 : f32 to vector<7x8xf32>
    %26 = arith.mulf %24, %25 : vector<7x8xf32>
    %c0_20 = arith.constant 0 : index
    %c0_21 = arith.constant 0 : index
    %c0_22 = arith.constant 0 : index
    %27 = vector.load %arg8[%c0_20, %c0_21, %c0_22] : memref<4x32x8xbf16, #tpu.memory_space<vmem>>, vector<1x32x8xbf16>
    %28 = vector.shape_cast %27 : vector<1x32x8xbf16> to vector<32x8xbf16>
    %cst_23 = arith.constant dense<0.000000e+00> : vector<7x8xf32>
    %29 = tpu.matmul %1, %28, %cst_23 {dimension_numbers = #tpu.dot_dimension_numbers<[1], [0], [0], [1], [0, 0, 1, 1], [], []>} : vector<7x32xbf16>, vector<32x8xbf16>, vector<7x8xf32> -> vector<7x8xf32>
    %c0_24 = arith.constant 0 : index
    %c0_25 = arith.constant 0 : index
    %c0_26 = arith.constant 0 : index
    %30 = vector.load %arg9[%c0_24, %c0_25, %c0_26] : memref<4x1x8xf32, #tpu.memory_space<vmem>>, vector<1x1x8xf32>
    %31 = vector.shape_cast %30 : vector<1x1x8xf32> to vector<1x8xf32>
    %32 = vector.broadcast %31 : vector<1x8xf32> to vector<7x8xf32>
    %33 = arith.addf %29, %32 : vector<7x8xf32>
    %c0_27 = arith.constant 0 : index
    %c0_28 = arith.constant 0 : index
    %c0_29 = arith.constant 0 : index
    %34 = vector.load %arg10[%c0_27, %c0_28, %c0_29] : memref<4x32x8xbf16, #tpu.memory_space<vmem>>, vector<1x32x8xbf16>
    %35 = vector.shape_cast %34 : vector<1x32x8xbf16> to vector<32x8xbf16>
    %cst_30 = arith.constant dense<0.000000e+00> : vector<7x8xf32>
    %36 = tpu.matmul %1, %35, %cst_30 {dimension_numbers = #tpu.dot_dimension_numbers<[1], [0], [0], [1], [0, 0, 1, 1], [], []>} : vector<7x32xbf16>, vector<32x8xbf16>, vector<7x8xf32> -> vector<7x8xf32>
    %c0_31 = arith.constant 0 : index
    %c0_32 = arith.constant 0 : index
    %c0_33 = arith.constant 0 : index
    %37 = vector.load %arg11[%c0_31, %c0_32, %c0_33] : memref<4x1x8xf32, #tpu.memory_space<vmem>>, vector<1x1x8xf32>
    %38 = vector.shape_cast %37 : vector<1x1x8xf32> to vector<1x8xf32>
    %39 = vector.broadcast %38 : vector<1x8xf32> to vector<7x8xf32>
    %40 = arith.addf %36, %39 : vector<7x8xf32>
    %41 = arith.truncf %26 : vector<7x8xf32> to vector<7x8xbf16>
    %42 = arith.truncf %33 : vector<7x8xf32> to vector<7x8xbf16>
    %cst_34 = arith.constant dense<0.000000e+00> : vector<7x7xf32>
    %43 = tpu.matmul %41, %42, %cst_34 {dimension_numbers = #tpu.dot_dimension_numbers<[1], [1], [0], [0], [0, 0, 1, 0], [], []>} : vector<7x8xbf16>, vector<7x8xbf16>, vector<7x7xf32> -> vector<7x7xf32>
    %44 = arith.addf %43, %16 : vector<7x7xf32>
    %cst_35 = arith.constant dense<0xFF800000> : vector<7xf32>
    %45 = vector.multi_reduction <maximumf>, %44, %cst_35 [1] : vector<7x7xf32> to vector<7xf32>
    %46 = vector.shape_cast %45 : vector<7xf32> to vector<7x1xf32>
    %47 = vector.broadcast %46 : vector<7x1xf32> to vector<7x7xf32>
    %48 = arith.subf %44, %47 : vector<7x7xf32>
    %49 = math.exp %48 : vector<7x7xf32>
    %cst_36 = arith.constant dense<0.000000e+00> : vector<7xf32>
    %50 = vector.multi_reduction <add>, %49, %cst_36 [1] : vector<7x7xf32> to vector<7xf32>
    %51 = vector.shape_cast %50 : vector<7xf32> to vector<7x1xf32>
    %52 = tpu.reciprocal %51 {approx = true} : vector<7x1xf32> -> vector<7x1xf32>
    %53 = vector.broadcast %52 : vector<7x1xf32> to vector<7x7xf32>
    %54 = arith.mulf %49, %53 : vector<7x7xf32>
    %55 = arith.truncf %54 : vector<7x7xf32> to vector<7x7xbf16>
    %56 = arith.truncf %40 : vector<7x8xf32> to vector<7x8xbf16>
    %cst_37 = arith.constant dense<0.000000e+00> : vector<7x8xf32>
    %57 = tpu.matmul %55, %56, %cst_37 {dimension_numbers = #tpu.dot_dimension_numbers<[1], [0], [0], [1], [0, 0, 1, 1], [], []>} : vector<7x7xbf16>, vector<7x8xbf16>, vector<7x8xf32> -> vector<7x8xf32>
    %58 = arith.truncf %57 : vector<7x8xf32> to vector<7x8xbf16>
    %c0_38 = arith.constant 0 : index
    %c0_39 = arith.constant 0 : index
    %c0_40 = arith.constant 0 : index
    %59 = vector.load %arg12[%c0_38, %c0_39, %c0_40] : memref<4x8x32xbf16, #tpu.memory_space<vmem>>, vector<1x8x32xbf16>
    %60 = vector.shape_cast %59 : vector<1x8x32xbf16> to vector<8x32xbf16>
    %cst_41 = arith.constant dense<0.000000e+00> : vector<7x32xf32>
    %61 = tpu.matmul %58, %60, %cst_41 {dimension_numbers = #tpu.dot_dimension_numbers<[1], [0], [0], [1], [0, 0, 1, 1], [], []>} : vector<7x8xbf16>, vector<8x32xbf16>, vector<7x32xf32> -> vector<7x32xf32>
    %c1 = arith.constant 1 : index
    %c0_42 = arith.constant 0 : index
    %c0_43 = arith.constant 0 : index
    %62 = vector.load %arg6[%c1, %c0_42, %c0_43] : memref<4x32x8xbf16, #tpu.memory_space<vmem>>, vector<1x32x8xbf16>
    %63 = vector.shape_cast %62 : vector<1x32x8xbf16> to vector<32x8xbf16>
    %cst_44 = arith.constant dense<0.000000e+00> : vector<7x8xf32>
    %64 = tpu.matmul %17, %63, %cst_44 {dimension_numbers = #tpu.dot_dimension_numbers<[1], [0], [0], [1], [0, 0, 1, 1], [], []>} : vector<7x32xbf16>, vector<32x8xbf16>, vector<7x8xf32> -> vector<7x8xf32>
    %c1_45 = arith.constant 1 : index
    %c0_46 = arith.constant 0 : index
    %c0_47 = arith.constant 0 : index
    %65 = vector.load %arg7[%c1_45, %c0_46, %c0_47] : memref<4x1x8xf32, #tpu.memory_space<vmem>>, vector<1x1x8xf32>
    %66 = vector.shape_cast %65 : vector<1x1x8xf32> to vector<1x8xf32>
    %67 = vector.broadcast %66 : vector<1x8xf32> to vector<7x8xf32>
    %68 = arith.addf %64, %67 : vector<7x8xf32>
    %cst_48 = arith.constant 0.353553385 : f32
    %69 = vector.broadcast %cst_48 : f32 to vector<7x8xf32>
    %70 = arith.mulf %68, %69 : vector<7x8xf32>
    %c1_49 = arith.constant 1 : index
    %c0_50 = arith.constant 0 : index
    %c0_51 = arith.constant 0 : index
    %71 = vector.load %arg8[%c1_49, %c0_50, %c0_51] : memref<4x32x8xbf16, #tpu.memory_space<vmem>>, vector<1x32x8xbf16>
    %72 = vector.shape_cast %71 : vector<1x32x8xbf16> to vector<32x8xbf16>
    %cst_52 = arith.constant dense<0.000000e+00> : vector<7x8xf32>
    %73 = tpu.matmul %1, %72, %cst_52 {dimension_numbers = #tpu.dot_dimension_numbers<[1], [0], [0], [1], [0, 0, 1, 1], [], []>} : vector<7x32xbf16>, vector<32x8xbf16>, vector<7x8xf32> -> vector<7x8xf32>
    %c1_53 = arith.constant 1 : index
    %c0_54 = arith.constant 0 : index
    %c0_55 = arith.constant 0 : index
    %74 = vector.load %arg9[%c1_53, %c0_54, %c0_55] : memref<4x1x8xf32, #tpu.memory_space<vmem>>, vector<1x1x8xf32>
    %75 = vector.shape_cast %74 : vector<1x1x8xf32> to vector<1x8xf32>
    %76 = vector.broadcast %75 : vector<1x8xf32> to vector<7x8xf32>
    %77 = arith.addf %73, %76 : vector<7x8xf32>
    %c1_56 = arith.constant 1 : index
    %c0_57 = arith.constant 0 : index
    %c0_58 = arith.constant 0 : index
    %78 = vector.load %arg10[%c1_56, %c0_57, %c0_58] : memref<4x32x8xbf16, #tpu.memory_space<vmem>>, vector<1x32x8xbf16>
    %79 = vector.shape_cast %78 : vector<1x32x8xbf16> to vector<32x8xbf16>
    %cst_59 = arith.constant dense<0.000000e+00> : vector<7x8xf32>
    %80 = tpu.matmul %1, %79, %cst_59 {dimension_numbers = #tpu.dot_dimension_numbers<[1], [0], [0], [1], [0, 0, 1, 1], [], []>} : vector<7x32xbf16>, vector<32x8xbf16>, vector<7x8xf32> -> vector<7x8xf32>
    %c1_60 = arith.constant 1 : index
    %c0_61 = arith.constant 0 : index
    %c0_62 = arith.constant 0 : index
    %81 = vector.load %arg11[%c1_60, %c0_61, %c0_62] : memref<4x1x8xf32, #tpu.memory_space<vmem>>, vector<1x1x8xf32>
    %82 = vector.shape_cast %81 : vector<1x1x8xf32> to vector<1x8xf32>
    %83 = vector.broadcast %82 : vector<1x8xf32> to vector<7x8xf32>
    %84 = arith.addf %80, %83 : vector<7x8xf32>
    %85 = arith.truncf %70 : vector<7x8xf32> to vector<7x8xbf16>
    %86 = arith.truncf %77 : vector<7x8xf32> to vector<7x8xbf16>
    %cst_63 = arith.constant dense<0.000000e+00> : vector<7x7xf32>
    %87 = tpu.matmul %85, %86, %cst_63 {dimension_numbers = #tpu.dot_dimension_numbers<[1], [1], [0], [0], [0, 0, 1, 0], [], []>} : vector<7x8xbf16>, vector<7x8xbf16>, vector<7x7xf32> -> vector<7x7xf32>
    %88 = arith.addf %87, %16 : vector<7x7xf32>
    %cst_64 = arith.constant dense<0xFF800000> : vector<7xf32>
    %89 = vector.multi_reduction <maximumf>, %88, %cst_64 [1] : vector<7x7xf32> to vector<7xf32>
    %90 = vector.shape_cast %89 : vector<7xf32> to vector<7x1xf32>
    %91 = vector.broadcast %90 : vector<7x1xf32> to vector<7x7xf32>
    %92 = arith.subf %88, %91 : vector<7x7xf32>
    %93 = math.exp %92 : vector<7x7xf32>
    %cst_65 = arith.constant dense<0.000000e+00> : vector<7xf32>
    %94 = vector.multi_reduction <add>, %93, %cst_65 [1] : vector<7x7xf32> to vector<7xf32>
    %95 = vector.shape_cast %94 : vector<7xf32> to vector<7x1xf32>
    %96 = tpu.reciprocal %95 {approx = true} : vector<7x1xf32> -> vector<7x1xf32>
    %97 = vector.broadcast %96 : vector<7x1xf32> to vector<7x7xf32>
    %98 = arith.mulf %93, %97 : vector<7x7xf32>
    %99 = arith.truncf %98 : vector<7x7xf32> to vector<7x7xbf16>
    %100 = arith.truncf %84 : vector<7x8xf32> to vector<7x8xbf16>
    %cst_66 = arith.constant dense<0.000000e+00> : vector<7x8xf32>
    %101 = tpu.matmul %99, %100, %cst_66 {dimension_numbers = #tpu.dot_dimension_numbers<[1], [0], [0], [1], [0, 0, 1, 1], [], []>} : vector<7x7xbf16>, vector<7x8xbf16>, vector<7x8xf32> -> vector<7x8xf32>
    %102 = arith.truncf %101 : vector<7x8xf32> to vector<7x8xbf16>
    %c1_67 = arith.constant 1 : index
    %c0_68 = arith.constant 0 : index
    %c0_69 = arith.constant 0 : index
    %103 = vector.load %arg12[%c1_67, %c0_68, %c0_69] : memref<4x8x32xbf16, #tpu.memory_space<vmem>>, vector<1x8x32xbf16>
    %104 = vector.shape_cast %103 : vector<1x8x32xbf16> to vector<8x32xbf16>
    %cst_70 = arith.constant dense<0.000000e+00> : vector<7x32xf32>
    %105 = tpu.matmul %102, %104, %cst_70 {dimension_numbers = #tpu.dot_dimension_numbers<[1], [0], [0], [1], [0, 0, 1, 1], [], []>} : vector<7x8xbf16>, vector<8x32xbf16>, vector<7x32xf32> -> vector<7x32xf32>
    %106 = arith.addf %61, %105 : vector<7x32xf32>
    %c2 = arith.constant 2 : index
    %c0_71 = arith.constant 0 : index
    %c0_72 = arith.constant 0 : index
    %107 = vector.load %arg6[%c2, %c0_71, %c0_72] : memref<4x32x8xbf16, #tpu.memory_space<vmem>>, vector<1x32x8xbf16>
    %108 = vector.shape_cast %107 : vector<1x32x8xbf16> to vector<32x8xbf16>
    %cst_73 = arith.constant dense<0.000000e+00> : vector<7x8xf32>
    %109 = tpu.matmul %17, %108, %cst_73 {dimension_numbers = #tpu.dot_dimension_numbers<[1], [0], [0], [1], [0, 0, 1, 1], [], []>} : vector<7x32xbf16>, vector<32x8xbf16>, vector<7x8xf32> -> vector<7x8xf32>
    %c2_74 = arith.constant 2 : index
    %c0_75 = arith.constant 0 : index
    %c0_76 = arith.constant 0 : index
    %110 = vector.load %arg7[%c2_74, %c0_75, %c0_76] : memref<4x1x8xf32, #tpu.memory_space<vmem>>, vector<1x1x8xf32>
    %111 = vector.shape_cast %110 : vector<1x1x8xf32> to vector<1x8xf32>
    %112 = vector.broadcast %111 : vector<1x8xf32> to vector<7x8xf32>
    %113 = arith.addf %109, %112 : vector<7x8xf32>
    %cst_77 = arith.constant 0.353553385 : f32
    %114 = vector.broadcast %cst_77 : f32 to vector<7x8xf32>
    %115 = arith.mulf %113, %114 : vector<7x8xf32>
    %c2_78 = arith.constant 2 : index
    %c0_79 = arith.constant 0 : index
    %c0_80 = arith.constant 0 : index
    %116 = vector.load %arg8[%c2_78, %c0_79, %c0_80] : memref<4x32x8xbf16, #tpu.memory_space<vmem>>, vector<1x32x8xbf16>
    %117 = vector.shape_cast %116 : vector<1x32x8xbf16> to vector<32x8xbf16>
    %cst_81 = arith.constant dense<0.000000e+00> : vector<7x8xf32>
    %118 = tpu.matmul %1, %117, %cst_81 {dimension_numbers = #tpu.dot_dimension_numbers<[1], [0], [0], [1], [0, 0, 1, 1], [], []>} : vector<7x32xbf16>, vector<32x8xbf16>, vector<7x8xf32> -> vector<7x8xf32>
    %c2_82 = arith.constant 2 : index
    %c0_83 = arith.constant 0 : index
    %c0_84 = arith.constant 0 : index
    %119 = vector.load %arg9[%c2_82, %c0_83, %c0_84] : memref<4x1x8xf32, #tpu.memory_space<vmem>>, vector<1x1x8xf32>
    %120 = vector.shape_cast %119 : vector<1x1x8xf32> to vector<1x8xf32>
    %121 = vector.broadcast %120 : vector<1x8xf32> to vector<7x8xf32>
    %122 = arith.addf %118, %121 : vector<7x8xf32>
    %c2_85 = arith.constant 2 : index
    %c0_86 = arith.constant 0 : index
    %c0_87 = arith.constant 0 : index
    %123 = vector.load %arg10[%c2_85, %c0_86, %c0_87] : memref<4x32x8xbf16, #tpu.memory_space<vmem>>, vector<1x32x8xbf16>
    %124 = vector.shape_cast %123 : vector<1x32x8xbf16> to vector<32x8xbf16>
    %cst_88 = arith.constant dense<0.000000e+00> : vector<7x8xf32>
    %125 = tpu.matmul %1, %124, %cst_88 {dimension_numbers = #tpu.dot_dimension_numbers<[1], [0], [0], [1], [0, 0, 1, 1], [], []>} : vector<7x32xbf16>, vector<32x8xbf16>, vector<7x8xf32> -> vector<7x8xf32>
    %c2_89 = arith.constant 2 : index
    %c0_90 = arith.constant 0 : index
    %c0_91 = arith.constant 0 : index
    %126 = vector.load %arg11[%c2_89, %c0_90, %c0_91] : memref<4x1x8xf32, #tpu.memory_space<vmem>>, vector<1x1x8xf32>
    %127 = vector.shape_cast %126 : vector<1x1x8xf32> to vector<1x8xf32>
    %128 = vector.broadcast %127 : vector<1x8xf32> to vector<7x8xf32>
    %129 = arith.addf %125, %128 : vector<7x8xf32>
    %130 = arith.truncf %115 : vector<7x8xf32> to vector<7x8xbf16>
    %131 = arith.truncf %122 : vector<7x8xf32> to vector<7x8xbf16>
    %cst_92 = arith.constant dense<0.000000e+00> : vector<7x7xf32>
    %132 = tpu.matmul %130, %131, %cst_92 {dimension_numbers = #tpu.dot_dimension_numbers<[1], [1], [0], [0], [0, 0, 1, 0], [], []>} : vector<7x8xbf16>, vector<7x8xbf16>, vector<7x7xf32> -> vector<7x7xf32>
    %133 = arith.addf %132, %16 : vector<7x7xf32>
    %cst_93 = arith.constant dense<0xFF800000> : vector<7xf32>
    %134 = vector.multi_reduction <maximumf>, %133, %cst_93 [1] : vector<7x7xf32> to vector<7xf32>
    %135 = vector.shape_cast %134 : vector<7xf32> to vector<7x1xf32>
    %136 = vector.broadcast %135 : vector<7x1xf32> to vector<7x7xf32>
    %137 = arith.subf %133, %136 : vector<7x7xf32>
    %138 = math.exp %137 : vector<7x7xf32>
    %cst_94 = arith.constant dense<0.000000e+00> : vector<7xf32>
    %139 = vector.multi_reduction <add>, %138, %cst_94 [1] : vector<7x7xf32> to vector<7xf32>
    %140 = vector.shape_cast %139 : vector<7xf32> to vector<7x1xf32>
    %141 = tpu.reciprocal %140 {approx = true} : vector<7x1xf32> -> vector<7x1xf32>
    %142 = vector.broadcast %141 : vector<7x1xf32> to vector<7x7xf32>
    %143 = arith.mulf %138, %142 : vector<7x7xf32>
    %144 = arith.truncf %143 : vector<7x7xf32> to vector<7x7xbf16>
    %145 = arith.truncf %129 : vector<7x8xf32> to vector<7x8xbf16>
    %cst_95 = arith.constant dense<0.000000e+00> : vector<7x8xf32>
    %146 = tpu.matmul %144, %145, %cst_95 {dimension_numbers = #tpu.dot_dimension_numbers<[1], [0], [0], [1], [0, 0, 1, 1], [], []>} : vector<7x7xbf16>, vector<7x8xbf16>, vector<7x8xf32> -> vector<7x8xf32>
    %147 = arith.truncf %146 : vector<7x8xf32> to vector<7x8xbf16>
    %c2_96 = arith.constant 2 : index
    %c0_97 = arith.constant 0 : index
    %c0_98 = arith.constant 0 : index
    %148 = vector.load %arg12[%c2_96, %c0_97, %c0_98] : memref<4x8x32xbf16, #tpu.memory_space<vmem>>, vector<1x8x32xbf16>
    %149 = vector.shape_cast %148 : vector<1x8x32xbf16> to vector<8x32xbf16>
    %cst_99 = arith.constant dense<0.000000e+00> : vector<7x32xf32>
    %150 = tpu.matmul %147, %149, %cst_99 {dimension_numbers = #tpu.dot_dimension_numbers<[1], [0], [0], [1], [0, 0, 1, 1], [], []>} : vector<7x8xbf16>, vector<8x32xbf16>, vector<7x32xf32> -> vector<7x32xf32>
    %151 = arith.addf %106, %150 : vector<7x32xf32>
    %c3 = arith.constant 3 : index
    %c0_100 = arith.constant 0 : index
    %c0_101 = arith.constant 0 : index
    %152 = vector.load %arg6[%c3, %c0_100, %c0_101] : memref<4x32x8xbf16, #tpu.memory_space<vmem>>, vector<1x32x8xbf16>
    %153 = vector.shape_cast %152 : vector<1x32x8xbf16> to vector<32x8xbf16>
    %cst_102 = arith.constant dense<0.000000e+00> : vector<7x8xf32>
    %154 = tpu.matmul %17, %153, %cst_102 {dimension_numbers = #tpu.dot_dimension_numbers<[1], [0], [0], [1], [0, 0, 1, 1], [], []>} : vector<7x32xbf16>, vector<32x8xbf16>, vector<7x8xf32> -> vector<7x8xf32>
    %c3_103 = arith.constant 3 : index
    %c0_104 = arith.constant 0 : index
    %c0_105 = arith.constant 0 : index
    %155 = vector.load %arg7[%c3_103, %c0_104, %c0_105] : memref<4x1x8xf32, #tpu.memory_space<vmem>>, vector<1x1x8xf32>
    %156 = vector.shape_cast %155 : vector<1x1x8xf32> to vector<1x8xf32>
    %157 = vector.broadcast %156 : vector<1x8xf32> to vector<7x8xf32>
    %158 = arith.addf %154, %157 : vector<7x8xf32>
    %cst_106 = arith.constant 0.353553385 : f32
    %159 = vector.broadcast %cst_106 : f32 to vector<7x8xf32>
    %160 = arith.mulf %158, %159 : vector<7x8xf32>
    %c3_107 = arith.constant 3 : index
    %c0_108 = arith.constant 0 : index
    %c0_109 = arith.constant 0 : index
    %161 = vector.load %arg8[%c3_107, %c0_108, %c0_109] : memref<4x32x8xbf16, #tpu.memory_space<vmem>>, vector<1x32x8xbf16>
    %162 = vector.shape_cast %161 : vector<1x32x8xbf16> to vector<32x8xbf16>
    %cst_110 = arith.constant dense<0.000000e+00> : vector<7x8xf32>
    %163 = tpu.matmul %1, %162, %cst_110 {dimension_numbers = #tpu.dot_dimension_numbers<[1], [0], [0], [1], [0, 0, 1, 1], [], []>} : vector<7x32xbf16>, vector<32x8xbf16>, vector<7x8xf32> -> vector<7x8xf32>
    %c3_111 = arith.constant 3 : index
    %c0_112 = arith.constant 0 : index
    %c0_113 = arith.constant 0 : index
    %164 = vector.load %arg9[%c3_111, %c0_112, %c0_113] : memref<4x1x8xf32, #tpu.memory_space<vmem>>, vector<1x1x8xf32>
    %165 = vector.shape_cast %164 : vector<1x1x8xf32> to vector<1x8xf32>
    %166 = vector.broadcast %165 : vector<1x8xf32> to vector<7x8xf32>
    %167 = arith.addf %163, %166 : vector<7x8xf32>
    %c3_114 = arith.constant 3 : index
    %c0_115 = arith.constant 0 : index
    %c0_116 = arith.constant 0 : index
    %168 = vector.load %arg10[%c3_114, %c0_115, %c0_116] : memref<4x32x8xbf16, #tpu.memory_space<vmem>>, vector<1x32x8xbf16>
    %169 = vector.shape_cast %168 : vector<1x32x8xbf16> to vector<32x8xbf16>
    %cst_117 = arith.constant dense<0.000000e+00> : vector<7x8xf32>
    %170 = tpu.matmul %1, %169, %cst_117 {dimension_numbers = #tpu.dot_dimension_numbers<[1], [0], [0], [1], [0, 0, 1, 1], [], []>} : vector<7x32xbf16>, vector<32x8xbf16>, vector<7x8xf32> -> vector<7x8xf32>
    %c3_118 = arith.constant 3 : index
    %c0_119 = arith.constant 0 : index
    %c0_120 = arith.constant 0 : index
    %171 = vector.load %arg11[%c3_118, %c0_119, %c0_120] : memref<4x1x8xf32, #tpu.memory_space<vmem>>, vector<1x1x8xf32>
    %172 = vector.shape_cast %171 : vector<1x1x8xf32> to vector<1x8xf32>
    %173 = vector.broadcast %172 : vector<1x8xf32> to vector<7x8xf32>
    %174 = arith.addf %170, %173 : vector<7x8xf32>
    %175 = arith.truncf %160 : vector<7x8xf32> to vector<7x8xbf16>
    %176 = arith.truncf %167 : vector<7x8xf32> to vector<7x8xbf16>
    %cst_121 = arith.constant dense<0.000000e+00> : vector<7x7xf32>
    %177 = tpu.matmul %175, %176, %cst_121 {dimension_numbers = #tpu.dot_dimension_numbers<[1], [1], [0], [0], [0, 0, 1, 0], [], []>} : vector<7x8xbf16>, vector<7x8xbf16>, vector<7x7xf32> -> vector<7x7xf32>
    %178 = arith.addf %177, %16 : vector<7x7xf32>
    %cst_122 = arith.constant dense<0xFF800000> : vector<7xf32>
    %179 = vector.multi_reduction <maximumf>, %178, %cst_122 [1] : vector<7x7xf32> to vector<7xf32>
    %180 = vector.shape_cast %179 : vector<7xf32> to vector<7x1xf32>
    %181 = vector.broadcast %180 : vector<7x1xf32> to vector<7x7xf32>
    %182 = arith.subf %178, %181 : vector<7x7xf32>
    %183 = math.exp %182 : vector<7x7xf32>
    %cst_123 = arith.constant dense<0.000000e+00> : vector<7xf32>
    %184 = vector.multi_reduction <add>, %183, %cst_123 [1] : vector<7x7xf32> to vector<7xf32>
    %185 = vector.shape_cast %184 : vector<7xf32> to vector<7x1xf32>
    %186 = tpu.reciprocal %185 {approx = true} : vector<7x1xf32> -> vector<7x1xf32>
    %187 = vector.broadcast %186 : vector<7x1xf32> to vector<7x7xf32>
    %188 = arith.mulf %183, %187 : vector<7x7xf32>
    %189 = arith.truncf %188 : vector<7x7xf32> to vector<7x7xbf16>
    %190 = arith.truncf %174 : vector<7x8xf32> to vector<7x8xbf16>
    %cst_124 = arith.constant dense<0.000000e+00> : vector<7x8xf32>
    %191 = tpu.matmul %189, %190, %cst_124 {dimension_numbers = #tpu.dot_dimension_numbers<[1], [0], [0], [1], [0, 0, 1, 1], [], []>} : vector<7x7xbf16>, vector<7x8xbf16>, vector<7x8xf32> -> vector<7x8xf32>
    %192 = arith.truncf %191 : vector<7x8xf32> to vector<7x8xbf16>
    %c3_125 = arith.constant 3 : index
    %c0_126 = arith.constant 0 : index
    %c0_127 = arith.constant 0 : index
    %193 = vector.load %arg12[%c3_125, %c0_126, %c0_127] : memref<4x8x32xbf16, #tpu.memory_space<vmem>>, vector<1x8x32xbf16>
    %194 = vector.shape_cast %193 : vector<1x8x32xbf16> to vector<8x32xbf16>
    %cst_128 = arith.constant dense<0.000000e+00> : vector<7x32xf32>
    %195 = tpu.matmul %192, %194, %cst_128 {dimension_numbers = #tpu.dot_dimension_numbers<[1], [0], [0], [1], [0, 0, 1, 1], [], []>} : vector<7x8xbf16>, vector<8x32xbf16>, vector<7x32xf32> -> vector<7x32xf32>
    %196 = arith.addf %151, %195 : vector<7x32xf32>
    %c0_129 = arith.constant 0 : index
    %c0_130 = arith.constant 0 : index
    %197 = vector.load %arg13[%c0_129, %c0_130] : memref<1x32xf32, #tpu.memory_space<vmem>>, vector<1x32xf32>
    %198 = vector.broadcast %197 : vector<1x32xf32> to vector<7x32xf32>
    %199 = arith.addf %196, %198 : vector<7x32xf32>
    %200 = arith.addf %199, %2 : vector<7x32xf32>
    %cst_131 = arith.constant dense<0.000000e+00> : vector<7xf32>
    %201 = vector.multi_reduction <add>, %200, %cst_131 [1] : vector<7x32xf32> to vector<7xf32>
    %202 = vector.shape_cast %201 : vector<7xf32> to vector<7x1xf32>
    %cst_132 = arith.constant 3.200000e+01 : f32
    %203 = vector.broadcast %cst_132 : f32 to vector<7x1xf32>
    %204 = arith.divf %202, %203 : vector<7x1xf32>
    %205 = vector.broadcast %204 : vector<7x1xf32> to vector<7x32xf32>
    %206 = arith.subf %200, %205 : vector<7x32xf32>
    %207 = arith.mulf %206, %206 : vector<7x32xf32>
    %cst_133 = arith.constant dense<0.000000e+00> : vector<7xf32>
    %208 = vector.multi_reduction <add>, %207, %cst_133 [1] : vector<7x32xf32> to vector<7xf32>
    %209 = vector.shape_cast %208 : vector<7xf32> to vector<7x1xf32>
    %cst_134 = arith.constant 3.200000e+01 : f32
    %210 = vector.broadcast %cst_134 : f32 to vector<7x1xf32>
    %211 = arith.divf %209, %210 : vector<7x1xf32>
    %212 = vector.broadcast %204 : vector<7x1xf32> to vector<7x32xf32>
    %213 = arith.subf %200, %212 : vector<7x32xf32>
    %cst_135 = arith.constant 9.99999974E-6 : f32
    %214 = vector.broadcast %cst_135 : f32 to vector<7x1xf32>
    %215 = arith.addf %211, %214 : vector<7x1xf32>
    %216 = math.rsqrt %215 : vector<7x1xf32>
    %217 = vector.broadcast %216 : vector<7x1xf32> to vector<7x32xf32>
    %218 = arith.mulf %213, %217 : vector<7x32xf32>
    %c0_136 = arith.constant 0 : index
    %c0_137 = arith.constant 0 : index
    %219 = vector.load %arg14[%c0_136, %c0_137] : memref<1x32xf32, #tpu.memory_space<vmem>>, vector<1x32xf32>
    %220 = vector.broadcast %219 : vector<1x32xf32> to vector<7x32xf32>
    %221 = arith.mulf %218, %220 : vector<7x32xf32>
    %c0_138 = arith.constant 0 : index
    %c0_139 = arith.constant 0 : index
    %222 = vector.load %arg15[%c0_138, %c0_139] : memref<1x32xf32, #tpu.memory_space<vmem>>, vector<1x32xf32>
    %223 = vector.broadcast %222 : vector<1x32xf32> to vector<7x32xf32>
    %224 = arith.addf %221, %223 : vector<7x32xf32>
    %225 = vector.broadcast %6 : vector<7x1xf32> to vector<7x32xf32>
    %226 = arith.mulf %224, %225 : vector<7x32xf32>
    %c0_140 = arith.constant 0 : index
    %c0_141 = arith.constant 0 : index
    %c0_142 = arith.constant 0 : index
    %227 = vector.load %arg4[%c0_140, %c0_141, %c0_142] : memref<1x1x8xf32, #tpu.memory_space<vmem>>, vector<1x1x8xf32>
    %228 = vector.shape_cast %227 : vector<1x1x8xf32> to vector<1x8xf32>
    %229 = arith.truncf %226 : vector<7x32xf32> to vector<7x32xbf16>
    %c0_143 = arith.constant 0 : index
    %c0_144 = arith.constant 0 : index
    %c0_145 = arith.constant 0 : index
    %230 = vector.load %arg16[%c0_143, %c0_144, %c0_145] : memref<4x32x8xbf16, #tpu.memory_space<vmem>>, vector<1x32x8xbf16>
    %231 = vector.shape_cast %230 : vector<1x32x8xbf16> to vector<32x8xbf16>
    %cst_146 = arith.constant dense<0.000000e+00> : vector<7x8xf32>
    %232 = tpu.matmul %229, %231, %cst_146 {dimension_numbers = #tpu.dot_dimension_numbers<[1], [0], [0], [1], [0, 0, 1, 1], [], []>} : vector<7x32xbf16>, vector<32x8xbf16>, vector<7x8xf32> -> vector<7x8xf32>
    %c0_147 = arith.constant 0 : index
    %c0_148 = arith.constant 0 : index
    %c0_149 = arith.constant 0 : index
    %233 = vector.load %arg17[%c0_147, %c0_148, %c0_149] : memref<4x1x8xf32, #tpu.memory_space<vmem>>, vector<1x1x8xf32>
    %234 = vector.shape_cast %233 : vector<1x1x8xf32> to vector<1x8xf32>
    %235 = vector.broadcast %234 : vector<1x8xf32> to vector<7x8xf32>
    %236 = arith.addf %232, %235 : vector<7x8xf32>
    %cst_150 = arith.constant 0.353553385 : f32
    %237 = vector.broadcast %cst_150 : f32 to vector<7x8xf32>
    %238 = arith.mulf %236, %237 : vector<7x8xf32>
    %c0_151 = arith.constant 0 : index
    %c0_152 = arith.constant 0 : index
    %c0_153 = arith.constant 0 : index
    %239 = vector.load %arg18[%c0_151, %c0_152, %c0_153] : memref<4x32x8xbf16, #tpu.memory_space<vmem>>, vector<1x32x8xbf16>
    %240 = vector.shape_cast %239 : vector<1x32x8xbf16> to vector<32x8xbf16>
    %cst_154 = arith.constant dense<0.000000e+00> : vector<8x8xf32>
    %241 = tpu.matmul %4, %240, %cst_154 {dimension_numbers = #tpu.dot_dimension_numbers<[1], [0], [0], [1], [0, 0, 1, 1], [], []>} : vector<8x32xbf16>, vector<32x8xbf16>, vector<8x8xf32> -> vector<8x8xf32>
    %c0_155 = arith.constant 0 : index
    %c0_156 = arith.constant 0 : index
    %c0_157 = arith.constant 0 : index
    %242 = vector.load %arg19[%c0_155, %c0_156, %c0_157] : memref<4x1x8xf32, #tpu.memory_space<vmem>>, vector<1x1x8xf32>
    %243 = vector.shape_cast %242 : vector<1x1x8xf32> to vector<1x8xf32>
    %244 = vector.broadcast %243 : vector<1x8xf32> to vector<8x8xf32>
    %245 = arith.addf %241, %244 : vector<8x8xf32>
    %c0_158 = arith.constant 0 : index
    %c0_159 = arith.constant 0 : index
    %c0_160 = arith.constant 0 : index
    %246 = vector.load %arg20[%c0_158, %c0_159, %c0_160] : memref<4x32x8xbf16, #tpu.memory_space<vmem>>, vector<1x32x8xbf16>
    %247 = vector.shape_cast %246 : vector<1x32x8xbf16> to vector<32x8xbf16>
    %cst_161 = arith.constant dense<0.000000e+00> : vector<8x8xf32>
    %248 = tpu.matmul %4, %247, %cst_161 {dimension_numbers = #tpu.dot_dimension_numbers<[1], [0], [0], [1], [0, 0, 1, 1], [], []>} : vector<8x32xbf16>, vector<32x8xbf16>, vector<8x8xf32> -> vector<8x8xf32>
    %c0_162 = arith.constant 0 : index
    %c0_163 = arith.constant 0 : index
    %c0_164 = arith.constant 0 : index
    %249 = vector.load %arg21[%c0_162, %c0_163, %c0_164] : memref<4x1x8xf32, #tpu.memory_space<vmem>>, vector<1x1x8xf32>
    %250 = vector.shape_cast %249 : vector<1x1x8xf32> to vector<1x8xf32>
    %251 = vector.broadcast %250 : vector<1x8xf32> to vector<8x8xf32>
    %252 = arith.addf %248, %251 : vector<8x8xf32>
    %253 = arith.truncf %238 : vector<7x8xf32> to vector<7x8xbf16>
    %254 = arith.truncf %245 : vector<8x8xf32> to vector<8x8xbf16>
    %cst_165 = arith.constant dense<0.000000e+00> : vector<7x8xf32>
    %255 = tpu.matmul %253, %254, %cst_165 {dimension_numbers = #tpu.dot_dimension_numbers<[1], [1], [0], [0], [0, 0, 1, 0], [], []>} : vector<7x8xbf16>, vector<8x8xbf16>, vector<7x8xf32> -> vector<7x8xf32>
    %256 = vector.broadcast %228 : vector<1x8xf32> to vector<7x8xf32>
    %257 = arith.addf %255, %256 : vector<7x8xf32>
    %cst_166 = arith.constant dense<0xFF800000> : vector<7xf32>
    %258 = vector.multi_reduction <maximumf>, %257, %cst_166 [1] : vector<7x8xf32> to vector<7xf32>
    %259 = vector.shape_cast %258 : vector<7xf32> to vector<7x1xf32>
    %260 = vector.broadcast %259 : vector<7x1xf32> to vector<7x8xf32>
    %261 = arith.subf %257, %260 : vector<7x8xf32>
    %262 = math.exp %261 : vector<7x8xf32>
    %cst_167 = arith.constant dense<0.000000e+00> : vector<7xf32>
    %263 = vector.multi_reduction <add>, %262, %cst_167 [1] : vector<7x8xf32> to vector<7xf32>
    %264 = vector.shape_cast %263 : vector<7xf32> to vector<7x1xf32>
    %265 = tpu.reciprocal %264 {approx = true} : vector<7x1xf32> -> vector<7x1xf32>
    %266 = vector.broadcast %265 : vector<7x1xf32> to vector<7x8xf32>
    %267 = arith.mulf %262, %266 : vector<7x8xf32>
    %268 = arith.truncf %267 : vector<7x8xf32> to vector<7x8xbf16>
    %269 = arith.truncf %252 : vector<8x8xf32> to vector<8x8xbf16>
    %cst_168 = arith.constant dense<0.000000e+00> : vector<7x8xf32>
    %270 = tpu.matmul %268, %269, %cst_168 {dimension_numbers = #tpu.dot_dimension_numbers<[1], [0], [0], [1], [0, 0, 1, 1], [], []>} : vector<7x8xbf16>, vector<8x8xbf16>, vector<7x8xf32> -> vector<7x8xf32>
    %271 = arith.truncf %270 : vector<7x8xf32> to vector<7x8xbf16>
    %c0_169 = arith.constant 0 : index
    %c0_170 = arith.constant 0 : index
    %c0_171 = arith.constant 0 : index
    %272 = vector.load %arg22[%c0_169, %c0_170, %c0_171] : memref<4x8x32xbf16, #tpu.memory_space<vmem>>, vector<1x8x32xbf16>
    %273 = vector.shape_cast %272 : vector<1x8x32xbf16> to vector<8x32xbf16>
    %cst_172 = arith.constant dense<0.000000e+00> : vector<7x32xf32>
    %274 = tpu.matmul %271, %273, %cst_172 {dimension_numbers = #tpu.dot_dimension_numbers<[1], [0], [0], [1], [0, 0, 1, 1], [], []>} : vector<7x8xbf16>, vector<8x32xbf16>, vector<7x32xf32> -> vector<7x32xf32>
    %c1_173 = arith.constant 1 : index
    %c0_174 = arith.constant 0 : index
    %c0_175 = arith.constant 0 : index
    %275 = vector.load %arg16[%c1_173, %c0_174, %c0_175] : memref<4x32x8xbf16, #tpu.memory_space<vmem>>, vector<1x32x8xbf16>
    %276 = vector.shape_cast %275 : vector<1x32x8xbf16> to vector<32x8xbf16>
    %cst_176 = arith.constant dense<0.000000e+00> : vector<7x8xf32>
    %277 = tpu.matmul %229, %276, %cst_176 {dimension_numbers = #tpu.dot_dimension_numbers<[1], [0], [0], [1], [0, 0, 1, 1], [], []>} : vector<7x32xbf16>, vector<32x8xbf16>, vector<7x8xf32> -> vector<7x8xf32>
    %c1_177 = arith.constant 1 : index
    %c0_178 = arith.constant 0 : index
    %c0_179 = arith.constant 0 : index
    %278 = vector.load %arg17[%c1_177, %c0_178, %c0_179] : memref<4x1x8xf32, #tpu.memory_space<vmem>>, vector<1x1x8xf32>
    %279 = vector.shape_cast %278 : vector<1x1x8xf32> to vector<1x8xf32>
    %280 = vector.broadcast %279 : vector<1x8xf32> to vector<7x8xf32>
    %281 = arith.addf %277, %280 : vector<7x8xf32>
    %cst_180 = arith.constant 0.353553385 : f32
    %282 = vector.broadcast %cst_180 : f32 to vector<7x8xf32>
    %283 = arith.mulf %281, %282 : vector<7x8xf32>
    %c1_181 = arith.constant 1 : index
    %c0_182 = arith.constant 0 : index
    %c0_183 = arith.constant 0 : index
    %284 = vector.load %arg18[%c1_181, %c0_182, %c0_183] : memref<4x32x8xbf16, #tpu.memory_space<vmem>>, vector<1x32x8xbf16>
    %285 = vector.shape_cast %284 : vector<1x32x8xbf16> to vector<32x8xbf16>
    %cst_184 = arith.constant dense<0.000000e+00> : vector<8x8xf32>
    %286 = tpu.matmul %4, %285, %cst_184 {dimension_numbers = #tpu.dot_dimension_numbers<[1], [0], [0], [1], [0, 0, 1, 1], [], []>} : vector<8x32xbf16>, vector<32x8xbf16>, vector<8x8xf32> -> vector<8x8xf32>
    %c1_185 = arith.constant 1 : index
    %c0_186 = arith.constant 0 : index
    %c0_187 = arith.constant 0 : index
    %287 = vector.load %arg19[%c1_185, %c0_186, %c0_187] : memref<4x1x8xf32, #tpu.memory_space<vmem>>, vector<1x1x8xf32>
    %288 = vector.shape_cast %287 : vector<1x1x8xf32> to vector<1x8xf32>
    %289 = vector.broadcast %288 : vector<1x8xf32> to vector<8x8xf32>
    %290 = arith.addf %286, %289 : vector<8x8xf32>
    %c1_188 = arith.constant 1 : index
    %c0_189 = arith.constant 0 : index
    %c0_190 = arith.constant 0 : index
    %291 = vector.load %arg20[%c1_188, %c0_189, %c0_190] : memref<4x32x8xbf16, #tpu.memory_space<vmem>>, vector<1x32x8xbf16>
    %292 = vector.shape_cast %291 : vector<1x32x8xbf16> to vector<32x8xbf16>
    %cst_191 = arith.constant dense<0.000000e+00> : vector<8x8xf32>
    %293 = tpu.matmul %4, %292, %cst_191 {dimension_numbers = #tpu.dot_dimension_numbers<[1], [0], [0], [1], [0, 0, 1, 1], [], []>} : vector<8x32xbf16>, vector<32x8xbf16>, vector<8x8xf32> -> vector<8x8xf32>
    %c1_192 = arith.constant 1 : index
    %c0_193 = arith.constant 0 : index
    %c0_194 = arith.constant 0 : index
    %294 = vector.load %arg21[%c1_192, %c0_193, %c0_194] : memref<4x1x8xf32, #tpu.memory_space<vmem>>, vector<1x1x8xf32>
    %295 = vector.shape_cast %294 : vector<1x1x8xf32> to vector<1x8xf32>
    %296 = vector.broadcast %295 : vector<1x8xf32> to vector<8x8xf32>
    %297 = arith.addf %293, %296 : vector<8x8xf32>
    %298 = arith.truncf %283 : vector<7x8xf32> to vector<7x8xbf16>
    %299 = arith.truncf %290 : vector<8x8xf32> to vector<8x8xbf16>
    %cst_195 = arith.constant dense<0.000000e+00> : vector<7x8xf32>
    %300 = tpu.matmul %298, %299, %cst_195 {dimension_numbers = #tpu.dot_dimension_numbers<[1], [1], [0], [0], [0, 0, 1, 0], [], []>} : vector<7x8xbf16>, vector<8x8xbf16>, vector<7x8xf32> -> vector<7x8xf32>
    %301 = vector.broadcast %228 : vector<1x8xf32> to vector<7x8xf32>
    %302 = arith.addf %300, %301 : vector<7x8xf32>
    %cst_196 = arith.constant dense<0xFF800000> : vector<7xf32>
    %303 = vector.multi_reduction <maximumf>, %302, %cst_196 [1] : vector<7x8xf32> to vector<7xf32>
    %304 = vector.shape_cast %303 : vector<7xf32> to vector<7x1xf32>
    %305 = vector.broadcast %304 : vector<7x1xf32> to vector<7x8xf32>
    %306 = arith.subf %302, %305 : vector<7x8xf32>
    %307 = math.exp %306 : vector<7x8xf32>
    %cst_197 = arith.constant dense<0.000000e+00> : vector<7xf32>
    %308 = vector.multi_reduction <add>, %307, %cst_197 [1] : vector<7x8xf32> to vector<7xf32>
    %309 = vector.shape_cast %308 : vector<7xf32> to vector<7x1xf32>
    %310 = tpu.reciprocal %309 {approx = true} : vector<7x1xf32> -> vector<7x1xf32>
    %311 = vector.broadcast %310 : vector<7x1xf32> to vector<7x8xf32>
    %312 = arith.mulf %307, %311 : vector<7x8xf32>
    %313 = arith.truncf %312 : vector<7x8xf32> to vector<7x8xbf16>
    %314 = arith.truncf %297 : vector<8x8xf32> to vector<8x8xbf16>
    %cst_198 = arith.constant dense<0.000000e+00> : vector<7x8xf32>
    %315 = tpu.matmul %313, %314, %cst_198 {dimension_numbers = #tpu.dot_dimension_numbers<[1], [0], [0], [1], [0, 0, 1, 1], [], []>} : vector<7x8xbf16>, vector<8x8xbf16>, vector<7x8xf32> -> vector<7x8xf32>
    %316 = arith.truncf %315 : vector<7x8xf32> to vector<7x8xbf16>
    %c1_199 = arith.constant 1 : index
    %c0_200 = arith.constant 0 : index
    %c0_201 = arith.constant 0 : index
    %317 = vector.load %arg22[%c1_199, %c0_200, %c0_201] : memref<4x8x32xbf16, #tpu.memory_space<vmem>>, vector<1x8x32xbf16>
    %318 = vector.shape_cast %317 : vector<1x8x32xbf16> to vector<8x32xbf16>
    %cst_202 = arith.constant dense<0.000000e+00> : vector<7x32xf32>
    %319 = tpu.matmul %316, %318, %cst_202 {dimension_numbers = #tpu.dot_dimension_numbers<[1], [0], [0], [1], [0, 0, 1, 1], [], []>} : vector<7x8xbf16>, vector<8x32xbf16>, vector<7x32xf32> -> vector<7x32xf32>
    %320 = arith.addf %274, %319 : vector<7x32xf32>
    %c2_203 = arith.constant 2 : index
    %c0_204 = arith.constant 0 : index
    %c0_205 = arith.constant 0 : index
    %321 = vector.load %arg16[%c2_203, %c0_204, %c0_205] : memref<4x32x8xbf16, #tpu.memory_space<vmem>>, vector<1x32x8xbf16>
    %322 = vector.shape_cast %321 : vector<1x32x8xbf16> to vector<32x8xbf16>
    %cst_206 = arith.constant dense<0.000000e+00> : vector<7x8xf32>
    %323 = tpu.matmul %229, %322, %cst_206 {dimension_numbers = #tpu.dot_dimension_numbers<[1], [0], [0], [1], [0, 0, 1, 1], [], []>} : vector<7x32xbf16>, vector<32x8xbf16>, vector<7x8xf32> -> vector<7x8xf32>
    %c2_207 = arith.constant 2 : index
    %c0_208 = arith.constant 0 : index
    %c0_209 = arith.constant 0 : index
    %324 = vector.load %arg17[%c2_207, %c0_208, %c0_209] : memref<4x1x8xf32, #tpu.memory_space<vmem>>, vector<1x1x8xf32>
    %325 = vector.shape_cast %324 : vector<1x1x8xf32> to vector<1x8xf32>
    %326 = vector.broadcast %325 : vector<1x8xf32> to vector<7x8xf32>
    %327 = arith.addf %323, %326 : vector<7x8xf32>
    %cst_210 = arith.constant 0.353553385 : f32
    %328 = vector.broadcast %cst_210 : f32 to vector<7x8xf32>
    %329 = arith.mulf %327, %328 : vector<7x8xf32>
    %c2_211 = arith.constant 2 : index
    %c0_212 = arith.constant 0 : index
    %c0_213 = arith.constant 0 : index
    %330 = vector.load %arg18[%c2_211, %c0_212, %c0_213] : memref<4x32x8xbf16, #tpu.memory_space<vmem>>, vector<1x32x8xbf16>
    %331 = vector.shape_cast %330 : vector<1x32x8xbf16> to vector<32x8xbf16>
    %cst_214 = arith.constant dense<0.000000e+00> : vector<8x8xf32>
    %332 = tpu.matmul %4, %331, %cst_214 {dimension_numbers = #tpu.dot_dimension_numbers<[1], [0], [0], [1], [0, 0, 1, 1], [], []>} : vector<8x32xbf16>, vector<32x8xbf16>, vector<8x8xf32> -> vector<8x8xf32>
    %c2_215 = arith.constant 2 : index
    %c0_216 = arith.constant 0 : index
    %c0_217 = arith.constant 0 : index
    %333 = vector.load %arg19[%c2_215, %c0_216, %c0_217] : memref<4x1x8xf32, #tpu.memory_space<vmem>>, vector<1x1x8xf32>
    %334 = vector.shape_cast %333 : vector<1x1x8xf32> to vector<1x8xf32>
    %335 = vector.broadcast %334 : vector<1x8xf32> to vector<8x8xf32>
    %336 = arith.addf %332, %335 : vector<8x8xf32>
    %c2_218 = arith.constant 2 : index
    %c0_219 = arith.constant 0 : index
    %c0_220 = arith.constant 0 : index
    %337 = vector.load %arg20[%c2_218, %c0_219, %c0_220] : memref<4x32x8xbf16, #tpu.memory_space<vmem>>, vector<1x32x8xbf16>
    %338 = vector.shape_cast %337 : vector<1x32x8xbf16> to vector<32x8xbf16>
    %cst_221 = arith.constant dense<0.000000e+00> : vector<8x8xf32>
    %339 = tpu.matmul %4, %338, %cst_221 {dimension_numbers = #tpu.dot_dimension_numbers<[1], [0], [0], [1], [0, 0, 1, 1], [], []>} : vector<8x32xbf16>, vector<32x8xbf16>, vector<8x8xf32> -> vector<8x8xf32>
    %c2_222 = arith.constant 2 : index
    %c0_223 = arith.constant 0 : index
    %c0_224 = arith.constant 0 : index
    %340 = vector.load %arg21[%c2_222, %c0_223, %c0_224] : memref<4x1x8xf32, #tpu.memory_space<vmem>>, vector<1x1x8xf32>
    %341 = vector.shape_cast %340 : vector<1x1x8xf32> to vector<1x8xf32>
    %342 = vector.broadcast %341 : vector<1x8xf32> to vector<8x8xf32>
    %343 = arith.addf %339, %342 : vector<8x8xf32>
    %344 = arith.truncf %329 : vector<7x8xf32> to vector<7x8xbf16>
    %345 = arith.truncf %336 : vector<8x8xf32> to vector<8x8xbf16>
    %cst_225 = arith.constant dense<0.000000e+00> : vector<7x8xf32>
    %346 = tpu.matmul %344, %345, %cst_225 {dimension_numbers = #tpu.dot_dimension_numbers<[1], [1], [0], [0], [0, 0, 1, 0], [], []>} : vector<7x8xbf16>, vector<8x8xbf16>, vector<7x8xf32> -> vector<7x8xf32>
    %347 = vector.broadcast %228 : vector<1x8xf32> to vector<7x8xf32>
    %348 = arith.addf %346, %347 : vector<7x8xf32>
    %cst_226 = arith.constant dense<0xFF800000> : vector<7xf32>
    %349 = vector.multi_reduction <maximumf>, %348, %cst_226 [1] : vector<7x8xf32> to vector<7xf32>
    %350 = vector.shape_cast %349 : vector<7xf32> to vector<7x1xf32>
    %351 = vector.broadcast %350 : vector<7x1xf32> to vector<7x8xf32>
    %352 = arith.subf %348, %351 : vector<7x8xf32>
    %353 = math.exp %352 : vector<7x8xf32>
    %cst_227 = arith.constant dense<0.000000e+00> : vector<7xf32>
    %354 = vector.multi_reduction <add>, %353, %cst_227 [1] : vector<7x8xf32> to vector<7xf32>
    %355 = vector.shape_cast %354 : vector<7xf32> to vector<7x1xf32>
    %356 = tpu.reciprocal %355 {approx = true} : vector<7x1xf32> -> vector<7x1xf32>
    %357 = vector.broadcast %356 : vector<7x1xf32> to vector<7x8xf32>
    %358 = arith.mulf %353, %357 : vector<7x8xf32>
    %359 = arith.truncf %358 : vector<7x8xf32> to vector<7x8xbf16>
    %360 = arith.truncf %343 : vector<8x8xf32> to vector<8x8xbf16>
    %cst_228 = arith.constant dense<0.000000e+00> : vector<7x8xf32>
    %361 = tpu.matmul %359, %360, %cst_228 {dimension_numbers = #tpu.dot_dimension_numbers<[1], [0], [0], [1], [0, 0, 1, 1], [], []>} : vector<7x8xbf16>, vector<8x8xbf16>, vector<7x8xf32> -> vector<7x8xf32>
    %362 = arith.truncf %361 : vector<7x8xf32> to vector<7x8xbf16>
    %c2_229 = arith.constant 2 : index
    %c0_230 = arith.constant 0 : index
    %c0_231 = arith.constant 0 : index
    %363 = vector.load %arg22[%c2_229, %c0_230, %c0_231] : memref<4x8x32xbf16, #tpu.memory_space<vmem>>, vector<1x8x32xbf16>
    %364 = vector.shape_cast %363 : vector<1x8x32xbf16> to vector<8x32xbf16>
    %cst_232 = arith.constant dense<0.000000e+00> : vector<7x32xf32>
    %365 = tpu.matmul %362, %364, %cst_232 {dimension_numbers = #tpu.dot_dimension_numbers<[1], [0], [0], [1], [0, 0, 1, 1], [], []>} : vector<7x8xbf16>, vector<8x32xbf16>, vector<7x32xf32> -> vector<7x32xf32>
    %366 = arith.addf %320, %365 : vector<7x32xf32>
    %c3_233 = arith.constant 3 : index
    %c0_234 = arith.constant 0 : index
    %c0_235 = arith.constant 0 : index
    %367 = vector.load %arg16[%c3_233, %c0_234, %c0_235] : memref<4x32x8xbf16, #tpu.memory_space<vmem>>, vector<1x32x8xbf16>
    %368 = vector.shape_cast %367 : vector<1x32x8xbf16> to vector<32x8xbf16>
    %cst_236 = arith.constant dense<0.000000e+00> : vector<7x8xf32>
    %369 = tpu.matmul %229, %368, %cst_236 {dimension_numbers = #tpu.dot_dimension_numbers<[1], [0], [0], [1], [0, 0, 1, 1], [], []>} : vector<7x32xbf16>, vector<32x8xbf16>, vector<7x8xf32> -> vector<7x8xf32>
    %c3_237 = arith.constant 3 : index
    %c0_238 = arith.constant 0 : index
    %c0_239 = arith.constant 0 : index
    %370 = vector.load %arg17[%c3_237, %c0_238, %c0_239] : memref<4x1x8xf32, #tpu.memory_space<vmem>>, vector<1x1x8xf32>
    %371 = vector.shape_cast %370 : vector<1x1x8xf32> to vector<1x8xf32>
    %372 = vector.broadcast %371 : vector<1x8xf32> to vector<7x8xf32>
    %373 = arith.addf %369, %372 : vector<7x8xf32>
    %cst_240 = arith.constant 0.353553385 : f32
    %374 = vector.broadcast %cst_240 : f32 to vector<7x8xf32>
    %375 = arith.mulf %373, %374 : vector<7x8xf32>
    %c3_241 = arith.constant 3 : index
    %c0_242 = arith.constant 0 : index
    %c0_243 = arith.constant 0 : index
    %376 = vector.load %arg18[%c3_241, %c0_242, %c0_243] : memref<4x32x8xbf16, #tpu.memory_space<vmem>>, vector<1x32x8xbf16>
    %377 = vector.shape_cast %376 : vector<1x32x8xbf16> to vector<32x8xbf16>
    %cst_244 = arith.constant dense<0.000000e+00> : vector<8x8xf32>
    %378 = tpu.matmul %4, %377, %cst_244 {dimension_numbers = #tpu.dot_dimension_numbers<[1], [0], [0], [1], [0, 0, 1, 1], [], []>} : vector<8x32xbf16>, vector<32x8xbf16>, vector<8x8xf32> -> vector<8x8xf32>
    %c3_245 = arith.constant 3 : index
    %c0_246 = arith.constant 0 : index
    %c0_247 = arith.constant 0 : index
    %379 = vector.load %arg19[%c3_245, %c0_246, %c0_247] : memref<4x1x8xf32, #tpu.memory_space<vmem>>, vector<1x1x8xf32>
    %380 = vector.shape_cast %379 : vector<1x1x8xf32> to vector<1x8xf32>
    %381 = vector.broadcast %380 : vector<1x8xf32> to vector<8x8xf32>
    %382 = arith.addf %378, %381 : vector<8x8xf32>
    %c3_248 = arith.constant 3 : index
    %c0_249 = arith.constant 0 : index
    %c0_250 = arith.constant 0 : index
    %383 = vector.load %arg20[%c3_248, %c0_249, %c0_250] : memref<4x32x8xbf16, #tpu.memory_space<vmem>>, vector<1x32x8xbf16>
    %384 = vector.shape_cast %383 : vector<1x32x8xbf16> to vector<32x8xbf16>
    %cst_251 = arith.constant dense<0.000000e+00> : vector<8x8xf32>
    %385 = tpu.matmul %4, %384, %cst_251 {dimension_numbers = #tpu.dot_dimension_numbers<[1], [0], [0], [1], [0, 0, 1, 1], [], []>} : vector<8x32xbf16>, vector<32x8xbf16>, vector<8x8xf32> -> vector<8x8xf32>
    %c3_252 = arith.constant 3 : index
    %c0_253 = arith.constant 0 : index
    %c0_254 = arith.constant 0 : index
    %386 = vector.load %arg21[%c3_252, %c0_253, %c0_254] : memref<4x1x8xf32, #tpu.memory_space<vmem>>, vector<1x1x8xf32>
    %387 = vector.shape_cast %386 : vector<1x1x8xf32> to vector<1x8xf32>
    %388 = vector.broadcast %387 : vector<1x8xf32> to vector<8x8xf32>
    %389 = arith.addf %385, %388 : vector<8x8xf32>
    %390 = arith.truncf %375 : vector<7x8xf32> to vector<7x8xbf16>
    %391 = arith.truncf %382 : vector<8x8xf32> to vector<8x8xbf16>
    %cst_255 = arith.constant dense<0.000000e+00> : vector<7x8xf32>
    %392 = tpu.matmul %390, %391, %cst_255 {dimension_numbers = #tpu.dot_dimension_numbers<[1], [1], [0], [0], [0, 0, 1, 0], [], []>} : vector<7x8xbf16>, vector<8x8xbf16>, vector<7x8xf32> -> vector<7x8xf32>
    %393 = vector.broadcast %228 : vector<1x8xf32> to vector<7x8xf32>
    %394 = arith.addf %392, %393 : vector<7x8xf32>
    %cst_256 = arith.constant dense<0xFF800000> : vector<7xf32>
    %395 = vector.multi_reduction <maximumf>, %394, %cst_256 [1] : vector<7x8xf32> to vector<7xf32>
    %396 = vector.shape_cast %395 : vector<7xf32> to vector<7x1xf32>
    %397 = vector.broadcast %396 : vector<7x1xf32> to vector<7x8xf32>
    %398 = arith.subf %394, %397 : vector<7x8xf32>
    %399 = math.exp %398 : vector<7x8xf32>
    %cst_257 = arith.constant dense<0.000000e+00> : vector<7xf32>
    %400 = vector.multi_reduction <add>, %399, %cst_257 [1] : vector<7x8xf32> to vector<7xf32>
    %401 = vector.shape_cast %400 : vector<7xf32> to vector<7x1xf32>
    %402 = tpu.reciprocal %401 {approx = true} : vector<7x1xf32> -> vector<7x1xf32>
    %403 = vector.broadcast %402 : vector<7x1xf32> to vector<7x8xf32>
    %404 = arith.mulf %399, %403 : vector<7x8xf32>
    %405 = arith.truncf %404 : vector<7x8xf32> to vector<7x8xbf16>
    %406 = arith.truncf %389 : vector<8x8xf32> to vector<8x8xbf16>
    %cst_258 = arith.constant dense<0.000000e+00> : vector<7x8xf32>
    %407 = tpu.matmul %405, %406, %cst_258 {dimension_numbers = #tpu.dot_dimension_numbers<[1], [0], [0], [1], [0, 0, 1, 1], [], []>} : vector<7x8xbf16>, vector<8x8xbf16>, vector<7x8xf32> -> vector<7x8xf32>
    %408 = arith.truncf %407 : vector<7x8xf32> to vector<7x8xbf16>
    %c3_259 = arith.constant 3 : index
    %c0_260 = arith.constant 0 : index
    %c0_261 = arith.constant 0 : index
    %409 = vector.load %arg22[%c3_259, %c0_260, %c0_261] : memref<4x8x32xbf16, #tpu.memory_space<vmem>>, vector<1x8x32xbf16>
    %410 = vector.shape_cast %409 : vector<1x8x32xbf16> to vector<8x32xbf16>
    %cst_262 = arith.constant dense<0.000000e+00> : vector<7x32xf32>
    %411 = tpu.matmul %408, %410, %cst_262 {dimension_numbers = #tpu.dot_dimension_numbers<[1], [0], [0], [1], [0, 0, 1, 1], [], []>} : vector<7x8xbf16>, vector<8x32xbf16>, vector<7x32xf32> -> vector<7x32xf32>
    %412 = arith.addf %366, %411 : vector<7x32xf32>
    %c0_263 = arith.constant 0 : index
    %c0_264 = arith.constant 0 : index
    %413 = vector.load %arg23[%c0_263, %c0_264] : memref<1x32xf32, #tpu.memory_space<vmem>>, vector<1x32xf32>
    %414 = vector.broadcast %413 : vector<1x32xf32> to vector<7x32xf32>
    %415 = arith.addf %412, %414 : vector<7x32xf32>
    %416 = arith.addf %415, %226 : vector<7x32xf32>
    %cst_265 = arith.constant dense<0.000000e+00> : vector<7xf32>
    %417 = vector.multi_reduction <add>, %416, %cst_265 [1] : vector<7x32xf32> to vector<7xf32>
    %418 = vector.shape_cast %417 : vector<7xf32> to vector<7x1xf32>
    %cst_266 = arith.constant 3.200000e+01 : f32
    %419 = vector.broadcast %cst_266 : f32 to vector<7x1xf32>
    %420 = arith.divf %418, %419 : vector<7x1xf32>
    %421 = vector.broadcast %420 : vector<7x1xf32> to vector<7x32xf32>
    %422 = arith.subf %416, %421 : vector<7x32xf32>
    %423 = arith.mulf %422, %422 : vector<7x32xf32>
    %cst_267 = arith.constant dense<0.000000e+00> : vector<7xf32>
    %424 = vector.multi_reduction <add>, %423, %cst_267 [1] : vector<7x32xf32> to vector<7xf32>
    %425 = vector.shape_cast %424 : vector<7xf32> to vector<7x1xf32>
    %cst_268 = arith.constant 3.200000e+01 : f32
    %426 = vector.broadcast %cst_268 : f32 to vector<7x1xf32>
    %427 = arith.divf %425, %426 : vector<7x1xf32>
    %428 = vector.broadcast %420 : vector<7x1xf32> to vector<7x32xf32>
    %429 = arith.subf %416, %428 : vector<7x32xf32>
    %cst_269 = arith.constant 9.99999974E-6 : f32
    %430 = vector.broadcast %cst_269 : f32 to vector<7x1xf32>
    %431 = arith.addf %427, %430 : vector<7x1xf32>
    %432 = math.rsqrt %431 : vector<7x1xf32>
    %433 = vector.broadcast %432 : vector<7x1xf32> to vector<7x32xf32>
    %434 = arith.mulf %429, %433 : vector<7x32xf32>
    %c0_270 = arith.constant 0 : index
    %c0_271 = arith.constant 0 : index
    %435 = vector.load %arg24[%c0_270, %c0_271] : memref<1x32xf32, #tpu.memory_space<vmem>>, vector<1x32xf32>
    %436 = vector.broadcast %435 : vector<1x32xf32> to vector<7x32xf32>
    %437 = arith.mulf %434, %436 : vector<7x32xf32>
    %c0_272 = arith.constant 0 : index
    %c0_273 = arith.constant 0 : index
    %438 = vector.load %arg25[%c0_272, %c0_273] : memref<1x32xf32, #tpu.memory_space<vmem>>, vector<1x32xf32>
    %439 = vector.broadcast %438 : vector<1x32xf32> to vector<7x32xf32>
    %440 = arith.addf %437, %439 : vector<7x32xf32>
    %441 = vector.broadcast %6 : vector<7x1xf32> to vector<7x32xf32>
    %442 = arith.mulf %440, %441 : vector<7x32xf32>
    %443 = arith.truncf %442 : vector<7x32xf32> to vector<7x32xbf16>
    %c0_274 = arith.constant 0 : index
    %c0_275 = arith.constant 0 : index
    %444 = vector.load %arg26[%c0_274, %c0_275] : memref<32x64xbf16, #tpu.memory_space<vmem>>, vector<32x64xbf16>
    %cst_276 = arith.constant dense<0.000000e+00> : vector<7x64xf32>
    %445 = tpu.matmul %443, %444, %cst_276 {dimension_numbers = #tpu.dot_dimension_numbers<[1], [0], [0], [1], [0, 0, 1, 1], [], []>} : vector<7x32xbf16>, vector<32x64xbf16>, vector<7x64xf32> -> vector<7x64xf32>
    %c0_277 = arith.constant 0 : index
    %c0_278 = arith.constant 0 : index
    %446 = vector.load %arg27[%c0_277, %c0_278] : memref<1x64xf32, #tpu.memory_space<vmem>>, vector<1x64xf32>
    %447 = vector.broadcast %446 : vector<1x64xf32> to vector<7x64xf32>
    %448 = arith.addf %445, %447 : vector<7x64xf32>
    %cst_279 = arith.constant 0.000000e+00 : f32
    %449 = vector.broadcast %cst_279 : f32 to vector<7x64xf32>
    %450 = arith.maximumf %448, %449 : vector<7x64xf32>
    %451 = arith.truncf %450 : vector<7x64xf32> to vector<7x64xbf16>
    %c0_280 = arith.constant 0 : index
    %c0_281 = arith.constant 0 : index
    %452 = vector.load %arg28[%c0_280, %c0_281] : memref<64x32xbf16, #tpu.memory_space<vmem>>, vector<64x32xbf16>
    %cst_282 = arith.constant dense<0.000000e+00> : vector<7x32xf32>
    %453 = tpu.matmul %451, %452, %cst_282 {dimension_numbers = #tpu.dot_dimension_numbers<[1], [0], [0], [1], [0, 0, 1, 1], [], []>} : vector<7x64xbf16>, vector<64x32xbf16>, vector<7x32xf32> -> vector<7x32xf32>
    %c0_283 = arith.constant 0 : index
    %c0_284 = arith.constant 0 : index
    %454 = vector.load %arg29[%c0_283, %c0_284] : memref<1x32xf32, #tpu.memory_space<vmem>>, vector<1x32xf32>
    %455 = vector.broadcast %454 : vector<1x32xf32> to vector<7x32xf32>
    %456 = arith.addf %453, %455 : vector<7x32xf32>
    %457 = arith.addf %456, %442 : vector<7x32xf32>
    %cst_285 = arith.constant dense<0.000000e+00> : vector<7xf32>
    %458 = vector.multi_reduction <add>, %457, %cst_285 [1] : vector<7x32xf32> to vector<7xf32>
    %459 = vector.shape_cast %458 : vector<7xf32> to vector<7x1xf32>
    %cst_286 = arith.constant 3.200000e+01 : f32
    %460 = vector.broadcast %cst_286 : f32 to vector<7x1xf32>
    %461 = arith.divf %459, %460 : vector<7x1xf32>
    %462 = vector.broadcast %461 : vector<7x1xf32> to vector<7x32xf32>
    %463 = arith.subf %457, %462 : vector<7x32xf32>
    %464 = arith.mulf %463, %463 : vector<7x32xf32>
    %cst_287 = arith.constant dense<0.000000e+00> : vector<7xf32>
    %465 = vector.multi_reduction <add>, %464, %cst_287 [1] : vector<7x32xf32> to vector<7xf32>
    %466 = vector.shape_cast %465 : vector<7xf32> to vector<7x1xf32>
    %cst_288 = arith.constant 3.200000e+01 : f32
    %467 = vector.broadcast %cst_288 : f32 to vector<7x1xf32>
    %468 = arith.divf %466, %467 : vector<7x1xf32>
    %469 = vector.broadcast %461 : vector<7x1xf32> to vector<7x32xf32>
    %470 = arith.subf %457, %469 : vector<7x32xf32>
    %cst_289 = arith.constant 9.99999974E-6 : f32
    %471 = vector.broadcast %cst_289 : f32 to vector<7x1xf32>
    %472 = arith.addf %468, %471 : vector<7x1xf32>
    %473 = math.rsqrt %472 : vector<7x1xf32>
    %474 = vector.broadcast %473 : vector<7x1xf32> to vector<7x32xf32>
    %475 = arith.mulf %470, %474 : vector<7x32xf32>
    %c0_290 = arith.constant 0 : index
    %c0_291 = arith.constant 0 : index
    %476 = vector.load %arg30[%c0_290, %c0_291] : memref<1x32xf32, #tpu.memory_space<vmem>>, vector<1x32xf32>
    %477 = vector.broadcast %476 : vector<1x32xf32> to vector<7x32xf32>
    %478 = arith.mulf %475, %477 : vector<7x32xf32>
    %c0_292 = arith.constant 0 : index
    %c0_293 = arith.constant 0 : index
    %479 = vector.load %arg31[%c0_292, %c0_293] : memref<1x32xf32, #tpu.memory_space<vmem>>, vector<1x32xf32>
    %480 = vector.broadcast %479 : vector<1x32xf32> to vector<7x32xf32>
    %481 = arith.addf %478, %480 : vector<7x32xf32>
    %482 = vector.broadcast %6 : vector<7x1xf32> to vector<7x32xf32>
    %483 = arith.mulf %481, %482 : vector<7x32xf32>
    %484 = arith.truncf %483 : vector<7x32xf32> to vector<7x32xbf16>
    %c0_294 = arith.constant 0 : index
    %c0_295 = arith.constant 0 : index
    %c0_296 = arith.constant 0 : index
    %485 = vector.load %arg32[%c0_294, %c0_295, %c0_296] : memref<1x7x32xbf16, #tpu.memory_space<vmem>>, vector<1x7x32xbf16>
    %486 = vector.shape_cast %485 : vector<1x7x32xbf16> to vector<7x32xbf16>
    %487 = vector.shape_cast %484 : vector<7x32xbf16> to vector<1x7x32xbf16>
    tpu.vector_store %arg32[%c0_294, %c0_295, %c0_296], %487 {strides = array<i32>} : memref<1x7x32xbf16, #tpu.memory_space<vmem>>, vector<1x7x32xbf16>,
    return
  }
  func.func @transform_0(%arg0: i32) -> (i32, i32, i32) {
    %c0_i32 = arith.constant 0 : i32
    %c0_i32_0 = arith.constant 0 : i32
    %c0_i32_1 = arith.constant 0 : i32
    return %arg0, %c0_i32, %c0_i32_0 : i32, i32, i32
  }
  func.func @transform_1(%arg0: i32) -> (i32, i32, i32) {
    %c0_i32 = arith.constant 0 : i32
    %c0_i32_0 = arith.constant 0 : i32
    %c0_i32_1 = arith.constant 0 : i32
    return %arg0, %c0_i32, %c0_i32_0 : i32, i32, i32
  }
  func.func @transform_2(%arg0: i32) -> (i32, i32, i32) {
    %c0_i32 = arith.constant 0 : i32
    %c0_i32_0 = arith.constant 0 : i32
    %c0_i32_1 = arith.constant 0 : i32
    return %arg0, %c0_i32, %c0_i32_0 : i32, i32, i32
  }
  func.func @transform_3(%arg0: i32) -> (i32, i32, i32) {
    %c0_i32 = arith.constant 0 : i32
    %c0_i32_0 = arith.constant 0 : i32
    %c0_i32_1 = arith.constant 0 : i32
    return %arg0, %c0_i32, %c0_i32_0 : i32, i32, i32
  }
  func.func @transform_4(%arg0: i32) -> (i32, i32, i32) {
    %c0_i32 = arith.constant 0 : i32
    %c0_i32_0 = arith.constant 0 : i32
    %c0_i32_1 = arith.constant 0 : i32
    return %arg0, %c0_i32, %c0_i32_0 : i32, i32, i32
  }
  func.func @transform_5(%arg0: i32) -> (i32, i32, i32) {
    %c0_i32 = arith.constant 0 : i32
    %c0_i32_0 = arith.constant 0 : i32
    %c0_i32_1 = arith.constant 0 : i32
    %c0_i32_2 = arith.constant 0 : i32
    return %c0_i32, %c0_i32_0, %c0_i32_1 : i32, i32, i32
  }
  func.func @transform_6(%arg0: i32) -> (i32, i32, i32) {
    %c0_i32 = arith.constant 0 : i32
    %c0_i32_0 = arith.constant 0 : i32
    %c0_i32_1 = arith.constant 0 : i32
    %c0_i32_2 = arith.constant 0 : i32
    return %c0_i32, %c0_i32_0, %c0_i32_1 : i32, i32, i32
  }
  func.func @transform_7(%arg0: i32) -> (i32, i32, i32) {
    %c0_i32 = arith.constant 0 : i32
    %c0_i32_0 = arith.constant 0 : i32
    %c0_i32_1 = arith.constant 0 : i32
    %c0_i32_2 = arith.constant 0 : i32
    return %c0_i32, %c0_i32_0, %c0_i32_1 : i32, i32, i32
  }
  func.func @transform_8(%arg0: i32) -> (i32, i32, i32) {
    %c0_i32 = arith.constant 0 : i32
    %c0_i32_0 = arith.constant 0 : i32
    %c0_i32_1 = arith.constant 0 : i32
    %c0_i32_2 = arith.constant 0 : i32
    return %c0_i32, %c0_i32_0, %c0_i32_1 : i32, i32, i32
  }
  func.func @transform_9(%arg0: i32) -> (i32, i32, i32) {
    %c0_i32 = arith.constant 0 : i32
    %c0_i32_0 = arith.constant 0 : i32
    %c0_i32_1 = arith.constant 0 : i32
    %c0_i32_2 = arith.constant 0 : i32
    return %c0_i32, %c0_i32_0, %c0_i32_1 : i32, i32, i32
  }
  func.func @transform_10(%arg0: i32) -> (i32, i32, i32) {
    %c0_i32 = arith.constant 0 : i32
    %c0_i32_0 = arith.constant 0 : i32
    %c0_i32_1 = arith.constant 0 : i32
    %c0_i32_2 = arith.constant 0 : i32
    return %c0_i32, %c0_i32_0, %c0_i32_1 : i32, i32, i32
  }
  func.func @transform_11(%arg0: i32) -> (i32, i32, i32) {
    %c0_i32 = arith.constant 0 : i32
    %c0_i32_0 = arith.constant 0 : i32
    %c0_i32_1 = arith.constant 0 : i32
    %c0_i32_2 = arith.constant 0 : i32
    return %c0_i32, %c0_i32_0, %c0_i32_1 : i32, i32, i32
  }
  func.func @transform_12(%arg0: i32) -> (i32, i32) {
    %c0_i32 = arith.constant 0 : i32
    %c0_i32_0 = arith.constant 0 : i32
    %c0_i32_1 = arith.constant 0 : i32
    return %c0_i32, %c0_i32_0 : i32, i32
  }
  func.func @transform_13(%arg0: i32) -> (i32, i32) {
    %c0_i32 = arith.constant 0 : i32
    %c0_i32_0 = arith.constant 0 : i32
    %c0_i32_1 = arith.constant 0 : i32
    return %c0_i32, %c0_i32_0 : i32, i32
  }
  func.func @transform_14(%arg0: i32) -> (i32, i32) {
    %c0_i32 = arith.constant 0 : i32
    %c0_i32_0 = arith.constant 0 : i32
    %c0_i32_1 = arith.constant 0 : i32
    return %c0_i32, %c0_i32_0 : i32, i32
  }
  func.func @transform_15(%arg0: i32) -> (i32, i32, i32) {
    %c0_i32 = arith.constant 0 : i32
    %c0_i32_0 = arith.constant 0 : i32
    %c0_i32_1 = arith.constant 0 : i32
    %c0_i32_2 = arith.constant 0 : i32
    return %c0_i32, %c0_i32_0, %c0_i32_1 : i32, i32, i32
  }
  func.func @transform_16(%arg0: i32) -> (i32, i32, i32) {
    %c0_i32 = arith.constant 0 : i32
    %c0_i32_0 = arith.constant 0 : i32
    %c0_i32_1 = arith.constant 0 : i32
    %c0_i32_2 = arith.constant 0 : i32
    return %c0_i32, %c0_i32_0, %c0_i32_1 : i32, i32, i32
  }
  func.func @transform_17(%arg0: i32) -> (i32, i32, i32) {
    %c0_i32 = arith.constant 0 : i32
    %c0_i32_0 = arith.constant 0 : i32
    %c0_i32_1 = arith.constant 0 : i32
    %c0_i32_2 = arith.constant 0 : i32
    return %c0_i32, %c0_i32_0, %c0_i32_1 : i32, i32, i32
  }
  func.func @transform_18(%arg0: i32) -> (i32, i32, i32) {
    %c0_i32 = arith.constant 0 : i32
    %c0_i32_0 = arith.constant 0 : i32
    %c0_i32_1 = arith.constant 0 : i32
    %c0_i32_2 = arith.constant 0 : i32
    return %c0_i32, %c0_i32_0, %c0_i32_1 : i32, i32, i32
  }
  func.func @transform_19(%arg0: i32) -> (i32, i32, i32) {
    %c0_i32 = arith.constant 0 : i32
    %c0_i32_0 = arith.constant 0 : i32
    %c0_i32_1 = arith.constant 0 : i32
    %c0_i32_2 = arith.constant 0 : i32
    return %c0_i32, %c0_i32_0, %c0_i32_1 : i32, i32, i32
  }
  func.func @transform_20(%arg0: i32) -> (i32, i32, i32) {
    %c0_i32 = arith.constant 0 : i32
    %c0_i32_0 = arith.constant 0 : i32
    %c0_i32_1 = arith.constant 0 : i32
    %c0_i32_2 = arith.constant 0 : i32
    return %c0_i32, %c0_i32_0, %c0_i32_1 : i32, i32, i32
  }
  func.func @transform_21(%arg0: i32) -> (i32, i32, i32) {
    %c0_i32 = arith.constant 0 : i32
    %c0_i32_0 = arith.constant 0 : i32
    %c0_i32_1 = arith.constant 0 : i32
    %c0_i32_2 = arith.constant 0 : i32
    return %c0_i32, %c0_i32_0, %c0_i32_1 : i32, i32, i32
  }
  func.func @transform_22(%arg0: i32) -> (i32, i32) {
    %c0_i32 = arith.constant 0 : i32
    %c0_i32_0 = arith.constant 0 : i32
    %c0_i32_1 = arith.constant 0 : i32
    return %c0_i32, %c0_i32_0 : i32, i32
  }
  func.func @transform_23(%arg0: i32) -> (i32, i32) {
    %c0_i32 = arith.constant 0 : i32
    %c0_i32_0 = arith.constant 0 : i32
    %c0_i32_1 = arith.constant 0 : i32
    return %c0_i32, %c0_i32_0 : i32, i32
  }
  func.func @transform_24(%arg0: i32) -> (i32, i32) {
    %c0_i32 = arith.constant 0 : i32
    %c0_i32_0 = arith.constant 0 : i32
    %c0_i32_1 = arith.constant 0 : i32
    return %c0_i32, %c0_i32_0 : i32, i32
  }
  func.func @transform_25(%arg0: i32) -> (i32, i32) {
    %c0_i32 = arith.constant 0 : i32
    %c0_i32_0 = arith.constant 0 : i32
    %c0_i32_1 = arith.constant 0 : i32
    return %c0_i32, %c0_i32_0 : i32, i32
  }
  func.func @transform_26(%arg0: i32) -> (i32, i32) {
    %c0_i32 = arith.constant 0 : i32
    %c0_i32_0 = arith.constant 0 : i32
    %c0_i32_1 = arith.constant 0 : i32
    return %c0_i32, %c0_i32_0 : i32, i32
  }
  func.func @transform_27(%arg0: i32) -> (i32, i32) {
    %c0_i32 = arith.constant 0 : i32
    %c0_i32_0 = arith.constant 0 : i32
    %c0_i32_1 = arith.constant 0 : i32
    return %c0_i32, %c0_i32_0 : i32, i32
  }
  func.func @transform_28(%arg0: i32) -> (i32, i32) {
    %c0_i32 = arith.constant 0 : i32
    %c0_i32_0 = arith.constant 0 : i32
    %c0_i32_1 = arith.constant 0 : i32
    return %c0_i32, %c0_i32_0 : i32, i32
  }
  func.func @transform_29(%arg0: i32) -> (i32, i32) {
    %c0_i32 = arith.constant 0 : i32
    %c0_i32_0 = arith.constant 0 : i32
    %c0_i32_1 = arith.constant 0 : i32
    return %c0_i32, %c0_i32_0 : i32, i32
  }
  func.func @transform_30(%arg0: i32) -> (i32, i32) {
    %c0_i32 = arith.constant 0 : i32
    %c0_i32_0 = arith.constant 0 : i32
    %c0_i32_1 = arith.constant 0 : i32
    return %c0_i32, %c0_i32_0 : i32, i32
  }
  func.func @transform_31(%arg0: i32) -> (i32, i32, i32) {
    %c0_i32 = arith.constant 0 : i32
    %c0_i32_0 = arith.constant 0 : i32
    %c0_i32_1 = arith.constant 0 : i32
    return %arg0, %c0_i32, %c0_i32_0 : i32, i32, i32
  }
}

</mosaic_0001>

<llo_original>
// kernel: transformer_forward.9
$region0: #{transformer_forward.9}
  #allocation0 [shape = 'u32[]', space=smem, size = 0x4, offset = 0x4, fixed_abs, tag = 'smem constant byte address 0x4 - core index']
  #allocation1 [shape = 'u32[144,128]{1,0:T(1,128)}', space=vmem, size = 0x12000, scoped, tag = 'internal scratch']
  %s0 = inlined_call_operand.vmem [shape: bf16[14,32], index: 0, kind: input, shape index: {}]
  %s1 = inlined_call_operand.vmem [shape: bf16[32,48], index: 1, kind: input, shape index: {}]
  %s2 = inlined_call_operand.hbm [shape: f32[14,48], index: 2, kind: output, shape index: {}]
  %s3 = sld [smem:[#allocation0]]
  $region18: #{transformer_forward.9} parent=0
    _
  %s5 = ssub.s32 1, %s3
  %s6 = scalar_select 0, %s5, %s3
  $region1: #{transformer_forward.9} parent=0
    #allocation2 [shape = 'u8[8192]{0}', space=vmem, size = 0x2000, scoped, tag = 'output window, operand 0, single buffered']
    #allocation3 [shape = 's32[1]{0}', space=sflag, size = 0x4, scoped, tag = 'scoped memory for transformer_forward.9']
    %7 = vsyncpa [#allocation3], 0
    // Predicated region
    $region2: #{transformer_forward.9} parent=1 // pred_check
      _
    $region3: #{transformer_forward.9} parent=1 // pred_check_branch
      %9 = sbr.rel (0) target = $region5
    $region4: #{transformer_forward.9} parent=1 // pred_region
      _
    $region5: #{transformer_forward.9} parent=1 // pred_fallthru
      _
    // Predicated region
    $region6: #{transformer_forward.9} parent=1 // pred_check
      _
    $region7: #{transformer_forward.9} parent=1 // pred_check_branch
      %11 = sbr.rel (0) target = $region9
    $region8: #{transformer_forward.9} parent=1 // pred_region
      _
    $region9: #{transformer_forward.9} parent=1 // pred_fallthru
      _
    %v13 = vld [vmem:[%s0] sm:$0xf]
    %v14 = vld [vmem:[%s0 + $0x4] sm:$0x7]
    %v15 = vld [vmem:[%s1] sm:$0xf]
    %v16 = vld [vmem:[%s1 + $0x4] sm:$0xf]
    %v17 = vld [vmem:[%s1 + $0x8] sm:$0xf]
    %v18 = vld [vmem:[%s1 + $0xc] sm:$0xf]
    %v21 = vunpack.c.l.b16 %v13
    %v22 = vunpack.c.l.b16 %v14
    %v23 = vpack.c.b16 %v22, %v21
    %v28 = vunpack.c.l.b16 %v15
    %v29 = vunpack.c.l.b16 %v16
    %v30 = vunpack.c.l.b16 %v17
    %v31 = vunpack.c.l.b16 %v18
    %v32 = vpack.c.b16 %v29, %v28
    %v33 = vpack.c.b16 %v31, %v30
    %vm36 = vcmask 261120
    %v38 = vsel %vm36, %v23, 0
    %40 = vmatprep.subr.bf16.mxu0 0
    %41 = vmatpush1.bf16.msra.mxu0 %v32
    %42 = vmatprep.subr.bf16.mxu0 0
    %43 = vmatpush1.bf16.msra.mxu0 %v33
    %44 = vmatprep.subr.bf16.mxu0 0
    %45 = vmatpush1.bf16.msra.mxu0 0
    %46 = vmatprep.subr.bf16.mxu0 0
    %47 = vmatpush1.bf16.msra.mxu0 0
    %48 = vmatprep.subr.bf16.mxu0 0
    %49 = vmatpush1.bf16.msra.mxu0 0
    %50 = vmatprep.subr.bf16.mxu0 0
    %51 = vmatpush1.bf16.msra.mxu0 0
    %52 = vmatprep.subr.bf16.mxu0 0
    %53 = vmatpush1.bf16.msra.mxu0 0
    %54 = vmatprep.subr.bf16.mxu0 0
    %55 = vmatpush1.bf16.msra.mxu0 0
    %56 = vmatprep.subr.bf16.mxu0 0
    %57 = vmatpush1.bf16.msra.mxu0 0
    %58 = vmatprep.subr.bf16.mxu0 0
    %59 = vmatpush1.bf16.msra.mxu0 0
    %60 = vmatprep.subr.bf16.mxu0 0
    %61 = vmatpush1.bf16.msra.mxu0 0
    %62 = vmatprep.subr.bf16.mxu0 0
    %63 = vmatpush1.bf16.msra.mxu0 0
    %64 = vmatprep.subr.bf16.mxu0 0
    %65 = vmatpush1.bf16.msra.mxu0 0
    %66 = vmatprep.subr.bf16.mxu0 0
    %67 = vmatpush1.bf16.msra.mxu0 0
    %68 = vmatprep.subr.bf16.mxu0 0
    %69 = vmatpush1.bf16.msra.mxu0 0
    %70 = vmatprep.subr.bf16.mxu0 0
    %71 = vmatpush1.bf16.msra.mxu0 0
    %72 = vmatprep.mubr.bf16.mxu0 0
    %73 = vmatmul.mubr.bf16.gmra.mrb[0].mxu0 %v38
    %v74 = vpop.f32.mrb[0].mxu0
    %v75 = vadd.f32 0.0, %v74
    %v76 = vpop.f32.mrb[0].mxu0
    %v77 = vpop.f32.mrb[0].mxu0
    %v78 = vadd.f32 0.0, %v77
    %v79 = vpop.f32.mrb[0].mxu0
    %80 = vdwg.mxu0
    %v81 = vmul.f32 %v75, 0.17677669
    %v82 = vmul.f32 %v78, 0.17677669
    %vm83 = vcmask 392192
    %84 = vst.msk [vmem:[#allocation2] sm:$0xff] %vm83, %v81
    %vm85 = vcmask 390144
    %86 = vst.msk [vmem:[#allocation2 + $0x8] sm:$0x3f] %vm85, %v82
    // Predicated region
    $region10: #{transformer_forward.9} parent=1 // pred_check
      _
    $region11: #{transformer_forward.9} parent=1 // pred_check_branch
      %88 = sbr.rel (0) target = $region13
    $region12: #{transformer_forward.9} parent=1 // pred_region
      %s90 = ssub.s32 256, 256
      %91 = vsyncadd [#allocation3], %s90
      %s92 = sshll.u32 [#allocation2], 4
      %s93 = int_to_ptr.vmem [resolvable:$true] %s92
      %98 = dma.vmem_to_hbm [thread:$0]  %s93, 256, %s2, [#allocation3], 128, 128, 8
    $region13: #{transformer_forward.9} parent=1 // pred_fallthru
      _
    // Predicated region
    $region14: #{transformer_forward.9} parent=1 // pred_check
      _
    $region15: #{transformer_forward.9} parent=1 // pred_check_branch
      %100 = sbr.rel (0) target = $region17
    $region16: #{transformer_forward.9} parent=1 // pred_region
      %101 = dma.done [#allocation3], 256
    $region17: #{transformer_forward.9} parent=1 // pred_fallthru
      _
    %102 = vsyncpa [#allocation3], 1

// kernel: transformer_forward.5
$region0: #{transformer_forward.5}
  #allocation0 [shape = 'u32[]', space=smem, size = 0x4, offset = 0x4, fixed_abs, tag = 'smem constant byte address 0x4 - core index']
  #allocation1 [shape = 'u32[144,128]{1,0:T(1,128)}', space=vmem, size = 0x12000, scoped, tag = 'internal scratch']
  %s0 = inlined_call_operand.vmem [shape: bf16[2,8,32], index: 0, kind: input, shape index: {}]
  %s1 = inlined_call_operand.vmem [shape: f32[2,1,8], index: 1, kind: input, shape index: {}]
  %s2 = inlined_call_operand.vmem [shape: f32[2,8,1], index: 2, kind: input, shape index: {}]
  %s3 = inlined_call_operand.vmem [shape: bf16[4,32,8], index: 3, kind: input, shape index: {}]
  %s4 = inlined_call_operand.vmem [shape: f32[4,1,8], index: 4, kind: input, shape index: {}]
  %s5 = inlined_call_operand.vmem [shape: bf16[4,32,8], index: 5, kind: input, shape index: {}]
  %s6 = inlined_call_operand.vmem [shape: f32[4,1,8], index: 6, kind: input, shape index: {}]
  %s7 = inlined_call_operand.vmem [shape: bf16[4,32,8], index: 7, kind: input, shape index: {}]
  %s8 = inlined_call_operand.vmem [shape: f32[4,1,8], index: 8, kind: input, shape index: {}]
  %s9 = inlined_call_operand.vmem [shape: bf16[4,8,32], index: 9, kind: input, shape index: {}]
  %s10 = inlined_call_operand.vmem [shape: f32[1,32], index: 10, kind: input, shape index: {}]
  %s11 = inlined_call_operand.vmem [shape: f32[1,32], index: 11, kind: input, shape index: {}]
  %s12 = inlined_call_operand.vmem [shape: f32[1,32], index: 12, kind: input, shape index: {}]
  %s13 = inlined_call_operand.vmem [shape: bf16[32,64], index: 13, kind: input, shape index: {}]
  %s14 = inlined_call_operand.vmem [shape: f32[1,64], index: 14, kind: input, shape index: {}]
  %s15 = inlined_call_operand.vmem [shape: bf16[64,32], index: 15, kind: input, shape index: {}]
  %s16 = inlined_call_operand.vmem [shape: f32[1,32], index: 16, kind: input, shape index: {}]
  %s17 = inlined_call_operand.vmem [shape: f32[1,32], index: 17, kind: input, shape index: {}]
  %s18 = inlined_call_operand.vmem [shape: f32[1,32], index: 18, kind: input, shape index: {}]
  %s19 = inlined_call_operand.vmem [shape: bf16[2,8,32], index: 19, kind: output, shape index: {}]
  %s20 = sld [smem:[#allocation0]]
  $region109: #{transformer_forward.5} parent=0
    _
  %s22 = ssub.s32 1, %s20
  %s23 = scalar_select 0, %s22, %s20
  loop: start=0, step=1, limit=4
  $region2: #{transformer_forward.5} parent=0 // loop_pre_header
    _
  $region3: #{transformer_forward.5} parent=0 // loop_header
    %s25 = sphi 0, %s29
    %p26 = scmp.ge.s32.totalorder %s25, 4
    %s35 = sphi 0, %s37
    %s38 = sphi 0, %s35
    %s39 = sphi 0, %s38
    %s55 = sphi 0, %s39
    %s61 = sphi 0, %s63
    %s64 = sphi 0, %s61
    %s65 = sphi 0, %s64
    %s81 = sphi 0, %s65
    %s87 = sphi 0, %s89
    %s90 = sphi 0, %s87
    %s91 = sphi 0, %s90
    %s107 = sphi 0, %s91
    %s111 = sphi 0, %s111
    %s113 = sphi 0, %s111
    %s114 = sphi 0, %s113
    %s128 = sphi 0, %s114
    %s132 = sphi 0, %s132
    %s134 = sphi 0, %s132
    %s135 = sphi 0, %s134
    %s149 = sphi 0, %s135
    %s153 = sphi 0, %s153
    %s155 = sphi 0, %s153
    %s156 = sphi 0, %s155
    %s170 = sphi 0, %s156
    %s174 = sphi 0, %s174
    %s176 = sphi 0, %s174
    %s177 = sphi 0, %s176
    %s191 = sphi 0, %s177
    %s195 = sphi 0, %s195
    %s197 = sphi 0, %s195
    %s198 = sphi 0, %s197
    %s212 = sphi 0, %s198
    %s216 = sphi 0, %s216
    %s218 = sphi 0, %s216
    %s219 = sphi 0, %s218
    %s233 = sphi 0, %s219
    %s237 = sphi 0, %s237
    %s239 = sphi 0, %s237
    %s240 = sphi 0, %s239
    %s254 = sphi 0, %s240
    %s258 = sphi 0, %s258
    %s260 = sphi 0, %s258
    %s261 = sphi 0, %s260
    %s275 = sphi 0, %s261
    %s279 = sphi 0, %s279
    %s281 = sphi 0, %s279
    %s282 = sphi 0, %s281
    %s296 = sphi 0, %s282
    %s300 = sphi 0, %s300
    %s302 = sphi 0, %s300
    %s303 = sphi 0, %s302
    %s317 = sphi 0, %s303
    %s321 = sphi 0, %s321
    %s323 = sphi 0, %s321
    %s324 = sphi 0, %s323
    %s338 = sphi 0, %s324
    %s342 = sphi 0, %s342
    %s344 = sphi 0, %s342
    %s345 = sphi 0, %s344
    %s359 = sphi 0, %s345
    %s363 = sphi 0, %s363
    %s365 = sphi 0, %s363
    %s366 = sphi 0, %s365
    %s380 = sphi 0, %s366
    %s384 = sphi 0, %s384
    %s386 = sphi 0, %s384
    %s387 = sphi 0, %s386
    %s401 = sphi 0, %s387
    %s405 = sphi 0, %s405
    %s407 = sphi 0, %s405
    %s408 = sphi 0, %s407
    %s422 = sphi 0, %s408
    %s426 = sphi 0, %s426
    %s428 = sphi 0, %s426
    %s429 = sphi 0, %s428
    %s443 = sphi 0, %s429
    %s449 = sphi 0, %s451
    %s452 = sphi 0, %s449
    %s453 = sphi 0, %s452
    %s469 = sphi 0, %s453
  $region4: #{transformer_forward.5} parent=0 // loop_header_branch
    %28 = sbr.rel (%p26) target = $region8
  $region5: #{transformer_forward.5} parent=0 // loop_body
    %s30 = ssub.s32 %s25, 1
    %s31 = ssub.s32 %s25, 2
    %s32 = sadd.s32 %s25, 1
    %s33 = ssub.s32 %s25, %s32
    %p34 = scmp.eq.s32.totalorder %s33, 0
    %s36 = sadd.s32 %s35, 1
    %s37 = scalar_select %p34, %s35, %s36
    %p40 = pneg %p34
    %p41 = scmp.eq.s32.totalorder %s25, 1
    %p42 = por %p40, %p41
    %p43 = scmp.ne.s32.totalorder %s35, %s38
    %p44 = scmp.eq.s32.totalorder %s25, 0
    %p45 = por %p43, %p44
    %p46 = scmp.ne.s32.totalorder %s35, %s38
    %p47 = scmp.eq.s32.totalorder %s30, 1
    %p48 = por %p46, %p47
    %p49 = scmp.ne.s32.totalorder %s38, %s39
    %p50 = scmp.eq.s32.totalorder %s30, 0
    %p51 = por %p49, %p50
    %p52 = scmp.ne.s32.totalorder %s38, %s39
    %p53 = scmp.eq.s32.totalorder %s31, 1
    %p54 = por %p52, %p53
    %p56 = scmp.ne.s32.totalorder %s39, %s55
    %p57 = scmp.eq.s32.totalorder %s31, 0
    %p58 = por %p56, %p57
    %s59 = ssub.s32 %s25, %s32
    %p60 = scmp.eq.s32.totalorder %s59, 0
    %s62 = sadd.s32 %s61, 1
    %s63 = scalar_select %p60, %s61, %s62
    %p66 = pneg %p60
    %p67 = scmp.eq.s32.totalorder %s25, 1
    %p68 = por %p66, %p67
    %p69 = scmp.ne.s32.totalorder %s61, %s64
    %p70 = scmp.eq.s32.totalorder %s25, 0
    %p71 = por %p69, %p70
    %p72 = scmp.ne.s32.totalorder %s61, %s64
    %p73 = scmp.eq.s32.totalorder %s30, 1
    %p74 = por %p72, %p73
    %p75 = scmp.ne.s32.totalorder %s64, %s65
    %p76 = scmp.eq.s32.totalorder %s30, 0
    %p77 = por %p75, %p76
    %p78 = scmp.ne.s32.totalorder %s64, %s65
    %p79 = scmp.eq.s32.totalorder %s31, 1
    %p80 = por %p78, %p79
    %p82 = scmp.ne.s32.totalorder %s65, %s81
    %p83 = scmp.eq.s32.totalorder %s31, 0
    %p84 = por %p82, %p83
    %s85 = ssub.s32 %s25, %s32
    %p86 = scmp.eq.s32.totalorder %s85, 0
    %s88 = sadd.s32 %s87, 1
    %s89 = scalar_select %p86, %s87, %s88
    %p92 = pneg %p86
    %p93 = scmp.eq.s32.totalorder %s25, 1
    %p94 = por %p92, %p93
    %p95 = scmp.ne.s32.totalorder %s87, %s90
    %p96 = scmp.eq.s32.totalorder %s25, 0
    %p97 = por %p95, %p96
    %p98 = scmp.ne.s32.totalorder %s87, %s90
    %p99 = scmp.eq.s32.totalorder %s30, 1
    %p100 = por %p98, %p99
    %p101 = scmp.ne.s32.totalorder %s90, %s91
    %p102 = scmp.eq.s32.totalorder %s30, 0
    %p103 = por %p101, %p102
    %p104 = scmp.ne.s32.totalorder %s90, %s91
    %p105 = scmp.eq.s32.totalorder %s31, 1
    %p106 = por %p104, %p105
    %p108 = scmp.ne.s32.totalorder %s91, %s107
    %p109 = scmp.eq.s32.totalorder %s31, 0
    %p110 = por %p108, %p109
    %s112 = sadd.s32 %s111, 1
    %p115 = scmp.eq.s32.totalorder %s25, 1
    %p116 = scmp.ne.s32.totalorder %s111, %s113
    %p117 = scmp.eq.s32.totalorder %s25, 0
    %p118 = por %p116, %p117
    %p119 = scmp.ne.s32.totalorder %s111, %s113
    %p120 = scmp.eq.s32.totalorder %s30, 1
    %p121 = por %p119, %p120
    %p122 = scmp.ne.s32.totalorder %s113, %s114
    %p123 = scmp.eq.s32.totalorder %s30, 0
    %p124 = por %p122, %p123
    %p125 = scmp.ne.s32.totalorder %s113, %s114
    %p126 = scmp.eq.s32.totalorder %s31, 1
    %p127 = por %p125, %p126
    %p129 = scmp.ne.s32.totalorder %s114, %s128
    %p130 = scmp.eq.s32.totalorder %s31, 0
    %p131 = por %p129, %p130
    %s133 = sadd.s32 %s132, 1
    %p136 = scmp.eq.s32.totalorder %s25, 1
    %p137 = scmp.ne.s32.totalorder %s132, %s134
    %p138 = scmp.eq.s32.totalorder %s25, 0
    %p139 = por %p137, %p138
    %p140 = scmp.ne.s32.totalorder %s132, %s134
    %p141 = scmp.eq.s32.totalorder %s30, 1
    %p142 = por %p140, %p141
    %p143 = scmp.ne.s32.totalorder %s134, %s135
    %p144 = scmp.eq.s32.totalorder %s30, 0
    %p145 = por %p143, %p144
    %p146 = scmp.ne.s32.totalorder %s134, %s135
    %p147 = scmp.eq.s32.totalorder %s31, 1
    %p148 = por %p146, %p147
    %p150 = scmp.ne.s32.totalorder %s135, %s149
    %p151 = scmp.eq.s32.totalorder %s31, 0
    %p152 = por %p150, %p151
    %s154 = sadd.s32 %s153, 1
    %p157 = scmp.eq.s32.totalorder %s25, 1
    %p158 = scmp.ne.s32.totalorder %s153, %s155
    %p159 = scmp.eq.s32.totalorder %s25, 0
    %p160 = por %p158, %p159
    %p161 = scmp.ne.s32.totalorder %s153, %s155
    %p162 = scmp.eq.s32.totalorder %s30, 1
    %p163 = por %p161, %p162
    %p164 = scmp.ne.s32.totalorder %s155, %s156
    %p165 = scmp.eq.s32.totalorder %s30, 0
    %p166 = por %p164, %p165
    %p167 = scmp.ne.s32.totalorder %s155, %s156
    %p168 = scmp.eq.s32.totalorder %s31, 1
    %p169 = por %p167, %p168
    %p171 = scmp.ne.s32.totalorder %s156, %s170
    %p172 = scmp.eq.s32.totalorder %s31, 0
    %p173 = por %p171, %p172
    %s175 = sadd.s32 %s174, 1
    %p178 = scmp.eq.s32.totalorder %s25, 1
    %p179 = scmp.ne.s32.totalorder %s174, %s176
    %p180 = scmp.eq.s32.totalorder %s25, 0
    %p181 = por %p179, %p180
    %p182 = scmp.ne.s32.totalorder %s174, %s176
    %p183 = scmp.eq.s32.totalorder %s30, 1
    %p184 = por %p182, %p183
    %p185 = scmp.ne.s32.totalorder %s176, %s177
    %p186 = scmp.eq.s32.totalorder %s30, 0
    %p187 = por %p185, %p186
    %p188 = scmp.ne.s32.totalorder %s176, %s177
    %p189 = scmp.eq.s32.totalorder %s31, 1
    %p190 = por %p188, %p189
    %p192 = scmp.ne.s32.totalorder %s177, %s191
    %p193 = scmp.eq.s32.totalorder %s31, 0
    %p194 = por %p192, %p193
    %s196 = sadd.s32 %s195, 1
    %p199 = scmp.eq.s32.totalorder %s25, 1
    %p200 = scmp.ne.s32.totalorder %s195, %s197
    %p201 = scmp.eq.s32.totalorder %s25, 0
    %p202 = por %p200, %p201
    %p203 = scmp.ne.s32.totalorder %s195, %s197
    %p204 = scmp.eq.s32.totalorder %s30, 1
    %p205 = por %p203, %p204
    %p206 = scmp.ne.s32.totalorder %s197, %s198
    %p207 = scmp.eq.s32.totalorder %s30, 0
    %p208 = por %p206, %p207
    %p209 = scmp.ne.s32.totalorder %s197, %s198
    %p210 = scmp.eq.s32.totalorder %s31, 1
    %p211 = por %p209, %p210
    %p213 = scmp.ne.s32.totalorder %s198, %s212
    %p214 = scmp.eq.s32.totalorder %s31, 0
    %p215 = por %p213, %p214
    %s217 = sadd.s32 %s216, 1
    %p220 = scmp.eq.s32.totalorder %s25, 1
    %p221 = scmp.ne.s32.totalorder %s216, %s218
    %p222 = scmp.eq.s32.totalorder %s25, 0
    %p223 = por %p221, %p222
    %p224 = scmp.ne.s32.totalorder %s216, %s218
    %p225 = scmp.eq.s32.totalorder %s30, 1
    %p226 = por %p224, %p225
    %p227 = scmp.ne.s32.totalorder %s218, %s219
    %p228 = scmp.eq.s32.totalorder %s30, 0
    %p229 = por %p227, %p228
    %p230 = scmp.ne.s32.totalorder %s218, %s219
    %p231 = scmp.eq.s32.totalorder %s31, 1
    %p232 = por %p230, %p231
    %p234 = scmp.ne.s32.totalorder %s219, %s233
    %p235 = scmp.eq.s32.totalorder %s31, 0
    %p236 = por %p234, %p235
    %s238 = sadd.s32 %s237, 1
    %p241 = scmp.eq.s32.totalorder %s25, 1
    %p242 = scmp.ne.s32.totalorder %s237, %s239
    %p243 = scmp.eq.s32.totalorder %s25, 0
    %p244 = por %p242, %p243
    %p245 = scmp.ne.s32.totalorder %s237, %s239
    %p246 = scmp.eq.s32.totalorder %s30, 1
    %p247 = por %p245, %p246
    %p248 = scmp.ne.s32.totalorder %s239, %s240
    %p249 = scmp.eq.s32.totalorder %s30, 0
    %p250 = por %p248, %p249
    %p251 = scmp.ne.s32.totalorder %s239, %s240
    %p252 = scmp.eq.s32.totalorder %s31, 1
    %p253 = por %p251, %p252
    %p255 = scmp.ne.s32.totalorder %s240, %s254
    %p256 = scmp.eq.s32.totalorder %s31, 0
    %p257 = por %p255, %p256
    %s259 = sadd.s32 %s258, 1
    %p262 = scmp.eq.s32.totalorder %s25, 1
    %p263 = scmp.ne.s32.totalorder %s258, %s260
    %p264 = scmp.eq.s32.totalorder %s25, 0
    %p265 = por %p263, %p264
    %p266 = scmp.ne.s32.totalorder %s258, %s260
    %p267 = scmp.eq.s32.totalorder %s30, 1
    %p268 = por %p266, %p267
    %p269 = scmp.ne.s32.totalorder %s260, %s261
    %p270 = scmp.eq.s32.totalorder %s30, 0
    %p271 = por %p269, %p270
    %p272 = scmp.ne.s32.totalorder %s260, %s261
    %p273 = scmp.eq.s32.totalorder %s31, 1
    %p274 = por %p272, %p273
    %p276 = scmp.ne.s32.totalorder %s261, %s275
    %p277 = scmp.eq.s32.totalorder %s31, 0
    %p278 = por %p276, %p277
    %s280 = sadd.s32 %s279, 1
    %p283 = scmp.eq.s32.totalorder %s25, 1
    %p284 = scmp.ne.s32.totalorder %s279, %s281
    %p285 = scmp.eq.s32.totalorder %s25, 0
    %p286 = por %p284, %p285
    %p287 = scmp.ne.s32.totalorder %s279, %s281
    %p288 = scmp.eq.s32.totalorder %s30, 1
    %p289 = por %p287, %p288
    %p290 = scmp.ne.s32.totalorder %s281, %s282
    %p291 = scmp.eq.s32.totalorder %s30, 0
    %p292 = por %p290, %p291
    %p293 = scmp.ne.s32.totalorder %s281, %s282
    %p294 = scmp.eq.s32.totalorder %s31, 1
    %p295 = por %p293, %p294
    %p297 = scmp.ne.s32.totalorder %s282, %s296
    %p298 = scmp.eq.s32.totalorder %s31, 0
    %p299 = por %p297, %p298
    %s301 = sadd.s32 %s300, 1
    %p304 = scmp.eq.s32.totalorder %s25, 1
    %p305 = scmp.ne.s32.totalorder %s300, %s302
    %p306 = scmp.eq.s32.totalorder %s25, 0
    %p307 = por %p305, %p306
    %p308 = scmp.ne.s32.totalorder %s300, %s302
    %p309 = scmp.eq.s32.totalorder %s30, 1
    %p310 = por %p308, %p309
    %p311 = scmp.ne.s32.totalorder %s302, %s303
    %p312 = scmp.eq.s32.totalorder %s30, 0
    %p313 = por %p311, %p312
    %p314 = scmp.ne.s32.totalorder %s302, %s303
    %p315 = scmp.eq.s32.totalorder %s31, 1
    %p316 = por %p314, %p315
    %p318 = scmp.ne.s32.totalorder %s303, %s317
    %p319 = scmp.eq.s32.totalorder %s31, 0
    %p320 = por %p318, %p319
    %s322 = sadd.s32 %s321, 1
    %p325 = scmp.eq.s32.totalorder %s25, 1
    %p326 = scmp.ne.s32.totalorder %s321, %s323
    %p327 = scmp.eq.s32.totalorder %s25, 0
    %p328 = por %p326, %p327
    %p329 = scmp.ne.s32.totalorder %s321, %s323
    %p330 = scmp.eq.s32.totalorder %s30, 1
    %p331 = por %p329, %p330
    %p332 = scmp.ne.s32.totalorder %s323, %s324
    %p333 = scmp.eq.s32.totalorder %s30, 0
    %p334 = por %p332, %p333
    %p335 = scmp.ne.s32.totalorder %s323, %s324
    %p336 = scmp.eq.s32.totalorder %s31, 1
    %p337 = por %p335, %p336
    %p339 = scmp.ne.s32.totalorder %s324, %s338
    %p340 = scmp.eq.s32.totalorder %s31, 0
    %p341 = por %p339, %p340
    %s343 = sadd.s32 %s342, 1
    %p346 = scmp.eq.s32.totalorder %s25, 1
    %p347 = scmp.ne.s32.totalorder %s342, %s344
    %p348 = scmp.eq.s32.totalorder %s25, 0
    %p349 = por %p347, %p348
    %p350 = scmp.ne.s32.totalorder %s342, %s344
    %p351 = scmp.eq.s32.totalorder %s30, 1
    %p352 = por %p350, %p351
    %p353 = scmp.ne.s32.totalorder %s344, %s345
    %p354 = scmp.eq.s32.totalorder %s30, 0
    %p355 = por %p353, %p354
    %p356 = scmp.ne.s32.totalorder %s344, %s345
    %p357 = scmp.eq.s32.totalorder %s31, 1
    %p358 = por %p356, %p357
    %p360 = scmp.ne.s32.totalorder %s345, %s359
    %p361 = scmp.eq.s32.totalorder %s31, 0
    %p362 = por %p360, %p361
    %s364 = sadd.s32 %s363, 1
    %p367 = scmp.eq.s32.totalorder %s25, 1
    %p368 = scmp.ne.s32.totalorder %s363, %s365
    %p369 = scmp.eq.s32.totalorder %s25, 0
    %p370 = por %p368, %p369
    %p371 = scmp.ne.s32.totalorder %s363, %s365
    %p372 = scmp.eq.s32.totalorder %s30, 1
    %p373 = por %p371, %p372
    %p374 = scmp.ne.s32.totalorder %s365, %s366
    %p375 = scmp.eq.s32.totalorder %s30, 0
    %p376 = por %p374, %p375
    %p377 = scmp.ne.s32.totalorder %s365, %s366
    %p378 = scmp.eq.s32.totalorder %s31, 1
    %p379 = por %p377, %p378
    %p381 = scmp.ne.s32.totalorder %s366, %s380
    %p382 = scmp.eq.s32.totalorder %s31, 0
    %p383 = por %p381, %p382
    %s385 = sadd.s32 %s384, 1
    %p388 = scmp.eq.s32.totalorder %s25, 1
    %p389 = scmp.ne.s32.totalorder %s384, %s386
    %p390 = scmp.eq.s32.totalorder %s25, 0
    %p391 = por %p389, %p390
    %p392 = scmp.ne.s32.totalorder %s384, %s386
    %p393 = scmp.eq.s32.totalorder %s30, 1
    %p394 = por %p392, %p393
    %p395 = scmp.ne.s32.totalorder %s386, %s387
    %p396 = scmp.eq.s32.totalorder %s30, 0
    %p397 = por %p395, %p396
    %p398 = scmp.ne.s32.totalorder %s386, %s387
    %p399 = scmp.eq.s32.totalorder %s31, 1
    %p400 = por %p398, %p399
    %p402 = scmp.ne.s32.totalorder %s387, %s401
    %p403 = scmp.eq.s32.totalorder %s31, 0
    %p404 = por %p402, %p403
    %s406 = sadd.s32 %s405, 1
    %p409 = scmp.eq.s32.totalorder %s25, 1
    %p410 = scmp.ne.s32.totalorder %s405, %s407
    %p411 = scmp.eq.s32.totalorder %s25, 0
    %p412 = por %p410, %p411
    %p413 = scmp.ne.s32.totalorder %s405, %s407
    %p414 = scmp.eq.s32.totalorder %s30, 1
    %p415 = por %p413, %p414
    %p416 = scmp.ne.s32.totalorder %s407, %s408
    %p417 = scmp.eq.s32.totalorder %s30, 0
    %p418 = por %p416, %p417
    %p419 = scmp.ne.s32.totalorder %s407, %s408
    %p420 = scmp.eq.s32.totalorder %s31, 1
    %p421 = por %p419, %p420
    %p423 = scmp.ne.s32.totalorder %s408, %s422
    %p424 = scmp.eq.s32.totalorder %s31, 0
    %p425 = por %p423, %p424
    %s427 = sadd.s32 %s426, 1
    %p430 = scmp.eq.s32.totalorder %s25, 1
    %p431 = scmp.ne.s32.totalorder %s426, %s428
    %p432 = scmp.eq.s32.totalorder %s25, 0
    %p433 = por %p431, %p432
    %p434 = scmp.ne.s32.totalorder %s426, %s428
    %p435 = scmp.eq.s32.totalorder %s30, 1
    %p436 = por %p434, %p435
    %p437 = scmp.ne.s32.totalorder %s428, %s429
    %p438 = scmp.eq.s32.totalorder %s30, 0
    %p439 = por %p437, %p438
    %p440 = scmp.ne.s32.totalorder %s428, %s429
    %p441 = scmp.eq.s32.totalorder %s31, 1
    %p442 = por %p440, %p441
    %p444 = scmp.ne.s32.totalorder %s429, %s443
    %p445 = scmp.eq.s32.totalorder %s31, 0
    %p446 = por %p444, %p445
    %s447 = ssub.s32 %s25, %s32
    %p448 = scmp.eq.s32.totalorder %s447, 0
    %s450 = sadd.s32 %s449, 1
    %s451 = scalar_select %p448, %s449, %s450
    %p454 = pneg %p448
    %p455 = scmp.eq.s32.totalorder %s25, 1
    %p456 = por %p454, %p455
    %p457 = scmp.ne.s32.totalorder %s449, %s452
    %p458 = scmp.eq.s32.totalorder %s25, 0
    %p459 = por %p457, %p458
    %p460 = scmp.ne.s32.totalorder %s449, %s452
    %p461 = scmp.eq.s32.totalorder %s30, 1
    %p462 = por %p460, %p461
    %p463 = scmp.ne.s32.totalorder %s452, %s453
    %p464 = scmp.eq.s32.totalorder %s30, 0
    %p465 = por %p463, %p464
    %p466 = scmp.ne.s32.totalorder %s452, %s453
    %p467 = scmp.eq.s32.totalorder %s31, 1
    %p468 = por %p466, %p467
    %p470 = scmp.ne.s32.totalorder %s453, %s469
    %p471 = scmp.eq.s32.totalorder %s31, 0
    %p472 = por %p470, %p471
    %p473 = scmp.le.s32.totalorder 1, %s25
    %p474 = scmp.lt.s32.totalorder %s25, 3
    %p475 = pnand %p473, %p474
    %p476 = pneg %p475
    // Predicated region
    $region9: #{transformer_forward.5} parent=5 // pred_check
      _
    $region10: #{transformer_forward.5} parent=5 // pred_check_branch
      %478 = sbr.rel (%p475) target = $region12
    $region11: #{transformer_forward.5} parent=5 // pred_region
      %s479 = ssub.s32 %s25, 1
      // Predicated region
      $region13: #{transformer_forward.5} parent=11 // pred_check
        %p480 = pneg %p124
      $region14: #{transformer_forward.5} parent=11 // pred_check_branch
        %482 = sbr.rel (%p480) target = $region16
      $region15: #{transformer_forward.5} parent=11 // pred_region
        _
      $region16: #{transformer_forward.5} parent=11 // pred_fallthru
        _
      // Predicated region
      $region17: #{transformer_forward.5} parent=11 // pred_check
        %p483 = pneg %p145
      $region18: #{transformer_forward.5} parent=11 // pred_check_branch
        %485 = sbr.rel (%p483) target = $region20
      $region19: #{transformer_forward.5} parent=11 // pred_region
        _
      $region20: #{transformer_forward.5} parent=11 // pred_fallthru
        _
      // Predicated region
      $region21: #{transformer_forward.5} parent=11 // pred_check
        %p486 = pneg %p166
      $region22: #{transformer_forward.5} parent=11 // pred_check_branch
        %488 = sbr.rel (%p486) target = $region24
      $region23: #{transformer_forward.5} parent=11 // pred_region
        _
      $region24: #{transformer_forward.5} parent=11 // pred_fallthru
        _
      // Predicated region
      $region25: #{transformer_forward.5} parent=11 // pred_check
        %p489 = pneg %p187
      $region26: #{transformer_forward.5} parent=11 // pred_check_branch
        %491 = sbr.rel (%p489) target = $region28
      $region27: #{transformer_forward.5} parent=11 // pred_region
        _
      $region28: #{transformer_forward.5} parent=11 // pred_fallthru
        _
      // Predicated region
      $region29: #{transformer_forward.5} parent=11 // pred_check
        %p492 = pneg %p208
      $region30: #{transformer_forward.5} parent=11 // pred_check_branch
        %494 = sbr.rel (%p492) target = $region32
      $region31: #{transformer_forward.5} parent=11 // pred_region
        _
      $region32: #{transformer_forward.5} parent=11 // pred_fallthru
        _
      // Predicated region
      $region33: #{transformer_forward.5} parent=11 // pred_check
        %p495 = pneg %p229
      $region34: #{transformer_forward.5} parent=11 // pred_check_branch
        %497 = sbr.rel (%p495) target = $region36
      $region35: #{transformer_forward.5} parent=11 // pred_region
        _
      $region36: #{transformer_forward.5} parent=11 // pred_fallthru
        _
      // Predicated region
      $region37: #{transformer_forward.5} parent=11 // pred_check
        %p498 = pneg %p250
      $region38: #{transformer_forward.5} parent=11 // pred_check_branch
        %500 = sbr.rel (%p498) target = $region40
      $region39: #{transformer_forward.5} parent=11 // pred_region
        _
      $region40: #{transformer_forward.5} parent=11 // pred_fallthru
        _
      // Predicated region
      $region41: #{transformer_forward.5} parent=11 // pred_check
        %p501 = pneg %p271
      $region42: #{transformer_forward.5} parent=11 // pred_check_branch
        %503 = sbr.rel (%p501) target = $region44
      $region43: #{transformer_forward.5} parent=11 // pred_region
        _
      $region44: #{transformer_forward.5} parent=11 // pred_fallthru
        _
      // Predicated region
      $region45: #{transformer_forward.5} parent=11 // pred_check
        %p504 = pneg %p292
      $region46: #{transformer_forward.5} parent=11 // pred_check_branch
        %506 = sbr.rel (%p504) target = $region48
      $region47: #{transformer_forward.5} parent=11 // pred_region
        _
      $region48: #{transformer_forward.5} parent=11 // pred_fallthru
        _
      // Predicated region
      $region49: #{transformer_forward.5} parent=11 // pred_check
        %p507 = pneg %p313
      $region50: #{transformer_forward.5} parent=11 // pred_check_branch
        %509 = sbr.rel (%p507) target = $region52
      $region51: #{transformer_forward.5} parent=11 // pred_region
        _
      $region52: #{transformer_forward.5} parent=11 // pred_fallthru
        _
      // Predicated region
      $region53: #{transformer_forward.5} parent=11 // pred_check
        %p510 = pneg %p334
      $region54: #{transformer_forward.5} parent=11 // pred_check_branch
        %512 = sbr.rel (%p510) target = $region56
      $region55: #{transformer_forward.5} parent=11 // pred_region
        _
      $region56: #{transformer_forward.5} parent=11 // pred_fallthru
        _
      // Predicated region
      $region57: #{transformer_forward.5} parent=11 // pred_check
        %p513 = pneg %p355
      $region58: #{transformer_forward.5} parent=11 // pred_check_branch
        %515 = sbr.rel (%p513) target = $region60
      $region59: #{transformer_forward.5} parent=11 // pred_region
        _
      $region60: #{transformer_forward.5} parent=11 // pred_fallthru
        _
      // Predicated region
      $region61: #{transformer_forward.5} parent=11 // pred_check
        %p516 = pneg %p376
      $region62: #{transformer_forward.5} parent=11 // pred_check_branch
        %518 = sbr.rel (%p516) target = $region64
      $region63: #{transformer_forward.5} parent=11 // pred_region
        _
      $region64: #{transformer_forward.5} parent=11 // pred_fallthru
        _
      // Predicated region
      $region65: #{transformer_forward.5} parent=11 // pred_check
        %p519 = pneg %p397
      $region66: #{transformer_forward.5} parent=11 // pred_check_branch
        %521 = sbr.rel (%p519) target = $region68
      $region67: #{transformer_forward.5} parent=11 // pred_region
        _
      $region68: #{transformer_forward.5} parent=11 // pred_fallthru
        _
      // Predicated region
      $region69: #{transformer_forward.5} parent=11 // pred_check
        %p522 = pneg %p418
      $region70: #{transformer_forward.5} parent=11 // pred_check_branch
        %524 = sbr.rel (%p522) target = $region72
      $region71: #{transformer_forward.5} parent=11 // pred_region
        _
      $region72: #{transformer_forward.5} parent=11 // pred_fallthru
        _
      // Predicated region
      $region73: #{transformer_forward.5} parent=11 // pred_check
        %p525 = pneg %p439
      $region74: #{transformer_forward.5} parent=11 // pred_check_branch
        %527 = sbr.rel (%p525) target = $region76
      $region75: #{transformer_forward.5} parent=11 // pred_region
        _
      $region76: #{transformer_forward.5} parent=11 // pred_fallthru
        _
    $region12: #{transformer_forward.5} parent=5 // pred_fallthru
      _
    %p528 = scmp.lt.s32.totalorder %s25, 2
    // Predicated region
    $region77: #{transformer_forward.5} parent=5 // pred_check
      %p529 = pneg %p528
    $region78: #{transformer_forward.5} parent=5 // pred_check_branch
      %531 = sbr.rel (%p529) target = $region80
    $region79: #{transformer_forward.5} parent=5 // pred_region
      // Predicated region
      $region81: #{transformer_forward.5} parent=79 // pred_check
        %p532 = pneg %p45
      $region82: #{transformer_forward.5} parent=79 // pred_check_branch
        %534 = sbr.rel (%p532) target = $region84
      $region83: #{transformer_forward.5} parent=79 // pred_region
        %p535 = scmp.lt.s32.totalorder %s25, 1
        %s536 = scalar_select %p535, %s25, 1
        %s537 = smul.addr %s536, 4
        %s538 = scalar_lea.vmem %s0, %s537
      $region84: #{transformer_forward.5} parent=79 // pred_fallthru
        _
      // Predicated region
      $region85: #{transformer_forward.5} parent=79 // pred_check
        %p539 = pneg %p71
      $region86: #{transformer_forward.5} parent=79 // pred_check_branch
        %541 = sbr.rel (%p539) target = $region88
      $region87: #{transformer_forward.5} parent=79 // pred_region
        %p542 = scmp.lt.s32.totalorder %s25, 1
        %s543 = scalar_select %p542, %s25, 1
        %s544 = scalar_lea.vmem %s1, %s543
      $region88: #{transformer_forward.5} parent=79 // pred_fallthru
        _
      // Predicated region
      $region89: #{transformer_forward.5} parent=79 // pred_check
        %p545 = pneg %p97
      $region90: #{transformer_forward.5} parent=79 // pred_check_branch
        %547 = sbr.rel (%p545) target = $region92
      $region91: #{transformer_forward.5} parent=79 // pred_region
        %p548 = scmp.lt.s32.totalorder %s25, 1
        %s549 = scalar_select %p548, %s25, 1
        %s550 = smul.addr %s549, 8
        %s551 = scalar_lea.vmem %s2, %s550
      $region92: #{transformer_forward.5} parent=79 // pred_fallthru
        _
    $region80: #{transformer_forward.5} parent=5 // pred_fallthru
      _
    %p552 = scmp.le.s32.totalorder 1, %s25
    %p553 = scmp.lt.s32.totalorder %s25, 3
    %p554 = pnand %p552, %p553
    %p555 = pneg %p554
    // Predicated region
    $region93: #{transformer_forward.5} parent=5 // pred_check
      _
    $region94: #{transformer_forward.5} parent=5 // pred_check_branch
      %557 = sbr.rel (%p554) target = $region96
    $region95: #{transformer_forward.5} parent=5 // pred_region
      %s558 = ssub.s32 %s25, 1
      %p559 = scmp.lt.s32.totalorder %s30, 1
      %s560 = scalar_select %p559, %s30, 1
      %s561 = smul.addr %s560, 4
      %s562 = scalar_lea.vmem %s0, %s561
      %p563 = pneg %p51
      %p564 = pneg %p48
      %p565 = scmp.lt.s32.totalorder %s30, 1
      %s566 = scalar_select %p565, %s30, 1
      %s567 = scalar_lea.vmem %s1, %s566
      %p568 = pneg %p77
      %p569 = pneg %p74
      %p570 = scmp.lt.s32.totalorder %s30, 1
      %s571 = scalar_select %p570, %s30, 1
      %s572 = smul.addr %s571, 8
      %s573 = scalar_lea.vmem %s2, %s572
      %p574 = pneg %p103
      %p575 = pneg %p100
      %p576 = pneg %p124
      %p577 = pneg %p121
      %p578 = pneg %p145
      %p579 = pneg %p142
      %p580 = pneg %p166
      %p581 = pneg %p163
      %p582 = pneg %p187
      %p583 = pneg %p184
      %p584 = pneg %p208
      %p585 = pneg %p205
      %p586 = pneg %p229
      %p587 = pneg %p226
      %p588 = pneg %p250
      %p589 = pneg %p247
      %p590 = pneg %p271
      %p591 = pneg %p268
      %p592 = pneg %p292
      %p593 = pneg %p289
      %p594 = pneg %p313
      %p595 = pneg %p310
      %p596 = pneg %p334
      %p597 = pneg %p331
      %p598 = pneg %p355
      %p599 = pneg %p352
      %p600 = pneg %p376
      %p601 = pneg %p373
      %p602 = pneg %p397
      %p603 = pneg %p394
      %p604 = pneg %p418
      %p605 = pneg %p415
      %p606 = pneg %p439
      %p607 = pneg %p436
      %p608 = pneg %p465
      %p609 = pneg %p462
      %p610 = scmp.lt.s32.totalorder %s30, 1
      %s611 = scalar_select %p610, %s30, 1
      %s612 = smul.addr %s611, 4
      %s613 = scalar_lea.vmem %s19, %s612
      %p614 = scmp.lt.s32.totalorder %s30, 1
      %s615 = scalar_select %p614, %s30, 1
      %s616 = smul.addr %s615, 4
      %s617 = scalar_lea.vmem %s0, %s616
      %p618 = scmp.lt.s32.totalorder %s30, 1
      %s619 = scalar_select %p618, %s30, 1
      %s620 = scalar_lea.vmem %s1, %s619
      %p621 = scmp.lt.s32.totalorder %s30, 1
      %s622 = scalar_select %p621, %s30, 1
      %s623 = smul.addr %s622, 8
      %s624 = scalar_lea.vmem %s2, %s623
      %p625 = scmp.lt.s32.totalorder %s30, 1
      %s626 = scalar_select %p625, %s30, 1
      %s627 = smul.addr %s626, 4
      %s628 = scalar_lea.vmem %s19, %s627
      %v630 = vld [vmem:[%s617] sm:$0xf]
      %v631 = vunpack.c.l.bf16 %v630
      %v632 = vld [vmem:[%s620] sm:$0x1]
      %v633 = vld [vmem:[%s624] sm:$0xff]
      %v634 = vld [vmem:[%s3] sm:$0xf]
      %v635 = vld [vmem:[%s3 + $0x4] sm:$0xf]
      %v636 = vld [vmem:[%s3 + $0x8] sm:$0xf]
      %v637 = vld [vmem:[%s3 + $0xc] sm:$0xf]
      %v638 = vld [vmem:[%s4] sm:$0x1]
      %v640 = vlaneseq
      %v641 = vshrl.u32 %v640, 7
      %v642 = vsub.s32 0, %v641
      %v643 = vrot.slane %v638, %v642
      %v649 = vunpack.c.l.b16 %v634
      %v650 = vunpack.c.l.b16 %v635
      %v651 = vunpack.c.l.b16 %v636
      %v652 = vunpack.c.l.b16 %v637
      %v653 = vpack.c.b16 %v650, %v649
      %v654 = vpack.c.b16 %v652, %v651
      %vm657 = vcmask 261120
      %v659 = vsel %vm657, %v630, 0
      %661 = vmatprep.subr.bf16.mxu0 0
      %662 = vmatpush1.bf16.msra.mxu0 %v653
      %663 = vmatprep.subr.bf16.mxu0 0
      %664 = vmatpush1.bf16.msra.mxu0 %v654
      %665 = vmatprep.subr.bf16.mxu0 0
      %666 = vmatpush1.bf16.msra.mxu0 0
      %667 = vmatprep.subr.bf16.mxu0 0
      %668 = vmatpush1.bf16.msra.mxu0 0
      %669 = vmatprep.subr.bf16.mxu0 0
      %670 = vmatpush1.bf16.msra.mxu0 0
      %671 = vmatprep.subr.bf16.mxu0 0
      %672 = vmatpush1.bf16.msra.mxu0 0
      %673 = vmatprep.subr.bf16.mxu0 0
      %674 = vmatpush1.bf16.msra.mxu0 0
      %675 = vmatprep.subr.bf16.mxu0 0
      %676 = vmatpush1.bf16.msra.mxu0 0
      %677 = vmatprep.subr.bf16.mxu0 0
      %678 = vmatpush1.bf16.msra.mxu0 0
      %679 = vmatprep.subr.bf16.mxu0 0
      %680 = vmatpush1.bf16.msra.mxu0 0
      %681 = vmatprep.subr.bf16.mxu0 0
      %682 = vmatpush1.bf16.msra.mxu0 0
      %683 = vmatprep.subr.bf16.mxu0 0
      %684 = vmatpush1.bf16.msra.mxu0 0
      %685 = vmatprep.subr.bf16.mxu0 0
      %686 = vmatpush1.bf16.msra.mxu0 0
      %687 = vmatprep.subr.bf16.mxu0 0
      %688 = vmatpush1.bf16.msra.mxu0 0
      %689 = vmatprep.subr.bf16.mxu0 0
      %690 = vmatpush1.bf16.msra.mxu0 0
      %691 = vmatprep.subr.bf16.mxu0 0
      %692 = vmatpush1.bf16.msra.mxu0 0
      %693 = vmatprep.mubr.bf16.mxu0 0
      %694 = vmatmul.mubr.bf16.gmra.mrb[0].mxu0 %v659
      %v695 = vpop.f32.mrb[0].mxu0
      %v696 = vadd.f32 %v643, %v695
      %v697 = vpop.f32.mrb[0].mxu0
      %v698 = vpop.f32.mrb[0].mxu0
      %v699 = vpop.f32.mrb[0].mxu0
      %700 = vdwg.mxu0
      %v701 = vmul.f32 %v696, 0.35355338
      %v702 = vld [vmem:[%s5] sm:$0xf]
      %v703 = vld [vmem:[%s5 + $0x4] sm:$0xf]
      %v704 = vld [vmem:[%s5 + $0x8] sm:$0xf]
      %v705 = vld [vmem:[%s5 + $0xc] sm:$0xf]
      %v706 = vld [vmem:[%s6] sm:$0x1]
      %v708 = vlaneseq
      %v709 = vshrl.u32 %v708, 7
      %v710 = vsub.s32 0, %v709
      %v711 = vrot.slane %v706, %v710
      %v717 = vunpack.c.l.b16 %v702
      %v718 = vunpack.c.l.b16 %v703
      %v719 = vunpack.c.l.b16 %v704
      %v720 = vunpack.c.l.b16 %v705
      %v721 = vpack.c.b16 %v718, %v717
      %v722 = vpack.c.b16 %v720, %v719
      %725 = vmatprep.subr.bf16.mxu0 0
      %726 = vmatpush1.bf16.msra.mxu0 %v721
      %727 = vmatprep.subr.bf16.mxu0 0
      %728 = vmatpush1.bf16.msra.mxu0 %v722
      %729 = vmatprep.subr.bf16.mxu0 0
      %730 = vmatpush1.bf16.msra.mxu0 0
      %731 = vmatprep.subr.bf16.mxu0 0
      %732 = vmatpush1.bf16.msra.mxu0 0
      %733 = vmatprep.subr.bf16.mxu0 0
      %734 = vmatpush1.bf16.msra.mxu0 0
      %735 = vmatprep.subr.bf16.mxu0 0
      %736 = vmatpush1.bf16.msra.mxu0 0
      %737 = vmatprep.subr.bf16.mxu0 0
      %738 = vmatpush1.bf16.msra.mxu0 0
      %739 = vmatprep.subr.bf16.mxu0 0
      %740 = vmatpush1.bf16.msra.mxu0 0
      %741 = vmatprep.subr.bf16.mxu0 0
      %742 = vmatpush1.bf16.msra.mxu0 0
      %743 = vmatprep.subr.bf16.mxu0 0
      %744 = vmatpush1.bf16.msra.mxu0 0
      %745 = vmatprep.subr.bf16.mxu0 0
      %746 = vmatpush1.bf16.msra.mxu0 0
      %747 = vmatprep.subr.bf16.mxu0 0
      %748 = vmatpush1.bf16.msra.mxu0 0
      %749 = vmatprep.subr.bf16.mxu0 0
      %750 = vmatpush1.bf16.msra.mxu0 0
      %751 = vmatprep.subr.bf16.mxu0 0
      %752 = vmatpush1.bf16.msra.mxu0 0
      %753 = vmatprep.subr.bf16.mxu0 0
      %754 = vmatpush1.bf16.msra.mxu0 0
      %755 = vmatprep.subr.bf16.mxu0 0
      %756 = vmatpush1.bf16.msra.mxu0 0
      %757 = vmatprep.mubr.bf16.mxu0 0
      %758 = vmatmul.mubr.bf16.gmra.mrb[0].mxu0 %v659
      %v759 = vpop.f32.mrb[0].mxu0
      %v760 = vadd.f32 %v711, %v759
      %v761 = vpop.f32.mrb[0].mxu0
      %v762 = vpop.f32.mrb[0].mxu0
      %v763 = vpop.f32.mrb[0].mxu0
      %764 = vdwg.mxu0
      %v765 = vld [vmem:[%s7] sm:$0xf]
      %v766 = vld [vmem:[%s7 + $0x4] sm:$0xf]
      %v767 = vld [vmem:[%s7 + $0x8] sm:$0xf]
      %v768 = vld [vmem:[%s7 + $0xc] sm:$0xf]
      %v769 = vld [vmem:[%s8] sm:$0x1]
      %v771 = vlaneseq
      %v772 = vshrl.u32 %v771, 7
      %v773 = vsub.s32 0, %v772
      %v774 = vrot.slane %v769, %v773
      %v780 = vunpack.c.l.b16 %v765
      %v781 = vunpack.c.l.b16 %v766
      %v782 = vunpack.c.l.b16 %v767
      %v783 = vunpack.c.l.b16 %v768
      %v784 = vpack.c.b16 %v781, %v780
      %v785 = vpack.c.b16 %v783, %v782
      %788 = vmatprep.subr.bf16.mxu0 0
      %789 = vmatpush1.bf16.msra.mxu0 %v784
      %790 = vmatprep.subr.bf16.mxu0 0
      %791 = vmatpush1.bf16.msra.mxu0 %v785
      %792 = vmatprep.subr.bf16.mxu0 0
      %793 = vmatpush1.bf16.msra.mxu0 0
      %794 = vmatprep.subr.bf16.mxu0 0
      %795 = vmatpush1.bf16.msra.mxu0 0
      %796 = vmatprep.subr.bf16.mxu0 0
      %797 = vmatpush1.bf16.msra.mxu0 0
      %798 = vmatprep.subr.bf16.mxu0 0
      %799 = vmatpush1.bf16.msra.mxu0 0
      %800 = vmatprep.subr.bf16.mxu0 0
      %801 = vmatpush1.bf16.msra.mxu0 0
      %802 = vmatprep.subr.bf16.mxu0 0
      %803 = vmatpush1.bf16.msra.mxu0 0
      %804 = vmatprep.subr.bf16.mxu0 0
      %805 = vmatpush1.bf16.msra.mxu0 0
      %806 = vmatprep.subr.bf16.mxu0 0
      %807 = vmatpush1.bf16.msra.mxu0 0
      %808 = vmatprep.subr.bf16.mxu0 0
      %809 = vmatpush1.bf16.msra.mxu0 0
      %810 = vmatprep.subr.bf16.mxu0 0
      %811 = vmatpush1.bf16.msra.mxu0 0
      %812 = vmatprep.subr.bf16.mxu0 0
      %813 = vmatpush1.bf16.msra.mxu0 0
      %814 = vmatprep.subr.bf16.mxu0 0
      %815 = vmatpush1.bf16.msra.mxu0 0
      %816 = vmatprep.subr.bf16.mxu0 0
      %817 = vmatpush1.bf16.msra.mxu0 0
      %818 = vmatprep.subr.bf16.mxu0 0
      %819 = vmatpush1.bf16.msra.mxu0 0
      %820 = vmatprep.mubr.bf16.mxu0 0
      %821 = vmatmul.mubr.bf16.gmra.mrb[0].mxu0 %v659
      %v822 = vpop.f32.mrb[0].mxu0
      %v823 = vadd.f32 %v774, %v822
      %v824 = vpop.f32.mrb[0].mxu0
      %v825 = vpop.f32.mrb[0].mxu0
      %v826 = vpop.f32.mrb[0].mxu0
      %827 = vdwg.mxu0
      %v828 = vpack.c.bf16 %v701, %v701
      %v829 = vpack.c.bf16 %v760, %v760
      %v831 = vlaneseq
      %v832 = vshrl.u32 %v831, 7
      %v833 = vsub.s32 0, %v832
      %v834 = vrot.slane %v632, %v833
      %vm836 = vcmask 64512
      %v838 = vsel %vm836, %v828, 0
      %v841 = vsel %vm836, %v829, 0
      %843 = vmatprep.subr.bf16.mxu0 0
      %844 = vmatpush1.bf16.xpose.msra.mxu0 %v841
      %845 = vmatprep.subr.bf16.mxu0 0
      %846 = vmatpush1.bf16.xpose.msra.mxu0 0
      %847 = vmatprep.subr.bf16.mxu0 0
      %848 = vmatpush1.bf16.xpose.msra.mxu0 0
      %849 = vmatprep.subr.bf16.mxu0 0
      %850 = vmatpush1.bf16.xpose.msra.mxu0 0
      %851 = vmatprep.subr.bf16.mxu0 0
      %852 = vmatpush1.bf16.xpose.msra.mxu0 0
      %853 = vmatprep.subr.bf16.mxu0 0
      %854 = vmatpush1.bf16.xpose.msra.mxu0 0
      %855 = vmatprep.subr.bf16.mxu0 0
      %856 = vmatpush1.bf16.xpose.msra.mxu0 0
      %857 = vmatprep.subr.bf16.mxu0 0
      %858 = vmatpush1.bf16.xpose.msra.mxu0 0
      %859 = vmatprep.subr.bf16.mxu0 0
      %860 = vmatpush1.bf16.xpose.msra.mxu0 0
      %861 = vmatprep.subr.bf16.mxu0 0
      %862 = vmatpush1.bf16.xpose.msra.mxu0 0
      %863 = vmatprep.subr.bf16.mxu0 0
      %864 = vmatpush1.bf16.xpose.msra.mxu0 0
      %865 = vmatprep.subr.bf16.mxu0 0
      %866 = vmatpush1.bf16.xpose.msra.mxu0 0
      %867 = vmatprep.subr.bf16.mxu0 0
      %868 = vmatpush1.bf16.xpose.msra.mxu0 0
      %869 = vmatprep.subr.bf16.mxu0 0
      %870 = vmatpush1.bf16.xpose.msra.mxu0 0
      %871 = vmatprep.subr.bf16.mxu0 0
      %872 = vmatpush1.bf16.xpose.msra.mxu0 0
      %873 = vmatprep.subr.bf16.mxu0 0
      %874 = vmatpush1.bf16.xpose.msra.mxu0 0
      %875 = vmatprep.mubr.bf16.mxu0 0
      %876 = vmatmul.mubr.bf16.gmra.mrb[0].mxu0 %v838
      %v877 = vpop.f32.mrb[0].mxu0
      %v878 = vadd.f32 %v834, %v877
      %v879 = vpop.f32.mrb[0].mxu0
      %v880 = vpop.f32.mrb[0].mxu0
      %v881 = vpop.f32.mrb[0].mxu0
      %882 = vdwg.mxu0
      %v883 = vsel %vm836, %v878, -inf
      %884 = vmax.xlane.f32.xlu0 %v883
      %v885 = vpop.xlane.xlu0 %884
      %v886 = vsub.f32 %v878, %v885
      %v887 = vmul.f32 %v886, 1.442695
      %v888 = vpow.pop %v887
      %v889 = vsel %vm836, %v888, 0.0
      %890 = vadd.xlane.f32.xlu0 %v889
      %v891 = vpop.xlane.xlu0 %890
      %v892 = vrcp.pop %v891
      %v893 = vmul.f32 %v888, %v892
      %v894 = vpack.c.bf16 %v893, %v893
      %v895 = vpack.c.bf16 %v823, %v823
      %v897 = vsel %vm836, %v894, 0
      %vm899 = vcmask 1043456
      %v901 = vsel %vm899, %v895, 0
      %903 = vmatprep.subr.bf16.mxu0 0
      %904 = vmatpush1.bf16.msra.mxu0 %v901
      %905 = vmatprep.subr.bf16.mxu0 0
      %906 = vmatpush1.bf16.msra.mxu0 0
      %907 = vmatprep.subr.bf16.mxu0 0
      %908 = vmatpush1.bf16.msra.mxu0 0
      %909 = vmatprep.subr.bf16.mxu0 0
      %910 = vmatpush1.bf16.msra.mxu0 0
      %911 = vmatprep.subr.bf16.mxu0 0
      %912 = vmatpush1.bf16.msra.mxu0 0
      %913 = vmatprep.subr.bf16.mxu0 0
      %914 = vmatpush1.bf16.msra.mxu0 0
      %915 = vmatprep.subr.bf16.mxu0 0
      %916 = vmatpush1.bf16.msra.mxu0 0
      %917 = vmatprep.subr.bf16.mxu0 0
      %918 = vmatpush1.bf16.msra.mxu0 0
      %919 = vmatprep.subr.bf16.mxu0 0
      %920 = vmatpush1.bf16.msra.mxu0 0
      %921 = vmatprep.subr.bf16.mxu0 0
      %922 = vmatpush1.bf16.msra.mxu0 0
      %923 = vmatprep.subr.bf16.mxu0 0
      %924 = vmatpush1.bf16.msra.mxu0 0
      %925 = vmatprep.subr.bf16.mxu0 0
      %926 = vmatpush1.bf16.msra.mxu0 0
      %927 = vmatprep.subr.bf16.mxu0 0
      %928 = vmatpush1.bf16.msra.mxu0 0
      %929 = vmatprep.subr.bf16.mxu0 0
      %930 = vmatpush1.bf16.msra.mxu0 0
      %931 = vmatprep.subr.bf16.mxu0 0
      %932 = vmatpush1.bf16.msra.mxu0 0
      %933 = vmatprep.subr.bf16.mxu0 0
      %934 = vmatpush1.bf16.msra.mxu0 0
      %935 = vmatprep.mubr.bf16.mxu0 0
      %936 = vmatmul.mubr.bf16.gmra.mrb[0].mxu0 %v897
      %v937 = vpop.f32.mrb[0].mxu0
      %v938 = vadd.f32 0.0, %v937
      %v939 = vpop.f32.mrb[0].mxu0
      %v940 = vpop.f32.mrb[0].mxu0
      %v941 = vpop.f32.mrb[0].mxu0
      %942 = vdwg.mxu0
      %v943 = vpack.c.bf16 %v938, %v938
      %v944 = vld [vmem:[%s9] sm:$0xf]
      %s945 = scalar_lea.vmem %s3, 16
      %v946 = vld [vmem:[%s945] sm:$0xf]
      %v947 = vld [vmem:[%s945 + $0x4] sm:$0xf]
      %v948 = vld [vmem:[%s945 + $0x8] sm:$0xf]
      %v949 = vld [vmem:[%s945 + $0xc] sm:$0xf]
      %s950 = scalar_lea.vmem %s4, 1
      %v951 = vld [vmem:[%s950] sm:$0x1]
      %v953 = vlaneseq
      %v954 = vshrl.u32 %v953, 7
      %v955 = vsub.s32 0, %v954
      %v956 = vrot.slane %v951, %v955
      %v962 = vunpack.c.l.b16 %v946
      %v963 = vunpack.c.l.b16 %v947
      %v964 = vunpack.c.l.b16 %v948
      %v965 = vunpack.c.l.b16 %v949
      %v966 = vpack.c.b16 %v963, %v962
      %v967 = vpack.c.b16 %v965, %v964
      %970 = vmatprep.subr.bf16.mxu0 0
      %971 = vmatpush1.bf16.msra.mxu0 %v966
      %972 = vmatprep.subr.bf16.mxu0 0
      %973 = vmatpush1.bf16.msra.mxu0 %v967
      %974 = vmatprep.subr.bf16.mxu0 0
      %975 = vmatpush1.bf16.msra.mxu0 0
      %976 = vmatprep.subr.bf16.mxu0 0
      %977 = vmatpush1.bf16.msra.mxu0 0
      %978 = vmatprep.subr.bf16.mxu0 0
      %979 = vmatpush1.bf16.msra.mxu0 0
      %980 = vmatprep.subr.bf16.mxu0 0
      %981 = vmatpush1.bf16.msra.mxu0 0
      %982 = vmatprep.subr.bf16.mxu0 0
      %983 = vmatpush1.bf16.msra.mxu0 0
      %984 = vmatprep.subr.bf16.mxu0 0
      %985 = vmatpush1.bf16.msra.mxu0 0
      %986 = vmatprep.subr.bf16.mxu0 0
      %987 = vmatpush1.bf16.msra.mxu0 0
      %988 = vmatprep.subr.bf16.mxu0 0
      %989 = vmatpush1.bf16.msra.mxu0 0
      %990 = vmatprep.subr.bf16.mxu0 0
      %991 = vmatpush1.bf16.msra.mxu0 0
      %992 = vmatprep.subr.bf16.mxu0 0
      %993 = vmatpush1.bf16.msra.mxu0 0
      %994 = vmatprep.subr.bf16.mxu0 0
      %995 = vmatpush1.bf16.msra.mxu0 0
      %996 = vmatprep.subr.bf16.mxu0 0
      %997 = vmatpush1.bf16.msra.mxu0 0
      %998 = vmatprep.subr.bf16.mxu0 0
      %999 = vmatpush1.bf16.msra.mxu0 0
      %1000 = vmatprep.subr.bf16.mxu0 0
      %1001 = vmatpush1.bf16.msra.mxu0 0
      %1002 = vmatprep.mubr.bf16.mxu0 0
      %1003 = vmatmul.mubr.bf16.gmra.mrb[0].mxu0 %v659
      %v1004 = vpop.f32.mrb[0].mxu0
      %v1005 = vadd.f32 %v956, %v1004
      %v1006 = vpop.f32.mrb[0].mxu0
      %v1007 = vpop.f32.mrb[0].mxu0
      %v1008 = vpop.f32.mrb[0].mxu0
      %1009 = vdwg.mxu0
      %v1010 = vmul.f32 %v1005, 0.35355338
      %s1011 = scalar_lea.vmem %s5, 16
      %v1012 = vld [vmem:[%s1011] sm:$0xf]
      %v1013 = vld [vmem:[%s1011 + $0x4] sm:$0xf]
      %v1014 = vld [vmem:[%s1011 + $0x8] sm:$0xf]
      %v1015 = vld [vmem:[%s1011 + $0xc] sm:$0xf]
      %s1016 = scalar_lea.vmem %s6, 1
      %v1017 = vld [vmem:[%s1016] sm:$0x1]
      %v1019 = vlaneseq
      %v1020 = vshrl.u32 %v1019, 7
      %v1021 = vsub.s32 0, %v1020
      %v1022 = vrot.slane %v1017, %v1021
      %v1028 = vunpack.c.l.b16 %v1012
      %v1029 = vunpack.c.l.b16 %v1013
      %v1030 = vunpack.c.l.b16 %v1014
      %v1031 = vunpack.c.l.b16 %v1015
      %v1032 = vpack.c.b16 %v1029, %v1028
      %v1033 = vpack.c.b16 %v1031, %v1030
      %1036 = vmatprep.subr.bf16.mxu0 0
      %1037 = vmatpush1.bf16.msra.mxu0 %v1032
      %1038 = vmatprep.subr.bf16.mxu0 0
      %1039 = vmatpush1.bf16.msra.mxu0 %v1033
      %1040 = vmatprep.subr.bf16.mxu0 0
      %1041 = vmatpush1.bf16.msra.mxu0 0
      %1042 = vmatprep.subr.bf16.mxu0 0
      %1043 = vmatpush1.bf16.msra.mxu0 0
      %1044 = vmatprep.subr.bf16.mxu0 0
      %1045 = vmatpush1.bf16.msra.mxu0 0
      %1046 = vmatprep.subr.bf16.mxu0 0
      %1047 = vmatpush1.bf16.msra.mxu0 0
      %1048 = vmatprep.subr.bf16.mxu0 0
      %1049 = vmatpush1.bf16.msra.mxu0 0
      %1050 = vmatprep.subr.bf16.mxu0 0
      %1051 = vmatpush1.bf16.msra.mxu0 0
      %1052 = vmatprep.subr.bf16.mxu0 0
      %1053 = vmatpush1.bf16.msra.mxu0 0
      %1054 = vmatprep.subr.bf16.mxu0 0
      %1055 = vmatpush1.bf16.msra.mxu0 0
      %1056 = vmatprep.subr.bf16.mxu0 0
      %1057 = vmatpush1.bf16.msra.mxu0 0
      %1058 = vmatprep.subr.bf16.mxu0 0
      %1059 = vmatpush1.bf16.msra.mxu0 0
      %1060 = vmatprep.subr.bf16.mxu0 0
      %1061 = vmatpush1.bf16.msra.mxu0 0
      %1062 = vmatprep.subr.bf16.mxu0 0
      %1063 = vmatpush1.bf16.msra.mxu0 0
      %1064 = vmatprep.subr.bf16.mxu0 0
      %1065 = vmatpush1.bf16.msra.mxu0 0
      %1066 = vmatprep.subr.bf16.mxu0 0
      %1067 = vmatpush1.bf16.msra.mxu0 0
      %1068 = vmatprep.mubr.bf16.mxu0 0
      %1069 = vmatmul.mubr.bf16.gmra.mrb[0].mxu0 %v659
      %v1070 = vpop.f32.mrb[0].mxu0
      %v1071 = vadd.f32 %v1022, %v1070
      %v1072 = vpop.f32.mrb[0].mxu0
      %v1073 = vpop.f32.mrb[0].mxu0
      %v1074 = vpop.f32.mrb[0].mxu0
      %1075 = vdwg.mxu0
      %s1076 = scalar_lea.vmem %s7, 16
      %v1077 = vld [vmem:[%s1076] sm:$0xf]
      %v1078 = vld [vmem:[%s1076 + $0x4] sm:$0xf]
      %v1079 = vld [vmem:[%s1076 + $0x8] sm:$0xf]
      %v1080 = vld [vmem:[%s1076 + $0xc] sm:$0xf]
      %s1081 = scalar_lea.vmem %s8, 1
      %v1082 = vld [vmem:[%s1081] sm:$0x1]
      %v1084 = vlaneseq
      %v1085 = vshrl.u32 %v1084, 7
      %v1086 = vsub.s32 0, %v1085
      %v1087 = vrot.slane %v1082, %v1086
      %v1093 = vunpack.c.l.b16 %v1077
      %v1094 = vunpack.c.l.b16 %v1078
      %v1095 = vunpack.c.l.b16 %v1079
      %v1096 = vunpack.c.l.b16 %v1080
      %v1097 = vpack.c.b16 %v1094, %v1093
      %v1098 = vpack.c.b16 %v1096, %v1095
      %1101 = vmatprep.subr.bf16.mxu0 0
      %1102 = vmatpush1.bf16.msra.mxu0 %v1097
      %1103 = vmatprep.subr.bf16.mxu0 0
      %1104 = vmatpush1.bf16.msra.mxu0 %v1098
      %1105 = vmatprep.subr.bf16.mxu0 0
      %1106 = vmatpush1.bf16.msra.mxu0 0
      %1107 = vmatprep.subr.bf16.mxu0 0
      %1108 = vmatpush1.bf16.msra.mxu0 0
      %1109 = vmatprep.subr.bf16.mxu0 0
      %1110 = vmatpush1.bf16.msra.mxu0 0
      %1111 = vmatprep.subr.bf16.mxu0 0
      %1112 = vmatpush1.bf16.msra.mxu0 0
      %1113 = vmatprep.subr.bf16.mxu0 0
      %1114 = vmatpush1.bf16.msra.mxu0 0
      %1115 = vmatprep.subr.bf16.mxu0 0
      %1116 = vmatpush1.bf16.msra.mxu0 0
      %1117 = vmatprep.subr.bf16.mxu0 0
      %1118 = vmatpush1.bf16.msra.mxu0 0
      %1119 = vmatprep.subr.bf16.mxu0 0
      %1120 = vmatpush1.bf16.msra.mxu0 0
      %1121 = vmatprep.subr.bf16.mxu0 0
      %1122 = vmatpush1.bf16.msra.mxu0 0
      %1123 = vmatprep.subr.bf16.mxu0 0
      %1124 = vmatpush1.bf16.msra.mxu0 0
      %1125 = vmatprep.subr.bf16.mxu0 0
      %1126 = vmatpush1.bf16.msra.mxu0 0
      %1127 = vmatprep.subr.bf16.mxu0 0
      %1128 = vmatpush1.bf16.msra.mxu0 0
      %1129 = vmatprep.subr.bf16.mxu0 0
      %1130 = vmatpush1.bf16.msra.mxu0 0
      %1131 = vmatprep.subr.bf16.mxu0 0
      %1132 = vmatpush1.bf16.msra.mxu0 0
      %1133 = vmatprep.mubr.bf16.mxu0 0
      %1134 = vmatmul.mubr.bf16.gmra.mrb[0].mxu0 %v659
      %v1135 = vpop.f32.mrb[0].mxu0
      %v1136 = vadd.f32 %v1087, %v1135
      %v1137 = vpop.f32.mrb[0].mxu0
      %v1138 = vpop.f32.mrb[0].mxu0
      %v1139 = vpop.f32.mrb[0].mxu0
      %1140 = vdwg.mxu0
      %v1141 = vpack.c.bf16 %v1010, %v1010
      %v1142 = vpack.c.bf16 %v1071, %v1071
      %v1144 = vsel %vm836, %v1141, 0
      %v1147 = vsel %vm836, %v1142, 0
      %1149 = vmatprep.subr.bf16.mxu0 0
      %1150 = vmatpush1.bf16.xpose.msra.mxu0 %v1147
      %1151 = vmatprep.subr.bf16.mxu0 0
      %1152 = vmatpush1.bf16.xpose.msra.mxu0 0
      %1153 = vmatprep.subr.bf16.mxu0 0
      %1154 = vmatpush1.bf16.xpose.msra.mxu0 0
      %1155 = vmatprep.subr.bf16.mxu0 0
      %1156 = vmatpush1.bf16.xpose.msra.mxu0 0
      %1157 = vmatprep.subr.bf16.mxu0 0
      %1158 = vmatpush1.bf16.xpose.msra.mxu0 0
      %1159 = vmatprep.subr.bf16.mxu0 0
      %1160 = vmatpush1.bf16.xpose.msra.mxu0 0
      %1161 = vmatprep.subr.bf16.mxu0 0
      %1162 = vmatpush1.bf16.xpose.msra.mxu0 0
      %1163 = vmatprep.subr.bf16.mxu0 0
      %1164 = vmatpush1.bf16.xpose.msra.mxu0 0
      %1165 = vmatprep.subr.bf16.mxu0 0
      %1166 = vmatpush1.bf16.xpose.msra.mxu0 0
      %1167 = vmatprep.subr.bf16.mxu0 0
      %1168 = vmatpush1.bf16.xpose.msra.mxu0 0
      %1169 = vmatprep.subr.bf16.mxu0 0
      %1170 = vmatpush1.bf16.xpose.msra.mxu0 0
      %1171 = vmatprep.subr.bf16.mxu0 0
      %1172 = vmatpush1.bf16.xpose.msra.mxu0 0
      %1173 = vmatprep.subr.bf16.mxu0 0
      %1174 = vmatpush1.bf16.xpose.msra.mxu0 0
      %1175 = vmatprep.subr.bf16.mxu0 0
      %1176 = vmatpush1.bf16.xpose.msra.mxu0 0
      %1177 = vmatprep.subr.bf16.mxu0 0
      %1178 = vmatpush1.bf16.xpose.msra.mxu0 0
      %1179 = vmatprep.subr.bf16.mxu0 0
      %1180 = vmatpush1.bf16.xpose.msra.mxu0 0
      %1181 = vmatprep.mubr.bf16.mxu0 0
      %1182 = vmatmul.mubr.bf16.gmra.mrb[0].mxu0 %v1144
      %v1183 = vpop.f32.mrb[0].mxu0
      %v1184 = vadd.f32 %v834, %v1183
      %v1185 = vpop.f32.mrb[0].mxu0
      %v1186 = vpop.f32.mrb[0].mxu0
      %v1187 = vpop.f32.mrb[0].mxu0
      %1188 = vdwg.mxu0
      %v1189 = vsel %vm836, %v1184, -inf
      %1190 = vmax.xlane.f32.xlu0 %v1189
      %v1191 = vpop.xlane.xlu0 %1190
      %v1192 = vsub.f32 %v1184, %v1191
      %v1193 = vmul.f32 %v1192, 1.442695
      %v1194 = vpow.pop %v1193
      %v1195 = vsel %vm836, %v1194, 0.0
      %1196 = vadd.xlane.f32.xlu0 %v1195
      %v1197 = vpop.xlane.xlu0 %1196
      %v1198 = vrcp.pop %v1197
      %v1199 = vmul.f32 %v1194, %v1198
      %v1200 = vpack.c.bf16 %v1199, %v1199
      %v1201 = vpack.c.bf16 %v1136, %v1136
      %v1203 = vsel %vm836, %v1200, 0
      %v1206 = vsel %vm899, %v1201, 0
      %1208 = vmatprep.subr.bf16.mxu0 0
      %1209 = vmatpush1.bf16.msra.mxu0 %v1206
      %1210 = vmatprep.subr.bf16.mxu0 0
      %1211 = vmatpush1.bf16.msra.mxu0 0
      %1212 = vmatprep.subr.bf16.mxu0 0
      %1213 = vmatpush1.bf16.msra.mxu0 0
      %1214 = vmatprep.subr.bf16.mxu0 0
      %1215 = vmatpush1.bf16.msra.mxu0 0
      %1216 = vmatprep.subr.bf16.mxu0 0
      %1217 = vmatpush1.bf16.msra.mxu0 0
      %1218 = vmatprep.subr.bf16.mxu0 0
      %1219 = vmatpush1.bf16.msra.mxu0 0
      %1220 = vmatprep.subr.bf16.mxu0 0
      %1221 = vmatpush1.bf16.msra.mxu0 0
      %1222 = vmatprep.subr.bf16.mxu0 0
      %1223 = vmatpush1.bf16.msra.mxu0 0
      %1224 = vmatprep.subr.bf16.mxu0 0
      %1225 = vmatpush1.bf16.msra.mxu0 0
      %1226 = vmatprep.subr.bf16.mxu0 0
      %1227 = vmatpush1.bf16.msra.mxu0 0
      %1228 = vmatprep.subr.bf16.mxu0 0
      %1229 = vmatpush1.bf16.msra.mxu0 0
      %1230 = vmatprep.subr.bf16.mxu0 0
      %1231 = vmatpush1.bf16.msra.mxu0 0
      %1232 = vmatprep.subr.bf16.mxu0 0
      %1233 = vmatpush1.bf16.msra.mxu0 0
      %1234 = vmatprep.subr.bf16.mxu0 0
      %1235 = vmatpush1.bf16.msra.mxu0 0
      %1236 = vmatprep.subr.bf16.mxu0 0
      %1237 = vmatpush1.bf16.msra.mxu0 0
      %1238 = vmatprep.subr.bf16.mxu0 0
      %1239 = vmatpush1.bf16.msra.mxu0 0
      %1240 = vmatprep.mubr.bf16.mxu0 0
      %1241 = vmatmul.mubr.bf16.gmra.mrb[0].mxu0 %v1203
      %v1242 = vpop.f32.mrb[0].mxu0
      %v1243 = vadd.f32 0.0, %v1242
      %v1244 = vpop.f32.mrb[0].mxu0
      %v1245 = vpop.f32.mrb[0].mxu0
      %v1246 = vpop.f32.mrb[0].mxu0
      %1247 = vdwg.mxu0
      %v1248 = vpack.c.bf16 %v1243, %v1243
      %s1249 = scalar_lea.vmem %s9, 4
      %v1250 = vld [vmem:[%s1249] sm:$0xf]
      %v1252 = vsel %vm836, %v1248, 0
      %v1255 = vsel %vm899, %v1250, 0
      %1257 = vmatprep.subr.bf16.mxu0 0
      %1258 = vmatpush1.bf16.msra.mxu0 %v1255
      %1259 = vmatprep.subr.bf16.mxu0 0
      %1260 = vmatpush1.bf16.msra.mxu0 0
      %1261 = vmatprep.subr.bf16.mxu0 0
      %1262 = vmatpush1.bf16.msra.mxu0 0
      %1263 = vmatprep.subr.bf16.mxu0 0
      %1264 = vmatpush1.bf16.msra.mxu0 0
      %1265 = vmatprep.subr.bf16.mxu0 0
      %1266 = vmatpush1.bf16.msra.mxu0 0
      %1267 = vmatprep.subr.bf16.mxu0 0
      %1268 = vmatpush1.bf16.msra.mxu0 0
      %1269 = vmatprep.subr.bf16.mxu0 0
      %1270 = vmatpush1.bf16.msra.mxu0 0
      %1271 = vmatprep.subr.bf16.mxu0 0
      %1272 = vmatpush1.bf16.msra.mxu0 0
      %1273 = vmatprep.subr.bf16.mxu0 0
      %1274 = vmatpush1.bf16.msra.mxu0 0
      %1275 = vmatprep.subr.bf16.mxu0 0
      %1276 = vmatpush1.bf16.msra.mxu0 0
      %1277 = vmatprep.subr.bf16.mxu0 0
      %1278 = vmatpush1.bf16.msra.mxu0 0
      %1279 = vmatprep.subr.bf16.mxu0 0
      %1280 = vmatpush1.bf16.msra.mxu0 0
      %1281 = vmatprep.subr.bf16.mxu0 0
      %1282 = vmatpush1.bf16.msra.mxu0 0
      %1283 = vmatprep.subr.bf16.mxu0 0
      %1284 = vmatpush1.bf16.msra.mxu0 0
      %1285 = vmatprep.subr.bf16.mxu0 0
      %1286 = vmatpush1.bf16.msra.mxu0 0
      %1287 = vmatprep.subr.bf16.mxu0 0
      %1288 = vmatpush1.bf16.msra.mxu0 0
      %1289 = vmatprep.mubr.bf16.mxu0 0
      %1290 = vmatmul.mubr.bf16.gmra.mrb[0].mxu0 %v1252
      %v1291 = vpop.f32.mrb[0].mxu0
      %v1292 = vadd.f32 0.0, %v1291
      %v1293 = vpop.f32.mrb[0].mxu0
      %v1294 = vpop.f32.mrb[0].mxu0
      %v1295 = vpop.f32.mrb[0].mxu0
      %1296 = vdwg.mxu0
      %v1298 = vsel %vm836, %v943, 0
      %v1301 = vsel %vm899, %v944, 0
      %1303 = vmatprep.subr.bf16.mxu0 0
      %1304 = vmatpush1.bf16.msra.mxu0 %v1301
      %1305 = vmatprep.subr.bf16.mxu0 0
      %1306 = vmatpush1.bf16.msra.mxu0 0
      %1307 = vmatprep.subr.bf16.mxu0 0
      %1308 = vmatpush1.bf16.msra.mxu0 0
      %1309 = vmatprep.subr.bf16.mxu0 0
      %1310 = vmatpush1.bf16.msra.mxu0 0
      %1311 = vmatprep.subr.bf16.mxu0 0
      %1312 = vmatpush1.bf16.msra.mxu0 0
      %1313 = vmatprep.subr.bf16.mxu0 0
      %1314 = vmatpush1.bf16.msra.mxu0 0
      %1315 = vmatprep.subr.bf16.mxu0 0
      %1316 = vmatpush1.bf16.msra.mxu0 0
      %1317 = vmatprep.subr.bf16.mxu0 0
      %1318 = vmatpush1.bf16.msra.mxu0 0
      %1319 = vmatprep.subr.bf16.mxu0 0
      %1320 = vmatpush1.bf16.msra.mxu0 0
      %1321 = vmatprep.subr.bf16.mxu0 0
      %1322 = vmatpush1.bf16.msra.mxu0 0
      %1323 = vmatprep.subr.bf16.mxu0 0
      %1324 = vmatpush1.bf16.msra.mxu0 0
      %1325 = vmatprep.subr.bf16.mxu0 0
      %1326 = vmatpush1.bf16.msra.mxu0 0
      %1327 = vmatprep.subr.bf16.mxu0 0
      %1328 = vmatpush1.bf16.msra.mxu0 0
      %1329 = vmatprep.subr.bf16.mxu0 0
      %1330 = vmatpush1.bf16.msra.mxu0 0
      %1331 = vmatprep.subr.bf16.mxu0 0
      %1332 = vmatpush1.bf16.msra.mxu0 0
      %1333 = vmatprep.subr.bf16.mxu0 0
      %1334 = vmatpush1.bf16.msra.mxu0 0
      %1335 = vmatprep.mubr.bf16.mxu0 0
      %1336 = vmatmul.mubr.bf16.gmra.mrb[0].mxu0 %v1298
      %v1337 = vpop.f32.mrb[0].mxu0
      %v1338 = vadd.f32 %v1292, %v1337
      %v1339 = vpop.f32.mrb[0].mxu0
      %v1340 = vpop.f32.mrb[0].mxu0
      %v1341 = vpop.f32.mrb[0].mxu0
      %1342 = vdwg.mxu0
      %s1343 = scalar_lea.vmem %s3, 32
      %v1344 = vld [vmem:[%s1343] sm:$0xf]
      %v1345 = vld [vmem:[%s1343 + $0x4] sm:$0xf]
      %v1346 = vld [vmem:[%s1343 + $0x8] sm:$0xf]
      %v1347 = vld [vmem:[%s1343 + $0xc] sm:$0xf]
      %s1348 = scalar_lea.vmem %s4, 2
      %v1349 = vld [vmem:[%s1348] sm:$0x1]
      %v1351 = vlaneseq
      %v1352 = vshrl.u32 %v1351, 7
      %v1353 = vsub.s32 0, %v1352
      %v1354 = vrot.slane %v1349, %v1353
      %v1360 = vunpack.c.l.b16 %v1344
      %v1361 = vunpack.c.l.b16 %v1345
      %v1362 = vunpack.c.l.b16 %v1346
      %v1363 = vunpack.c.l.b16 %v1347
      %v1364 = vpack.c.b16 %v1361, %v1360
      %v1365 = vpack.c.b16 %v1363, %v1362
      %1368 = vmatprep.subr.bf16.mxu0 0
      %1369 = vmatpush1.bf16.msra.mxu0 %v1364
      %1370 = vmatprep.subr.bf16.mxu0 0
      %1371 = vmatpush1.bf16.msra.mxu0 %v1365
      %1372 = vmatprep.subr.bf16.mxu0 0
      %1373 = vmatpush1.bf16.msra.mxu0 0
      %1374 = vmatprep.subr.bf16.mxu0 0
      %1375 = vmatpush1.bf16.msra.mxu0 0
      %1376 = vmatprep.subr.bf16.mxu0 0
      %1377 = vmatpush1.bf16.msra.mxu0 0
      %1378 = vmatprep.subr.bf16.mxu0 0
      %1379 = vmatpush1.bf16.msra.mxu0 0
      %1380 = vmatprep.subr.bf16.mxu0 0
      %1381 = vmatpush1.bf16.msra.mxu0 0
      %1382 = vmatprep.subr.bf16.mxu0 0
      %1383 = vmatpush1.bf16.msra.mxu0 0
      %1384 = vmatprep.subr.bf16.mxu0 0
      %1385 = vmatpush1.bf16.msra.mxu0 0
      %1386 = vmatprep.subr.bf16.mxu0 0
      %1387 = vmatpush1.bf16.msra.mxu0 0
      %1388 = vmatprep.subr.bf16.mxu0 0
      %1389 = vmatpush1.bf16.msra.mxu0 0
      %1390 = vmatprep.subr.bf16.mxu0 0
      %1391 = vmatpush1.bf16.msra.mxu0 0
      %1392 = vmatprep.subr.bf16.mxu0 0
      %1393 = vmatpush1.bf16.msra.mxu0 0
      %1394 = vmatprep.subr.bf16.mxu0 0
      %1395 = vmatpush1.bf16.msra.mxu0 0
      %1396 = vmatprep.subr.bf16.mxu0 0
      %1397 = vmatpush1.bf16.msra.mxu0 0
      %1398 = vmatprep.subr.bf16.mxu0 0
      %1399 = vmatpush1.bf16.msra.mxu0 0
      %1400 = vmatprep.mubr.bf16.mxu0 0
      %1401 = vmatmul.mubr.bf16.gmra.mrb[0].mxu0 %v659
      %v1402 = vpop.f32.mrb[0].mxu0
      %v1403 = vadd.f32 %v1354, %v1402
      %v1404 = vpop.f32.mrb[0].mxu0
      %v1405 = vpop.f32.mrb[0].mxu0
      %v1406 = vpop.f32.mrb[0].mxu0
      %1407 = vdwg.mxu0
      %v1408 = vmul.f32 %v1403, 0.35355338
      %s1409 = scalar_lea.vmem %s5, 32
      %v1410 = vld [vmem:[%s1409] sm:$0xf]
      %v1411 = vld [vmem:[%s1409 + $0x4] sm:$0xf]
      %v1412 = vld [vmem:[%s1409 + $0x8] sm:$0xf]
      %v1413 = vld [vmem:[%s1409 + $0xc] sm:$0xf]
      %s1414 = scalar_lea.vmem %s6, 2
      %v1415 = vld [vmem:[%s1414] sm:$0x1]
      %v1417 = vlaneseq
      %v1418 = vshrl.u32 %v1417, 7
      %v1419 = vsub.s32 0, %v1418
      %v1420 = vrot.slane %v1415, %v1419
      %v1426 = vunpack.c.l.b16 %v1410
      %v1427 = vunpack.c.l.b16 %v1411
      %v1428 = vunpack.c.l.b16 %v1412
      %v1429 = vunpack.c.l.b16 %v1413
      %v1430 = vpack.c.b16 %v1427, %v1426
      %v1431 = vpack.c.b16 %v1429, %v1428
      %1434 = vmatprep.subr.bf16.mxu0 0
      %1435 = vmatpush1.bf16.msra.mxu0 %v1430
      %1436 = vmatprep.subr.bf16.mxu0 0
      %1437 = vmatpush1.bf16.msra.mxu0 %v1431
      %1438 = vmatprep.subr.bf16.mxu0 0
      %1439 = vmatpush1.bf16.msra.mxu0 0
      %1440 = vmatprep.subr.bf16.mxu0 0
      %1441 = vmatpush1.bf16.msra.mxu0 0
      %1442 = vmatprep.subr.bf16.mxu0 0
      %1443 = vmatpush1.bf16.msra.mxu0 0
      %1444 = vmatprep.subr.bf16.mxu0 0
      %1445 = vmatpush1.bf16.msra.mxu0 0
      %1446 = vmatprep.subr.bf16.mxu0 0
      %1447 = vmatpush1.bf16.msra.mxu0 0
      %1448 = vmatprep.subr.bf16.mxu0 0
      %1449 = vmatpush1.bf16.msra.mxu0 0
      %1450 = vmatprep.subr.bf16.mxu0 0
      %1451 = vmatpush1.bf16.msra.mxu0 0
      %1452 = vmatprep.subr.bf16.mxu0 0
      %1453 = vmatpush1.bf16.msra.mxu0 0
      %1454 = vmatprep.subr.bf16.mxu0 0
      %1455 = vmatpush1.bf16.msra.mxu0 0
      %1456 = vmatprep.subr.bf16.mxu0 0
      %1457 = vmatpush1.bf16.msra.mxu0 0
      %1458 = vmatprep.subr.bf16.mxu0 0
      %1459 = vmatpush1.bf16.msra.mxu0 0
      %1460 = vmatprep.subr.bf16.mxu0 0
      %1461 = vmatpush1.bf16.msra.mxu0 0
      %1462 = vmatprep.subr.bf16.mxu0 0
      %1463 = vmatpush1.bf16.msra.mxu0 0
      %1464 = vmatprep.subr.bf16.mxu0 0
      %1465 = vmatpush1.bf16.msra.mxu0 0
      %1466 = vmatprep.mubr.bf16.mxu0 0
      %1467 = vmatmul.mubr.bf16.gmra.mrb[0].mxu0 %v659
      %v1468 = vpop.f32.mrb[0].mxu0
      %v1469 = vadd.f32 %v1420, %v1468
      %v1470 = vpop.f32.mrb[0].mxu0
      %v1471 = vpop.f32.mrb[0].mxu0
      %v1472 = vpop.f32.mrb[0].mxu0
      %1473 = vdwg.mxu0
      %s1474 = scalar_lea.vmem %s7, 32
      %v1475 = vld [vmem:[%s1474] sm:$0xf]
      %v1476 = vld [vmem:[%s1474 + $0x4] sm:$0xf]
      %v1477 = vld [vmem:[%s1474 + $0x8] sm:$0xf]
      %v1478 = vld [vmem:[%s1474 + $0xc] sm:$0xf]
      %s1479 = scalar_lea.vmem %s8, 2
      %v1480 = vld [vmem:[%s1479] sm:$0x1]
      %v1482 = vlaneseq
      %v1483 = vshrl.u32 %v1482, 7
      %v1484 = vsub.s32 0, %v1483
      %v1485 = vrot.slane %v1480, %v1484
      %v1491 = vunpack.c.l.b16 %v1475
      %v1492 = vunpack.c.l.b16 %v1476
      %v1493 = vunpack.c.l.b16 %v1477
      %v1494 = vunpack.c.l.b16 %v1478
      %v1495 = vpack.c.b16 %v1492, %v1491
      %v1496 = vpack.c.b16 %v1494, %v1493
      %1499 = vmatprep.subr.bf16.mxu0 0
      %1500 = vmatpush1.bf16.msra.mxu0 %v1495
      %1501 = vmatprep.subr.bf16.mxu0 0
      %1502 = vmatpush1.bf16.msra.mxu0 %v1496
      %1503 = vmatprep.subr.bf16.mxu0 0
      %1504 = vmatpush1.bf16.msra.mxu0 0
      %1505 = vmatprep.subr.bf16.mxu0 0
      %1506 = vmatpush1.bf16.msra.mxu0 0
      %1507 = vmatprep.subr.bf16.mxu0 0
      %1508 = vmatpush1.bf16.msra.mxu0 0
      %1509 = vmatprep.subr.bf16.mxu0 0
      %1510 = vmatpush1.bf16.msra.mxu0 0
      %1511 = vmatprep.subr.bf16.mxu0 0
      %1512 = vmatpush1.bf16.msra.mxu0 0
      %1513 = vmatprep.subr.bf16.mxu0 0
      %1514 = vmatpush1.bf16.msra.mxu0 0
      %1515 = vmatprep.subr.bf16.mxu0 0
      %1516 = vmatpush1.bf16.msra.mxu0 0
      %1517 = vmatprep.subr.bf16.mxu0 0
      %1518 = vmatpush1.bf16.msra.mxu0 0
      %1519 = vmatprep.subr.bf16.mxu0 0
      %1520 = vmatpush1.bf16.msra.mxu0 0
      %1521 = vmatprep.subr.bf16.mxu0 0
      %1522 = vmatpush1.bf16.msra.mxu0 0
      %1523 = vmatprep.subr.bf16.mxu0 0
      %1524 = vmatpush1.bf16.msra.mxu0 0
      %1525 = vmatprep.subr.bf16.mxu0 0
      %1526 = vmatpush1.bf16.msra.mxu0 0
      %1527 = vmatprep.subr.bf16.mxu0 0
      %1528 = vmatpush1.bf16.msra.mxu0 0
      %1529 = vmatprep.subr.bf16.mxu0 0
      %1530 = vmatpush1.bf16.msra.mxu0 0
      %1531 = vmatprep.mubr.bf16.mxu0 0
      %1532 = vmatmul.mubr.bf16.gmra.mrb[0].mxu0 %v659
      %v1533 = vpop.f32.mrb[0].mxu0
      %v1534 = vadd.f32 %v1485, %v1533
      %v1535 = vpop.f32.mrb[0].mxu0
      %v1536 = vpop.f32.mrb[0].mxu0
      %v1537 = vpop.f32.mrb[0].mxu0
      %1538 = vdwg.mxu0
      %v1539 = vpack.c.bf16 %v1408, %v1408
      %v1540 = vpack.c.bf16 %v1469, %v1469
      %v1542 = vsel %vm836, %v1539, 0
      %v1545 = vsel %vm836, %v1540, 0
      %1547 = vmatprep.subr.bf16.mxu0 0
      %1548 = vmatpush1.bf16.xpose.msra.mxu0 %v1545
      %1549 = vmatprep.subr.bf16.mxu0 0
      %1550 = vmatpush1.bf16.xpose.msra.mxu0 0
      %1551 = vmatprep.subr.bf16.mxu0 0
      %1552 = vmatpush1.bf16.xpose.msra.mxu0 0
      %1553 = vmatprep.subr.bf16.mxu0 0
      %1554 = vmatpush1.bf16.xpose.msra.mxu0 0
      %1555 = vmatprep.subr.bf16.mxu0 0
      %1556 = vmatpush1.bf16.xpose.msra.mxu0 0
      %1557 = vmatprep.subr.bf16.mxu0 0
      %1558 = vmatpush1.bf16.xpose.msra.mxu0 0
      %1559 = vmatprep.subr.bf16.mxu0 0
      %1560 = vmatpush1.bf16.xpose.msra.mxu0 0
      %1561 = vmatprep.subr.bf16.mxu0 0
      %1562 = vmatpush1.bf16.xpose.msra.mxu0 0
      %1563 = vmatprep.subr.bf16.mxu0 0
      %1564 = vmatpush1.bf16.xpose.msra.mxu0 0
      %1565 = vmatprep.subr.bf16.mxu0 0
      %1566 = vmatpush1.bf16.xpose.msra.mxu0 0
      %1567 = vmatprep.subr.bf16.mxu0 0
      %1568 = vmatpush1.bf16.xpose.msra.mxu0 0
      %1569 = vmatprep.subr.bf16.mxu0 0
      %1570 = vmatpush1.bf16.xpose.msra.mxu0 0
      %1571 = vmatprep.subr.bf16.mxu0 0
      %1572 = vmatpush1.bf16.xpose.msra.mxu0 0
      %1573 = vmatprep.subr.bf16.mxu0 0
      %1574 = vmatpush1.bf16.xpose.msra.mxu0 0
      %1575 = vmatprep.subr.bf16.mxu0 0
      %1576 = vmatpush1.bf16.xpose.msra.mxu0 0
      %1577 = vmatprep.subr.bf16.mxu0 0
      %1578 = vmatpush1.bf16.xpose.msra.mxu0 0
      %1579 = vmatprep.mubr.bf16.mxu0 0
      %1580 = vmatmul.mubr.bf16.gmra.mrb[0].mxu0 %v1542
      %v1581 = vpop.f32.mrb[0].mxu0
      %v1582 = vadd.f32 %v834, %v1581
      %v1583 = vpop.f32.mrb[0].mxu0
      %v1584 = vpop.f32.mrb[0].mxu0
      %v1585 = vpop.f32.mrb[0].mxu0
      %1586 = vdwg.mxu0
      %v1587 = vsel %vm836, %v1582, -inf
      %1588 = vmax.xlane.f32.xlu0 %v1587
      %v1589 = vpop.xlane.xlu0 %1588
      %v1590 = vsub.f32 %v1582, %v1589
      %v1591 = vmul.f32 %v1590, 1.442695
      %v1592 = vpow.pop %v1591
      %v1593 = vsel %vm836, %v1592, 0.0
      %1594 = vadd.xlane.f32.xlu0 %v1593
      %v1595 = vpop.xlane.xlu0 %1594
      %v1596 = vrcp.pop %v1595
      %v1597 = vmul.f32 %v1592, %v1596
      %v1598 = vpack.c.bf16 %v1597, %v1597
      %v1599 = vpack.c.bf16 %v1534, %v1534
      %v1601 = vsel %vm836, %v1598, 0
      %v1604 = vsel %vm899, %v1599, 0
      %1606 = vmatprep.subr.bf16.mxu0 0
      %1607 = vmatpush1.bf16.msra.mxu0 %v1604
      %1608 = vmatprep.subr.bf16.mxu0 0
      %1609 = vmatpush1.bf16.msra.mxu0 0
      %1610 = vmatprep.subr.bf16.mxu0 0
      %1611 = vmatpush1.bf16.msra.mxu0 0
      %1612 = vmatprep.subr.bf16.mxu0 0
      %1613 = vmatpush1.bf16.msra.mxu0 0
      %1614 = vmatprep.subr.bf16.mxu0 0
      %1615 = vmatpush1.bf16.msra.mxu0 0
      %1616 = vmatprep.subr.bf16.mxu0 0
      %1617 = vmatpush1.bf16.msra.mxu0 0
      %1618 = vmatprep.subr.bf16.mxu0 0
      %1619 = vmatpush1.bf16.msra.mxu0 0
      %1620 = vmatprep.subr.bf16.mxu0 0
      %1621 = vmatpush1.bf16.msra.mxu0 0
      %1622 = vmatprep.subr.bf16.mxu0 0
      %1623 = vmatpush1.bf16.msra.mxu0 0
      %1624 = vmatprep.subr.bf16.mxu0 0
      %1625 = vmatpush1.bf16.msra.mxu0 0
      %1626 = vmatprep.subr.bf16.mxu0 0
      %1627 = vmatpush1.bf16.msra.mxu0 0
      %1628 = vmatprep.subr.bf16.mxu0 0
      %1629 = vmatpush1.bf16.msra.mxu0 0
      %1630 = vmatprep.subr.bf16.mxu0 0
      %1631 = vmatpush1.bf16.msra.mxu0 0
      %1632 = vmatprep.subr.bf16.mxu0 0
      %1633 = vmatpush1.bf16.msra.mxu0 0
      %1634 = vmatprep.subr.bf16.mxu0 0
      %1635 = vmatpush1.bf16.msra.mxu0 0
      %1636 = vmatprep.subr.bf16.mxu0 0
      %1637 = vmatpush1.bf16.msra.mxu0 0
      %1638 = vmatprep.mubr.bf16.mxu0 0
      %1639 = vmatmul.mubr.bf16.gmra.mrb[0].mxu0 %v1601
      %v1640 = vpop.f32.mrb[0].mxu0
      %v1641 = vadd.f32 0.0, %v1640
      %v1642 = vpop.f32.mrb[0].mxu0
      %v1643 = vpop.f32.mrb[0].mxu0
      %v1644 = vpop.f32.mrb[0].mxu0
      %1645 = vdwg.mxu0
      %v1646 = vpack.c.bf16 %v1641, %v1641
      %s1647 = scalar_lea.vmem %s9, 8
      %v1648 = vld [vmem:[%s1647] sm:$0xf]
      %v1650 = vsel %vm836, %v1646, 0
      %v1653 = vsel %vm899, %v1648, 0
      %1655 = vmatprep.subr.bf16.mxu0 0
      %1656 = vmatpush1.bf16.msra.mxu0 %v1653
      %1657 = vmatprep.subr.bf16.mxu0 0
      %1658 = vmatpush1.bf16.msra.mxu0 0
      %1659 = vmatprep.subr.bf16.mxu0 0
      %1660 = vmatpush1.bf16.msra.mxu0 0
      %1661 = vmatprep.subr.bf16.mxu0 0
      %1662 = vmatpush1.bf16.msra.mxu0 0
      %1663 = vmatprep.subr.bf16.mxu0 0
      %1664 = vmatpush1.bf16.msra.mxu0 0
      %1665 = vmatprep.subr.bf16.mxu0 0
      %1666 = vmatpush1.bf16.msra.mxu0 0
      %1667 = vmatprep.subr.bf16.mxu0 0
      %1668 = vmatpush1.bf16.msra.mxu0 0
      %1669 = vmatprep.subr.bf16.mxu0 0
      %1670 = vmatpush1.bf16.msra.mxu0 0
      %1671 = vmatprep.subr.bf16.mxu0 0
      %1672 = vmatpush1.bf16.msra.mxu0 0
      %1673 = vmatprep.subr.bf16.mxu0 0
      %1674 = vmatpush1.bf16.msra.mxu0 0
      %1675 = vmatprep.subr.bf16.mxu0 0
      %1676 = vmatpush1.bf16.msra.mxu0 0
      %1677 = vmatprep.subr.bf16.mxu0 0
      %1678 = vmatpush1.bf16.msra.mxu0 0
      %1679 = vmatprep.subr.bf16.mxu0 0
      %1680 = vmatpush1.bf16.msra.mxu0 0
      %1681 = vmatprep.subr.bf16.mxu0 0
      %1682 = vmatpush1.bf16.msra.mxu0 0
      %1683 = vmatprep.subr.bf16.mxu0 0
      %1684 = vmatpush1.bf16.msra.mxu0 0
      %1685 = vmatprep.subr.bf16.mxu0 0
      %1686 = vmatpush1.bf16.msra.mxu0 0
      %1687 = vmatprep.mubr.bf16.mxu0 0
      %1688 = vmatmul.mubr.bf16.gmra.mrb[0].mxu0 %v1650
      %v1689 = vpop.f32.mrb[0].mxu0
      %v1690 = vadd.f32 0.0, %v1689
      %v1691 = vpop.f32.mrb[0].mxu0
      %v1692 = vpop.f32.mrb[0].mxu0
      %v1693 = vpop.f32.mrb[0].mxu0
      %1694 = vdwg.mxu0
      %v1695 = vadd.f32 %v1338, %v1690
      %s1696 = scalar_lea.vmem %s3, 48
      %v1697 = vld [vmem:[%s1696] sm:$0xf]
      %v1698 = vld [vmem:[%s1696 + $0x4] sm:$0xf]
      %v1699 = vld [vmem:[%s1696 + $0x8] sm:$0xf]
      %v1700 = vld [vmem:[%s1696 + $0xc] sm:$0xf]
      %s1701 = scalar_lea.vmem %s4, 3
      %v1702 = vld [vmem:[%s1701] sm:$0x1]
      %v1704 = vlaneseq
      %v1705 = vshrl.u32 %v1704, 7
      %v1706 = vsub.s32 0, %v1705
      %v1707 = vrot.slane %v1702, %v1706
      %v1713 = vunpack.c.l.b16 %v1697
      %v1714 = vunpack.c.l.b16 %v1698
      %v1715 = vunpack.c.l.b16 %v1699
      %v1716 = vunpack.c.l.b16 %v1700
      %v1717 = vpack.c.b16 %v1714, %v1713
      %v1718 = vpack.c.b16 %v1716, %v1715
      %1721 = vmatprep.subr.bf16.mxu0 0
      %1722 = vmatpush1.bf16.msra.mxu0 %v1717
      %1723 = vmatprep.subr.bf16.mxu0 0
      %1724 = vmatpush1.bf16.msra.mxu0 %v1718
      %1725 = vmatprep.subr.bf16.mxu0 0
      %1726 = vmatpush1.bf16.msra.mxu0 0
      %1727 = vmatprep.subr.bf16.mxu0 0
      %1728 = vmatpush1.bf16.msra.mxu0 0
      %1729 = vmatprep.subr.bf16.mxu0 0
      %1730 = vmatpush1.bf16.msra.mxu0 0
      %1731 = vmatprep.subr.bf16.mxu0 0
      %1732 = vmatpush1.bf16.msra.mxu0 0
      %1733 = vmatprep.subr.bf16.mxu0 0
      %1734 = vmatpush1.bf16.msra.mxu0 0
      %1735 = vmatprep.subr.bf16.mxu0 0
      %1736 = vmatpush1.bf16.msra.mxu0 0
      %1737 = vmatprep.subr.bf16.mxu0 0
      %1738 = vmatpush1.bf16.msra.mxu0 0
      %1739 = vmatprep.subr.bf16.mxu0 0
      %1740 = vmatpush1.bf16.msra.mxu0 0
      %1741 = vmatprep.subr.bf16.mxu0 0
      %1742 = vmatpush1.bf16.msra.mxu0 0
      %1743 = vmatprep.subr.bf16.mxu0 0
      %1744 = vmatpush1.bf16.msra.mxu0 0
      %1745 = vmatprep.subr.bf16.mxu0 0
      %1746 = vmatpush1.bf16.msra.mxu0 0
      %1747 = vmatprep.subr.bf16.mxu0 0
      %1748 = vmatpush1.bf16.msra.mxu0 0
      %1749 = vmatprep.subr.bf16.mxu0 0
      %1750 = vmatpush1.bf16.msra.mxu0 0
      %1751 = vmatprep.subr.bf16.mxu0 0
      %1752 = vmatpush1.bf16.msra.mxu0 0
      %1753 = vmatprep.mubr.bf16.mxu0 0
      %1754 = vmatmul.mubr.bf16.gmra.mrb[0].mxu0 %v659
      %v1755 = vpop.f32.mrb[0].mxu0
      %v1756 = vadd.f32 %v1707, %v1755
      %v1757 = vpop.f32.mrb[0].mxu0
      %v1758 = vpop.f32.mrb[0].mxu0
      %v1759 = vpop.f32.mrb[0].mxu0
      %1760 = vdwg.mxu0
      %v1761 = vmul.f32 %v1756, 0.35355338
      %s1762 = scalar_lea.vmem %s5, 48
      %v1763 = vld [vmem:[%s1762] sm:$0xf]
      %v1764 = vld [vmem:[%s1762 + $0x4] sm:$0xf]
      %v1765 = vld [vmem:[%s1762 + $0x8] sm:$0xf]
      %v1766 = vld [vmem:[%s1762 + $0xc] sm:$0xf]
      %s1767 = scalar_lea.vmem %s6, 3
      %v1768 = vld [vmem:[%s1767] sm:$0x1]
      %v1770 = vlaneseq
      %v1771 = vshrl.u32 %v1770, 7
      %v1772 = vsub.s32 0, %v1771
      %v1773 = vrot.slane %v1768, %v1772
      %v1779 = vunpack.c.l.b16 %v1763
      %v1780 = vunpack.c.l.b16 %v1764
      %v1781 = vunpack.c.l.b16 %v1765
      %v1782 = vunpack.c.l.b16 %v1766
      %v1783 = vpack.c.b16 %v1780, %v1779
      %v1784 = vpack.c.b16 %v1782, %v1781
      %1787 = vmatprep.subr.bf16.mxu0 0
      %1788 = vmatpush1.bf16.msra.mxu0 %v1783
      %1789 = vmatprep.subr.bf16.mxu0 0
      %1790 = vmatpush1.bf16.msra.mxu0 %v1784
      %1791 = vmatprep.subr.bf16.mxu0 0
      %1792 = vmatpush1.bf16.msra.mxu0 0
      %1793 = vmatprep.subr.bf16.mxu0 0
      %1794 = vmatpush1.bf16.msra.mxu0 0
      %1795 = vmatprep.subr.bf16.mxu0 0
      %1796 = vmatpush1.bf16.msra.mxu0 0
      %1797 = vmatprep.subr.bf16.mxu0 0
      %1798 = vmatpush1.bf16.msra.mxu0 0
      %1799 = vmatprep.subr.bf16.mxu0 0
      %1800 = vmatpush1.bf16.msra.mxu0 0
      %1801 = vmatprep.subr.bf16.mxu0 0
      %1802 = vmatpush1.bf16.msra.mxu0 0
      %1803 = vmatprep.subr.bf16.mxu0 0
      %1804 = vmatpush1.bf16.msra.mxu0 0
      %1805 = vmatprep.subr.bf16.mxu0 0
      %1806 = vmatpush1.bf16.msra.mxu0 0
      %1807 = vmatprep.subr.bf16.mxu0 0
      %1808 = vmatpush1.bf16.msra.mxu0 0
      %1809 = vmatprep.subr.bf16.mxu0 0
      %1810 = vmatpush1.bf16.msra.mxu0 0
      %1811 = vmatprep.subr.bf16.mxu0 0
      %1812 = vmatpush1.bf16.msra.mxu0 0
      %1813 = vmatprep.subr.bf16.mxu0 0
      %1814 = vmatpush1.bf16.msra.mxu0 0
      %1815 = vmatprep.subr.bf16.mxu0 0
      %1816 = vmatpush1.bf16.msra.mxu0 0
      %1817 = vmatprep.subr.bf16.mxu0 0
      %1818 = vmatpush1.bf16.msra.mxu0 0
      %1819 = vmatprep.mubr.bf16.mxu0 0
      %1820 = vmatmul.mubr.bf16.gmra.mrb[0].mxu0 %v659
      %v1821 = vpop.f32.mrb[0].mxu0
      %v1822 = vadd.f32 %v1773, %v1821
      %v1823 = vpop.f32.mrb[0].mxu0
      %v1824 = vpop.f32.mrb[0].mxu0
      %v1825 = vpop.f32.mrb[0].mxu0
      %1826 = vdwg.mxu0
      %s1827 = scalar_lea.vmem %s7, 48
      %v1828 = vld [vmem:[%s1827] sm:$0xf]
      %v1829 = vld [vmem:[%s1827 + $0x4] sm:$0xf]
      %v1830 = vld [vmem:[%s1827 + $0x8] sm:$0xf]
      %v1831 = vld [vmem:[%s1827 + $0xc] sm:$0xf]
      %s1832 = scalar_lea.vmem %s8, 3
      %v1833 = vld [vmem:[%s1832] sm:$0x1]
      %v1835 = vlaneseq
      %v1836 = vshrl.u32 %v1835, 7
      %v1837 = vsub.s32 0, %v1836
      %v1838 = vrot.slane %v1833, %v1837
      %v1844 = vunpack.c.l.b16 %v1828
      %v1845 = vunpack.c.l.b16 %v1829
      %v1846 = vunpack.c.l.b16 %v1830
      %v1847 = vunpack.c.l.b16 %v1831
      %v1848 = vpack.c.b16 %v1845, %v1844
      %v1849 = vpack.c.b16 %v1847, %v1846
      %1852 = vmatprep.subr.bf16.mxu0 0
      %1853 = vmatpush1.bf16.msra.mxu0 %v1848
      %1854 = vmatprep.subr.bf16.mxu0 0
      %1855 = vmatpush1.bf16.msra.mxu0 %v1849
      %1856 = vmatprep.subr.bf16.mxu0 0
      %1857 = vmatpush1.bf16.msra.mxu0 0
      %1858 = vmatprep.subr.bf16.mxu0 0
      %1859 = vmatpush1.bf16.msra.mxu0 0
      %1860 = vmatprep.subr.bf16.mxu0 0
      %1861 = vmatpush1.bf16.msra.mxu0 0
      %1862 = vmatprep.subr.bf16.mxu0 0
      %1863 = vmatpush1.bf16.msra.mxu0 0
      %1864 = vmatprep.subr.bf16.mxu0 0
      %1865 = vmatpush1.bf16.msra.mxu0 0
      %1866 = vmatprep.subr.bf16.mxu0 0
      %1867 = vmatpush1.bf16.msra.mxu0 0
      %1868 = vmatprep.subr.bf16.mxu0 0
      %1869 = vmatpush1.bf16.msra.mxu0 0
      %1870 = vmatprep.subr.bf16.mxu0 0
      %1871 = vmatpush1.bf16.msra.mxu0 0
      %1872 = vmatprep.subr.bf16.mxu0 0
      %1873 = vmatpush1.bf16.msra.mxu0 0
      %1874 = vmatprep.subr.bf16.mxu0 0
      %1875 = vmatpush1.bf16.msra.mxu0 0
      %1876 = vmatprep.subr.bf16.mxu0 0
      %1877 = vmatpush1.bf16.msra.mxu0 0
      %1878 = vmatprep.subr.bf16.mxu0 0
      %1879 = vmatpush1.bf16.msra.mxu0 0
      %1880 = vmatprep.subr.bf16.mxu0 0
      %1881 = vmatpush1.bf16.msra.mxu0 0
      %1882 = vmatprep.subr.bf16.mxu0 0
      %1883 = vmatpush1.bf16.msra.mxu0 0
      %1884 = vmatprep.mubr.bf16.mxu0 0
      %1885 = vmatmul.mubr.bf16.gmra.mrb[0].mxu0 %v659
      %v1886 = vpop.f32.mrb[0].mxu0
      %v1887 = vadd.f32 %v1838, %v1886
      %v1888 = vpop.f32.mrb[0].mxu0
      %v1889 = vpop.f32.mrb[0].mxu0
      %v1890 = vpop.f32.mrb[0].mxu0
      %1891 = vdwg.mxu0
      %v1892 = vpack.c.bf16 %v1761, %v1761
      %v1893 = vpack.c.bf16 %v1822, %v1822
      %v1895 = vsel %vm836, %v1892, 0
      %v1898 = vsel %vm836, %v1893, 0
      %1900 = vmatprep.subr.bf16.mxu0 0
      %1901 = vmatpush1.bf16.xpose.msra.mxu0 %v1898
      %1902 = vmatprep.subr.bf16.mxu0 0
      %1903 = vmatpush1.bf16.xpose.msra.mxu0 0
      %1904 = vmatprep.subr.bf16.mxu0 0
      %1905 = vmatpush1.bf16.xpose.msra.mxu0 0
      %1906 = vmatprep.subr.bf16.mxu0 0
      %1907 = vmatpush1.bf16.xpose.msra.mxu0 0
      %1908 = vmatprep.subr.bf16.mxu0 0
      %1909 = vmatpush1.bf16.xpose.msra.mxu0 0
      %1910 = vmatprep.subr.bf16.mxu0 0
      %1911 = vmatpush1.bf16.xpose.msra.mxu0 0
      %1912 = vmatprep.subr.bf16.mxu0 0
      %1913 = vmatpush1.bf16.xpose.msra.mxu0 0
      %1914 = vmatprep.subr.bf16.mxu0 0
      %1915 = vmatpush1.bf16.xpose.msra.mxu0 0
      %1916 = vmatprep.subr.bf16.mxu0 0
      %1917 = vmatpush1.bf16.xpose.msra.mxu0 0
      %1918 = vmatprep.subr.bf16.mxu0 0
      %1919 = vmatpush1.bf16.xpose.msra.mxu0 0
      %1920 = vmatprep.subr.bf16.mxu0 0
      %1921 = vmatpush1.bf16.xpose.msra.mxu0 0
      %1922 = vmatprep.subr.bf16.mxu0 0
      %1923 = vmatpush1.bf16.xpose.msra.mxu0 0
      %1924 = vmatprep.subr.bf16.mxu0 0
      %1925 = vmatpush1.bf16.xpose.msra.mxu0 0
      %1926 = vmatprep.subr.bf16.mxu0 0
      %1927 = vmatpush1.bf16.xpose.msra.mxu0 0
      %1928 = vmatprep.subr.bf16.mxu0 0
      %1929 = vmatpush1.bf16.xpose.msra.mxu0 0
      %1930 = vmatprep.subr.bf16.mxu0 0
      %1931 = vmatpush1.bf16.xpose.msra.mxu0 0
      %1932 = vmatprep.mubr.bf16.mxu0 0
      %1933 = vmatmul.mubr.bf16.gmra.mrb[0].mxu0 %v1895
      %v1934 = vpop.f32.mrb[0].mxu0
      %v1935 = vadd.f32 %v834, %v1934
      %v1936 = vpop.f32.mrb[0].mxu0
      %v1937 = vpop.f32.mrb[0].mxu0
      %v1938 = vpop.f32.mrb[0].mxu0
      %1939 = vdwg.mxu0
      %v1940 = vsel %vm836, %v1935, -inf
      %1941 = vmax.xlane.f32.xlu0 %v1940
      %v1942 = vpop.xlane.xlu0 %1941
      %v1943 = vsub.f32 %v1935, %v1942
      %v1944 = vmul.f32 %v1943, 1.442695
      %v1945 = vpow.pop %v1944
      %v1946 = vsel %vm836, %v1945, 0.0
      %1947 = vadd.xlane.f32.xlu0 %v1946
      %v1948 = vpop.xlane.xlu0 %1947
      %v1949 = vrcp.pop %v1948
      %v1950 = vmul.f32 %v1945, %v1949
      %v1951 = vpack.c.bf16 %v1950, %v1950
      %v1952 = vpack.c.bf16 %v1887, %v1887
      %v1954 = vsel %vm836, %v1951, 0
      %v1957 = vsel %vm899, %v1952, 0
      %1959 = vmatprep.subr.bf16.mxu0 0
      %1960 = vmatpush1.bf16.msra.mxu0 %v1957
      %1961 = vmatprep.subr.bf16.mxu0 0
      %1962 = vmatpush1.bf16.msra.mxu0 0
      %1963 = vmatprep.subr.bf16.mxu0 0
      %1964 = vmatpush1.bf16.msra.mxu0 0
      %1965 = vmatprep.subr.bf16.mxu0 0
      %1966 = vmatpush1.bf16.msra.mxu0 0
      %1967 = vmatprep.subr.bf16.mxu0 0
      %1968 = vmatpush1.bf16.msra.mxu0 0
      %1969 = vmatprep.subr.bf16.mxu0 0
      %1970 = vmatpush1.bf16.msra.mxu0 0
      %1971 = vmatprep.subr.bf16.mxu0 0
      %1972 = vmatpush1.bf16.msra.mxu0 0
      %1973 = vmatprep.subr.bf16.mxu0 0
      %1974 = vmatpush1.bf16.msra.mxu0 0
      %1975 = vmatprep.subr.bf16.mxu0 0
      %1976 = vmatpush1.bf16.msra.mxu0 0
      %1977 = vmatprep.subr.bf16.mxu0 0
      %1978 = vmatpush1.bf16.msra.mxu0 0
      %1979 = vmatprep.subr.bf16.mxu0 0
      %1980 = vmatpush1.bf16.msra.mxu0 0
      %1981 = vmatprep.subr.bf16.mxu0 0
      %1982 = vmatpush1.bf16.msra.mxu0 0
      %1983 = vmatprep.subr.bf16.mxu0 0
      %1984 = vmatpush1.bf16.msra.mxu0 0
      %1985 = vmatprep.subr.bf16.mxu0 0
      %1986 = vmatpush1.bf16.msra.mxu0 0
      %1987 = vmatprep.subr.bf16.mxu0 0
      %1988 = vmatpush1.bf16.msra.mxu0 0
      %1989 = vmatprep.subr.bf16.mxu0 0
      %1990 = vmatpush1.bf16.msra.mxu0 0
      %1991 = vmatprep.mubr.bf16.mxu0 0
      %1992 = vmatmul.mubr.bf16.gmra.mrb[0].mxu0 %v1954
      %v1993 = vpop.f32.mrb[0].mxu0
      %v1994 = vadd.f32 0.0, %v1993
      %v1995 = vpop.f32.mrb[0].mxu0
      %v1996 = vpop.f32.mrb[0].mxu0
      %v1997 = vpop.f32.mrb[0].mxu0
      %1998 = vdwg.mxu0
      %v1999 = vpack.c.bf16 %v1994, %v1994
      %s2000 = scalar_lea.vmem %s9, 12
      %v2001 = vld [vmem:[%s2000] sm:$0xf]
      %v2003 = vsel %vm836, %v1999, 0
      %v2006 = vsel %vm899, %v2001, 0
      %2008 = vmatprep.subr.bf16.mxu0 0
      %2009 = vmatpush1.bf16.msra.mxu0 %v2006
      %2010 = vmatprep.subr.bf16.mxu0 0
      %2011 = vmatpush1.bf16.msra.mxu0 0
      %2012 = vmatprep.subr.bf16.mxu0 0
      %2013 = vmatpush1.bf16.msra.mxu0 0
      %2014 = vmatprep.subr.bf16.mxu0 0
      %2015 = vmatpush1.bf16.msra.mxu0 0
      %2016 = vmatprep.subr.bf16.mxu0 0
      %2017 = vmatpush1.bf16.msra.mxu0 0
      %2018 = vmatprep.subr.bf16.mxu0 0
      %2019 = vmatpush1.bf16.msra.mxu0 0
      %2020 = vmatprep.subr.bf16.mxu0 0
      %2021 = vmatpush1.bf16.msra.mxu0 0
      %2022 = vmatprep.subr.bf16.mxu0 0
      %2023 = vmatpush1.bf16.msra.mxu0 0
      %2024 = vmatprep.subr.bf16.mxu0 0
      %2025 = vmatpush1.bf16.msra.mxu0 0
      %2026 = vmatprep.subr.bf16.mxu0 0
      %2027 = vmatpush1.bf16.msra.mxu0 0
      %2028 = vmatprep.subr.bf16.mxu0 0
      %2029 = vmatpush1.bf16.msra.mxu0 0
      %2030 = vmatprep.subr.bf16.mxu0 0
      %2031 = vmatpush1.bf16.msra.mxu0 0
      %2032 = vmatprep.subr.bf16.mxu0 0
      %2033 = vmatpush1.bf16.msra.mxu0 0
      %2034 = vmatprep.subr.bf16.mxu0 0
      %2035 = vmatpush1.bf16.msra.mxu0 0
      %2036 = vmatprep.subr.bf16.mxu0 0
      %2037 = vmatpush1.bf16.msra.mxu0 0
      %2038 = vmatprep.subr.bf16.mxu0 0
      %2039 = vmatpush1.bf16.msra.mxu0 0
      %2040 = vmatprep.mubr.bf16.mxu0 0
      %2041 = vmatmul.mubr.bf16.gmra.mrb[0].mxu0 %v2003
      %v2042 = vpop.f32.mrb[0].mxu0
      %v2043 = vadd.f32 0.0, %v2042
      %v2044 = vpop.f32.mrb[0].mxu0
      %v2045 = vpop.f32.mrb[0].mxu0
      %v2046 = vpop.f32.mrb[0].mxu0
      %2047 = vdwg.mxu0
      %v2048 = vadd.f32 %v1695, %v2043
      %v2049 = vld [vmem:[%s10] sm:$0x1]
      %v2051 = vlaneseq
      %v2052 = vshrl.u32 %v2051, 7
      %v2053 = vsub.s32 0, %v2052
      %v2054 = vrot.slane %v2049, %v2053
      %v2056 = vadd.f32 %v2048, %v2054
      %v2057 = vadd.f32 %v2056, %v631
      %v2058 = vsel %vm657, %v2057, 0.0
      %2059 = vadd.xlane.f32.xlu0 %v2058
      %v2060 = vpop.xlane.xlu0 %2059
      %v2061 = vrcp.pop 32.0
      %v2062 = vmul.f32 %v2060, %v2061
      %v2063 = vsub.f32 %v2057, %v2062
      %v2064 = vmul.f32 %v2063, %v2063
      %v2065 = vsel %vm657, %v2064, 0.0
      %2066 = vadd.xlane.f32.xlu0 %v2065
      %v2067 = vpop.xlane.xlu0 %2066
      %v2068 = vmul.f32 %v2067, %v2061
      %v2069 = vadd.f32 %v2068, 1e-05
      %v2070 = vrsqrt.pop %v2069
      %v2071 = vmul.f32 %v2063, %v2070
      %v2072 = vld [vmem:[%s11] sm:$0x1]
      %v2074 = vlaneseq
      %v2075 = vshrl.u32 %v2074, 7
      %v2076 = vsub.s32 0, %v2075
      %v2077 = vrot.slane %v2072, %v2076
      %v2079 = vmul.f32 %v2071, %v2077
      %v2080 = vld [vmem:[%s12] sm:$0x1]
      %v2082 = vlaneseq
      %v2083 = vshrl.u32 %v2082, 7
      %v2084 = vsub.s32 0, %v2083
      %v2085 = vrot.slane %v2080, %v2084
      %v2087 = vadd.f32 %v2079, %v2085
      %2089 = vset.pattern.permute.xlu0 0
      %2090 = vperm.xlu0 %2089, %v633
      %v2091 = vpop.permute.xlu0 %2090
      %v2093 = vmul.f32 %v2087, %v2091
      %v2094 = vpack.c.bf16 %v2093, %v2093
      %v2095 = vld [vmem:[%s13] sm:$0xf]
      %v2096 = vld [vmem:[%s13 + $0x4] sm:$0xf]
      %v2097 = vld [vmem:[%s13 + $0x8] sm:$0xf]
      %v2098 = vld [vmem:[%s13 + $0xc] sm:$0xf]
      %v2099 = vld [vmem:[%s14] sm:$0x1]
      %v2101 = vlaneseq
      %v2102 = vshrl.u32 %v2101, 7
      %v2103 = vsub.s32 0, %v2102
      %v2104 = vrot.slane %v2099, %v2103
      %v2110 = vunpack.c.l.b16 %v2095
      %v2111 = vunpack.c.l.b16 %v2096
      %v2112 = vunpack.c.l.b16 %v2097
      %v2113 = vunpack.c.l.b16 %v2098
      %v2114 = vpack.c.b16 %v2111, %v2110
      %v2115 = vpack.c.b16 %v2113, %v2112
      %v2119 = vsel %vm657, %v2094, 0
      %2121 = vmatprep.subr.bf16.mxu0 0
      %2122 = vmatpush1.bf16.msra.mxu0 %v2114
      %2123 = vmatprep.subr.bf16.mxu0 0
      %2124 = vmatpush1.bf16.msra.mxu0 %v2115
      %2125 = vmatprep.subr.bf16.mxu0 0
      %2126 = vmatpush1.bf16.msra.mxu0 0
      %2127 = vmatprep.subr.bf16.mxu0 0
      %2128 = vmatpush1.bf16.msra.mxu0 0
      %2129 = vmatprep.subr.bf16.mxu0 0
      %2130 = vmatpush1.bf16.msra.mxu0 0
      %2131 = vmatprep.subr.bf16.mxu0 0
      %2132 = vmatpush1.bf16.msra.mxu0 0
      %2133 = vmatprep.subr.bf16.mxu0 0
      %2134 = vmatpush1.bf16.msra.mxu0 0
      %2135 = vmatprep.subr.bf16.mxu0 0
      %2136 = vmatpush1.bf16.msra.mxu0 0
      %2137 = vmatprep.subr.bf16.mxu0 0
      %2138 = vmatpush1.bf16.msra.mxu0 0
      %2139 = vmatprep.subr.bf16.mxu0 0
      %2140 = vmatpush1.bf16.msra.mxu0 0
      %2141 = vmatprep.subr.bf16.mxu0 0
      %2142 = vmatpush1.bf16.msra.mxu0 0
      %2143 = vmatprep.subr.bf16.mxu0 0
      %2144 = vmatpush1.bf16.msra.mxu0 0
      %2145 = vmatprep.subr.bf16.mxu0 0
      %2146 = vmatpush1.bf16.msra.mxu0 0
      %2147 = vmatprep.subr.bf16.mxu0 0
      %2148 = vmatpush1.bf16.msra.mxu0 0
      %2149 = vmatprep.subr.bf16.mxu0 0
      %2150 = vmatpush1.bf16.msra.mxu0 0
      %2151 = vmatprep.subr.bf16.mxu0 0
      %2152 = vmatpush1.bf16.msra.mxu0 0
      %2153 = vmatprep.mubr.bf16.mxu0 0
      %2154 = vmatmul.mubr.bf16.gmra.mrb[0].mxu0 %v2119
      %v2155 = vpop.f32.mrb[0].mxu0
      %v2156 = vadd.f32 %v2104, %v2155
      %v2157 = vpop.f32.mrb[0].mxu0
      %v2158 = vpop.f32.mrb[0].mxu0
      %v2159 = vpop.f32.mrb[0].mxu0
      %2160 = vdwg.mxu0
      %v2161 = vmax.f32 %v2156, 0.0
      %v2162 = vpack.c.bf16 %v2161, %v2161
      %v2163 = vld [vmem:[%s15] sm:$0xf]
      %v2164 = vld [vmem:[%s15 + $0x4] sm:$0xf]
      %v2165 = vld [vmem:[%s15 + $0x8] sm:$0xf]
      %v2166 = vld [vmem:[%s15 + $0xc] sm:$0xf]
      %v2167 = vld [vmem:[%s15 + $0x10] sm:$0xf]
      %v2168 = vld [vmem:[%s15 + $0x14] sm:$0xf]
      %v2169 = vld [vmem:[%s15 + $0x18] sm:$0xf]
      %v2170 = vld [vmem:[%s15 + $0x1c] sm:$0xf]
      %v2171 = vld [vmem:[%s16] sm:$0x1]
      %v2173 = vlaneseq
      %v2174 = vshrl.u32 %v2173, 7
      %v2175 = vsub.s32 0, %v2174
      %v2176 = vrot.slane %v2171, %v2175
      %v2186 = vunpack.c.l.b16 %v2163
      %v2187 = vunpack.c.l.b16 %v2164
      %v2188 = vunpack.c.l.b16 %v2165
      %v2189 = vunpack.c.l.b16 %v2166
      %v2190 = vunpack.c.l.b16 %v2167
      %v2191 = vunpack.c.l.b16 %v2168
      %v2192 = vunpack.c.l.b16 %v2169
      %v2193 = vunpack.c.l.b16 %v2170
      %v2194 = vpack.c.b16 %v2187, %v2186
      %v2195 = vpack.c.b16 %v2189, %v2188
      %v2196 = vpack.c.b16 %v2191, %v2190
      %v2197 = vpack.c.b16 %v2193, %v2192
      %vm2202 = vcmask 523264
      %v2204 = vsel %vm2202, %v2162, 0
      %2206 = vmatprep.subr.bf16.mxu0 0
      %2207 = vmatpush1.bf16.msra.mxu0 %v2194
      %2208 = vmatprep.subr.bf16.mxu0 0
      %2209 = vmatpush1.bf16.msra.mxu0 %v2195
      %2210 = vmatprep.subr.bf16.mxu0 0
      %2211 = vmatpush1.bf16.msra.mxu0 %v2196
      %2212 = vmatprep.subr.bf16.mxu0 0
      %2213 = vmatpush1.bf16.msra.mxu0 %v2197
      %2214 = vmatprep.subr.bf16.mxu0 0
      %2215 = vmatpush1.bf16.msra.mxu0 0
      %2216 = vmatprep.subr.bf16.mxu0 0
      %2217 = vmatpush1.bf16.msra.mxu0 0
      %2218 = vmatprep.subr.bf16.mxu0 0
      %2219 = vmatpush1.bf16.msra.mxu0 0
      %2220 = vmatprep.subr.bf16.mxu0 0
      %2221 = vmatpush1.bf16.msra.mxu0 0
      %2222 = vmatprep.subr.bf16.mxu0 0
      %2223 = vmatpush1.bf16.msra.mxu0 0
      %2224 = vmatprep.subr.bf16.mxu0 0
      %2225 = vmatpush1.bf16.msra.mxu0 0
      %2226 = vmatprep.subr.bf16.mxu0 0
      %2227 = vmatpush1.bf16.msra.mxu0 0
      %2228 = vmatprep.subr.bf16.mxu0 0
      %2229 = vmatpush1.bf16.msra.mxu0 0
      %2230 = vmatprep.subr.bf16.mxu0 0
      %2231 = vmatpush1.bf16.msra.mxu0 0
      %2232 = vmatprep.subr.bf16.mxu0 0
      %2233 = vmatpush1.bf16.msra.mxu0 0
      %2234 = vmatprep.subr.bf16.mxu0 0
      %2235 = vmatpush1.bf16.msra.mxu0 0
      %2236 = vmatprep.subr.bf16.mxu0 0
      %2237 = vmatpush1.bf16.msra.mxu0 0
      %2238 = vmatprep.mubr.bf16.mxu0 0
      %2239 = vmatmul.mubr.bf16.gmra.mrb[0].mxu0 %v2204
      %v2240 = vpop.f32.mrb[0].mxu0
      %v2241 = vadd.f32 %v2176, %v2240
      %v2242 = vpop.f32.mrb[0].mxu0
      %v2243 = vpop.f32.mrb[0].mxu0
      %v2244 = vpop.f32.mrb[0].mxu0
      %2245 = vdwg.mxu0
      %v2246 = vadd.f32 %v2241, %v2093
      %v2247 = vsel %vm657, %v2246, 0.0
      %2248 = vadd.xlane.f32.xlu0 %v2247
      %v2249 = vpop.xlane.xlu0 %2248
      %v2250 = vmul.f32 %v2249, %v2061
      %v2251 = vsub.f32 %v2246, %v2250
      %v2252 = vmul.f32 %v2251, %v2251
      %v2253 = vsel %vm657, %v2252, 0.0
      %2254 = vadd.xlane.f32.xlu0 %v2253
      %v2255 = vpop.xlane.xlu0 %2254
      %v2256 = vmul.f32 %v2255, %v2061
      %v2257 = vadd.f32 %v2256, 1e-05
      %v2258 = vrsqrt.pop %v2257
      %v2259 = vmul.f32 %v2251, %v2258
      %v2260 = vld [vmem:[%s17] sm:$0x1]
      %v2262 = vlaneseq
      %v2263 = vshrl.u32 %v2262, 7
      %v2264 = vsub.s32 0, %v2263
      %v2265 = vrot.slane %v2260, %v2264
      %v2267 = vmul.f32 %v2259, %v2265
      %v2268 = vld [vmem:[%s18] sm:$0x1]
      %v2270 = vlaneseq
      %v2271 = vshrl.u32 %v2270, 7
      %v2272 = vsub.s32 0, %v2271
      %v2273 = vrot.slane %v2268, %v2272
      %v2275 = vadd.f32 %v2267, %v2273
      %v2276 = vmul.f32 %v2275, %v2091
      %v2277 = vpack.c.bf16 %v2276, %v2276
      %vm2278 = vcmask 257024
      %2279 = vst.msk [vmem:[%s628] sm:$0xf] %vm2278, %v2277
      %p2280 = scmp.lt.s32.totalorder %s30, 1
      %s2281 = scalar_select %p2280, %s30, 1
      %s2282 = smul.addr %s2281, 4
      %s2283 = scalar_lea.vmem %s19, %s2282
      // Predicated region
      $region97: #{transformer_forward.5} parent=95 // pred_check
        %p2284 = pneg %p462
      $region98: #{transformer_forward.5} parent=95 // pred_check_branch
        %2286 = sbr.rel (%p2284) target = $region100
      $region99: #{transformer_forward.5} parent=95 // pred_region
        _
      $region100: #{transformer_forward.5} parent=95 // pred_fallthru
        _
    $region96: #{transformer_forward.5} parent=5 // pred_fallthru
      _
    %p2287 = scmp.le.s32.totalorder 2, %s25
    // Predicated region
    $region101: #{transformer_forward.5} parent=5 // pred_check
      %p2288 = pneg %p2287
    $region102: #{transformer_forward.5} parent=5 // pred_check_branch
      %2290 = sbr.rel (%p2288) target = $region104
    $region103: #{transformer_forward.5} parent=5 // pred_region
      %s2291 = ssub.s32 %s25, 2
      // Predicated region
      $region105: #{transformer_forward.5} parent=103 // pred_check
        %p2292 = pneg %p468
      $region106: #{transformer_forward.5} parent=103 // pred_check_branch
        %2294 = sbr.rel (%p2292) target = $region108
      $region107: #{transformer_forward.5} parent=103 // pred_region
        %p2295 = scmp.lt.s32.totalorder %s31, 1
        %s2296 = scalar_select %p2295, %s31, 1
        %s2297 = smul.addr %s2296, 4
        %s2298 = scalar_lea.vmem %s19, %s2297
      $region108: #{transformer_forward.5} parent=103 // pred_fallthru
        _
    $region104: #{transformer_forward.5} parent=5 // pred_fallthru
      _
  $region6: #{transformer_forward.5} parent=0 // loop_footer
    %s29 = sadd.s32 1, %s25
  $region7: #{transformer_forward.5} parent=0 // loop_footer_branch
    %24 = sbr.rel target = $region3
  $region8: #{transformer_forward.5} parent=0 // loop_exit
    _

// kernel: transformer_forward.7
$region0: #{transformer_forward.7}
  #allocation0 [shape = 'u32[]', space=smem, size = 0x4, offset = 0x4, fixed_abs, tag = 'smem constant byte address 0x4 - core index']
  #allocation1 [shape = 'u32[144,128]{1,0:T(1,128)}', space=vmem, size = 0x12000, scoped, tag = 'internal scratch']
  %s0 = inlined_call_operand.smem [shape: u32[32], index: -1, kind: input, shape index: {}]
  %s1 = sld [smem:[%s0]]
  %s2 = scalar_lea.smem %s0, 1
  %s3 = sld [smem:[%s2]]
  %s4 = scalar_lea.smem %s0, 2
  %s5 = sld [smem:[%s4]]
  %s6 = scalar_lea.smem %s0, 3
  %s7 = sld [smem:[%s6]]
  %s8 = scalar_lea.smem %s0, 4
  %s9 = sld [smem:[%s8]]
  %s10 = scalar_lea.smem %s0, 5
  %s11 = sld [smem:[%s10]]
  %s12 = scalar_lea.smem %s0, 6
  %s13 = sld [smem:[%s12]]
  %s14 = scalar_lea.smem %s0, 7
  %s15 = sld [smem:[%s14]]
  %s16 = scalar_lea.smem %s0, 8
  %s17 = sld [smem:[%s16]]
  %s18 = scalar_lea.smem %s0, 9
  %s19 = sld [smem:[%s18]]
  %s20 = scalar_lea.smem %s0, 10
  %s21 = sld [smem:[%s20]]
  %s22 = scalar_lea.smem %s0, 11
  %s23 = sld [smem:[%s22]]
  %s24 = scalar_lea.smem %s0, 12
  %s25 = sld [smem:[%s24]]
  %s26 = scalar_lea.smem %s0, 13
  %s27 = sld [smem:[%s26]]
  %s28 = scalar_lea.smem %s0, 14
  %s29 = sld [smem:[%s28]]
  %s30 = scalar_lea.smem %s0, 15
  %s31 = sld [smem:[%s30]]
  %s32 = scalar_lea.smem %s0, 16
  %s33 = sld [smem:[%s32]]
  %s34 = scalar_lea.smem %s0, 17
  %s35 = sld [smem:[%s34]]
  %s36 = scalar_lea.smem %s0, 18
  %s37 = sld [smem:[%s36]]
  %s38 = scalar_lea.smem %s0, 19
  %s39 = sld [smem:[%s38]]
  %s40 = scalar_lea.smem %s0, 20
  %s41 = sld [smem:[%s40]]
  %s42 = scalar_lea.smem %s0, 21
  %s43 = sld [smem:[%s42]]
  %s44 = scalar_lea.smem %s0, 22
  %s45 = sld [smem:[%s44]]
  %s46 = scalar_lea.smem %s0, 23
  %s47 = sld [smem:[%s46]]
  %s48 = scalar_lea.smem %s0, 24
  %s49 = sld [smem:[%s48]]
  %s50 = scalar_lea.smem %s0, 25
  %s51 = sld [smem:[%s50]]
  %s52 = scalar_lea.smem %s0, 26
  %s53 = sld [smem:[%s52]]
  %s54 = scalar_lea.smem %s0, 27
  %s55 = sld [smem:[%s54]]
  %s56 = scalar_lea.smem %s0, 28
  %s57 = sld [smem:[%s56]]
  %s58 = scalar_lea.smem %s0, 29
  %s59 = sld [smem:[%s58]]
  %s60 = scalar_lea.smem %s0, 30
  %s61 = sld [smem:[%s60]]
  %s62 = scalar_lea.smem %s0, 31
  %s63 = sld [smem:[%s62]]
  %s64 = sld [smem:[#allocation0]]
  $region157: #{transformer_forward.7} parent=0
    _
  %s66 = ssub.s32 1, %s64
  %s67 = scalar_select 0, %s66, %s64
  loop: start=0, step=1, limit=4
  $region2: #{transformer_forward.7} parent=0 // loop_pre_header
    _
  $region3: #{transformer_forward.7} parent=0 // loop_header
    %s69 = sphi 0, %s73
    %p70 = scmp.ge.s32.totalorder %s69, 4
    %s79 = sphi 0, %s81
    %s82 = sphi 0, %s79
    %s83 = sphi 0, %s82
    %s99 = sphi 0, %s83
    %s105 = sphi 0, %s107
    %s108 = sphi 0, %s105
    %s109 = sphi 0, %s108
    %s125 = sphi 0, %s109
    %s131 = sphi 0, %s133
    %s134 = sphi 0, %s131
    %s135 = sphi 0, %s134
    %s151 = sphi 0, %s135
    %s157 = sphi 0, %s159
    %s160 = sphi 0, %s157
    %s161 = sphi 0, %s160
    %s177 = sphi 0, %s161
    %s183 = sphi 0, %s185
    %s186 = sphi 0, %s183
    %s187 = sphi 0, %s186
    %s203 = sphi 0, %s187
    %s207 = sphi 0, %s207
    %s209 = sphi 0, %s207
    %s210 = sphi 0, %s209
    %s224 = sphi 0, %s210
    %s228 = sphi 0, %s228
    %s230 = sphi 0, %s228
    %s231 = sphi 0, %s230
    %s245 = sphi 0, %s231
    %s249 = sphi 0, %s249
    %s251 = sphi 0, %s249
    %s252 = sphi 0, %s251
    %s266 = sphi 0, %s252
    %s270 = sphi 0, %s270
    %s272 = sphi 0, %s270
    %s273 = sphi 0, %s272
    %s287 = sphi 0, %s273
    %s291 = sphi 0, %s291
    %s293 = sphi 0, %s291
    %s294 = sphi 0, %s293
    %s308 = sphi 0, %s294
    %s312 = sphi 0, %s312
    %s314 = sphi 0, %s312
    %s315 = sphi 0, %s314
    %s329 = sphi 0, %s315
    %s333 = sphi 0, %s333
    %s335 = sphi 0, %s333
    %s336 = sphi 0, %s335
    %s350 = sphi 0, %s336
    %s354 = sphi 0, %s354
    %s356 = sphi 0, %s354
    %s357 = sphi 0, %s356
    %s371 = sphi 0, %s357
    %s375 = sphi 0, %s375
    %s377 = sphi 0, %s375
    %s378 = sphi 0, %s377
    %s392 = sphi 0, %s378
    %s396 = sphi 0, %s396
    %s398 = sphi 0, %s396
    %s399 = sphi 0, %s398
    %s413 = sphi 0, %s399
    %s417 = sphi 0, %s417
    %s419 = sphi 0, %s417
    %s420 = sphi 0, %s419
    %s434 = sphi 0, %s420
    %s438 = sphi 0, %s438
    %s440 = sphi 0, %s438
    %s441 = sphi 0, %s440
    %s455 = sphi 0, %s441
    %s459 = sphi 0, %s459
    %s461 = sphi 0, %s459
    %s462 = sphi 0, %s461
    %s476 = sphi 0, %s462
    %s480 = sphi 0, %s480
    %s482 = sphi 0, %s480
    %s483 = sphi 0, %s482
    %s497 = sphi 0, %s483
    %s501 = sphi 0, %s501
    %s503 = sphi 0, %s501
    %s504 = sphi 0, %s503
    %s518 = sphi 0, %s504
    %s522 = sphi 0, %s522
    %s524 = sphi 0, %s522
    %s525 = sphi 0, %s524
    %s539 = sphi 0, %s525
    %s543 = sphi 0, %s543
    %s545 = sphi 0, %s543
    %s546 = sphi 0, %s545
    %s560 = sphi 0, %s546
    %s564 = sphi 0, %s564
    %s566 = sphi 0, %s564
    %s567 = sphi 0, %s566
    %s581 = sphi 0, %s567
    %s585 = sphi 0, %s585
    %s587 = sphi 0, %s585
    %s588 = sphi 0, %s587
    %s602 = sphi 0, %s588
    %s606 = sphi 0, %s606
    %s608 = sphi 0, %s606
    %s609 = sphi 0, %s608
    %s623 = sphi 0, %s609
    %s627 = sphi 0, %s627
    %s629 = sphi 0, %s627
    %s630 = sphi 0, %s629
    %s644 = sphi 0, %s630
    %s648 = sphi 0, %s648
    %s650 = sphi 0, %s648
    %s651 = sphi 0, %s650
    %s665 = sphi 0, %s651
    %s669 = sphi 0, %s669
    %s671 = sphi 0, %s669
    %s672 = sphi 0, %s671
    %s686 = sphi 0, %s672
    %s690 = sphi 0, %s690
    %s692 = sphi 0, %s690
    %s693 = sphi 0, %s692
    %s707 = sphi 0, %s693
    %s711 = sphi 0, %s711
    %s713 = sphi 0, %s711
    %s714 = sphi 0, %s713
    %s728 = sphi 0, %s714
    %s732 = sphi 0, %s732
    %s734 = sphi 0, %s732
    %s735 = sphi 0, %s734
    %s749 = sphi 0, %s735
    %s755 = sphi 0, %s757
    %s758 = sphi 0, %s755
    %s759 = sphi 0, %s758
    %s775 = sphi 0, %s759
  $region4: #{transformer_forward.7} parent=0 // loop_header_branch
    %72 = sbr.rel (%p70) target = $region8
  $region5: #{transformer_forward.7} parent=0 // loop_body
    %s74 = ssub.s32 %s69, 1
    %s75 = ssub.s32 %s69, 2
    %s76 = sadd.s32 %s69, 1
    %s77 = ssub.s32 %s69, %s76
    %p78 = scmp.eq.s32.totalorder %s77, 0
    %s80 = sadd.s32 %s79, 1
    %s81 = scalar_select %p78, %s79, %s80
    %p84 = pneg %p78
    %p85 = scmp.eq.s32.totalorder %s69, 1
    %p86 = por %p84, %p85
    %p87 = scmp.ne.s32.totalorder %s79, %s82
    %p88 = scmp.eq.s32.totalorder %s69, 0
    %p89 = por %p87, %p88
    %p90 = scmp.ne.s32.totalorder %s79, %s82
    %p91 = scmp.eq.s32.totalorder %s74, 1
    %p92 = por %p90, %p91
    %p93 = scmp.ne.s32.totalorder %s82, %s83
    %p94 = scmp.eq.s32.totalorder %s74, 0
    %p95 = por %p93, %p94
    %p96 = scmp.ne.s32.totalorder %s82, %s83
    %p97 = scmp.eq.s32.totalorder %s75, 1
    %p98 = por %p96, %p97
    %p100 = scmp.ne.s32.totalorder %s83, %s99
    %p101 = scmp.eq.s32.totalorder %s75, 0
    %p102 = por %p100, %p101
    %s103 = ssub.s32 %s69, %s76
    %p104 = scmp.eq.s32.totalorder %s103, 0
    %s106 = sadd.s32 %s105, 1
    %s107 = scalar_select %p104, %s105, %s106
    %p110 = pneg %p104
    %p111 = scmp.eq.s32.totalorder %s69, 1
    %p112 = por %p110, %p111
    %p113 = scmp.ne.s32.totalorder %s105, %s108
    %p114 = scmp.eq.s32.totalorder %s69, 0
    %p115 = por %p113, %p114
    %p116 = scmp.ne.s32.totalorder %s105, %s108
    %p117 = scmp.eq.s32.totalorder %s74, 1
    %p118 = por %p116, %p117
    %p119 = scmp.ne.s32.totalorder %s108, %s109
    %p120 = scmp.eq.s32.totalorder %s74, 0
    %p121 = por %p119, %p120
    %p122 = scmp.ne.s32.totalorder %s108, %s109
    %p123 = scmp.eq.s32.totalorder %s75, 1
    %p124 = por %p122, %p123
    %p126 = scmp.ne.s32.totalorder %s109, %s125
    %p127 = scmp.eq.s32.totalorder %s75, 0
    %p128 = por %p126, %p127
    %s129 = ssub.s32 %s69, %s76
    %p130 = scmp.eq.s32.totalorder %s129, 0
    %s132 = sadd.s32 %s131, 1
    %s133 = scalar_select %p130, %s131, %s132
    %p136 = pneg %p130
    %p137 = scmp.eq.s32.totalorder %s69, 1
    %p138 = por %p136, %p137
    %p139 = scmp.ne.s32.totalorder %s131, %s134
    %p140 = scmp.eq.s32.totalorder %s69, 0
    %p141 = por %p139, %p140
    %p142 = scmp.ne.s32.totalorder %s131, %s134
    %p143 = scmp.eq.s32.totalorder %s74, 1
    %p144 = por %p142, %p143
    %p145 = scmp.ne.s32.totalorder %s134, %s135
    %p146 = scmp.eq.s32.totalorder %s74, 0
    %p147 = por %p145, %p146
    %p148 = scmp.ne.s32.totalorder %s134, %s135
    %p149 = scmp.eq.s32.totalorder %s75, 1
    %p150 = por %p148, %p149
    %p152 = scmp.ne.s32.totalorder %s135, %s151
    %p153 = scmp.eq.s32.totalorder %s75, 0
    %p154 = por %p152, %p153
    %s155 = ssub.s32 %s69, %s76
    %p156 = scmp.eq.s32.totalorder %s155, 0
    %s158 = sadd.s32 %s157, 1
    %s159 = scalar_select %p156, %s157, %s158
    %p162 = pneg %p156
    %p163 = scmp.eq.s32.totalorder %s69, 1
    %p164 = por %p162, %p163
    %p165 = scmp.ne.s32.totalorder %s157, %s160
    %p166 = scmp.eq.s32.totalorder %s69, 0
    %p167 = por %p165, %p166
    %p168 = scmp.ne.s32.totalorder %s157, %s160
    %p169 = scmp.eq.s32.totalorder %s74, 1
    %p170 = por %p168, %p169
    %p171 = scmp.ne.s32.totalorder %s160, %s161
    %p172 = scmp.eq.s32.totalorder %s74, 0
    %p173 = por %p171, %p172
    %p174 = scmp.ne.s32.totalorder %s160, %s161
    %p175 = scmp.eq.s32.totalorder %s75, 1
    %p176 = por %p174, %p175
    %p178 = scmp.ne.s32.totalorder %s161, %s177
    %p179 = scmp.eq.s32.totalorder %s75, 0
    %p180 = por %p178, %p179
    %s181 = ssub.s32 %s69, %s76
    %p182 = scmp.eq.s32.totalorder %s181, 0
    %s184 = sadd.s32 %s183, 1
    %s185 = scalar_select %p182, %s183, %s184
    %p188 = pneg %p182
    %p189 = scmp.eq.s32.totalorder %s69, 1
    %p190 = por %p188, %p189
    %p191 = scmp.ne.s32.totalorder %s183, %s186
    %p192 = scmp.eq.s32.totalorder %s69, 0
    %p193 = por %p191, %p192
    %p194 = scmp.ne.s32.totalorder %s183, %s186
    %p195 = scmp.eq.s32.totalorder %s74, 1
    %p196 = por %p194, %p195
    %p197 = scmp.ne.s32.totalorder %s186, %s187
    %p198 = scmp.eq.s32.totalorder %s74, 0
    %p199 = por %p197, %p198
    %p200 = scmp.ne.s32.totalorder %s186, %s187
    %p201 = scmp.eq.s32.totalorder %s75, 1
    %p202 = por %p200, %p201
    %p204 = scmp.ne.s32.totalorder %s187, %s203
    %p205 = scmp.eq.s32.totalorder %s75, 0
    %p206 = por %p204, %p205
    %s208 = sadd.s32 %s207, 1
    %p211 = scmp.eq.s32.totalorder %s69, 1
    %p212 = scmp.ne.s32.totalorder %s207, %s209
    %p213 = scmp.eq.s32.totalorder %s69, 0
    %p214 = por %p212, %p213
    %p215 = scmp.ne.s32.totalorder %s207, %s209
    %p216 = scmp.eq.s32.totalorder %s74, 1
    %p217 = por %p215, %p216
    %p218 = scmp.ne.s32.totalorder %s209, %s210
    %p219 = scmp.eq.s32.totalorder %s74, 0
    %p220 = por %p218, %p219
    %p221 = scmp.ne.s32.totalorder %s209, %s210
    %p222 = scmp.eq.s32.totalorder %s75, 1
    %p223 = por %p221, %p222
    %p225 = scmp.ne.s32.totalorder %s210, %s224
    %p226 = scmp.eq.s32.totalorder %s75, 0
    %p227 = por %p225, %p226
    %s229 = sadd.s32 %s228, 1
    %p232 = scmp.eq.s32.totalorder %s69, 1
    %p233 = scmp.ne.s32.totalorder %s228, %s230
    %p234 = scmp.eq.s32.totalorder %s69, 0
    %p235 = por %p233, %p234
    %p236 = scmp.ne.s32.totalorder %s228, %s230
    %p237 = scmp.eq.s32.totalorder %s74, 1
    %p238 = por %p236, %p237
    %p239 = scmp.ne.s32.totalorder %s230, %s231
    %p240 = scmp.eq.s32.totalorder %s74, 0
    %p241 = por %p239, %p240
    %p242 = scmp.ne.s32.totalorder %s230, %s231
    %p243 = scmp.eq.s32.totalorder %s75, 1
    %p244 = por %p242, %p243
    %p246 = scmp.ne.s32.totalorder %s231, %s245
    %p247 = scmp.eq.s32.totalorder %s75, 0
    %p248 = por %p246, %p247
    %s250 = sadd.s32 %s249, 1
    %p253 = scmp.eq.s32.totalorder %s69, 1
    %p254 = scmp.ne.s32.totalorder %s249, %s251
    %p255 = scmp.eq.s32.totalorder %s69, 0
    %p256 = por %p254, %p255
    %p257 = scmp.ne.s32.totalorder %s249, %s251
    %p258 = scmp.eq.s32.totalorder %s74, 1
    %p259 = por %p257, %p258
    %p260 = scmp.ne.s32.totalorder %s251, %s252
    %p261 = scmp.eq.s32.totalorder %s74, 0
    %p262 = por %p260, %p261
    %p263 = scmp.ne.s32.totalorder %s251, %s252
    %p264 = scmp.eq.s32.totalorder %s75, 1
    %p265 = por %p263, %p264
    %p267 = scmp.ne.s32.totalorder %s252, %s266
    %p268 = scmp.eq.s32.totalorder %s75, 0
    %p269 = por %p267, %p268
    %s271 = sadd.s32 %s270, 1
    %p274 = scmp.eq.s32.totalorder %s69, 1
    %p275 = scmp.ne.s32.totalorder %s270, %s272
    %p276 = scmp.eq.s32.totalorder %s69, 0
    %p277 = por %p275, %p276
    %p278 = scmp.ne.s32.totalorder %s270, %s272
    %p279 = scmp.eq.s32.totalorder %s74, 1
    %p280 = por %p278, %p279
    %p281 = scmp.ne.s32.totalorder %s272, %s273
    %p282 = scmp.eq.s32.totalorder %s74, 0
    %p283 = por %p281, %p282
    %p284 = scmp.ne.s32.totalorder %s272, %s273
    %p285 = scmp.eq.s32.totalorder %s75, 1
    %p286 = por %p284, %p285
    %p288 = scmp.ne.s32.totalorder %s273, %s287
    %p289 = scmp.eq.s32.totalorder %s75, 0
    %p290 = por %p288, %p289
    %s292 = sadd.s32 %s291, 1
    %p295 = scmp.eq.s32.totalorder %s69, 1
    %p296 = scmp.ne.s32.totalorder %s291, %s293
    %p297 = scmp.eq.s32.totalorder %s69, 0
    %p298 = por %p296, %p297
    %p299 = scmp.ne.s32.totalorder %s291, %s293
    %p300 = scmp.eq.s32.totalorder %s74, 1
    %p301 = por %p299, %p300
    %p302 = scmp.ne.s32.totalorder %s293, %s294
    %p303 = scmp.eq.s32.totalorder %s74, 0
    %p304 = por %p302, %p303
    %p305 = scmp.ne.s32.totalorder %s293, %s294
    %p306 = scmp.eq.s32.totalorder %s75, 1
    %p307 = por %p305, %p306
    %p309 = scmp.ne.s32.totalorder %s294, %s308
    %p310 = scmp.eq.s32.totalorder %s75, 0
    %p311 = por %p309, %p310
    %s313 = sadd.s32 %s312, 1
    %p316 = scmp.eq.s32.totalorder %s69, 1
    %p317 = scmp.ne.s32.totalorder %s312, %s314
    %p318 = scmp.eq.s32.totalorder %s69, 0
    %p319 = por %p317, %p318
    %p320 = scmp.ne.s32.totalorder %s312, %s314
    %p321 = scmp.eq.s32.totalorder %s74, 1
    %p322 = por %p320, %p321
    %p323 = scmp.ne.s32.totalorder %s314, %s315
    %p324 = scmp.eq.s32.totalorder %s74, 0
    %p325 = por %p323, %p324
    %p326 = scmp.ne.s32.totalorder %s314, %s315
    %p327 = scmp.eq.s32.totalorder %s75, 1
    %p328 = por %p326, %p327
    %p330 = scmp.ne.s32.totalorder %s315, %s329
    %p331 = scmp.eq.s32.totalorder %s75, 0
    %p332 = por %p330, %p331
    %s334 = sadd.s32 %s333, 1
    %p337 = scmp.eq.s32.totalorder %s69, 1
    %p338 = scmp.ne.s32.totalorder %s333, %s335
    %p339 = scmp.eq.s32.totalorder %s69, 0
    %p340 = por %p338, %p339
    %p341 = scmp.ne.s32.totalorder %s333, %s335
    %p342 = scmp.eq.s32.totalorder %s74, 1
    %p343 = por %p341, %p342
    %p344 = scmp.ne.s32.totalorder %s335, %s336
    %p345 = scmp.eq.s32.totalorder %s74, 0
    %p346 = por %p344, %p345
    %p347 = scmp.ne.s32.totalorder %s335, %s336
    %p348 = scmp.eq.s32.totalorder %s75, 1
    %p349 = por %p347, %p348
    %p351 = scmp.ne.s32.totalorder %s336, %s350
    %p352 = scmp.eq.s32.totalorder %s75, 0
    %p353 = por %p351, %p352
    %s355 = sadd.s32 %s354, 1
    %p358 = scmp.eq.s32.totalorder %s69, 1
    %p359 = scmp.ne.s32.totalorder %s354, %s356
    %p360 = scmp.eq.s32.totalorder %s69, 0
    %p361 = por %p359, %p360
    %p362 = scmp.ne.s32.totalorder %s354, %s356
    %p363 = scmp.eq.s32.totalorder %s74, 1
    %p364 = por %p362, %p363
    %p365 = scmp.ne.s32.totalorder %s356, %s357
    %p366 = scmp.eq.s32.totalorder %s74, 0
    %p367 = por %p365, %p366
    %p368 = scmp.ne.s32.totalorder %s356, %s357
    %p369 = scmp.eq.s32.totalorder %s75, 1
    %p370 = por %p368, %p369
    %p372 = scmp.ne.s32.totalorder %s357, %s371
    %p373 = scmp.eq.s32.totalorder %s75, 0
    %p374 = por %p372, %p373
    %s376 = sadd.s32 %s375, 1
    %p379 = scmp.eq.s32.totalorder %s69, 1
    %p380 = scmp.ne.s32.totalorder %s375, %s377
    %p381 = scmp.eq.s32.totalorder %s69, 0
    %p382 = por %p380, %p381
    %p383 = scmp.ne.s32.totalorder %s375, %s377
    %p384 = scmp.eq.s32.totalorder %s74, 1
    %p385 = por %p383, %p384
    %p386 = scmp.ne.s32.totalorder %s377, %s378
    %p387 = scmp.eq.s32.totalorder %s74, 0
    %p388 = por %p386, %p387
    %p389 = scmp.ne.s32.totalorder %s377, %s378
    %p390 = scmp.eq.s32.totalorder %s75, 1
    %p391 = por %p389, %p390
    %p393 = scmp.ne.s32.totalorder %s378, %s392
    %p394 = scmp.eq.s32.totalorder %s75, 0
    %p395 = por %p393, %p394
    %s397 = sadd.s32 %s396, 1
    %p400 = scmp.eq.s32.totalorder %s69, 1
    %p401 = scmp.ne.s32.totalorder %s396, %s398
    %p402 = scmp.eq.s32.totalorder %s69, 0
    %p403 = por %p401, %p402
    %p404 = scmp.ne.s32.totalorder %s396, %s398
    %p405 = scmp.eq.s32.totalorder %s74, 1
    %p406 = por %p404, %p405
    %p407 = scmp.ne.s32.totalorder %s398, %s399
    %p408 = scmp.eq.s32.totalorder %s74, 0
    %p409 = por %p407, %p408
    %p410 = scmp.ne.s32.totalorder %s398, %s399
    %p411 = scmp.eq.s32.totalorder %s75, 1
    %p412 = por %p410, %p411
    %p414 = scmp.ne.s32.totalorder %s399, %s413
    %p415 = scmp.eq.s32.totalorder %s75, 0
    %p416 = por %p414, %p415
    %s418 = sadd.s32 %s417, 1
    %p421 = scmp.eq.s32.totalorder %s69, 1
    %p422 = scmp.ne.s32.totalorder %s417, %s419
    %p423 = scmp.eq.s32.totalorder %s69, 0
    %p424 = por %p422, %p423
    %p425 = scmp.ne.s32.totalorder %s417, %s419
    %p426 = scmp.eq.s32.totalorder %s74, 1
    %p427 = por %p425, %p426
    %p428 = scmp.ne.s32.totalorder %s419, %s420
    %p429 = scmp.eq.s32.totalorder %s74, 0
    %p430 = por %p428, %p429
    %p431 = scmp.ne.s32.totalorder %s419, %s420
    %p432 = scmp.eq.s32.totalorder %s75, 1
    %p433 = por %p431, %p432
    %p435 = scmp.ne.s32.totalorder %s420, %s434
    %p436 = scmp.eq.s32.totalorder %s75, 0
    %p437 = por %p435, %p436
    %s439 = sadd.s32 %s438, 1
    %p442 = scmp.eq.s32.totalorder %s69, 1
    %p443 = scmp.ne.s32.totalorder %s438, %s440
    %p444 = scmp.eq.s32.totalorder %s69, 0
    %p445 = por %p443, %p444
    %p446 = scmp.ne.s32.totalorder %s438, %s440
    %p447 = scmp.eq.s32.totalorder %s74, 1
    %p448 = por %p446, %p447
    %p449 = scmp.ne.s32.totalorder %s440, %s441
    %p450 = scmp.eq.s32.totalorder %s74, 0
    %p451 = por %p449, %p450
    %p452 = scmp.ne.s32.totalorder %s440, %s441
    %p453 = scmp.eq.s32.totalorder %s75, 1
    %p454 = por %p452, %p453
    %p456 = scmp.ne.s32.totalorder %s441, %s455
    %p457 = scmp.eq.s32.totalorder %s75, 0
    %p458 = por %p456, %p457
    %s460 = sadd.s32 %s459, 1
    %p463 = scmp.eq.s32.totalorder %s69, 1
    %p464 = scmp.ne.s32.totalorder %s459, %s461
    %p465 = scmp.eq.s32.totalorder %s69, 0
    %p466 = por %p464, %p465
    %p467 = scmp.ne.s32.totalorder %s459, %s461
    %p468 = scmp.eq.s32.totalorder %s74, 1
    %p469 = por %p467, %p468
    %p470 = scmp.ne.s32.totalorder %s461, %s462
    %p471 = scmp.eq.s32.totalorder %s74, 0
    %p472 = por %p470, %p471
    %p473 = scmp.ne.s32.totalorder %s461, %s462
    %p474 = scmp.eq.s32.totalorder %s75, 1
    %p475 = por %p473, %p474
    %p477 = scmp.ne.s32.totalorder %s462, %s476
    %p478 = scmp.eq.s32.totalorder %s75, 0
    %p479 = por %p477, %p478
    %s481 = sadd.s32 %s480, 1
    %p484 = scmp.eq.s32.totalorder %s69, 1
    %p485 = scmp.ne.s32.totalorder %s480, %s482
    %p486 = scmp.eq.s32.totalorder %s69, 0
    %p487 = por %p485, %p486
    %p488 = scmp.ne.s32.totalorder %s480, %s482
    %p489 = scmp.eq.s32.totalorder %s74, 1
    %p490 = por %p488, %p489
    %p491 = scmp.ne.s32.totalorder %s482, %s483
    %p492 = scmp.eq.s32.totalorder %s74, 0
    %p493 = por %p491, %p492
    %p494 = scmp.ne.s32.totalorder %s482, %s483
    %p495 = scmp.eq.s32.totalorder %s75, 1
    %p496 = por %p494, %p495
    %p498 = scmp.ne.s32.totalorder %s483, %s497
    %p499 = scmp.eq.s32.totalorder %s75, 0
    %p500 = por %p498, %p499
    %s502 = sadd.s32 %s501, 1
    %p505 = scmp.eq.s32.totalorder %s69, 1
    %p506 = scmp.ne.s32.totalorder %s501, %s503
    %p507 = scmp.eq.s32.totalorder %s69, 0
    %p508 = por %p506, %p507
    %p509 = scmp.ne.s32.totalorder %s501, %s503
    %p510 = scmp.eq.s32.totalorder %s74, 1
    %p511 = por %p509, %p510
    %p512 = scmp.ne.s32.totalorder %s503, %s504
    %p513 = scmp.eq.s32.totalorder %s74, 0
    %p514 = por %p512, %p513
    %p515 = scmp.ne.s32.totalorder %s503, %s504
    %p516 = scmp.eq.s32.totalorder %s75, 1
    %p517 = por %p515, %p516
    %p519 = scmp.ne.s32.totalorder %s504, %s518
    %p520 = scmp.eq.s32.totalorder %s75, 0
    %p521 = por %p519, %p520
    %s523 = sadd.s32 %s522, 1
    %p526 = scmp.eq.s32.totalorder %s69, 1
    %p527 = scmp.ne.s32.totalorder %s522, %s524
    %p528 = scmp.eq.s32.totalorder %s69, 0
    %p529 = por %p527, %p528
    %p530 = scmp.ne.s32.totalorder %s522, %s524
    %p531 = scmp.eq.s32.totalorder %s74, 1
    %p532 = por %p530, %p531
    %p533 = scmp.ne.s32.totalorder %s524, %s525
    %p534 = scmp.eq.s32.totalorder %s74, 0
    %p535 = por %p533, %p534
    %p536 = scmp.ne.s32.totalorder %s524, %s525
    %p537 = scmp.eq.s32.totalorder %s75, 1
    %p538 = por %p536, %p537
    %p540 = scmp.ne.s32.totalorder %s525, %s539
    %p541 = scmp.eq.s32.totalorder %s75, 0
    %p542 = por %p540, %p541
    %s544 = sadd.s32 %s543, 1
    %p547 = scmp.eq.s32.totalorder %s69, 1
    %p548 = scmp.ne.s32.totalorder %s543, %s545
    %p549 = scmp.eq.s32.totalorder %s69, 0
    %p550 = por %p548, %p549
    %p551 = scmp.ne.s32.totalorder %s543, %s545
    %p552 = scmp.eq.s32.totalorder %s74, 1
    %p553 = por %p551, %p552
    %p554 = scmp.ne.s32.totalorder %s545, %s546
    %p555 = scmp.eq.s32.totalorder %s74, 0
    %p556 = por %p554, %p555
    %p557 = scmp.ne.s32.totalorder %s545, %s546
    %p558 = scmp.eq.s32.totalorder %s75, 1
    %p559 = por %p557, %p558
    %p561 = scmp.ne.s32.totalorder %s546, %s560
    %p562 = scmp.eq.s32.totalorder %s75, 0
    %p563 = por %p561, %p562
    %s565 = sadd.s32 %s564, 1
    %p568 = scmp.eq.s32.totalorder %s69, 1
    %p569 = scmp.ne.s32.totalorder %s564, %s566
    %p570 = scmp.eq.s32.totalorder %s69, 0
    %p571 = por %p569, %p570
    %p572 = scmp.ne.s32.totalorder %s564, %s566
    %p573 = scmp.eq.s32.totalorder %s74, 1
    %p574 = por %p572, %p573
    %p575 = scmp.ne.s32.totalorder %s566, %s567
    %p576 = scmp.eq.s32.totalorder %s74, 0
    %p577 = por %p575, %p576
    %p578 = scmp.ne.s32.totalorder %s566, %s567
    %p579 = scmp.eq.s32.totalorder %s75, 1
    %p580 = por %p578, %p579
    %p582 = scmp.ne.s32.totalorder %s567, %s581
    %p583 = scmp.eq.s32.totalorder %s75, 0
    %p584 = por %p582, %p583
    %s586 = sadd.s32 %s585, 1
    %p589 = scmp.eq.s32.totalorder %s69, 1
    %p590 = scmp.ne.s32.totalorder %s585, %s587
    %p591 = scmp.eq.s32.totalorder %s69, 0
    %p592 = por %p590, %p591
    %p593 = scmp.ne.s32.totalorder %s585, %s587
    %p594 = scmp.eq.s32.totalorder %s74, 1
    %p595 = por %p593, %p594
    %p596 = scmp.ne.s32.totalorder %s587, %s588
    %p597 = scmp.eq.s32.totalorder %s74, 0
    %p598 = por %p596, %p597
    %p599 = scmp.ne.s32.totalorder %s587, %s588
    %p600 = scmp.eq.s32.totalorder %s75, 1
    %p601 = por %p599, %p600
    %p603 = scmp.ne.s32.totalorder %s588, %s602
    %p604 = scmp.eq.s32.totalorder %s75, 0
    %p605 = por %p603, %p604
    %s607 = sadd.s32 %s606, 1
    %p610 = scmp.eq.s32.totalorder %s69, 1
    %p611 = scmp.ne.s32.totalorder %s606, %s608
    %p612 = scmp.eq.s32.totalorder %s69, 0
    %p613 = por %p611, %p612
    %p614 = scmp.ne.s32.totalorder %s606, %s608
    %p615 = scmp.eq.s32.totalorder %s74, 1
    %p616 = por %p614, %p615
    %p617 = scmp.ne.s32.totalorder %s608, %s609
    %p618 = scmp.eq.s32.totalorder %s74, 0
    %p619 = por %p617, %p618
    %p620 = scmp.ne.s32.totalorder %s608, %s609
    %p621 = scmp.eq.s32.totalorder %s75, 1
    %p622 = por %p620, %p621
    %p624 = scmp.ne.s32.totalorder %s609, %s623
    %p625 = scmp.eq.s32.totalorder %s75, 0
    %p626 = por %p624, %p625
    %s628 = sadd.s32 %s627, 1
    %p631 = scmp.eq.s32.totalorder %s69, 1
    %p632 = scmp.ne.s32.totalorder %s627, %s629
    %p633 = scmp.eq.s32.totalorder %s69, 0
    %p634 = por %p632, %p633
    %p635 = scmp.ne.s32.totalorder %s627, %s629
    %p636 = scmp.eq.s32.totalorder %s74, 1
    %p637 = por %p635, %p636
    %p638 = scmp.ne.s32.totalorder %s629, %s630
    %p639 = scmp.eq.s32.totalorder %s74, 0
    %p640 = por %p638, %p639
    %p641 = scmp.ne.s32.totalorder %s629, %s630
    %p642 = scmp.eq.s32.totalorder %s75, 1
    %p643 = por %p641, %p642
    %p645 = scmp.ne.s32.totalorder %s630, %s644
    %p646 = scmp.eq.s32.totalorder %s75, 0
    %p647 = por %p645, %p646
    %s649 = sadd.s32 %s648, 1
    %p652 = scmp.eq.s32.totalorder %s69, 1
    %p653 = scmp.ne.s32.totalorder %s648, %s650
    %p654 = scmp.eq.s32.totalorder %s69, 0
    %p655 = por %p653, %p654
    %p656 = scmp.ne.s32.totalorder %s648, %s650
    %p657 = scmp.eq.s32.totalorder %s74, 1
    %p658 = por %p656, %p657
    %p659 = scmp.ne.s32.totalorder %s650, %s651
    %p660 = scmp.eq.s32.totalorder %s74, 0
    %p661 = por %p659, %p660
    %p662 = scmp.ne.s32.totalorder %s650, %s651
    %p663 = scmp.eq.s32.totalorder %s75, 1
    %p664 = por %p662, %p663
    %p666 = scmp.ne.s32.totalorder %s651, %s665
    %p667 = scmp.eq.s32.totalorder %s75, 0
    %p668 = por %p666, %p667
    %s670 = sadd.s32 %s669, 1
    %p673 = scmp.eq.s32.totalorder %s69, 1
    %p674 = scmp.ne.s32.totalorder %s669, %s671
    %p675 = scmp.eq.s32.totalorder %s69, 0
    %p676 = por %p674, %p675
    %p677 = scmp.ne.s32.totalorder %s669, %s671
    %p678 = scmp.eq.s32.totalorder %s74, 1
    %p679 = por %p677, %p678
    %p680 = scmp.ne.s32.totalorder %s671, %s672
    %p681 = scmp.eq.s32.totalorder %s74, 0
    %p682 = por %p680, %p681
    %p683 = scmp.ne.s32.totalorder %s671, %s672
    %p684 = scmp.eq.s32.totalorder %s75, 1
    %p685 = por %p683, %p684
    %p687 = scmp.ne.s32.totalorder %s672, %s686
    %p688 = scmp.eq.s32.totalorder %s75, 0
    %p689 = por %p687, %p688
    %s691 = sadd.s32 %s690, 1
    %p694 = scmp.eq.s32.totalorder %s69, 1
    %p695 = scmp.ne.s32.totalorder %s690, %s692
    %p696 = scmp.eq.s32.totalorder %s69, 0
    %p697 = por %p695, %p696
    %p698 = scmp.ne.s32.totalorder %s690, %s692
    %p699 = scmp.eq.s32.totalorder %s74, 1
    %p700 = por %p698, %p699
    %p701 = scmp.ne.s32.totalorder %s692, %s693
    %p702 = scmp.eq.s32.totalorder %s74, 0
    %p703 = por %p701, %p702
    %p704 = scmp.ne.s32.totalorder %s692, %s693
    %p705 = scmp.eq.s32.totalorder %s75, 1
    %p706 = por %p704, %p705
    %p708 = scmp.ne.s32.totalorder %s693, %s707
    %p709 = scmp.eq.s32.totalorder %s75, 0
    %p710 = por %p708, %p709
    %s712 = sadd.s32 %s711, 1
    %p715 = scmp.eq.s32.totalorder %s69, 1
    %p716 = scmp.ne.s32.totalorder %s711, %s713
    %p717 = scmp.eq.s32.totalorder %s69, 0
    %p718 = por %p716, %p717
    %p719 = scmp.ne.s32.totalorder %s711, %s713
    %p720 = scmp.eq.s32.totalorder %s74, 1
    %p721 = por %p719, %p720
    %p722 = scmp.ne.s32.totalorder %s713, %s714
    %p723 = scmp.eq.s32.totalorder %s74, 0
    %p724 = por %p722, %p723
    %p725 = scmp.ne.s32.totalorder %s713, %s714
    %p726 = scmp.eq.s32.totalorder %s75, 1
    %p727 = por %p725, %p726
    %p729 = scmp.ne.s32.totalorder %s714, %s728
    %p730 = scmp.eq.s32.totalorder %s75, 0
    %p731 = por %p729, %p730
    %s733 = sadd.s32 %s732, 1
    %p736 = scmp.eq.s32.totalorder %s69, 1
    %p737 = scmp.ne.s32.totalorder %s732, %s734
    %p738 = scmp.eq.s32.totalorder %s69, 0
    %p739 = por %p737, %p738
    %p740 = scmp.ne.s32.totalorder %s732, %s734
    %p741 = scmp.eq.s32.totalorder %s74, 1
    %p742 = por %p740, %p741
    %p743 = scmp.ne.s32.totalorder %s734, %s735
    %p744 = scmp.eq.s32.totalorder %s74, 0
    %p745 = por %p743, %p744
    %p746 = scmp.ne.s32.totalorder %s734, %s735
    %p747 = scmp.eq.s32.totalorder %s75, 1
    %p748 = por %p746, %p747
    %p750 = scmp.ne.s32.totalorder %s735, %s749
    %p751 = scmp.eq.s32.totalorder %s75, 0
    %p752 = por %p750, %p751
    %s753 = ssub.s32 %s69, %s76
    %p754 = scmp.eq.s32.totalorder %s753, 0
    %s756 = sadd.s32 %s755, 1
    %s757 = scalar_select %p754, %s755, %s756
    %p760 = pneg %p754
    %p761 = scmp.eq.s32.totalorder %s69, 1
    %p762 = por %p760, %p761
    %p763 = scmp.ne.s32.totalorder %s755, %s758
    %p764 = scmp.eq.s32.totalorder %s69, 0
    %p765 = por %p763, %p764
    %p766 = scmp.ne.s32.totalorder %s755, %s758
    %p767 = scmp.eq.s32.totalorder %s74, 1
    %p768 = por %p766, %p767
    %p769 = scmp.ne.s32.totalorder %s758, %s759
    %p770 = scmp.eq.s32.totalorder %s74, 0
    %p771 = por %p769, %p770
    %p772 = scmp.ne.s32.totalorder %s758, %s759
    %p773 = scmp.eq.s32.totalorder %s75, 1
    %p774 = por %p772, %p773
    %p776 = scmp.ne.s32.totalorder %s759, %s775
    %p777 = scmp.eq.s32.totalorder %s75, 0
    %p778 = por %p776, %p777
    %p779 = scmp.le.s32.totalorder 1, %s69
    %p780 = scmp.lt.s32.totalorder %s69, 3
    %p781 = pnand %p779, %p780
    %p782 = pneg %p781
    // Predicated region
    $region9: #{transformer_forward.7} parent=5 // pred_check
      _
    $region10: #{transformer_forward.7} parent=5 // pred_check_branch
      %784 = sbr.rel (%p781) target = $region12
    $region11: #{transformer_forward.7} parent=5 // pred_region
      %s785 = ssub.s32 %s69, 1
      // Predicated region
      $region13: #{transformer_forward.7} parent=11 // pred_check
        %p786 = pneg %p220
      $region14: #{transformer_forward.7} parent=11 // pred_check_branch
        %788 = sbr.rel (%p786) target = $region16
      $region15: #{transformer_forward.7} parent=11 // pred_region
        _
      $region16: #{transformer_forward.7} parent=11 // pred_fallthru
        _
      // Predicated region
      $region17: #{transformer_forward.7} parent=11 // pred_check
        %p789 = pneg %p241
      $region18: #{transformer_forward.7} parent=11 // pred_check_branch
        %791 = sbr.rel (%p789) target = $region20
      $region19: #{transformer_forward.7} parent=11 // pred_region
        _
      $region20: #{transformer_forward.7} parent=11 // pred_fallthru
        _
      // Predicated region
      $region21: #{transformer_forward.7} parent=11 // pred_check
        %p792 = pneg %p262
      $region22: #{transformer_forward.7} parent=11 // pred_check_branch
        %794 = sbr.rel (%p792) target = $region24
      $region23: #{transformer_forward.7} parent=11 // pred_region
        _
      $region24: #{transformer_forward.7} parent=11 // pred_fallthru
        _
      // Predicated region
      $region25: #{transformer_forward.7} parent=11 // pred_check
        %p795 = pneg %p283
      $region26: #{transformer_forward.7} parent=11 // pred_check_branch
        %797 = sbr.rel (%p795) target = $region28
      $region27: #{transformer_forward.7} parent=11 // pred_region
        _
      $region28: #{transformer_forward.7} parent=11 // pred_fallthru
        _
      // Predicated region
      $region29: #{transformer_forward.7} parent=11 // pred_check
        %p798 = pneg %p304
      $region30: #{transformer_forward.7} parent=11 // pred_check_branch
        %800 = sbr.rel (%p798) target = $region32
      $region31: #{transformer_forward.7} parent=11 // pred_region
        _
      $region32: #{transformer_forward.7} parent=11 // pred_fallthru
        _
      // Predicated region
      $region33: #{transformer_forward.7} parent=11 // pred_check
        %p801 = pneg %p325
      $region34: #{transformer_forward.7} parent=11 // pred_check_branch
        %803 = sbr.rel (%p801) target = $region36
      $region35: #{transformer_forward.7} parent=11 // pred_region
        _
      $region36: #{transformer_forward.7} parent=11 // pred_fallthru
        _
      // Predicated region
      $region37: #{transformer_forward.7} parent=11 // pred_check
        %p804 = pneg %p346
      $region38: #{transformer_forward.7} parent=11 // pred_check_branch
        %806 = sbr.rel (%p804) target = $region40
      $region39: #{transformer_forward.7} parent=11 // pred_region
        _
      $region40: #{transformer_forward.7} parent=11 // pred_fallthru
        _
      // Predicated region
      $region41: #{transformer_forward.7} parent=11 // pred_check
        %p807 = pneg %p367
      $region42: #{transformer_forward.7} parent=11 // pred_check_branch
        %809 = sbr.rel (%p807) target = $region44
      $region43: #{transformer_forward.7} parent=11 // pred_region
        _
      $region44: #{transformer_forward.7} parent=11 // pred_fallthru
        _
      // Predicated region
      $region45: #{transformer_forward.7} parent=11 // pred_check
        %p810 = pneg %p388
      $region46: #{transformer_forward.7} parent=11 // pred_check_branch
        %812 = sbr.rel (%p810) target = $region48
      $region47: #{transformer_forward.7} parent=11 // pred_region
        _
      $region48: #{transformer_forward.7} parent=11 // pred_fallthru
        _
      // Predicated region
      $region49: #{transformer_forward.7} parent=11 // pred_check
        %p813 = pneg %p409
      $region50: #{transformer_forward.7} parent=11 // pred_check_branch
        %815 = sbr.rel (%p813) target = $region52
      $region51: #{transformer_forward.7} parent=11 // pred_region
        _
      $region52: #{transformer_forward.7} parent=11 // pred_fallthru
        _
      // Predicated region
      $region53: #{transformer_forward.7} parent=11 // pred_check
        %p816 = pneg %p430
      $region54: #{transformer_forward.7} parent=11 // pred_check_branch
        %818 = sbr.rel (%p816) target = $region56
      $region55: #{transformer_forward.7} parent=11 // pred_region
        _
      $region56: #{transformer_forward.7} parent=11 // pred_fallthru
        _
      // Predicated region
      $region57: #{transformer_forward.7} parent=11 // pred_check
        %p819 = pneg %p451
      $region58: #{transformer_forward.7} parent=11 // pred_check_branch
        %821 = sbr.rel (%p819) target = $region60
      $region59: #{transformer_forward.7} parent=11 // pred_region
        _
      $region60: #{transformer_forward.7} parent=11 // pred_fallthru
        _
      // Predicated region
      $region61: #{transformer_forward.7} parent=11 // pred_check
        %p822 = pneg %p472
      $region62: #{transformer_forward.7} parent=11 // pred_check_branch
        %824 = sbr.rel (%p822) target = $region64
      $region63: #{transformer_forward.7} parent=11 // pred_region
        _
      $region64: #{transformer_forward.7} parent=11 // pred_fallthru
        _
      // Predicated region
      $region65: #{transformer_forward.7} parent=11 // pred_check
        %p825 = pneg %p493
      $region66: #{transformer_forward.7} parent=11 // pred_check_branch
        %827 = sbr.rel (%p825) target = $region68
      $region67: #{transformer_forward.7} parent=11 // pred_region
        _
      $region68: #{transformer_forward.7} parent=11 // pred_fallthru
        _
      // Predicated region
      $region69: #{transformer_forward.7} parent=11 // pred_check
        %p828 = pneg %p514
      $region70: #{transformer_forward.7} parent=11 // pred_check_branch
        %830 = sbr.rel (%p828) target = $region72
      $region71: #{transformer_forward.7} parent=11 // pred_region
        _
      $region72: #{transformer_forward.7} parent=11 // pred_fallthru
        _
      // Predicated region
      $region73: #{transformer_forward.7} parent=11 // pred_check
        %p831 = pneg %p535
      $region74: #{transformer_forward.7} parent=11 // pred_check_branch
        %833 = sbr.rel (%p831) target = $region76
      $region75: #{transformer_forward.7} parent=11 // pred_region
        _
      $region76: #{transformer_forward.7} parent=11 // pred_fallthru
        _
      // Predicated region
      $region77: #{transformer_forward.7} parent=11 // pred_check
        %p834 = pneg %p556
      $region78: #{transformer_forward.7} parent=11 // pred_check_branch
        %836 = sbr.rel (%p834) target = $region80
      $region79: #{transformer_forward.7} parent=11 // pred_region
        _
      $region80: #{transformer_forward.7} parent=11 // pred_fallthru
        _
      // Predicated region
      $region81: #{transformer_forward.7} parent=11 // pred_check
        %p837 = pneg %p577
      $region82: #{transformer_forward.7} parent=11 // pred_check_branch
        %839 = sbr.rel (%p837) target = $region84
      $region83: #{transformer_forward.7} parent=11 // pred_region
        _
      $region84: #{transformer_forward.7} parent=11 // pred_fallthru
        _
      // Predicated region
      $region85: #{transformer_forward.7} parent=11 // pred_check
        %p840 = pneg %p598
      $region86: #{transformer_forward.7} parent=11 // pred_check_branch
        %842 = sbr.rel (%p840) target = $region88
      $region87: #{transformer_forward.7} parent=11 // pred_region
        _
      $region88: #{transformer_forward.7} parent=11 // pred_fallthru
        _
      // Predicated region
      $region89: #{transformer_forward.7} parent=11 // pred_check
        %p843 = pneg %p619
      $region90: #{transformer_forward.7} parent=11 // pred_check_branch
        %845 = sbr.rel (%p843) target = $region92
      $region91: #{transformer_forward.7} parent=11 // pred_region
        _
      $region92: #{transformer_forward.7} parent=11 // pred_fallthru
        _
      // Predicated region
      $region93: #{transformer_forward.7} parent=11 // pred_check
        %p846 = pneg %p640
      $region94: #{transformer_forward.7} parent=11 // pred_check_branch
        %848 = sbr.rel (%p846) target = $region96
      $region95: #{transformer_forward.7} parent=11 // pred_region
        _
      $region96: #{transformer_forward.7} parent=11 // pred_fallthru
        _
      // Predicated region
      $region97: #{transformer_forward.7} parent=11 // pred_check
        %p849 = pneg %p661
      $region98: #{transformer_forward.7} parent=11 // pred_check_branch
        %851 = sbr.rel (%p849) target = $region100
      $region99: #{transformer_forward.7} parent=11 // pred_region
        _
      $region100: #{transformer_forward.7} parent=11 // pred_fallthru
        _
      // Predicated region
      $region101: #{transformer_forward.7} parent=11 // pred_check
        %p852 = pneg %p682
      $region102: #{transformer_forward.7} parent=11 // pred_check_branch
        %854 = sbr.rel (%p852) target = $region104
      $region103: #{transformer_forward.7} parent=11 // pred_region
        _
      $region104: #{transformer_forward.7} parent=11 // pred_fallthru
        _
      // Predicated region
      $region105: #{transformer_forward.7} parent=11 // pred_check
        %p855 = pneg %p703
      $region106: #{transformer_forward.7} parent=11 // pred_check_branch
        %857 = sbr.rel (%p855) target = $region108
      $region107: #{transformer_forward.7} parent=11 // pred_region
        _
      $region108: #{transformer_forward.7} parent=11 // pred_fallthru
        _
      // Predicated region
      $region109: #{transformer_forward.7} parent=11 // pred_check
        %p858 = pneg %p724
      $region110: #{transformer_forward.7} parent=11 // pred_check_branch
        %860 = sbr.rel (%p858) target = $region112
      $region111: #{transformer_forward.7} parent=11 // pred_region
        _
      $region112: #{transformer_forward.7} parent=11 // pred_fallthru
        _
      // Predicated region
      $region113: #{transformer_forward.7} parent=11 // pred_check
        %p861 = pneg %p745
      $region114: #{transformer_forward.7} parent=11 // pred_check_branch
        %863 = sbr.rel (%p861) target = $region116
      $region115: #{transformer_forward.7} parent=11 // pred_region
        _
      $region116: #{transformer_forward.7} parent=11 // pred_fallthru
        _
    $region12: #{transformer_forward.7} parent=5 // pred_fallthru
      _
    %p864 = scmp.lt.s32.totalorder %s69, 2
    // Predicated region
    $region117: #{transformer_forward.7} parent=5 // pred_check
      %p865 = pneg %p864
    $region118: #{transformer_forward.7} parent=5 // pred_check_branch
      %867 = sbr.rel (%p865) target = $region120
    $region119: #{transformer_forward.7} parent=5 // pred_region
      // Predicated region
      $region121: #{transformer_forward.7} parent=119 // pred_check
        %p868 = pneg %p89
      $region122: #{transformer_forward.7} parent=119 // pred_check_branch
        %870 = sbr.rel (%p868) target = $region124
      $region123: #{transformer_forward.7} parent=119 // pred_region
        %p871 = scmp.lt.s32.totalorder %s69, 1
        %s872 = scalar_select %p871, %s69, 1
        %s873 = smul.addr %s872, 4
        %s874 = scalar_lea.vmem %s1, %s873
      $region124: #{transformer_forward.7} parent=119 // pred_fallthru
        _
      // Predicated region
      $region125: #{transformer_forward.7} parent=119 // pred_check
        %p875 = pneg %p115
      $region126: #{transformer_forward.7} parent=119 // pred_check_branch
        %877 = sbr.rel (%p875) target = $region128
      $region127: #{transformer_forward.7} parent=119 // pred_region
        %p878 = scmp.lt.s32.totalorder %s69, 1
        %s879 = scalar_select %p878, %s69, 1
        %s880 = smul.addr %s879, 4
        %s881 = scalar_lea.vmem %s3, %s880
      $region128: #{transformer_forward.7} parent=119 // pred_fallthru
        _
      // Predicated region
      $region129: #{transformer_forward.7} parent=119 // pred_check
        %p882 = pneg %p141
      $region130: #{transformer_forward.7} parent=119 // pred_check_branch
        %884 = sbr.rel (%p882) target = $region132
      $region131: #{transformer_forward.7} parent=119 // pred_region
        %p885 = scmp.lt.s32.totalorder %s69, 1
        %s886 = scalar_select %p885, %s69, 1
        %s887 = scalar_lea.vmem %s5, %s886
      $region132: #{transformer_forward.7} parent=119 // pred_fallthru
        _
      // Predicated region
      $region133: #{transformer_forward.7} parent=119 // pred_check
        %p888 = pneg %p167
      $region134: #{transformer_forward.7} parent=119 // pred_check_branch
        %890 = sbr.rel (%p888) target = $region136
      $region135: #{transformer_forward.7} parent=119 // pred_region
        %p891 = scmp.lt.s32.totalorder %s69, 1
        %s892 = scalar_select %p891, %s69, 1
        %s893 = scalar_lea.vmem %s7, %s892
      $region136: #{transformer_forward.7} parent=119 // pred_fallthru
        _
      // Predicated region
      $region137: #{transformer_forward.7} parent=119 // pred_check
        %p894 = pneg %p193
      $region138: #{transformer_forward.7} parent=119 // pred_check_branch
        %896 = sbr.rel (%p894) target = $region140
      $region139: #{transformer_forward.7} parent=119 // pred_region
        %p897 = scmp.lt.s32.totalorder %s69, 1
        %s898 = scalar_select %p897, %s69, 1
        %s899 = smul.addr %s898, 8
        %s900 = scalar_lea.vmem %s9, %s899
      $region140: #{transformer_forward.7} parent=119 // pred_fallthru
        _
    $region120: #{transformer_forward.7} parent=5 // pred_fallthru
      _
    %p901 = scmp.le.s32.totalorder 1, %s69
    %p902 = scmp.lt.s32.totalorder %s69, 3
    %p903 = pnand %p901, %p902
    %p904 = pneg %p903
    // Predicated region
    $region141: #{transformer_forward.7} parent=5 // pred_check
      _
    $region142: #{transformer_forward.7} parent=5 // pred_check_branch
      %906 = sbr.rel (%p903) target = $region144
    $region143: #{transformer_forward.7} parent=5 // pred_region
      %s907 = ssub.s32 %s69, 1
      %p908 = scmp.lt.s32.totalorder %s74, 1
      %s909 = scalar_select %p908, %s74, 1
      %s910 = smul.addr %s909, 4
      %s911 = scalar_lea.vmem %s1, %s910
      %p912 = pneg %p95
      %p913 = pneg %p92
      %p914 = scmp.lt.s32.totalorder %s74, 1
      %s915 = scalar_select %p914, %s74, 1
      %s916 = smul.addr %s915, 4
      %s917 = scalar_lea.vmem %s3, %s916
      %p918 = pneg %p121
      %p919 = pneg %p118
      %p920 = scmp.lt.s32.totalorder %s74, 1
      %s921 = scalar_select %p920, %s74, 1
      %s922 = scalar_lea.vmem %s5, %s921
      %p923 = pneg %p147
      %p924 = pneg %p144
      %p925 = scmp.lt.s32.totalorder %s74, 1
      %s926 = scalar_select %p925, %s74, 1
      %s927 = scalar_lea.vmem %s7, %s926
      %p928 = pneg %p173
      %p929 = pneg %p170
      %p930 = scmp.lt.s32.totalorder %s74, 1
      %s931 = scalar_select %p930, %s74, 1
      %s932 = smul.addr %s931, 8
      %s933 = scalar_lea.vmem %s9, %s932
      %p934 = pneg %p199
      %p935 = pneg %p196
      %p936 = pneg %p220
      %p937 = pneg %p217
      %p938 = pneg %p241
      %p939 = pneg %p238
      %p940 = pneg %p262
      %p941 = pneg %p259
      %p942 = pneg %p283
      %p943 = pneg %p280
      %p944 = pneg %p304
      %p945 = pneg %p301
      %p946 = pneg %p325
      %p947 = pneg %p322
      %p948 = pneg %p346
      %p949 = pneg %p343
      %p950 = pneg %p367
      %p951 = pneg %p364
      %p952 = pneg %p388
      %p953 = pneg %p385
      %p954 = pneg %p409
      %p955 = pneg %p406
      %p956 = pneg %p430
      %p957 = pneg %p427
      %p958 = pneg %p451
      %p959 = pneg %p448
      %p960 = pneg %p472
      %p961 = pneg %p469
      %p962 = pneg %p493
      %p963 = pneg %p490
      %p964 = pneg %p514
      %p965 = pneg %p511
      %p966 = pneg %p535
      %p967 = pneg %p532
      %p968 = pneg %p556
      %p969 = pneg %p553
      %p970 = pneg %p577
      %p971 = pneg %p574
      %p972 = pneg %p598
      %p973 = pneg %p595
      %p974 = pneg %p619
      %p975 = pneg %p616
      %p976 = pneg %p640
      %p977 = pneg %p637
      %p978 = pneg %p661
      %p979 = pneg %p658
      %p980 = pneg %p682
      %p981 = pneg %p679
      %p982 = pneg %p703
      %p983 = pneg %p700
      %p984 = pneg %p724
      %p985 = pneg %p721
      %p986 = pneg %p745
      %p987 = pneg %p742
      %p988 = pneg %p771
      %p989 = pneg %p768
      %p990 = scmp.lt.s32.totalorder %s74, 1
      %s991 = scalar_select %p990, %s74, 1
      %s992 = smul.addr %s991, 4
      %s993 = scalar_lea.vmem %s63, %s992
      %p994 = scmp.lt.s32.totalorder %s74, 1
      %s995 = scalar_select %p994, %s74, 1
      %s996 = smul.addr %s995, 4
      %s997 = scalar_lea.vmem %s1, %s996
      %p998 = scmp.lt.s32.totalorder %s74, 1
      %s999 = scalar_select %p998, %s74, 1
      %s1000 = smul.addr %s999, 4
      %s1001 = scalar_lea.vmem %s3, %s1000
      %p1002 = scmp.lt.s32.totalorder %s74, 1
      %s1003 = scalar_select %p1002, %s74, 1
      %s1004 = scalar_lea.vmem %s5, %s1003
      %p1005 = scmp.lt.s32.totalorder %s74, 1
      %s1006 = scalar_select %p1005, %s74, 1
      %s1007 = scalar_lea.vmem %s7, %s1006
      %p1008 = scmp.lt.s32.totalorder %s74, 1
      %s1009 = scalar_select %p1008, %s74, 1
      %s1010 = smul.addr %s1009, 8
      %s1011 = scalar_lea.vmem %s9, %s1010
      %p1012 = scmp.lt.s32.totalorder %s74, 1
      %s1013 = scalar_select %p1012, %s74, 1
      %s1014 = smul.addr %s1013, 4
      %s1015 = scalar_lea.vmem %s63, %s1014
      %v1017 = vld [vmem:[%s997] sm:$0xf]
      %v1018 = vunpack.c.l.bf16 %v1017
      %v1019 = vld [vmem:[%s1001] sm:$0xf]
      %v1020 = vld [vmem:[%s1011] sm:$0x7f]
      %v1021 = vlaneseq
      %v1022 = vshrl.u32 %v1021, 7
      %v1023 = vlaneseq
      %v1024 = vand.u32 %v1023, 127
      %vm1025 = vcmp.gt.s32.totalorder %v1024, %v1022
      %v1026 = vsel %vm1025, -1e+09, 0.0
      %v1027 = vld [vmem:[%s1004] sm:$0x1]
      %v1029 = vlaneseq
      %v1030 = vshrl.u32 %v1029, 7
      %v1031 = vsub.s32 0, %v1030
      %v1032 = vrot.slane %v1027, %v1031
      %v1034 = vadd.f32 %v1026, %v1032
      %v1035 = vld [vmem:[%s11] sm:$0xf]
      %v1036 = vld [vmem:[%s11 + $0x4] sm:$0xf]
      %v1037 = vld [vmem:[%s11 + $0x8] sm:$0xf]
      %v1038 = vld [vmem:[%s11 + $0xc] sm:$0xf]
      %v1039 = vld [vmem:[%s13] sm:$0x1]
      %v1041 = vlaneseq
      %v1042 = vshrl.u32 %v1041, 7
      %v1043 = vsub.s32 0, %v1042
      %v1044 = vrot.slane %v1039, %v1043
      %v1050 = vunpack.c.l.b16 %v1035
      %v1051 = vunpack.c.l.b16 %v1036
      %v1052 = vunpack.c.l.b16 %v1037
      %v1053 = vunpack.c.l.b16 %v1038
      %v1054 = vpack.c.b16 %v1051, %v1050
      %v1055 = vpack.c.b16 %v1053, %v1052
      %vm1058 = vcmask 261120
      %v1060 = vsel %vm1058, %v1017, 0
      %1062 = vmatprep.subr.bf16.mxu0 0
      %1063 = vmatpush1.bf16.msra.mxu0 %v1054
      %1064 = vmatprep.subr.bf16.mxu0 0
      %1065 = vmatpush1.bf16.msra.mxu0 %v1055
      %1066 = vmatprep.subr.bf16.mxu0 0
      %1067 = vmatpush1.bf16.msra.mxu0 0
      %1068 = vmatprep.subr.bf16.mxu0 0
      %1069 = vmatpush1.bf16.msra.mxu0 0
      %1070 = vmatprep.subr.bf16.mxu0 0
      %1071 = vmatpush1.bf16.msra.mxu0 0
      %1072 = vmatprep.subr.bf16.mxu0 0
      %1073 = vmatpush1.bf16.msra.mxu0 0
      %1074 = vmatprep.subr.bf16.mxu0 0
      %1075 = vmatpush1.bf16.msra.mxu0 0
      %1076 = vmatprep.subr.bf16.mxu0 0
      %1077 = vmatpush1.bf16.msra.mxu0 0
      %1078 = vmatprep.subr.bf16.mxu0 0
      %1079 = vmatpush1.bf16.msra.mxu0 0
      %1080 = vmatprep.subr.bf16.mxu0 0
      %1081 = vmatpush1.bf16.msra.mxu0 0
      %1082 = vmatprep.subr.bf16.mxu0 0
      %1083 = vmatpush1.bf16.msra.mxu0 0
      %1084 = vmatprep.subr.bf16.mxu0 0
      %1085 = vmatpush1.bf16.msra.mxu0 0
      %1086 = vmatprep.subr.bf16.mxu0 0
      %1087 = vmatpush1.bf16.msra.mxu0 0
      %1088 = vmatprep.subr.bf16.mxu0 0
      %1089 = vmatpush1.bf16.msra.mxu0 0
      %1090 = vmatprep.subr.bf16.mxu0 0
      %1091 = vmatpush1.bf16.msra.mxu0 0
      %1092 = vmatprep.subr.bf16.mxu0 0
      %1093 = vmatpush1.bf16.msra.mxu0 0
      %1094 = vmatprep.mubr.bf16.mxu0 0
      %1095 = vmatmul.mubr.bf16.gmra.mrb[0].mxu0 %v1060
      %v1096 = vpop.f32.mrb[0].mxu0
      %v1097 = vadd.f32 %v1044, %v1096
      %v1098 = vpop.f32.mrb[0].mxu0
      %v1099 = vpop.f32.mrb[0].mxu0
      %v1100 = vpop.f32.mrb[0].mxu0
      %1101 = vdwg.mxu0
      %v1102 = vmul.f32 %v1097, 0.35355338
      %v1103 = vld [vmem:[%s15] sm:$0xf]
      %v1104 = vld [vmem:[%s15 + $0x4] sm:$0xf]
      %v1105 = vld [vmem:[%s15 + $0x8] sm:$0xf]
      %v1106 = vld [vmem:[%s15 + $0xc] sm:$0xf]
      %v1107 = vld [vmem:[%s17] sm:$0x1]
      %v1109 = vlaneseq
      %v1110 = vshrl.u32 %v1109, 7
      %v1111 = vsub.s32 0, %v1110
      %v1112 = vrot.slane %v1107, %v1111
      %v1118 = vunpack.c.l.b16 %v1103
      %v1119 = vunpack.c.l.b16 %v1104
      %v1120 = vunpack.c.l.b16 %v1105
      %v1121 = vunpack.c.l.b16 %v1106
      %v1122 = vpack.c.b16 %v1119, %v1118
      %v1123 = vpack.c.b16 %v1121, %v1120
      %1126 = vmatprep.subr.bf16.mxu0 0
      %1127 = vmatpush1.bf16.msra.mxu0 %v1122
      %1128 = vmatprep.subr.bf16.mxu0 0
      %1129 = vmatpush1.bf16.msra.mxu0 %v1123
      %1130 = vmatprep.subr.bf16.mxu0 0
      %1131 = vmatpush1.bf16.msra.mxu0 0
      %1132 = vmatprep.subr.bf16.mxu0 0
      %1133 = vmatpush1.bf16.msra.mxu0 0
      %1134 = vmatprep.subr.bf16.mxu0 0
      %1135 = vmatpush1.bf16.msra.mxu0 0
      %1136 = vmatprep.subr.bf16.mxu0 0
      %1137 = vmatpush1.bf16.msra.mxu0 0
      %1138 = vmatprep.subr.bf16.mxu0 0
      %1139 = vmatpush1.bf16.msra.mxu0 0
      %1140 = vmatprep.subr.bf16.mxu0 0
      %1141 = vmatpush1.bf16.msra.mxu0 0
      %1142 = vmatprep.subr.bf16.mxu0 0
      %1143 = vmatpush1.bf16.msra.mxu0 0
      %1144 = vmatprep.subr.bf16.mxu0 0
      %1145 = vmatpush1.bf16.msra.mxu0 0
      %1146 = vmatprep.subr.bf16.mxu0 0
      %1147 = vmatpush1.bf16.msra.mxu0 0
      %1148 = vmatprep.subr.bf16.mxu0 0
      %1149 = vmatpush1.bf16.msra.mxu0 0
      %1150 = vmatprep.subr.bf16.mxu0 0
      %1151 = vmatpush1.bf16.msra.mxu0 0
      %1152 = vmatprep.subr.bf16.mxu0 0
      %1153 = vmatpush1.bf16.msra.mxu0 0
      %1154 = vmatprep.subr.bf16.mxu0 0
      %1155 = vmatpush1.bf16.msra.mxu0 0
      %1156 = vmatprep.subr.bf16.mxu0 0
      %1157 = vmatpush1.bf16.msra.mxu0 0
      %1158 = vmatprep.mubr.bf16.mxu0 0
      %1159 = vmatmul.mubr.bf16.gmra.mrb[0].mxu0 %v1060
      %v1160 = vpop.f32.mrb[0].mxu0
      %v1161 = vadd.f32 %v1112, %v1160
      %v1162 = vpop.f32.mrb[0].mxu0
      %v1163 = vpop.f32.mrb[0].mxu0
      %v1164 = vpop.f32.mrb[0].mxu0
      %1165 = vdwg.mxu0
      %v1166 = vld [vmem:[%s19] sm:$0xf]
      %v1167 = vld [vmem:[%s19 + $0x4] sm:$0xf]
      %v1168 = vld [vmem:[%s19 + $0x8] sm:$0xf]
      %v1169 = vld [vmem:[%s19 + $0xc] sm:$0xf]
      %v1170 = vld [vmem:[%s21] sm:$0x1]
      %v1172 = vlaneseq
      %v1173 = vshrl.u32 %v1172, 7
      %v1174 = vsub.s32 0, %v1173
      %v1175 = vrot.slane %v1170, %v1174
      %v1181 = vunpack.c.l.b16 %v1166
      %v1182 = vunpack.c.l.b16 %v1167
      %v1183 = vunpack.c.l.b16 %v1168
      %v1184 = vunpack.c.l.b16 %v1169
      %v1185 = vpack.c.b16 %v1182, %v1181
      %v1186 = vpack.c.b16 %v1184, %v1183
      %1189 = vmatprep.subr.bf16.mxu0 0
      %1190 = vmatpush1.bf16.msra.mxu0 %v1185
      %1191 = vmatprep.subr.bf16.mxu0 0
      %1192 = vmatpush1.bf16.msra.mxu0 %v1186
      %1193 = vmatprep.subr.bf16.mxu0 0
      %1194 = vmatpush1.bf16.msra.mxu0 0
      %1195 = vmatprep.subr.bf16.mxu0 0
      %1196 = vmatpush1.bf16.msra.mxu0 0
      %1197 = vmatprep.subr.bf16.mxu0 0
      %1198 = vmatpush1.bf16.msra.mxu0 0
      %1199 = vmatprep.subr.bf16.mxu0 0
      %1200 = vmatpush1.bf16.msra.mxu0 0
      %1201 = vmatprep.subr.bf16.mxu0 0
      %1202 = vmatpush1.bf16.msra.mxu0 0
      %1203 = vmatprep.subr.bf16.mxu0 0
      %1204 = vmatpush1.bf16.msra.mxu0 0
      %1205 = vmatprep.subr.bf16.mxu0 0
      %1206 = vmatpush1.bf16.msra.mxu0 0
      %1207 = vmatprep.subr.bf16.mxu0 0
      %1208 = vmatpush1.bf16.msra.mxu0 0
      %1209 = vmatprep.subr.bf16.mxu0 0
      %1210 = vmatpush1.bf16.msra.mxu0 0
      %1211 = vmatprep.subr.bf16.mxu0 0
      %1212 = vmatpush1.bf16.msra.mxu0 0
      %1213 = vmatprep.subr.bf16.mxu0 0
      %1214 = vmatpush1.bf16.msra.mxu0 0
      %1215 = vmatprep.subr.bf16.mxu0 0
      %1216 = vmatpush1.bf16.msra.mxu0 0
      %1217 = vmatprep.subr.bf16.mxu0 0
      %1218 = vmatpush1.bf16.msra.mxu0 0
      %1219 = vmatprep.subr.bf16.mxu0 0
      %1220 = vmatpush1.bf16.msra.mxu0 0
      %1221 = vmatprep.mubr.bf16.mxu0 0
      %1222 = vmatmul.mubr.bf16.gmra.mrb[0].mxu0 %v1060
      %v1223 = vpop.f32.mrb[0].mxu0
      %v1224 = vadd.f32 %v1175, %v1223
      %v1225 = vpop.f32.mrb[0].mxu0
      %v1226 = vpop.f32.mrb[0].mxu0
      %v1227 = vpop.f32.mrb[0].mxu0
      %1228 = vdwg.mxu0
      %v1229 = vpack.c.bf16 %v1102, %v1102
      %v1230 = vpack.c.bf16 %v1161, %v1161
      %vm1231 = vcmask 64512
      %v1233 = vsel %vm1231, %v1229, 0
      %v1236 = vsel %vm1231, %v1230, 0
      %1238 = vmatprep.subr.bf16.mxu0 0
      %1239 = vmatpush1.bf16.xpose.msra.mxu0 %v1236
      %1240 = vmatprep.subr.bf16.mxu0 0
      %1241 = vmatpush1.bf16.xpose.msra.mxu0 0
      %1242 = vmatprep.subr.bf16.mxu0 0
      %1243 = vmatpush1.bf16.xpose.msra.mxu0 0
      %1244 = vmatprep.subr.bf16.mxu0 0
      %1245 = vmatpush1.bf16.xpose.msra.mxu0 0
      %1246 = vmatprep.subr.bf16.mxu0 0
      %1247 = vmatpush1.bf16.xpose.msra.mxu0 0
      %1248 = vmatprep.subr.bf16.mxu0 0
      %1249 = vmatpush1.bf16.xpose.msra.mxu0 0
      %1250 = vmatprep.subr.bf16.mxu0 0
      %1251 = vmatpush1.bf16.xpose.msra.mxu0 0
      %1252 = vmatprep.subr.bf16.mxu0 0
      %1253 = vmatpush1.bf16.xpose.msra.mxu0 0
      %1254 = vmatprep.subr.bf16.mxu0 0
      %1255 = vmatpush1.bf16.xpose.msra.mxu0 0
      %1256 = vmatprep.subr.bf16.mxu0 0
      %1257 = vmatpush1.bf16.xpose.msra.mxu0 0
      %1258 = vmatprep.subr.bf16.mxu0 0
      %1259 = vmatpush1.bf16.xpose.msra.mxu0 0
      %1260 = vmatprep.subr.bf16.mxu0 0
      %1261 = vmatpush1.bf16.xpose.msra.mxu0 0
      %1262 = vmatprep.subr.bf16.mxu0 0
      %1263 = vmatpush1.bf16.xpose.msra.mxu0 0
      %1264 = vmatprep.subr.bf16.mxu0 0
      %1265 = vmatpush1.bf16.xpose.msra.mxu0 0
      %1266 = vmatprep.subr.bf16.mxu0 0
      %1267 = vmatpush1.bf16.xpose.msra.mxu0 0
      %1268 = vmatprep.subr.bf16.mxu0 0
      %1269 = vmatpush1.bf16.xpose.msra.mxu0 0
      %1270 = vmatprep.mubr.bf16.mxu0 0
      %1271 = vmatmul.mubr.bf16.gmra.mrb[0].mxu0 %v1233
      %v1272 = vpop.f32.mrb[0].mxu0
      %v1273 = vadd.f32 %v1034, %v1272
      %v1274 = vpop.f32.mrb[0].mxu0
      %v1275 = vpop.f32.mrb[0].mxu0
      %v1276 = vpop.f32.mrb[0].mxu0
      %1277 = vdwg.mxu0
      %vm1278 = vcmask 55296
      %v1279 = vsel %vm1278, %v1273, -inf
      %1280 = vmax.xlane.f32.xlu0 %v1279
      %v1281 = vpop.xlane.xlu0 %1280
      %v1282 = vsub.f32 %v1273, %v1281
      %v1283 = vmul.f32 %v1282, 1.442695
      %v1284 = vpow.pop %v1283
      %v1285 = vsel %vm1278, %v1284, 0.0
      %1286 = vadd.xlane.f32.xlu0 %v1285
      %v1287 = vpop.xlane.xlu0 %1286
      %v1288 = vrcp.pop %v1287
      %v1289 = vmul.f32 %v1284, %v1288
      %v1290 = vpack.c.bf16 %v1289, %v1289
      %v1291 = vpack.c.bf16 %v1224, %v1224
      %vm1292 = vcmask 56320
      %v1294 = vsel %vm1292, %v1290, 0
      %vm1296 = vcmask 1042432
      %vm1297 = vcmask 1043456
      %v1298 = vsel %vm1296, 4294967295, 65535
      %v1299 = vsel %vm1297, %v1298, 0
      %v1301 = vand.u32 %v1291, %v1299
      %1303 = vmatprep.subr.bf16.mxu0 0
      %1304 = vmatpush1.bf16.msra.mxu0 %v1301
      %1305 = vmatprep.subr.bf16.mxu0 0
      %1306 = vmatpush1.bf16.msra.mxu0 0
      %1307 = vmatprep.subr.bf16.mxu0 0
      %1308 = vmatpush1.bf16.msra.mxu0 0
      %1309 = vmatprep.subr.bf16.mxu0 0
      %1310 = vmatpush1.bf16.msra.mxu0 0
      %1311 = vmatprep.subr.bf16.mxu0 0
      %1312 = vmatpush1.bf16.msra.mxu0 0
      %1313 = vmatprep.subr.bf16.mxu0 0
      %1314 = vmatpush1.bf16.msra.mxu0 0
      %1315 = vmatprep.subr.bf16.mxu0 0
      %1316 = vmatpush1.bf16.msra.mxu0 0
      %1317 = vmatprep.subr.bf16.mxu0 0
      %1318 = vmatpush1.bf16.msra.mxu0 0
      %1319 = vmatprep.subr.bf16.mxu0 0
      %1320 = vmatpush1.bf16.msra.mxu0 0
      %1321 = vmatprep.subr.bf16.mxu0 0
      %1322 = vmatpush1.bf16.msra.mxu0 0
      %1323 = vmatprep.subr.bf16.mxu0 0
      %1324 = vmatpush1.bf16.msra.mxu0 0
      %1325 = vmatprep.subr.bf16.mxu0 0
      %1326 = vmatpush1.bf16.msra.mxu0 0
      %1327 = vmatprep.subr.bf16.mxu0 0
      %1328 = vmatpush1.bf16.msra.mxu0 0
      %1329 = vmatprep.subr.bf16.mxu0 0
      %1330 = vmatpush1.bf16.msra.mxu0 0
      %1331 = vmatprep.subr.bf16.mxu0 0
      %1332 = vmatpush1.bf16.msra.mxu0 0
      %1333 = vmatprep.subr.bf16.mxu0 0
      %1334 = vmatpush1.bf16.msra.mxu0 0
      %1335 = vmatprep.mubr.bf16.mxu0 0
      %1336 = vmatmul.mubr.bf16.gmra.mrb[0].mxu0 %v1294
      %v1337 = vpop.f32.mrb[0].mxu0
      %v1338 = vadd.f32 0.0, %v1337
      %v1339 = vpop.f32.mrb[0].mxu0
      %v1340 = vpop.f32.mrb[0].mxu0
      %v1341 = vpop.f32.mrb[0].mxu0
      %1342 = vdwg.mxu0
      %v1343 = vpack.c.bf16 %v1338, %v1338
      %v1344 = vld [vmem:[%s23] sm:$0xf]
      %s1345 = scalar_lea.vmem %s11, 16
      %v1346 = vld [vmem:[%s1345] sm:$0xf]
      %v1347 = vld [vmem:[%s1345 + $0x4] sm:$0xf]
      %v1348 = vld [vmem:[%s1345 + $0x8] sm:$0xf]
      %v1349 = vld [vmem:[%s1345 + $0xc] sm:$0xf]
      %s1350 = scalar_lea.vmem %s13, 1
      %v1351 = vld [vmem:[%s1350] sm:$0x1]
      %v1353 = vlaneseq
      %v1354 = vshrl.u32 %v1353, 7
      %v1355 = vsub.s32 0, %v1354
      %v1356 = vrot.slane %v1351, %v1355
      %v1362 = vunpack.c.l.b16 %v1346
      %v1363 = vunpack.c.l.b16 %v1347
      %v1364 = vunpack.c.l.b16 %v1348
      %v1365 = vunpack.c.l.b16 %v1349
      %v1366 = vpack.c.b16 %v1363, %v1362
      %v1367 = vpack.c.b16 %v1365, %v1364
      %1370 = vmatprep.subr.bf16.mxu0 0
      %1371 = vmatpush1.bf16.msra.mxu0 %v1366
      %1372 = vmatprep.subr.bf16.mxu0 0
      %1373 = vmatpush1.bf16.msra.mxu0 %v1367
      %1374 = vmatprep.subr.bf16.mxu0 0
      %1375 = vmatpush1.bf16.msra.mxu0 0
      %1376 = vmatprep.subr.bf16.mxu0 0
      %1377 = vmatpush1.bf16.msra.mxu0 0
      %1378 = vmatprep.subr.bf16.mxu0 0
      %1379 = vmatpush1.bf16.msra.mxu0 0
      %1380 = vmatprep.subr.bf16.mxu0 0
      %1381 = vmatpush1.bf16.msra.mxu0 0
      %1382 = vmatprep.subr.bf16.mxu0 0
      %1383 = vmatpush1.bf16.msra.mxu0 0
      %1384 = vmatprep.subr.bf16.mxu0 0
      %1385 = vmatpush1.bf16.msra.mxu0 0
      %1386 = vmatprep.subr.bf16.mxu0 0
      %1387 = vmatpush1.bf16.msra.mxu0 0
      %1388 = vmatprep.subr.bf16.mxu0 0
      %1389 = vmatpush1.bf16.msra.mxu0 0
      %1390 = vmatprep.subr.bf16.mxu0 0
      %1391 = vmatpush1.bf16.msra.mxu0 0
      %1392 = vmatprep.subr.bf16.mxu0 0
      %1393 = vmatpush1.bf16.msra.mxu0 0
      %1394 = vmatprep.subr.bf16.mxu0 0
      %1395 = vmatpush1.bf16.msra.mxu0 0
      %1396 = vmatprep.subr.bf16.mxu0 0
      %1397 = vmatpush1.bf16.msra.mxu0 0
      %1398 = vmatprep.subr.bf16.mxu0 0
      %1399 = vmatpush1.bf16.msra.mxu0 0
      %1400 = vmatprep.subr.bf16.mxu0 0
      %1401 = vmatpush1.bf16.msra.mxu0 0
      %1402 = vmatprep.mubr.bf16.mxu0 0
      %1403 = vmatmul.mubr.bf16.gmra.mrb[0].mxu0 %v1060
      %v1404 = vpop.f32.mrb[0].mxu0
      %v1405 = vadd.f32 %v1356, %v1404
      %v1406 = vpop.f32.mrb[0].mxu0
      %v1407 = vpop.f32.mrb[0].mxu0
      %v1408 = vpop.f32.mrb[0].mxu0
      %1409 = vdwg.mxu0
      %v1410 = vmul.f32 %v1405, 0.35355338
      %s1411 = scalar_lea.vmem %s15, 16
      %v1412 = vld [vmem:[%s1411] sm:$0xf]
      %v1413 = vld [vmem:[%s1411 + $0x4] sm:$0xf]
      %v1414 = vld [vmem:[%s1411 + $0x8] sm:$0xf]
      %v1415 = vld [vmem:[%s1411 + $0xc] sm:$0xf]
      %s1416 = scalar_lea.vmem %s17, 1
      %v1417 = vld [vmem:[%s1416] sm:$0x1]
      %v1419 = vlaneseq
      %v1420 = vshrl.u32 %v1419, 7
      %v1421 = vsub.s32 0, %v1420
      %v1422 = vrot.slane %v1417, %v1421
      %v1428 = vunpack.c.l.b16 %v1412
      %v1429 = vunpack.c.l.b16 %v1413
      %v1430 = vunpack.c.l.b16 %v1414
      %v1431 = vunpack.c.l.b16 %v1415
      %v1432 = vpack.c.b16 %v1429, %v1428
      %v1433 = vpack.c.b16 %v1431, %v1430
      %1436 = vmatprep.subr.bf16.mxu0 0
      %1437 = vmatpush1.bf16.msra.mxu0 %v1432
      %1438 = vmatprep.subr.bf16.mxu0 0
      %1439 = vmatpush1.bf16.msra.mxu0 %v1433
      %1440 = vmatprep.subr.bf16.mxu0 0
      %1441 = vmatpush1.bf16.msra.mxu0 0
      %1442 = vmatprep.subr.bf16.mxu0 0
      %1443 = vmatpush1.bf16.msra.mxu0 0
      %1444 = vmatprep.subr.bf16.mxu0 0
      %1445 = vmatpush1.bf16.msra.mxu0 0
      %1446 = vmatprep.subr.bf16.mxu0 0
      %1447 = vmatpush1.bf16.msra.mxu0 0
      %1448 = vmatprep.subr.bf16.mxu0 0
      %1449 = vmatpush1.bf16.msra.mxu0 0
      %1450 = vmatprep.subr.bf16.mxu0 0
      %1451 = vmatpush1.bf16.msra.mxu0 0
      %1452 = vmatprep.subr.bf16.mxu0 0
      %1453 = vmatpush1.bf16.msra.mxu0 0
      %1454 = vmatprep.subr.bf16.mxu0 0
      %1455 = vmatpush1.bf16.msra.mxu0 0
      %1456 = vmatprep.subr.bf16.mxu0 0
      %1457 = vmatpush1.bf16.msra.mxu0 0
      %1458 = vmatprep.subr.bf16.mxu0 0
      %1459 = vmatpush1.bf16.msra.mxu0 0
      %1460 = vmatprep.subr.bf16.mxu0 0
      %1461 = vmatpush1.bf16.msra.mxu0 0
      %1462 = vmatprep.subr.bf16.mxu0 0
      %1463 = vmatpush1.bf16.msra.mxu0 0
      %1464 = vmatprep.subr.bf16.mxu0 0
      %1465 = vmatpush1.bf16.msra.mxu0 0
      %1466 = vmatprep.subr.bf16.mxu0 0
      %1467 = vmatpush1.bf16.msra.mxu0 0
      %1468 = vmatprep.mubr.bf16.mxu0 0
      %1469 = vmatmul.mubr.bf16.gmra.mrb[0].mxu0 %v1060
      %v1470 = vpop.f32.mrb[0].mxu0
      %v1471 = vadd.f32 %v1422, %v1470
      %v1472 = vpop.f32.mrb[0].mxu0
      %v1473 = vpop.f32.mrb[0].mxu0
      %v1474 = vpop.f32.mrb[0].mxu0
      %1475 = vdwg.mxu0
      %s1476 = scalar_lea.vmem %s19, 16
      %v1477 = vld [vmem:[%s1476] sm:$0xf]
      %v1478 = vld [vmem:[%s1476 + $0x4] sm:$0xf]
      %v1479 = vld [vmem:[%s1476 + $0x8] sm:$0xf]
      %v1480 = vld [vmem:[%s1476 + $0xc] sm:$0xf]
      %s1481 = scalar_lea.vmem %s21, 1
      %v1482 = vld [vmem:[%s1481] sm:$0x1]
      %v1484 = vlaneseq
      %v1485 = vshrl.u32 %v1484, 7
      %v1486 = vsub.s32 0, %v1485
      %v1487 = vrot.slane %v1482, %v1486
      %v1493 = vunpack.c.l.b16 %v1477
      %v1494 = vunpack.c.l.b16 %v1478
      %v1495 = vunpack.c.l.b16 %v1479
      %v1496 = vunpack.c.l.b16 %v1480
      %v1497 = vpack.c.b16 %v1494, %v1493
      %v1498 = vpack.c.b16 %v1496, %v1495
      %1501 = vmatprep.subr.bf16.mxu0 0
      %1502 = vmatpush1.bf16.msra.mxu0 %v1497
      %1503 = vmatprep.subr.bf16.mxu0 0
      %1504 = vmatpush1.bf16.msra.mxu0 %v1498
      %1505 = vmatprep.subr.bf16.mxu0 0
      %1506 = vmatpush1.bf16.msra.mxu0 0
      %1507 = vmatprep.subr.bf16.mxu0 0
      %1508 = vmatpush1.bf16.msra.mxu0 0
      %1509 = vmatprep.subr.bf16.mxu0 0
      %1510 = vmatpush1.bf16.msra.mxu0 0
      %1511 = vmatprep.subr.bf16.mxu0 0
      %1512 = vmatpush1.bf16.msra.mxu0 0
      %1513 = vmatprep.subr.bf16.mxu0 0
      %1514 = vmatpush1.bf16.msra.mxu0 0
      %1515 = vmatprep.subr.bf16.mxu0 0
      %1516 = vmatpush1.bf16.msra.mxu0 0
      %1517 = vmatprep.subr.bf16.mxu0 0
      %1518 = vmatpush1.bf16.msra.mxu0 0
      %1519 = vmatprep.subr.bf16.mxu0 0
      %1520 = vmatpush1.bf16.msra.mxu0 0
      %1521 = vmatprep.subr.bf16.mxu0 0
      %1522 = vmatpush1.bf16.msra.mxu0 0
      %1523 = vmatprep.subr.bf16.mxu0 0
      %1524 = vmatpush1.bf16.msra.mxu0 0
      %1525 = vmatprep.subr.bf16.mxu0 0
      %1526 = vmatpush1.bf16.msra.mxu0 0
      %1527 = vmatprep.subr.bf16.mxu0 0
      %1528 = vmatpush1.bf16.msra.mxu0 0
      %1529 = vmatprep.subr.bf16.mxu0 0
      %1530 = vmatpush1.bf16.msra.mxu0 0
      %1531 = vmatprep.subr.bf16.mxu0 0
      %1532 = vmatpush1.bf16.msra.mxu0 0
      %1533 = vmatprep.mubr.bf16.mxu0 0
      %1534 = vmatmul.mubr.bf16.gmra.mrb[0].mxu0 %v1060
      %v1535 = vpop.f32.mrb[0].mxu0
      %v1536 = vadd.f32 %v1487, %v1535
      %v1537 = vpop.f32.mrb[0].mxu0
      %v1538 = vpop.f32.mrb[0].mxu0
      %v1539 = vpop.f32.mrb[0].mxu0
      %1540 = vdwg.mxu0
      %v1541 = vpack.c.bf16 %v1410, %v1410
      %v1542 = vpack.c.bf16 %v1471, %v1471
      %v1544 = vsel %vm1231, %v1541, 0
      %v1547 = vsel %vm1231, %v1542, 0
      %1549 = vmatprep.subr.bf16.mxu0 0
      %1550 = vmatpush1.bf16.xpose.msra.mxu0 %v1547
      %1551 = vmatprep.subr.bf16.mxu0 0
      %1552 = vmatpush1.bf16.xpose.msra.mxu0 0
      %1553 = vmatprep.subr.bf16.mxu0 0
      %1554 = vmatpush1.bf16.xpose.msra.mxu0 0
      %1555 = vmatprep.subr.bf16.mxu0 0
      %1556 = vmatpush1.bf16.xpose.msra.mxu0 0
      %1557 = vmatprep.subr.bf16.mxu0 0
      %1558 = vmatpush1.bf16.xpose.msra.mxu0 0
      %1559 = vmatprep.subr.bf16.mxu0 0
      %1560 = vmatpush1.bf16.xpose.msra.mxu0 0
      %1561 = vmatprep.subr.bf16.mxu0 0
      %1562 = vmatpush1.bf16.xpose.msra.mxu0 0
      %1563 = vmatprep.subr.bf16.mxu0 0
      %1564 = vmatpush1.bf16.xpose.msra.mxu0 0
      %1565 = vmatprep.subr.bf16.mxu0 0
      %1566 = vmatpush1.bf16.xpose.msra.mxu0 0
      %1567 = vmatprep.subr.bf16.mxu0 0
      %1568 = vmatpush1.bf16.xpose.msra.mxu0 0
      %1569 = vmatprep.subr.bf16.mxu0 0
      %1570 = vmatpush1.bf16.xpose.msra.mxu0 0
      %1571 = vmatprep.subr.bf16.mxu0 0
      %1572 = vmatpush1.bf16.xpose.msra.mxu0 0
      %1573 = vmatprep.subr.bf16.mxu0 0
      %1574 = vmatpush1.bf16.xpose.msra.mxu0 0
      %1575 = vmatprep.subr.bf16.mxu0 0
      %1576 = vmatpush1.bf16.xpose.msra.mxu0 0
      %1577 = vmatprep.subr.bf16.mxu0 0
      %1578 = vmatpush1.bf16.xpose.msra.mxu0 0
      %1579 = vmatprep.subr.bf16.mxu0 0
      %1580 = vmatpush1.bf16.xpose.msra.mxu0 0
      %1581 = vmatprep.mubr.bf16.mxu0 0
      %1582 = vmatmul.mubr.bf16.gmra.mrb[0].mxu0 %v1544
      %v1583 = vpop.f32.mrb[0].mxu0
      %v1584 = vadd.f32 %v1034, %v1583
      %v1585 = vpop.f32.mrb[0].mxu0
      %v1586 = vpop.f32.mrb[0].mxu0
      %v1587 = vpop.f32.mrb[0].mxu0
      %1588 = vdwg.mxu0
      %v1589 = vsel %vm1278, %v1584, -inf
      %1590 = vmax.xlane.f32.xlu0 %v1589
      %v1591 = vpop.xlane.xlu0 %1590
      %v1592 = vsub.f32 %v1584, %v1591
      %v1593 = vmul.f32 %v1592, 1.442695
      %v1594 = vpow.pop %v1593
      %v1595 = vsel %vm1278, %v1594, 0.0
      %1596 = vadd.xlane.f32.xlu0 %v1595
      %v1597 = vpop.xlane.xlu0 %1596
      %v1598 = vrcp.pop %v1597
      %v1599 = vmul.f32 %v1594, %v1598
      %v1600 = vpack.c.bf16 %v1599, %v1599
      %v1601 = vpack.c.bf16 %v1536, %v1536
      %v1603 = vsel %vm1292, %v1600, 0
      %v1606 = vand.u32 %v1601, %v1299
      %1608 = vmatprep.subr.bf16.mxu0 0
      %1609 = vmatpush1.bf16.msra.mxu0 %v1606
      %1610 = vmatprep.subr.bf16.mxu0 0
      %1611 = vmatpush1.bf16.msra.mxu0 0
      %1612 = vmatprep.subr.bf16.mxu0 0
      %1613 = vmatpush1.bf16.msra.mxu0 0
      %1614 = vmatprep.subr.bf16.mxu0 0
      %1615 = vmatpush1.bf16.msra.mxu0 0
      %1616 = vmatprep.subr.bf16.mxu0 0
      %1617 = vmatpush1.bf16.msra.mxu0 0
      %1618 = vmatprep.subr.bf16.mxu0 0
      %1619 = vmatpush1.bf16.msra.mxu0 0
      %1620 = vmatprep.subr.bf16.mxu0 0
      %1621 = vmatpush1.bf16.msra.mxu0 0
      %1622 = vmatprep.subr.bf16.mxu0 0
      %1623 = vmatpush1.bf16.msra.mxu0 0
      %1624 = vmatprep.subr.bf16.mxu0 0
      %1625 = vmatpush1.bf16.msra.mxu0 0
      %1626 = vmatprep.subr.bf16.mxu0 0
      %1627 = vmatpush1.bf16.msra.mxu0 0
      %1628 = vmatprep.subr.bf16.mxu0 0
      %1629 = vmatpush1.bf16.msra.mxu0 0
      %1630 = vmatprep.subr.bf16.mxu0 0
      %1631 = vmatpush1.bf16.msra.mxu0 0
      %1632 = vmatprep.subr.bf16.mxu0 0
      %1633 = vmatpush1.bf16.msra.mxu0 0
      %1634 = vmatprep.subr.bf16.mxu0 0
      %1635 = vmatpush1.bf16.msra.mxu0 0
      %1636 = vmatprep.subr.bf16.mxu0 0
      %1637 = vmatpush1.bf16.msra.mxu0 0
      %1638 = vmatprep.subr.bf16.mxu0 0
      %1639 = vmatpush1.bf16.msra.mxu0 0
      %1640 = vmatprep.mubr.bf16.mxu0 0
      %1641 = vmatmul.mubr.bf16.gmra.mrb[0].mxu0 %v1603
      %v1642 = vpop.f32.mrb[0].mxu0
      %v1643 = vadd.f32 0.0, %v1642
      %v1644 = vpop.f32.mrb[0].mxu0
      %v1645 = vpop.f32.mrb[0].mxu0
      %v1646 = vpop.f32.mrb[0].mxu0
      %1647 = vdwg.mxu0
      %v1648 = vpack.c.bf16 %v1643, %v1643
      %s1649 = scalar_lea.vmem %s23, 4
      %v1650 = vld [vmem:[%s1649] sm:$0xf]
      %v1652 = vsel %vm1231, %v1648, 0
      %v1655 = vsel %vm1297, %v1650, 0
      %1657 = vmatprep.subr.bf16.mxu0 0
      %1658 = vmatpush1.bf16.msra.mxu0 %v1655
      %1659 = vmatprep.subr.bf16.mxu0 0
      %1660 = vmatpush1.bf16.msra.mxu0 0
      %1661 = vmatprep.subr.bf16.mxu0 0
      %1662 = vmatpush1.bf16.msra.mxu0 0
      %1663 = vmatprep.subr.bf16.mxu0 0
      %1664 = vmatpush1.bf16.msra.mxu0 0
      %1665 = vmatprep.subr.bf16.mxu0 0
      %1666 = vmatpush1.bf16.msra.mxu0 0
      %1667 = vmatprep.subr.bf16.mxu0 0
      %1668 = vmatpush1.bf16.msra.mxu0 0
      %1669 = vmatprep.subr.bf16.mxu0 0
      %1670 = vmatpush1.bf16.msra.mxu0 0
      %1671 = vmatprep.subr.bf16.mxu0 0
      %1672 = vmatpush1.bf16.msra.mxu0 0
      %1673 = vmatprep.subr.bf16.mxu0 0
      %1674 = vmatpush1.bf16.msra.mxu0 0
      %1675 = vmatprep.subr.bf16.mxu0 0
      %1676 = vmatpush1.bf16.msra.mxu0 0
      %1677 = vmatprep.subr.bf16.mxu0 0
      %1678 = vmatpush1.bf16.msra.mxu0 0
      %1679 = vmatprep.subr.bf16.mxu0 0
      %1680 = vmatpush1.bf16.msra.mxu0 0
      %1681 = vmatprep.subr.bf16.mxu0 0
      %1682 = vmatpush1.bf16.msra.mxu0 0
      %1683 = vmatprep.subr.bf16.mxu0 0
      %1684 = vmatpush1.bf16.msra.mxu0 0
      %1685 = vmatprep.subr.bf16.mxu0 0
      %1686 = vmatpush1.bf16.msra.mxu0 0
      %1687 = vmatprep.subr.bf16.mxu0 0
      %1688 = vmatpush1.bf16.msra.mxu0 0
      %1689 = vmatprep.mubr.bf16.mxu0 0
      %1690 = vmatmul.mubr.bf16.gmra.mrb[0].mxu0 %v1652
      %v1691 = vpop.f32.mrb[0].mxu0
      %v1692 = vadd.f32 0.0, %v1691
      %v1693 = vpop.f32.mrb[0].mxu0
      %v1694 = vpop.f32.mrb[0].mxu0
      %v1695 = vpop.f32.mrb[0].mxu0
      %1696 = vdwg.mxu0
      %v1698 = vsel %vm1231, %v1343, 0
      %v1701 = vsel %vm1297, %v1344, 0
      %1703 = vmatprep.subr.bf16.mxu0 0
      %1704 = vmatpush1.bf16.msra.mxu0 %v1701
      %1705 = vmatprep.subr.bf16.mxu0 0
      %1706 = vmatpush1.bf16.msra.mxu0 0
      %1707 = vmatprep.subr.bf16.mxu0 0
      %1708 = vmatpush1.bf16.msra.mxu0 0
      %1709 = vmatprep.subr.bf16.mxu0 0
      %1710 = vmatpush1.bf16.msra.mxu0 0
      %1711 = vmatprep.subr.bf16.mxu0 0
      %1712 = vmatpush1.bf16.msra.mxu0 0
      %1713 = vmatprep.subr.bf16.mxu0 0
      %1714 = vmatpush1.bf16.msra.mxu0 0
      %1715 = vmatprep.subr.bf16.mxu0 0
      %1716 = vmatpush1.bf16.msra.mxu0 0
      %1717 = vmatprep.subr.bf16.mxu0 0
      %1718 = vmatpush1.bf16.msra.mxu0 0
      %1719 = vmatprep.subr.bf16.mxu0 0
      %1720 = vmatpush1.bf16.msra.mxu0 0
      %1721 = vmatprep.subr.bf16.mxu0 0
      %1722 = vmatpush1.bf16.msra.mxu0 0
      %1723 = vmatprep.subr.bf16.mxu0 0
      %1724 = vmatpush1.bf16.msra.mxu0 0
      %1725 = vmatprep.subr.bf16.mxu0 0
      %1726 = vmatpush1.bf16.msra.mxu0 0
      %1727 = vmatprep.subr.bf16.mxu0 0
      %1728 = vmatpush1.bf16.msra.mxu0 0
      %1729 = vmatprep.subr.bf16.mxu0 0
      %1730 = vmatpush1.bf16.msra.mxu0 0
      %1731 = vmatprep.subr.bf16.mxu0 0
      %1732 = vmatpush1.bf16.msra.mxu0 0
      %1733 = vmatprep.subr.bf16.mxu0 0
      %1734 = vmatpush1.bf16.msra.mxu0 0
      %1735 = vmatprep.mubr.bf16.mxu0 0
      %1736 = vmatmul.mubr.bf16.gmra.mrb[0].mxu0 %v1698
      %v1737 = vpop.f32.mrb[0].mxu0
      %v1738 = vadd.f32 %v1692, %v1737
      %v1739 = vpop.f32.mrb[0].mxu0
      %v1740 = vpop.f32.mrb[0].mxu0
      %v1741 = vpop.f32.mrb[0].mxu0
      %1742 = vdwg.mxu0
      %s1743 = scalar_lea.vmem %s11, 32
      %v1744 = vld [vmem:[%s1743] sm:$0xf]
      %v1745 = vld [vmem:[%s1743 + $0x4] sm:$0xf]
      %v1746 = vld [vmem:[%s1743 + $0x8] sm:$0xf]
      %v1747 = vld [vmem:[%s1743 + $0xc] sm:$0xf]
      %s1748 = scalar_lea.vmem %s13, 2
      %v1749 = vld [vmem:[%s1748] sm:$0x1]
      %v1751 = vlaneseq
      %v1752 = vshrl.u32 %v1751, 7
      %v1753 = vsub.s32 0, %v1752
      %v1754 = vrot.slane %v1749, %v1753
      %v1760 = vunpack.c.l.b16 %v1744
      %v1761 = vunpack.c.l.b16 %v1745
      %v1762 = vunpack.c.l.b16 %v1746
      %v1763 = vunpack.c.l.b16 %v1747
      %v1764 = vpack.c.b16 %v1761, %v1760
      %v1765 = vpack.c.b16 %v1763, %v1762
      %1768 = vmatprep.subr.bf16.mxu0 0
      %1769 = vmatpush1.bf16.msra.mxu0 %v1764
      %1770 = vmatprep.subr.bf16.mxu0 0
      %1771 = vmatpush1.bf16.msra.mxu0 %v1765
      %1772 = vmatprep.subr.bf16.mxu0 0
      %1773 = vmatpush1.bf16.msra.mxu0 0
      %1774 = vmatprep.subr.bf16.mxu0 0
      %1775 = vmatpush1.bf16.msra.mxu0 0
      %1776 = vmatprep.subr.bf16.mxu0 0
      %1777 = vmatpush1.bf16.msra.mxu0 0
      %1778 = vmatprep.subr.bf16.mxu0 0
      %1779 = vmatpush1.bf16.msra.mxu0 0
      %1780 = vmatprep.subr.bf16.mxu0 0
      %1781 = vmatpush1.bf16.msra.mxu0 0
      %1782 = vmatprep.subr.bf16.mxu0 0
      %1783 = vmatpush1.bf16.msra.mxu0 0
      %1784 = vmatprep.subr.bf16.mxu0 0
      %1785 = vmatpush1.bf16.msra.mxu0 0
      %1786 = vmatprep.subr.bf16.mxu0 0
      %1787 = vmatpush1.bf16.msra.mxu0 0
      %1788 = vmatprep.subr.bf16.mxu0 0
      %1789 = vmatpush1.bf16.msra.mxu0 0
      %1790 = vmatprep.subr.bf16.mxu0 0
      %1791 = vmatpush1.bf16.msra.mxu0 0
      %1792 = vmatprep.subr.bf16.mxu0 0
      %1793 = vmatpush1.bf16.msra.mxu0 0
      %1794 = vmatprep.subr.bf16.mxu0 0
      %1795 = vmatpush1.bf16.msra.mxu0 0
      %1796 = vmatprep.subr.bf16.mxu0 0
      %1797 = vmatpush1.bf16.msra.mxu0 0
      %1798 = vmatprep.subr.bf16.mxu0 0
      %1799 = vmatpush1.bf16.msra.mxu0 0
      %1800 = vmatprep.mubr.bf16.mxu0 0
      %1801 = vmatmul.mubr.bf16.gmra.mrb[0].mxu0 %v1060
      %v1802 = vpop.f32.mrb[0].mxu0
      %v1803 = vadd.f32 %v1754, %v1802
      %v1804 = vpop.f32.mrb[0].mxu0
      %v1805 = vpop.f32.mrb[0].mxu0
      %v1806 = vpop.f32.mrb[0].mxu0
      %1807 = vdwg.mxu0
      %v1808 = vmul.f32 %v1803, 0.35355338
      %s1809 = scalar_lea.vmem %s15, 32
      %v1810 = vld [vmem:[%s1809] sm:$0xf]
      %v1811 = vld [vmem:[%s1809 + $0x4] sm:$0xf]
      %v1812 = vld [vmem:[%s1809 + $0x8] sm:$0xf]
      %v1813 = vld [vmem:[%s1809 + $0xc] sm:$0xf]
      %s1814 = scalar_lea.vmem %s17, 2
      %v1815 = vld [vmem:[%s1814] sm:$0x1]
      %v1817 = vlaneseq
      %v1818 = vshrl.u32 %v1817, 7
      %v1819 = vsub.s32 0, %v1818
      %v1820 = vrot.slane %v1815, %v1819
      %v1826 = vunpack.c.l.b16 %v1810
      %v1827 = vunpack.c.l.b16 %v1811
      %v1828 = vunpack.c.l.b16 %v1812
      %v1829 = vunpack.c.l.b16 %v1813
      %v1830 = vpack.c.b16 %v1827, %v1826
      %v1831 = vpack.c.b16 %v1829, %v1828
      %1834 = vmatprep.subr.bf16.mxu0 0
      %1835 = vmatpush1.bf16.msra.mxu0 %v1830
      %1836 = vmatprep.subr.bf16.mxu0 0
      %1837 = vmatpush1.bf16.msra.mxu0 %v1831
      %1838 = vmatprep.subr.bf16.mxu0 0
      %1839 = vmatpush1.bf16.msra.mxu0 0
      %1840 = vmatprep.subr.bf16.mxu0 0
      %1841 = vmatpush1.bf16.msra.mxu0 0
      %1842 = vmatprep.subr.bf16.mxu0 0
      %1843 = vmatpush1.bf16.msra.mxu0 0
      %1844 = vmatprep.subr.bf16.mxu0 0
      %1845 = vmatpush1.bf16.msra.mxu0 0
      %1846 = vmatprep.subr.bf16.mxu0 0
      %1847 = vmatpush1.bf16.msra.mxu0 0
      %1848 = vmatprep.subr.bf16.mxu0 0
      %1849 = vmatpush1.bf16.msra.mxu0 0
      %1850 = vmatprep.subr.bf16.mxu0 0
      %1851 = vmatpush1.bf16.msra.mxu0 0
      %1852 = vmatprep.subr.bf16.mxu0 0
      %1853 = vmatpush1.bf16.msra.mxu0 0
      %1854 = vmatprep.subr.bf16.mxu0 0
      %1855 = vmatpush1.bf16.msra.mxu0 0
      %1856 = vmatprep.subr.bf16.mxu0 0
      %1857 = vmatpush1.bf16.msra.mxu0 0
      %1858 = vmatprep.subr.bf16.mxu0 0
      %1859 = vmatpush1.bf16.msra.mxu0 0
      %1860 = vmatprep.subr.bf16.mxu0 0
      %1861 = vmatpush1.bf16.msra.mxu0 0
      %1862 = vmatprep.subr.bf16.mxu0 0
      %1863 = vmatpush1.bf16.msra.mxu0 0
      %1864 = vmatprep.subr.bf16.mxu0 0
      %1865 = vmatpush1.bf16.msra.mxu0 0
      %1866 = vmatprep.mubr.bf16.mxu0 0
      %1867 = vmatmul.mubr.bf16.gmra.mrb[0].mxu0 %v1060
      %v1868 = vpop.f32.mrb[0].mxu0
      %v1869 = vadd.f32 %v1820, %v1868
      %v1870 = vpop.f32.mrb[0].mxu0
      %v1871 = vpop.f32.mrb[0].mxu0
      %v1872 = vpop.f32.mrb[0].mxu0
      %1873 = vdwg.mxu0
      %s1874 = scalar_lea.vmem %s19, 32
      %v1875 = vld [vmem:[%s1874] sm:$0xf]
      %v1876 = vld [vmem:[%s1874 + $0x4] sm:$0xf]
      %v1877 = vld [vmem:[%s1874 + $0x8] sm:$0xf]
      %v1878 = vld [vmem:[%s1874 + $0xc] sm:$0xf]
      %s1879 = scalar_lea.vmem %s21, 2
      %v1880 = vld [vmem:[%s1879] sm:$0x1]
      %v1882 = vlaneseq
      %v1883 = vshrl.u32 %v1882, 7
      %v1884 = vsub.s32 0, %v1883
      %v1885 = vrot.slane %v1880, %v1884
      %v1891 = vunpack.c.l.b16 %v1875
      %v1892 = vunpack.c.l.b16 %v1876
      %v1893 = vunpack.c.l.b16 %v1877
      %v1894 = vunpack.c.l.b16 %v1878
      %v1895 = vpack.c.b16 %v1892, %v1891
      %v1896 = vpack.c.b16 %v1894, %v1893
      %1899 = vmatprep.subr.bf16.mxu0 0
      %1900 = vmatpush1.bf16.msra.mxu0 %v1895
      %1901 = vmatprep.subr.bf16.mxu0 0
      %1902 = vmatpush1.bf16.msra.mxu0 %v1896
      %1903 = vmatprep.subr.bf16.mxu0 0
      %1904 = vmatpush1.bf16.msra.mxu0 0
      %1905 = vmatprep.subr.bf16.mxu0 0
      %1906 = vmatpush1.bf16.msra.mxu0 0
      %1907 = vmatprep.subr.bf16.mxu0 0
      %1908 = vmatpush1.bf16.msra.mxu0 0
      %1909 = vmatprep.subr.bf16.mxu0 0
      %1910 = vmatpush1.bf16.msra.mxu0 0
      %1911 = vmatprep.subr.bf16.mxu0 0
      %1912 = vmatpush1.bf16.msra.mxu0 0
      %1913 = vmatprep.subr.bf16.mxu0 0
      %1914 = vmatpush1.bf16.msra.mxu0 0
      %1915 = vmatprep.subr.bf16.mxu0 0
      %1916 = vmatpush1.bf16.msra.mxu0 0
      %1917 = vmatprep.subr.bf16.mxu0 0
      %1918 = vmatpush1.bf16.msra.mxu0 0
      %1919 = vmatprep.subr.bf16.mxu0 0
      %1920 = vmatpush1.bf16.msra.mxu0 0
      %1921 = vmatprep.subr.bf16.mxu0 0
      %1922 = vmatpush1.bf16.msra.mxu0 0
      %1923 = vmatprep.subr.bf16.mxu0 0
      %1924 = vmatpush1.bf16.msra.mxu0 0
      %1925 = vmatprep.subr.bf16.mxu0 0
      %1926 = vmatpush1.bf16.msra.mxu0 0
      %1927 = vmatprep.subr.bf16.mxu0 0
      %1928 = vmatpush1.bf16.msra.mxu0 0
      %1929 = vmatprep.subr.bf16.mxu0 0
      %1930 = vmatpush1.bf16.msra.mxu0 0
      %1931 = vmatprep.mubr.bf16.mxu0 0
      %1932 = vmatmul.mubr.bf16.gmra.mrb[0].mxu0 %v1060
      %v1933 = vpop.f32.mrb[0].mxu0
      %v1934 = vadd.f32 %v1885, %v1933
      %v1935 = vpop.f32.mrb[0].mxu0
      %v1936 = vpop.f32.mrb[0].mxu0
      %v1937 = vpop.f32.mrb[0].mxu0
      %1938 = vdwg.mxu0
      %v1939 = vpack.c.bf16 %v1808, %v1808
      %v1940 = vpack.c.bf16 %v1869, %v1869
      %v1942 = vsel %vm1231, %v1939, 0
      %v1945 = vsel %vm1231, %v1940, 0
      %1947 = vmatprep.subr.bf16.mxu0 0
      %1948 = vmatpush1.bf16.xpose.msra.mxu0 %v1945
      %1949 = vmatprep.subr.bf16.mxu0 0
      %1950 = vmatpush1.bf16.xpose.msra.mxu0 0
      %1951 = vmatprep.subr.bf16.mxu0 0
      %1952 = vmatpush1.bf16.xpose.msra.mxu0 0
      %1953 = vmatprep.subr.bf16.mxu0 0
      %1954 = vmatpush1.bf16.xpose.msra.mxu0 0
      %1955 = vmatprep.subr.bf16.mxu0 0
      %1956 = vmatpush1.bf16.xpose.msra.mxu0 0
      %1957 = vmatprep.subr.bf16.mxu0 0
      %1958 = vmatpush1.bf16.xpose.msra.mxu0 0
      %1959 = vmatprep.subr.bf16.mxu0 0
      %1960 = vmatpush1.bf16.xpose.msra.mxu0 0
      %1961 = vmatprep.subr.bf16.mxu0 0
      %1962 = vmatpush1.bf16.xpose.msra.mxu0 0
      %1963 = vmatprep.subr.bf16.mxu0 0
      %1964 = vmatpush1.bf16.xpose.msra.mxu0 0
      %1965 = vmatprep.subr.bf16.mxu0 0
      %1966 = vmatpush1.bf16.xpose.msra.mxu0 0
      %1967 = vmatprep.subr.bf16.mxu0 0
      %1968 = vmatpush1.bf16.xpose.msra.mxu0 0
      %1969 = vmatprep.subr.bf16.mxu0 0
      %1970 = vmatpush1.bf16.xpose.msra.mxu0 0
      %1971 = vmatprep.subr.bf16.mxu0 0
      %1972 = vmatpush1.bf16.xpose.msra.mxu0 0
      %1973 = vmatprep.subr.bf16.mxu0 0
      %1974 = vmatpush1.bf16.xpose.msra.mxu0 0
      %1975 = vmatprep.subr.bf16.mxu0 0
      %1976 = vmatpush1.bf16.xpose.msra.mxu0 0
      %1977 = vmatprep.subr.bf16.mxu0 0
      %1978 = vmatpush1.bf16.xpose.msra.mxu0 0
      %1979 = vmatprep.mubr.bf16.mxu0 0
      %1980 = vmatmul.mubr.bf16.gmra.mrb[0].mxu0 %v1942
      %v1981 = vpop.f32.mrb[0].mxu0
      %v1982 = vadd.f32 %v1034, %v1981
      %v1983 = vpop.f32.mrb[0].mxu0
      %v1984 = vpop.f32.mrb[0].mxu0
      %v1985 = vpop.f32.mrb[0].mxu0
      %1986 = vdwg.mxu0
      %v1987 = vsel %vm1278, %v1982, -inf
      %1988 = vmax.xlane.f32.xlu0 %v1987
      %v1989 = vpop.xlane.xlu0 %1988
      %v1990 = vsub.f32 %v1982, %v1989
      %v1991 = vmul.f32 %v1990, 1.442695
      %v1992 = vpow.pop %v1991
      %v1993 = vsel %vm1278, %v1992, 0.0
      %1994 = vadd.xlane.f32.xlu0 %v1993
      %v1995 = vpop.xlane.xlu0 %1994
      %v1996 = vrcp.pop %v1995
      %v1997 = vmul.f32 %v1992, %v1996
      %v1998 = vpack.c.bf16 %v1997, %v1997
      %v1999 = vpack.c.bf16 %v1934, %v1934
      %v2001 = vsel %vm1292, %v1998, 0
      %v2004 = vand.u32 %v1999, %v1299
      %2006 = vmatprep.subr.bf16.mxu0 0
      %2007 = vmatpush1.bf16.msra.mxu0 %v2004
      %2008 = vmatprep.subr.bf16.mxu0 0
      %2009 = vmatpush1.bf16.msra.mxu0 0
      %2010 = vmatprep.subr.bf16.mxu0 0
      %2011 = vmatpush1.bf16.msra.mxu0 0
      %2012 = vmatprep.subr.bf16.mxu0 0
      %2013 = vmatpush1.bf16.msra.mxu0 0
      %2014 = vmatprep.subr.bf16.mxu0 0
      %2015 = vmatpush1.bf16.msra.mxu0 0
      %2016 = vmatprep.subr.bf16.mxu0 0
      %2017 = vmatpush1.bf16.msra.mxu0 0
      %2018 = vmatprep.subr.bf16.mxu0 0
      %2019 = vmatpush1.bf16.msra.mxu0 0
      %2020 = vmatprep.subr.bf16.mxu0 0
      %2021 = vmatpush1.bf16.msra.mxu0 0
      %2022 = vmatprep.subr.bf16.mxu0 0
      %2023 = vmatpush1.bf16.msra.mxu0 0
      %2024 = vmatprep.subr.bf16.mxu0 0
      %2025 = vmatpush1.bf16.msra.mxu0 0
      %2026 = vmatprep.subr.bf16.mxu0 0
      %2027 = vmatpush1.bf16.msra.mxu0 0
      %2028 = vmatprep.subr.bf16.mxu0 0
      %2029 = vmatpush1.bf16.msra.mxu0 0
      %2030 = vmatprep.subr.bf16.mxu0 0
      %2031 = vmatpush1.bf16.msra.mxu0 0
      %2032 = vmatprep.subr.bf16.mxu0 0
      %2033 = vmatpush1.bf16.msra.mxu0 0
      %2034 = vmatprep.subr.bf16.mxu0 0
      %2035 = vmatpush1.bf16.msra.mxu0 0
      %2036 = vmatprep.subr.bf16.mxu0 0
      %2037 = vmatpush1.bf16.msra.mxu0 0
      %2038 = vmatprep.mubr.bf16.mxu0 0
      %2039 = vmatmul.mubr.bf16.gmra.mrb[0].mxu0 %v2001
      %v2040 = vpop.f32.mrb[0].mxu0
      %v2041 = vadd.f32 0.0, %v2040
      %v2042 = vpop.f32.mrb[0].mxu0
      %v2043 = vpop.f32.mrb[0].mxu0
      %v2044 = vpop.f32.mrb[0].mxu0
      %2045 = vdwg.mxu0
      %v2046 = vpack.c.bf16 %v2041, %v2041
      %s2047 = scalar_lea.vmem %s23, 8
      %v2048 = vld [vmem:[%s2047] sm:$0xf]
      %v2050 = vsel %vm1231, %v2046, 0
      %v2053 = vsel %vm1297, %v2048, 0
      %2055 = vmatprep.subr.bf16.mxu0 0
      %2056 = vmatpush1.bf16.msra.mxu0 %v2053
      %2057 = vmatprep.subr.bf16.mxu0 0
      %2058 = vmatpush1.bf16.msra.mxu0 0
      %2059 = vmatprep.subr.bf16.mxu0 0
      %2060 = vmatpush1.bf16.msra.mxu0 0
      %2061 = vmatprep.subr.bf16.mxu0 0
      %2062 = vmatpush1.bf16.msra.mxu0 0
      %2063 = vmatprep.subr.bf16.mxu0 0
      %2064 = vmatpush1.bf16.msra.mxu0 0
      %2065 = vmatprep.subr.bf16.mxu0 0
      %2066 = vmatpush1.bf16.msra.mxu0 0
      %2067 = vmatprep.subr.bf16.mxu0 0
      %2068 = vmatpush1.bf16.msra.mxu0 0
      %2069 = vmatprep.subr.bf16.mxu0 0
      %2070 = vmatpush1.bf16.msra.mxu0 0
      %2071 = vmatprep.subr.bf16.mxu0 0
      %2072 = vmatpush1.bf16.msra.mxu0 0
      %2073 = vmatprep.subr.bf16.mxu0 0
      %2074 = vmatpush1.bf16.msra.mxu0 0
      %2075 = vmatprep.subr.bf16.mxu0 0
      %2076 = vmatpush1.bf16.msra.mxu0 0
      %2077 = vmatprep.subr.bf16.mxu0 0
      %2078 = vmatpush1.bf16.msra.mxu0 0
      %2079 = vmatprep.subr.bf16.mxu0 0
      %2080 = vmatpush1.bf16.msra.mxu0 0
      %2081 = vmatprep.subr.bf16.mxu0 0
      %2082 = vmatpush1.bf16.msra.mxu0 0
      %2083 = vmatprep.subr.bf16.mxu0 0
      %2084 = vmatpush1.bf16.msra.mxu0 0
      %2085 = vmatprep.subr.bf16.mxu0 0
      %2086 = vmatpush1.bf16.msra.mxu0 0
      %2087 = vmatprep.mubr.bf16.mxu0 0
      %2088 = vmatmul.mubr.bf16.gmra.mrb[0].mxu0 %v2050
      %v2089 = vpop.f32.mrb[0].mxu0
      %v2090 = vadd.f32 0.0, %v2089
      %v2091 = vpop.f32.mrb[0].mxu0
      %v2092 = vpop.f32.mrb[0].mxu0
      %v2093 = vpop.f32.mrb[0].mxu0
      %2094 = vdwg.mxu0
      %v2095 = vadd.f32 %v1738, %v2090
      %s2096 = scalar_lea.vmem %s11, 48
      %v2097 = vld [vmem:[%s2096] sm:$0xf]
      %v2098 = vld [vmem:[%s2096 + $0x4] sm:$0xf]
      %v2099 = vld [vmem:[%s2096 + $0x8] sm:$0xf]
      %v2100 = vld [vmem:[%s2096 + $0xc] sm:$0xf]
      %s2101 = scalar_lea.vmem %s13, 3
      %v2102 = vld [vmem:[%s2101] sm:$0x1]
      %v2104 = vlaneseq
      %v2105 = vshrl.u32 %v2104, 7
      %v2106 = vsub.s32 0, %v2105
      %v2107 = vrot.slane %v2102, %v2106
      %v2113 = vunpack.c.l.b16 %v2097
      %v2114 = vunpack.c.l.b16 %v2098
      %v2115 = vunpack.c.l.b16 %v2099
      %v2116 = vunpack.c.l.b16 %v2100
      %v2117 = vpack.c.b16 %v2114, %v2113
      %v2118 = vpack.c.b16 %v2116, %v2115
      %2121 = vmatprep.subr.bf16.mxu0 0
      %2122 = vmatpush1.bf16.msra.mxu0 %v2117
      %2123 = vmatprep.subr.bf16.mxu0 0
      %2124 = vmatpush1.bf16.msra.mxu0 %v2118
      %2125 = vmatprep.subr.bf16.mxu0 0
      %2126 = vmatpush1.bf16.msra.mxu0 0
      %2127 = vmatprep.subr.bf16.mxu0 0
      %2128 = vmatpush1.bf16.msra.mxu0 0
      %2129 = vmatprep.subr.bf16.mxu0 0
      %2130 = vmatpush1.bf16.msra.mxu0 0
      %2131 = vmatprep.subr.bf16.mxu0 0
      %2132 = vmatpush1.bf16.msra.mxu0 0
      %2133 = vmatprep.subr.bf16.mxu0 0
      %2134 = vmatpush1.bf16.msra.mxu0 0
      %2135 = vmatprep.subr.bf16.mxu0 0
      %2136 = vmatpush1.bf16.msra.mxu0 0
      %2137 = vmatprep.subr.bf16.mxu0 0
      %2138 = vmatpush1.bf16.msra.mxu0 0
      %2139 = vmatprep.subr.bf16.mxu0 0
      %2140 = vmatpush1.bf16.msra.mxu0 0
      %2141 = vmatprep.subr.bf16.mxu0 0
      %2142 = vmatpush1.bf16.msra.mxu0 0
      %2143 = vmatprep.subr.bf16.mxu0 0
      %2144 = vmatpush1.bf16.msra.mxu0 0
      %2145 = vmatprep.subr.bf16.mxu0 0
      %2146 = vmatpush1.bf16.msra.mxu0 0
      %2147 = vmatprep.subr.bf16.mxu0 0
      %2148 = vmatpush1.bf16.msra.mxu0 0
      %2149 = vmatprep.subr.bf16.mxu0 0
      %2150 = vmatpush1.bf16.msra.mxu0 0
      %2151 = vmatprep.subr.bf16.mxu0 0
      %2152 = vmatpush1.bf16.msra.mxu0 0
      %2153 = vmatprep.mubr.bf16.mxu0 0
      %2154 = vmatmul.mubr.bf16.gmra.mrb[0].mxu0 %v1060
      %v2155 = vpop.f32.mrb[0].mxu0
      %v2156 = vadd.f32 %v2107, %v2155
      %v2157 = vpop.f32.mrb[0].mxu0
      %v2158 = vpop.f32.mrb[0].mxu0
      %v2159 = vpop.f32.mrb[0].mxu0
      %2160 = vdwg.mxu0
      %v2161 = vmul.f32 %v2156, 0.35355338
      %s2162 = scalar_lea.vmem %s15, 48
      %v2163 = vld [vmem:[%s2162] sm:$0xf]
      %v2164 = vld [vmem:[%s2162 + $0x4] sm:$0xf]
      %v2165 = vld [vmem:[%s2162 + $0x8] sm:$0xf]
      %v2166 = vld [vmem:[%s2162 + $0xc] sm:$0xf]
      %s2167 = scalar_lea.vmem %s17, 3
      %v2168 = vld [vmem:[%s2167] sm:$0x1]
      %v2170 = vlaneseq
      %v2171 = vshrl.u32 %v2170, 7
      %v2172 = vsub.s32 0, %v2171
      %v2173 = vrot.slane %v2168, %v2172
      %v2179 = vunpack.c.l.b16 %v2163
      %v2180 = vunpack.c.l.b16 %v2164
      %v2181 = vunpack.c.l.b16 %v2165
      %v2182 = vunpack.c.l.b16 %v2166
      %v2183 = vpack.c.b16 %v2180, %v2179
      %v2184 = vpack.c.b16 %v2182, %v2181
      %2187 = vmatprep.subr.bf16.mxu0 0
      %2188 = vmatpush1.bf16.msra.mxu0 %v2183
      %2189 = vmatprep.subr.bf16.mxu0 0
      %2190 = vmatpush1.bf16.msra.mxu0 %v2184
      %2191 = vmatprep.subr.bf16.mxu0 0
      %2192 = vmatpush1.bf16.msra.mxu0 0
      %2193 = vmatprep.subr.bf16.mxu0 0
      %2194 = vmatpush1.bf16.msra.mxu0 0
      %2195 = vmatprep.subr.bf16.mxu0 0
      %2196 = vmatpush1.bf16.msra.mxu0 0
      %2197 = vmatprep.subr.bf16.mxu0 0
      %2198 = vmatpush1.bf16.msra.mxu0 0
      %2199 = vmatprep.subr.bf16.mxu0 0
      %2200 = vmatpush1.bf16.msra.mxu0 0
      %2201 = vmatprep.subr.bf16.mxu0 0
      %2202 = vmatpush1.bf16.msra.mxu0 0
      %2203 = vmatprep.subr.bf16.mxu0 0
      %2204 = vmatpush1.bf16.msra.mxu0 0
      %2205 = vmatprep.subr.bf16.mxu0 0
      %2206 = vmatpush1.bf16.msra.mxu0 0
      %2207 = vmatprep.subr.bf16.mxu0 0
      %2208 = vmatpush1.bf16.msra.mxu0 0
      %2209 = vmatprep.subr.bf16.mxu0 0
      %2210 = vmatpush1.bf16.msra.mxu0 0
      %2211 = vmatprep.subr.bf16.mxu0 0
      %2212 = vmatpush1.bf16.msra.mxu0 0
      %2213 = vmatprep.subr.bf16.mxu0 0
      %2214 = vmatpush1.bf16.msra.mxu0 0
      %2215 = vmatprep.subr.bf16.mxu0 0
      %2216 = vmatpush1.bf16.msra.mxu0 0
      %2217 = vmatprep.subr.bf16.mxu0 0
      %2218 = vmatpush1.bf16.msra.mxu0 0
      %2219 = vmatprep.mubr.bf16.mxu0 0
      %2220 = vmatmul.mubr.bf16.gmra.mrb[0].mxu0 %v1060
      %v2221 = vpop.f32.mrb[0].mxu0
      %v2222 = vadd.f32 %v2173, %v2221
      %v2223 = vpop.f32.mrb[0].mxu0
      %v2224 = vpop.f32.mrb[0].mxu0
      %v2225 = vpop.f32.mrb[0].mxu0
      %2226 = vdwg.mxu0
      %s2227 = scalar_lea.vmem %s19, 48
      %v2228 = vld [vmem:[%s2227] sm:$0xf]
      %v2229 = vld [vmem:[%s2227 + $0x4] sm:$0xf]
      %v2230 = vld [vmem:[%s2227 + $0x8] sm:$0xf]
      %v2231 = vld [vmem:[%s2227 + $0xc] sm:$0xf]
      %s2232 = scalar_lea.vmem %s21, 3
      %v2233 = vld [vmem:[%s2232] sm:$0x1]
      %v2235 = vlaneseq
      %v2236 = vshrl.u32 %v2235, 7
      %v2237 = vsub.s32 0, %v2236
      %v2238 = vrot.slane %v2233, %v2237
      %v2244 = vunpack.c.l.b16 %v2228
      %v2245 = vunpack.c.l.b16 %v2229
      %v2246 = vunpack.c.l.b16 %v2230
      %v2247 = vunpack.c.l.b16 %v2231
      %v2248 = vpack.c.b16 %v2245, %v2244
      %v2249 = vpack.c.b16 %v2247, %v2246
      %2252 = vmatprep.subr.bf16.mxu0 0
      %2253 = vmatpush1.bf16.msra.mxu0 %v2248
      %2254 = vmatprep.subr.bf16.mxu0 0
      %2255 = vmatpush1.bf16.msra.mxu0 %v2249
      %2256 = vmatprep.subr.bf16.mxu0 0
      %2257 = vmatpush1.bf16.msra.mxu0 0
      %2258 = vmatprep.subr.bf16.mxu0 0
      %2259 = vmatpush1.bf16.msra.mxu0 0
      %2260 = vmatprep.subr.bf16.mxu0 0
      %2261 = vmatpush1.bf16.msra.mxu0 0
      %2262 = vmatprep.subr.bf16.mxu0 0
      %2263 = vmatpush1.bf16.msra.mxu0 0
      %2264 = vmatprep.subr.bf16.mxu0 0
      %2265 = vmatpush1.bf16.msra.mxu0 0
      %2266 = vmatprep.subr.bf16.mxu0 0
      %2267 = vmatpush1.bf16.msra.mxu0 0
      %2268 = vmatprep.subr.bf16.mxu0 0
      %2269 = vmatpush1.bf16.msra.mxu0 0
      %2270 = vmatprep.subr.bf16.mxu0 0
      %2271 = vmatpush1.bf16.msra.mxu0 0
      %2272 = vmatprep.subr.bf16.mxu0 0
      %2273 = vmatpush1.bf16.msra.mxu0 0
      %2274 = vmatprep.subr.bf16.mxu0 0
      %2275 = vmatpush1.bf16.msra.mxu0 0
      %2276 = vmatprep.subr.bf16.mxu0 0
      %2277 = vmatpush1.bf16.msra.mxu0 0
      %2278 = vmatprep.subr.bf16.mxu0 0
      %2279 = vmatpush1.bf16.msra.mxu0 0
      %2280 = vmatprep.subr.bf16.mxu0 0
      %2281 = vmatpush1.bf16.msra.mxu0 0
      %2282 = vmatprep.subr.bf16.mxu0 0
      %2283 = vmatpush1.bf16.msra.mxu0 0
      %2284 = vmatprep.mubr.bf16.mxu0 0
      %2285 = vmatmul.mubr.bf16.gmra.mrb[0].mxu0 %v1060
      %v2286 = vpop.f32.mrb[0].mxu0
      %v2287 = vadd.f32 %v2238, %v2286
      %v2288 = vpop.f32.mrb[0].mxu0
      %v2289 = vpop.f32.mrb[0].mxu0
      %v2290 = vpop.f32.mrb[0].mxu0
      %2291 = vdwg.mxu0
      %v2292 = vpack.c.bf16 %v2161, %v2161
      %v2293 = vpack.c.bf16 %v2222, %v2222
      %v2295 = vsel %vm1231, %v2292, 0
      %v2298 = vsel %vm1231, %v2293, 0
      %2300 = vmatprep.subr.bf16.mxu0 0
      %2301 = vmatpush1.bf16.xpose.msra.mxu0 %v2298
      %2302 = vmatprep.subr.bf16.mxu0 0
      %2303 = vmatpush1.bf16.xpose.msra.mxu0 0
      %2304 = vmatprep.subr.bf16.mxu0 0
      %2305 = vmatpush1.bf16.xpose.msra.mxu0 0
      %2306 = vmatprep.subr.bf16.mxu0 0
      %2307 = vmatpush1.bf16.xpose.msra.mxu0 0
      %2308 = vmatprep.subr.bf16.mxu0 0
      %2309 = vmatpush1.bf16.xpose.msra.mxu0 0
      %2310 = vmatprep.subr.bf16.mxu0 0
      %2311 = vmatpush1.bf16.xpose.msra.mxu0 0
      %2312 = vmatprep.subr.bf16.mxu0 0
      %2313 = vmatpush1.bf16.xpose.msra.mxu0 0
      %2314 = vmatprep.subr.bf16.mxu0 0
      %2315 = vmatpush1.bf16.xpose.msra.mxu0 0
      %2316 = vmatprep.subr.bf16.mxu0 0
      %2317 = vmatpush1.bf16.xpose.msra.mxu0 0
      %2318 = vmatprep.subr.bf16.mxu0 0
      %2319 = vmatpush1.bf16.xpose.msra.mxu0 0
      %2320 = vmatprep.subr.bf16.mxu0 0
      %2321 = vmatpush1.bf16.xpose.msra.mxu0 0
      %2322 = vmatprep.subr.bf16.mxu0 0
      %2323 = vmatpush1.bf16.xpose.msra.mxu0 0
      %2324 = vmatprep.subr.bf16.mxu0 0
      %2325 = vmatpush1.bf16.xpose.msra.mxu0 0
      %2326 = vmatprep.subr.bf16.mxu0 0
      %2327 = vmatpush1.bf16.xpose.msra.mxu0 0
      %2328 = vmatprep.subr.bf16.mxu0 0
      %2329 = vmatpush1.bf16.xpose.msra.mxu0 0
      %2330 = vmatprep.subr.bf16.mxu0 0
      %2331 = vmatpush1.bf16.xpose.msra.mxu0 0
      %2332 = vmatprep.mubr.bf16.mxu0 0
      %2333 = vmatmul.mubr.bf16.gmra.mrb[0].mxu0 %v2295
      %v2334 = vpop.f32.mrb[0].mxu0
      %v2335 = vadd.f32 %v1034, %v2334
      %v2336 = vpop.f32.mrb[0].mxu0
      %v2337 = vpop.f32.mrb[0].mxu0
      %v2338 = vpop.f32.mrb[0].mxu0
      %2339 = vdwg.mxu0
      %v2340 = vsel %vm1278, %v2335, -inf
      %2341 = vmax.xlane.f32.xlu0 %v2340
      %v2342 = vpop.xlane.xlu0 %2341
      %v2343 = vsub.f32 %v2335, %v2342
      %v2344 = vmul.f32 %v2343, 1.442695
      %v2345 = vpow.pop %v2344
      %v2346 = vsel %vm1278, %v2345, 0.0
      %2347 = vadd.xlane.f32.xlu0 %v2346
      %v2348 = vpop.xlane.xlu0 %2347
      %v2349 = vrcp.pop %v2348
      %v2350 = vmul.f32 %v2345, %v2349
      %v2351 = vpack.c.bf16 %v2350, %v2350
      %v2352 = vpack.c.bf16 %v2287, %v2287
      %v2354 = vsel %vm1292, %v2351, 0
      %v2357 = vand.u32 %v2352, %v1299
      %2359 = vmatprep.subr.bf16.mxu0 0
      %2360 = vmatpush1.bf16.msra.mxu0 %v2357
      %2361 = vmatprep.subr.bf16.mxu0 0
      %2362 = vmatpush1.bf16.msra.mxu0 0
      %2363 = vmatprep.subr.bf16.mxu0 0
      %2364 = vmatpush1.bf16.msra.mxu0 0
      %2365 = vmatprep.subr.bf16.mxu0 0
      %2366 = vmatpush1.bf16.msra.mxu0 0
      %2367 = vmatprep.subr.bf16.mxu0 0
      %2368 = vmatpush1.bf16.msra.mxu0 0
      %2369 = vmatprep.subr.bf16.mxu0 0
      %2370 = vmatpush1.bf16.msra.mxu0 0
      %2371 = vmatprep.subr.bf16.mxu0 0
      %2372 = vmatpush1.bf16.msra.mxu0 0
      %2373 = vmatprep.subr.bf16.mxu0 0
      %2374 = vmatpush1.bf16.msra.mxu0 0
      %2375 = vmatprep.subr.bf16.mxu0 0
      %2376 = vmatpush1.bf16.msra.mxu0 0
      %2377 = vmatprep.subr.bf16.mxu0 0
      %2378 = vmatpush1.bf16.msra.mxu0 0
      %2379 = vmatprep.subr.bf16.mxu0 0
      %2380 = vmatpush1.bf16.msra.mxu0 0
      %2381 = vmatprep.subr.bf16.mxu0 0
      %2382 = vmatpush1.bf16.msra.mxu0 0
      %2383 = vmatprep.subr.bf16.mxu0 0
      %2384 = vmatpush1.bf16.msra.mxu0 0
      %2385 = vmatprep.subr.bf16.mxu0 0
      %2386 = vmatpush1.bf16.msra.mxu0 0
      %2387 = vmatprep.subr.bf16.mxu0 0
      %2388 = vmatpush1.bf16.msra.mxu0 0
      %2389 = vmatprep.subr.bf16.mxu0 0
      %2390 = vmatpush1.bf16.msra.mxu0 0
      %2391 = vmatprep.mubr.bf16.mxu0 0
      %2392 = vmatmul.mubr.bf16.gmra.mrb[0].mxu0 %v2354
      %v2393 = vpop.f32.mrb[0].mxu0
      %v2394 = vadd.f32 0.0, %v2393
      %v2395 = vpop.f32.mrb[0].mxu0
      %v2396 = vpop.f32.mrb[0].mxu0
      %v2397 = vpop.f32.mrb[0].mxu0
      %2398 = vdwg.mxu0
      %v2399 = vpack.c.bf16 %v2394, %v2394
      %s2400 = scalar_lea.vmem %s23, 12
      %v2401 = vld [vmem:[%s2400] sm:$0xf]
      %v2403 = vsel %vm1231, %v2399, 0
      %v2406 = vsel %vm1297, %v2401, 0
      %2408 = vmatprep.subr.bf16.mxu0 0
      %2409 = vmatpush1.bf16.msra.mxu0 %v2406
      %2410 = vmatprep.subr.bf16.mxu0 0
      %2411 = vmatpush1.bf16.msra.mxu0 0
      %2412 = vmatprep.subr.bf16.mxu0 0
      %2413 = vmatpush1.bf16.msra.mxu0 0
      %2414 = vmatprep.subr.bf16.mxu0 0
      %2415 = vmatpush1.bf16.msra.mxu0 0
      %2416 = vmatprep.subr.bf16.mxu0 0
      %2417 = vmatpush1.bf16.msra.mxu0 0
      %2418 = vmatprep.subr.bf16.mxu0 0
      %2419 = vmatpush1.bf16.msra.mxu0 0
      %2420 = vmatprep.subr.bf16.mxu0 0
      %2421 = vmatpush1.bf16.msra.mxu0 0
      %2422 = vmatprep.subr.bf16.mxu0 0
      %2423 = vmatpush1.bf16.msra.mxu0 0
      %2424 = vmatprep.subr.bf16.mxu0 0
      %2425 = vmatpush1.bf16.msra.mxu0 0
      %2426 = vmatprep.subr.bf16.mxu0 0
      %2427 = vmatpush1.bf16.msra.mxu0 0
      %2428 = vmatprep.subr.bf16.mxu0 0
      %2429 = vmatpush1.bf16.msra.mxu0 0
      %2430 = vmatprep.subr.bf16.mxu0 0
      %2431 = vmatpush1.bf16.msra.mxu0 0
      %2432 = vmatprep.subr.bf16.mxu0 0
      %2433 = vmatpush1.bf16.msra.mxu0 0
      %2434 = vmatprep.subr.bf16.mxu0 0
      %2435 = vmatpush1.bf16.msra.mxu0 0
      %2436 = vmatprep.subr.bf16.mxu0 0
      %2437 = vmatpush1.bf16.msra.mxu0 0
      %2438 = vmatprep.subr.bf16.mxu0 0
      %2439 = vmatpush1.bf16.msra.mxu0 0
      %2440 = vmatprep.mubr.bf16.mxu0 0
      %2441 = vmatmul.mubr.bf16.gmra.mrb[0].mxu0 %v2403
      %v2442 = vpop.f32.mrb[0].mxu0
      %v2443 = vadd.f32 0.0, %v2442
      %v2444 = vpop.f32.mrb[0].mxu0
      %v2445 = vpop.f32.mrb[0].mxu0
      %v2446 = vpop.f32.mrb[0].mxu0
      %2447 = vdwg.mxu0
      %v2448 = vadd.f32 %v2095, %v2443
      %v2449 = vld [vmem:[%s25] sm:$0x1]
      %v2451 = vlaneseq
      %v2452 = vshrl.u32 %v2451, 7
      %v2453 = vsub.s32 0, %v2452
      %v2454 = vrot.slane %v2449, %v2453
      %v2456 = vadd.f32 %v2448, %v2454
      %v2457 = vadd.f32 %v2456, %v1018
      %vm2458 = vcmask 260096
      %v2459 = vsel %vm2458, %v2457, 0.0
      %2460 = vadd.xlane.f32.xlu0 %v2459
      %v2461 = vpop.xlane.xlu0 %2460
      %v2462 = vrcp.pop 32.0
      %v2463 = vmul.f32 %v2461, %v2462
      %v2464 = vsub.f32 %v2457, %v2463
      %v2465 = vmul.f32 %v2464, %v2464
      %v2466 = vsel %vm2458, %v2465, 0.0
      %2467 = vadd.xlane.f32.xlu0 %v2466
      %v2468 = vpop.xlane.xlu0 %2467
      %v2469 = vmul.f32 %v2468, %v2462
      %v2470 = vadd.f32 %v2469, 1e-05
      %v2471 = vrsqrt.pop %v2470
      %v2472 = vmul.f32 %v2464, %v2471
      %v2473 = vld [vmem:[%s27] sm:$0x1]
      %v2475 = vlaneseq
      %v2476 = vshrl.u32 %v2475, 7
      %v2477 = vsub.s32 0, %v2476
      %v2478 = vrot.slane %v2473, %v2477
      %v2480 = vmul.f32 %v2472, %v2478
      %v2481 = vld [vmem:[%s29] sm:$0x1]
      %v2483 = vlaneseq
      %v2484 = vshrl.u32 %v2483, 7
      %v2485 = vsub.s32 0, %v2484
      %v2486 = vrot.slane %v2481, %v2485
      %v2488 = vadd.f32 %v2480, %v2486
      %2490 = vset.pattern.permute.xlu0 0
      %2491 = vperm.xlu0 %2490, %v1020
      %v2492 = vpop.permute.xlu0 %2491
      %v2494 = vmul.f32 %v2488, %v2492
      %v2495 = vld [vmem:[%s1007] sm:$0x1]
      %v2496 = vpack.c.bf16 %v2494, %v2494
      %v2497 = vld [vmem:[%s31] sm:$0xf]
      %v2498 = vld [vmem:[%s31 + $0x4] sm:$0xf]
      %v2499 = vld [vmem:[%s31 + $0x8] sm:$0xf]
      %v2500 = vld [vmem:[%s31 + $0xc] sm:$0xf]
      %v2501 = vld [vmem:[%s33] sm:$0x1]
      %v2503 = vlaneseq
      %v2504 = vshrl.u32 %v2503, 7
      %v2505 = vsub.s32 0, %v2504
      %v2506 = vrot.slane %v2501, %v2505
      %v2512 = vunpack.c.l.b16 %v2497
      %v2513 = vunpack.c.l.b16 %v2498
      %v2514 = vunpack.c.l.b16 %v2499
      %v2515 = vunpack.c.l.b16 %v2500
      %v2516 = vpack.c.b16 %v2513, %v2512
      %v2517 = vpack.c.b16 %v2515, %v2514
      %v2521 = vsel %vm1058, %v2496, 0
      %2523 = vmatprep.subr.bf16.mxu0 0
      %2524 = vmatpush1.bf16.msra.mxu0 %v2516
      %2525 = vmatprep.subr.bf16.mxu0 0
      %2526 = vmatpush1.bf16.msra.mxu0 %v2517
      %2527 = vmatprep.subr.bf16.mxu0 0
      %2528 = vmatpush1.bf16.msra.mxu0 0
      %2529 = vmatprep.subr.bf16.mxu0 0
      %2530 = vmatpush1.bf16.msra.mxu0 0
      %2531 = vmatprep.subr.bf16.mxu0 0
      %2532 = vmatpush1.bf16.msra.mxu0 0
      %2533 = vmatprep.subr.bf16.mxu0 0
      %2534 = vmatpush1.bf16.msra.mxu0 0
      %2535 = vmatprep.subr.bf16.mxu0 0
      %2536 = vmatpush1.bf16.msra.mxu0 0
      %2537 = vmatprep.subr.bf16.mxu0 0
      %2538 = vmatpush1.bf16.msra.mxu0 0
      %2539 = vmatprep.subr.bf16.mxu0 0
      %2540 = vmatpush1.bf16.msra.mxu0 0
      %2541 = vmatprep.subr.bf16.mxu0 0
      %2542 = vmatpush1.bf16.msra.mxu0 0
      %2543 = vmatprep.subr.bf16.mxu0 0
      %2544 = vmatpush1.bf16.msra.mxu0 0
      %2545 = vmatprep.subr.bf16.mxu0 0
      %2546 = vmatpush1.bf16.msra.mxu0 0
      %2547 = vmatprep.subr.bf16.mxu0 0
      %2548 = vmatpush1.bf16.msra.mxu0 0
      %2549 = vmatprep.subr.bf16.mxu0 0
      %2550 = vmatpush1.bf16.msra.mxu0 0
      %2551 = vmatprep.subr.bf16.mxu0 0
      %2552 = vmatpush1.bf16.msra.mxu0 0
      %2553 = vmatprep.subr.bf16.mxu0 0
      %2554 = vmatpush1.bf16.msra.mxu0 0
      %2555 = vmatprep.mubr.bf16.mxu0 0
      %2556 = vmatmul.mubr.bf16.gmra.mrb[0].mxu0 %v2521
      %v2557 = vpop.f32.mrb[0].mxu0
      %v2558 = vadd.f32 %v2506, %v2557
      %v2559 = vpop.f32.mrb[0].mxu0
      %v2560 = vpop.f32.mrb[0].mxu0
      %v2561 = vpop.f32.mrb[0].mxu0
      %2562 = vdwg.mxu0
      %v2563 = vmul.f32 %v2558, 0.35355338
      %v2564 = vld [vmem:[%s35] sm:$0xf]
      %v2565 = vld [vmem:[%s35 + $0x4] sm:$0xf]
      %v2566 = vld [vmem:[%s35 + $0x8] sm:$0xf]
      %v2567 = vld [vmem:[%s35 + $0xc] sm:$0xf]
      %v2568 = vld [vmem:[%s37] sm:$0x1]
      %v2570 = vlaneseq
      %v2571 = vshrl.u32 %v2570, 7
      %v2572 = vsub.s32 0, %v2571
      %v2573 = vrot.slane %v2568, %v2572
      %v2579 = vunpack.c.l.b16 %v2564
      %v2580 = vunpack.c.l.b16 %v2565
      %v2581 = vunpack.c.l.b16 %v2566
      %v2582 = vunpack.c.l.b16 %v2567
      %v2583 = vpack.c.b16 %v2580, %v2579
      %v2584 = vpack.c.b16 %v2582, %v2581
      %v2588 = vsel %vm1058, %v1019, 0
      %2590 = vmatprep.subr.bf16.mxu0 0
      %2591 = vmatpush1.bf16.msra.mxu0 %v2583
      %2592 = vmatprep.subr.bf16.mxu0 0
      %2593 = vmatpush1.bf16.msra.mxu0 %v2584
      %2594 = vmatprep.subr.bf16.mxu0 0
      %2595 = vmatpush1.bf16.msra.mxu0 0
      %2596 = vmatprep.subr.bf16.mxu0 0
      %2597 = vmatpush1.bf16.msra.mxu0 0
      %2598 = vmatprep.subr.bf16.mxu0 0
      %2599 = vmatpush1.bf16.msra.mxu0 0
      %2600 = vmatprep.subr.bf16.mxu0 0
      %2601 = vmatpush1.bf16.msra.mxu0 0
      %2602 = vmatprep.subr.bf16.mxu0 0
      %2603 = vmatpush1.bf16.msra.mxu0 0
      %2604 = vmatprep.subr.bf16.mxu0 0
      %2605 = vmatpush1.bf16.msra.mxu0 0
      %2606 = vmatprep.subr.bf16.mxu0 0
      %2607 = vmatpush1.bf16.msra.mxu0 0
      %2608 = vmatprep.subr.bf16.mxu0 0
      %2609 = vmatpush1.bf16.msra.mxu0 0
      %2610 = vmatprep.subr.bf16.mxu0 0
      %2611 = vmatpush1.bf16.msra.mxu0 0
      %2612 = vmatprep.subr.bf16.mxu0 0
      %2613 = vmatpush1.bf16.msra.mxu0 0
      %2614 = vmatprep.subr.bf16.mxu0 0
      %2615 = vmatpush1.bf16.msra.mxu0 0
      %2616 = vmatprep.subr.bf16.mxu0 0
      %2617 = vmatpush1.bf16.msra.mxu0 0
      %2618 = vmatprep.subr.bf16.mxu0 0
      %2619 = vmatpush1.bf16.msra.mxu0 0
      %2620 = vmatprep.subr.bf16.mxu0 0
      %2621 = vmatpush1.bf16.msra.mxu0 0
      %2622 = vmatprep.mubr.bf16.mxu0 0
      %2623 = vmatmul.mubr.bf16.gmra.mrb[0].mxu0 %v2588
      %v2624 = vpop.f32.mrb[0].mxu0
      %v2625 = vadd.f32 %v2573, %v2624
      %v2626 = vpop.f32.mrb[0].mxu0
      %v2627 = vpop.f32.mrb[0].mxu0
      %v2628 = vpop.f32.mrb[0].mxu0
      %2629 = vdwg.mxu0
      %v2630 = vld [vmem:[%s39] sm:$0xf]
      %v2631 = vld [vmem:[%s39 + $0x4] sm:$0xf]
      %v2632 = vld [vmem:[%s39 + $0x8] sm:$0xf]
      %v2633 = vld [vmem:[%s39 + $0xc] sm:$0xf]
      %v2634 = vld [vmem:[%s41] sm:$0x1]
      %v2636 = vlaneseq
      %v2637 = vshrl.u32 %v2636, 7
      %v2638 = vsub.s32 0, %v2637
      %v2639 = vrot.slane %v2634, %v2638
      %v2645 = vunpack.c.l.b16 %v2630
      %v2646 = vunpack.c.l.b16 %v2631
      %v2647 = vunpack.c.l.b16 %v2632
      %v2648 = vunpack.c.l.b16 %v2633
      %v2649 = vpack.c.b16 %v2646, %v2645
      %v2650 = vpack.c.b16 %v2648, %v2647
      %2653 = vmatprep.subr.bf16.mxu0 0
      %2654 = vmatpush1.bf16.msra.mxu0 %v2649
      %2655 = vmatprep.subr.bf16.mxu0 0
      %2656 = vmatpush1.bf16.msra.mxu0 %v2650
      %2657 = vmatprep.subr.bf16.mxu0 0
      %2658 = vmatpush1.bf16.msra.mxu0 0
      %2659 = vmatprep.subr.bf16.mxu0 0
      %2660 = vmatpush1.bf16.msra.mxu0 0
      %2661 = vmatprep.subr.bf16.mxu0 0
      %2662 = vmatpush1.bf16.msra.mxu0 0
      %2663 = vmatprep.subr.bf16.mxu0 0
      %2664 = vmatpush1.bf16.msra.mxu0 0
      %2665 = vmatprep.subr.bf16.mxu0 0
      %2666 = vmatpush1.bf16.msra.mxu0 0
      %2667 = vmatprep.subr.bf16.mxu0 0
      %2668 = vmatpush1.bf16.msra.mxu0 0
      %2669 = vmatprep.subr.bf16.mxu0 0
      %2670 = vmatpush1.bf16.msra.mxu0 0
      %2671 = vmatprep.subr.bf16.mxu0 0
      %2672 = vmatpush1.bf16.msra.mxu0 0
      %2673 = vmatprep.subr.bf16.mxu0 0
      %2674 = vmatpush1.bf16.msra.mxu0 0
      %2675 = vmatprep.subr.bf16.mxu0 0
      %2676 = vmatpush1.bf16.msra.mxu0 0
      %2677 = vmatprep.subr.bf16.mxu0 0
      %2678 = vmatpush1.bf16.msra.mxu0 0
      %2679 = vmatprep.subr.bf16.mxu0 0
      %2680 = vmatpush1.bf16.msra.mxu0 0
      %2681 = vmatprep.subr.bf16.mxu0 0
      %2682 = vmatpush1.bf16.msra.mxu0 0
      %2683 = vmatprep.subr.bf16.mxu0 0
      %2684 = vmatpush1.bf16.msra.mxu0 0
      %2685 = vmatprep.mubr.bf16.mxu0 0
      %2686 = vmatmul.mubr.bf16.gmra.mrb[0].mxu0 %v2588
      %v2687 = vpop.f32.mrb[0].mxu0
      %v2688 = vadd.f32 %v2639, %v2687
      %v2689 = vpop.f32.mrb[0].mxu0
      %v2690 = vpop.f32.mrb[0].mxu0
      %v2691 = vpop.f32.mrb[0].mxu0
      %2692 = vdwg.mxu0
      %v2693 = vpack.c.bf16 %v2563, %v2563
      %v2694 = vpack.c.bf16 %v2625, %v2625
      %v2696 = vlaneseq
      %v2697 = vshrl.u32 %v2696, 7
      %v2698 = vsub.s32 0, %v2697
      %v2699 = vrot.slane %v2495, %v2698
      %v2702 = vsel %vm1231, %v2693, 0
      %v2705 = vsel %vm1231, %v2694, 0
      %2707 = vmatprep.subr.bf16.mxu0 0
      %2708 = vmatpush1.bf16.xpose.msra.mxu0 %v2705
      %2709 = vmatprep.subr.bf16.mxu0 0
      %2710 = vmatpush1.bf16.xpose.msra.mxu0 0
      %2711 = vmatprep.subr.bf16.mxu0 0
      %2712 = vmatpush1.bf16.xpose.msra.mxu0 0
      %2713 = vmatprep.subr.bf16.mxu0 0
      %2714 = vmatpush1.bf16.xpose.msra.mxu0 0
      %2715 = vmatprep.subr.bf16.mxu0 0
      %2716 = vmatpush1.bf16.xpose.msra.mxu0 0
      %2717 = vmatprep.subr.bf16.mxu0 0
      %2718 = vmatpush1.bf16.xpose.msra.mxu0 0
      %2719 = vmatprep.subr.bf16.mxu0 0
      %2720 = vmatpush1.bf16.xpose.msra.mxu0 0
      %2721 = vmatprep.subr.bf16.mxu0 0
      %2722 = vmatpush1.bf16.xpose.msra.mxu0 0
      %2723 = vmatprep.subr.bf16.mxu0 0
      %2724 = vmatpush1.bf16.xpose.msra.mxu0 0
      %2725 = vmatprep.subr.bf16.mxu0 0
      %2726 = vmatpush1.bf16.xpose.msra.mxu0 0
      %2727 = vmatprep.subr.bf16.mxu0 0
      %2728 = vmatpush1.bf16.xpose.msra.mxu0 0
      %2729 = vmatprep.subr.bf16.mxu0 0
      %2730 = vmatpush1.bf16.xpose.msra.mxu0 0
      %2731 = vmatprep.subr.bf16.mxu0 0
      %2732 = vmatpush1.bf16.xpose.msra.mxu0 0
      %2733 = vmatprep.subr.bf16.mxu0 0
      %2734 = vmatpush1.bf16.xpose.msra.mxu0 0
      %2735 = vmatprep.subr.bf16.mxu0 0
      %2736 = vmatpush1.bf16.xpose.msra.mxu0 0
      %2737 = vmatprep.subr.bf16.mxu0 0
      %2738 = vmatpush1.bf16.xpose.msra.mxu0 0
      %2739 = vmatprep.mubr.bf16.mxu0 0
      %2740 = vmatmul.mubr.bf16.gmra.mrb[0].mxu0 %v2702
      %v2741 = vpop.f32.mrb[0].mxu0
      %v2742 = vadd.f32 %v2699, %v2741
      %v2743 = vpop.f32.mrb[0].mxu0
      %v2744 = vpop.f32.mrb[0].mxu0
      %v2745 = vpop.f32.mrb[0].mxu0
      %2746 = vdwg.mxu0
      %vm2747 = vcmask 63488
      %v2748 = vsel %vm2747, %v2742, -inf
      %2749 = vmax.xlane.f32.xlu0 %v2748
      %v2750 = vpop.xlane.xlu0 %2749
      %v2751 = vsub.f32 %v2742, %v2750
      %v2752 = vmul.f32 %v2751, 1.442695
      %v2753 = vpow.pop %v2752
      %v2754 = vsel %vm2747, %v2753, 0.0
      %2755 = vadd.xlane.f32.xlu0 %v2754
      %v2756 = vpop.xlane.xlu0 %2755
      %v2757 = vrcp.pop %v2756
      %v2758 = vmul.f32 %v2753, %v2757
      %v2759 = vpack.c.bf16 %v2758, %v2758
      %v2760 = vpack.c.bf16 %v2688, %v2688
      %v2762 = vsel %vm1231, %v2759, 0
      %v2765 = vsel %vm1297, %v2760, 0
      %2767 = vmatprep.subr.bf16.mxu0 0
      %2768 = vmatpush1.bf16.msra.mxu0 %v2765
      %2769 = vmatprep.subr.bf16.mxu0 0
      %2770 = vmatpush1.bf16.msra.mxu0 0
      %2771 = vmatprep.subr.bf16.mxu0 0
      %2772 = vmatpush1.bf16.msra.mxu0 0
      %2773 = vmatprep.subr.bf16.mxu0 0
      %2774 = vmatpush1.bf16.msra.mxu0 0
      %2775 = vmatprep.subr.bf16.mxu0 0
      %2776 = vmatpush1.bf16.msra.mxu0 0
      %2777 = vmatprep.subr.bf16.mxu0 0
      %2778 = vmatpush1.bf16.msra.mxu0 0
      %2779 = vmatprep.subr.bf16.mxu0 0
      %2780 = vmatpush1.bf16.msra.mxu0 0
      %2781 = vmatprep.subr.bf16.mxu0 0
      %2782 = vmatpush1.bf16.msra.mxu0 0
      %2783 = vmatprep.subr.bf16.mxu0 0
      %2784 = vmatpush1.bf16.msra.mxu0 0
      %2785 = vmatprep.subr.bf16.mxu0 0
      %2786 = vmatpush1.bf16.msra.mxu0 0
      %2787 = vmatprep.subr.bf16.mxu0 0
      %2788 = vmatpush1.bf16.msra.mxu0 0
      %2789 = vmatprep.subr.bf16.mxu0 0
      %2790 = vmatpush1.bf16.msra.mxu0 0
      %2791 = vmatprep.subr.bf16.mxu0 0
      %2792 = vmatpush1.bf16.msra.mxu0 0
      %2793 = vmatprep.subr.bf16.mxu0 0
      %2794 = vmatpush1.bf16.msra.mxu0 0
      %2795 = vmatprep.subr.bf16.mxu0 0
      %2796 = vmatpush1.bf16.msra.mxu0 0
      %2797 = vmatprep.subr.bf16.mxu0 0
      %2798 = vmatpush1.bf16.msra.mxu0 0
      %2799 = vmatprep.mubr.bf16.mxu0 0
      %2800 = vmatmul.mubr.bf16.gmra.mrb[0].mxu0 %v2762
      %v2801 = vpop.f32.mrb[0].mxu0
      %v2802 = vadd.f32 0.0, %v2801
      %v2803 = vpop.f32.mrb[0].mxu0
      %v2804 = vpop.f32.mrb[0].mxu0
      %v2805 = vpop.f32.mrb[0].mxu0
      %2806 = vdwg.mxu0
      %v2807 = vpack.c.bf16 %v2802, %v2802
      %v2808 = vld [vmem:[%s43] sm:$0xf]
      %s2809 = scalar_lea.vmem %s31, 16
      %v2810 = vld [vmem:[%s2809] sm:$0xf]
      %v2811 = vld [vmem:[%s2809 + $0x4] sm:$0xf]
      %v2812 = vld [vmem:[%s2809 + $0x8] sm:$0xf]
      %v2813 = vld [vmem:[%s2809 + $0xc] sm:$0xf]
      %s2814 = scalar_lea.vmem %s33, 1
      %v2815 = vld [vmem:[%s2814] sm:$0x1]
      %v2817 = vlaneseq
      %v2818 = vshrl.u32 %v2817, 7
      %v2819 = vsub.s32 0, %v2818
      %v2820 = vrot.slane %v2815, %v2819
      %v2826 = vunpack.c.l.b16 %v2810
      %v2827 = vunpack.c.l.b16 %v2811
      %v2828 = vunpack.c.l.b16 %v2812
      %v2829 = vunpack.c.l.b16 %v2813
      %v2830 = vpack.c.b16 %v2827, %v2826
      %v2831 = vpack.c.b16 %v2829, %v2828
      %2834 = vmatprep.subr.bf16.mxu0 0
      %2835 = vmatpush1.bf16.msra.mxu0 %v2830
      %2836 = vmatprep.subr.bf16.mxu0 0
      %2837 = vmatpush1.bf16.msra.mxu0 %v2831
      %2838 = vmatprep.subr.bf16.mxu0 0
      %2839 = vmatpush1.bf16.msra.mxu0 0
      %2840 = vmatprep.subr.bf16.mxu0 0
      %2841 = vmatpush1.bf16.msra.mxu0 0
      %2842 = vmatprep.subr.bf16.mxu0 0
      %2843 = vmatpush1.bf16.msra.mxu0 0
      %2844 = vmatprep.subr.bf16.mxu0 0
      %2845 = vmatpush1.bf16.msra.mxu0 0
      %2846 = vmatprep.subr.bf16.mxu0 0
      %2847 = vmatpush1.bf16.msra.mxu0 0
      %2848 = vmatprep.subr.bf16.mxu0 0
      %2849 = vmatpush1.bf16.msra.mxu0 0
      %2850 = vmatprep.subr.bf16.mxu0 0
      %2851 = vmatpush1.bf16.msra.mxu0 0
      %2852 = vmatprep.subr.bf16.mxu0 0
      %2853 = vmatpush1.bf16.msra.mxu0 0
      %2854 = vmatprep.subr.bf16.mxu0 0
      %2855 = vmatpush1.bf16.msra.mxu0 0
      %2856 = vmatprep.subr.bf16.mxu0 0
      %2857 = vmatpush1.bf16.msra.mxu0 0
      %2858 = vmatprep.subr.bf16.mxu0 0
      %2859 = vmatpush1.bf16.msra.mxu0 0
      %2860 = vmatprep.subr.bf16.mxu0 0
      %2861 = vmatpush1.bf16.msra.mxu0 0
      %2862 = vmatprep.subr.bf16.mxu0 0
      %2863 = vmatpush1.bf16.msra.mxu0 0
      %2864 = vmatprep.subr.bf16.mxu0 0
      %2865 = vmatpush1.bf16.msra.mxu0 0
      %2866 = vmatprep.mubr.bf16.mxu0 0
      %2867 = vmatmul.mubr.bf16.gmra.mrb[0].mxu0 %v2521
      %v2868 = vpop.f32.mrb[0].mxu0
      %v2869 = vadd.f32 %v2820, %v2868
      %v2870 = vpop.f32.mrb[0].mxu0
      %v2871 = vpop.f32.mrb[0].mxu0
      %v2872 = vpop.f32.mrb[0].mxu0
      %2873 = vdwg.mxu0
      %v2874 = vmul.f32 %v2869, 0.35355338
      %s2875 = scalar_lea.vmem %s35, 16
      %v2876 = vld [vmem:[%s2875] sm:$0xf]
      %v2877 = vld [vmem:[%s2875 + $0x4] sm:$0xf]
      %v2878 = vld [vmem:[%s2875 + $0x8] sm:$0xf]
      %v2879 = vld [vmem:[%s2875 + $0xc] sm:$0xf]
      %s2880 = scalar_lea.vmem %s37, 1
      %v2881 = vld [vmem:[%s2880] sm:$0x1]
      %v2883 = vlaneseq
      %v2884 = vshrl.u32 %v2883, 7
      %v2885 = vsub.s32 0, %v2884
      %v2886 = vrot.slane %v2881, %v2885
      %v2892 = vunpack.c.l.b16 %v2876
      %v2893 = vunpack.c.l.b16 %v2877
      %v2894 = vunpack.c.l.b16 %v2878
      %v2895 = vunpack.c.l.b16 %v2879
      %v2896 = vpack.c.b16 %v2893, %v2892
      %v2897 = vpack.c.b16 %v2895, %v2894
      %2900 = vmatprep.subr.bf16.mxu0 0
      %2901 = vmatpush1.bf16.msra.mxu0 %v2896
      %2902 = vmatprep.subr.bf16.mxu0 0
      %2903 = vmatpush1.bf16.msra.mxu0 %v2897
      %2904 = vmatprep.subr.bf16.mxu0 0
      %2905 = vmatpush1.bf16.msra.mxu0 0
      %2906 = vmatprep.subr.bf16.mxu0 0
      %2907 = vmatpush1.bf16.msra.mxu0 0
      %2908 = vmatprep.subr.bf16.mxu0 0
      %2909 = vmatpush1.bf16.msra.mxu0 0
      %2910 = vmatprep.subr.bf16.mxu0 0
      %2911 = vmatpush1.bf16.msra.mxu0 0
      %2912 = vmatprep.subr.bf16.mxu0 0
      %2913 = vmatpush1.bf16.msra.mxu0 0
      %2914 = vmatprep.subr.bf16.mxu0 0
      %2915 = vmatpush1.bf16.msra.mxu0 0
      %2916 = vmatprep.subr.bf16.mxu0 0
      %2917 = vmatpush1.bf16.msra.mxu0 0
      %2918 = vmatprep.subr.bf16.mxu0 0
      %2919 = vmatpush1.bf16.msra.mxu0 0
      %2920 = vmatprep.subr.bf16.mxu0 0
      %2921 = vmatpush1.bf16.msra.mxu0 0
      %2922 = vmatprep.subr.bf16.mxu0 0
      %2923 = vmatpush1.bf16.msra.mxu0 0
      %2924 = vmatprep.subr.bf16.mxu0 0
      %2925 = vmatpush1.bf16.msra.mxu0 0
      %2926 = vmatprep.subr.bf16.mxu0 0
      %2927 = vmatpush1.bf16.msra.mxu0 0
      %2928 = vmatprep.subr.bf16.mxu0 0
      %2929 = vmatpush1.bf16.msra.mxu0 0
      %2930 = vmatprep.subr.bf16.mxu0 0
      %2931 = vmatpush1.bf16.msra.mxu0 0
      %2932 = vmatprep.mubr.bf16.mxu0 0
      %2933 = vmatmul.mubr.bf16.gmra.mrb[0].mxu0 %v2588
      %v2934 = vpop.f32.mrb[0].mxu0
      %v2935 = vadd.f32 %v2886, %v2934
      %v2936 = vpop.f32.mrb[0].mxu0
      %v2937 = vpop.f32.mrb[0].mxu0
      %v2938 = vpop.f32.mrb[0].mxu0
      %2939 = vdwg.mxu0
      %s2940 = scalar_lea.vmem %s39, 16
      %v2941 = vld [vmem:[%s2940] sm:$0xf]
      %v2942 = vld [vmem:[%s2940 + $0x4] sm:$0xf]
      %v2943 = vld [vmem:[%s2940 + $0x8] sm:$0xf]
      %v2944 = vld [vmem:[%s2940 + $0xc] sm:$0xf]
      %s2945 = scalar_lea.vmem %s41, 1
      %v2946 = vld [vmem:[%s2945] sm:$0x1]
      %v2948 = vlaneseq
      %v2949 = vshrl.u32 %v2948, 7
      %v2950 = vsub.s32 0, %v2949
      %v2951 = vrot.slane %v2946, %v2950
      %v2957 = vunpack.c.l.b16 %v2941
      %v2958 = vunpack.c.l.b16 %v2942
      %v2959 = vunpack.c.l.b16 %v2943
      %v2960 = vunpack.c.l.b16 %v2944
      %v2961 = vpack.c.b16 %v2958, %v2957
      %v2962 = vpack.c.b16 %v2960, %v2959
      %2965 = vmatprep.subr.bf16.mxu0 0
      %2966 = vmatpush1.bf16.msra.mxu0 %v2961
      %2967 = vmatprep.subr.bf16.mxu0 0
      %2968 = vmatpush1.bf16.msra.mxu0 %v2962
      %2969 = vmatprep.subr.bf16.mxu0 0
      %2970 = vmatpush1.bf16.msra.mxu0 0
      %2971 = vmatprep.subr.bf16.mxu0 0
      %2972 = vmatpush1.bf16.msra.mxu0 0
      %2973 = vmatprep.subr.bf16.mxu0 0
      %2974 = vmatpush1.bf16.msra.mxu0 0
      %2975 = vmatprep.subr.bf16.mxu0 0
      %2976 = vmatpush1.bf16.msra.mxu0 0
      %2977 = vmatprep.subr.bf16.mxu0 0
      %2978 = vmatpush1.bf16.msra.mxu0 0
      %2979 = vmatprep.subr.bf16.mxu0 0
      %2980 = vmatpush1.bf16.msra.mxu0 0
      %2981 = vmatprep.subr.bf16.mxu0 0
      %2982 = vmatpush1.bf16.msra.mxu0 0
      %2983 = vmatprep.subr.bf16.mxu0 0
      %2984 = vmatpush1.bf16.msra.mxu0 0
      %2985 = vmatprep.subr.bf16.mxu0 0
      %2986 = vmatpush1.bf16.msra.mxu0 0
      %2987 = vmatprep.subr.bf16.mxu0 0
      %2988 = vmatpush1.bf16.msra.mxu0 0
      %2989 = vmatprep.subr.bf16.mxu0 0
      %2990 = vmatpush1.bf16.msra.mxu0 0
      %2991 = vmatprep.subr.bf16.mxu0 0
      %2992 = vmatpush1.bf16.msra.mxu0 0
      %2993 = vmatprep.subr.bf16.mxu0 0
      %2994 = vmatpush1.bf16.msra.mxu0 0
      %2995 = vmatprep.subr.bf16.mxu0 0
      %2996 = vmatpush1.bf16.msra.mxu0 0
      %2997 = vmatprep.mubr.bf16.mxu0 0
      %2998 = vmatmul.mubr.bf16.gmra.mrb[0].mxu0 %v2588
      %v2999 = vpop.f32.mrb[0].mxu0
      %v3000 = vadd.f32 %v2951, %v2999
      %v3001 = vpop.f32.mrb[0].mxu0
      %v3002 = vpop.f32.mrb[0].mxu0
      %v3003 = vpop.f32.mrb[0].mxu0
      %3004 = vdwg.mxu0
      %v3005 = vpack.c.bf16 %v2874, %v2874
      %v3006 = vpack.c.bf16 %v2935, %v2935
      %v3008 = vsel %vm1231, %v3005, 0
      %v3011 = vsel %vm1231, %v3006, 0
      %3013 = vmatprep.subr.bf16.mxu0 0
      %3014 = vmatpush1.bf16.xpose.msra.mxu0 %v3011
      %3015 = vmatprep.subr.bf16.mxu0 0
      %3016 = vmatpush1.bf16.xpose.msra.mxu0 0
      %3017 = vmatprep.subr.bf16.mxu0 0
      %3018 = vmatpush1.bf16.xpose.msra.mxu0 0
      %3019 = vmatprep.subr.bf16.mxu0 0
      %3020 = vmatpush1.bf16.xpose.msra.mxu0 0
      %3021 = vmatprep.subr.bf16.mxu0 0
      %3022 = vmatpush1.bf16.xpose.msra.mxu0 0
      %3023 = vmatprep.subr.bf16.mxu0 0
      %3024 = vmatpush1.bf16.xpose.msra.mxu0 0
      %3025 = vmatprep.subr.bf16.mxu0 0
      %3026 = vmatpush1.bf16.xpose.msra.mxu0 0
      %3027 = vmatprep.subr.bf16.mxu0 0
      %3028 = vmatpush1.bf16.xpose.msra.mxu0 0
      %3029 = vmatprep.subr.bf16.mxu0 0
      %3030 = vmatpush1.bf16.xpose.msra.mxu0 0
      %3031 = vmatprep.subr.bf16.mxu0 0
      %3032 = vmatpush1.bf16.xpose.msra.mxu0 0
      %3033 = vmatprep.subr.bf16.mxu0 0
      %3034 = vmatpush1.bf16.xpose.msra.mxu0 0
      %3035 = vmatprep.subr.bf16.mxu0 0
      %3036 = vmatpush1.bf16.xpose.msra.mxu0 0
      %3037 = vmatprep.subr.bf16.mxu0 0
      %3038 = vmatpush1.bf16.xpose.msra.mxu0 0
      %3039 = vmatprep.subr.bf16.mxu0 0
      %3040 = vmatpush1.bf16.xpose.msra.mxu0 0
      %3041 = vmatprep.subr.bf16.mxu0 0
      %3042 = vmatpush1.bf16.xpose.msra.mxu0 0
      %3043 = vmatprep.subr.bf16.mxu0 0
      %3044 = vmatpush1.bf16.xpose.msra.mxu0 0
      %3045 = vmatprep.mubr.bf16.mxu0 0
      %3046 = vmatmul.mubr.bf16.gmra.mrb[0].mxu0 %v3008
      %v3047 = vpop.f32.mrb[0].mxu0
      %v3048 = vadd.f32 %v2699, %v3047
      %v3049 = vpop.f32.mrb[0].mxu0
      %v3050 = vpop.f32.mrb[0].mxu0
      %v3051 = vpop.f32.mrb[0].mxu0
      %3052 = vdwg.mxu0
      %v3053 = vsel %vm2747, %v3048, -inf
      %3054 = vmax.xlane.f32.xlu0 %v3053
      %v3055 = vpop.xlane.xlu0 %3054
      %v3056 = vsub.f32 %v3048, %v3055
      %v3057 = vmul.f32 %v3056, 1.442695
      %v3058 = vpow.pop %v3057
      %v3059 = vsel %vm2747, %v3058, 0.0
      %3060 = vadd.xlane.f32.xlu0 %v3059
      %v3061 = vpop.xlane.xlu0 %3060
      %v3062 = vrcp.pop %v3061
      %v3063 = vmul.f32 %v3058, %v3062
      %v3064 = vpack.c.bf16 %v3063, %v3063
      %v3065 = vpack.c.bf16 %v3000, %v3000
      %v3067 = vsel %vm1231, %v3064, 0
      %v3070 = vsel %vm1297, %v3065, 0
      %3072 = vmatprep.subr.bf16.mxu0 0
      %3073 = vmatpush1.bf16.msra.mxu0 %v3070
      %3074 = vmatprep.subr.bf16.mxu0 0
      %3075 = vmatpush1.bf16.msra.mxu0 0
      %3076 = vmatprep.subr.bf16.mxu0 0
      %3077 = vmatpush1.bf16.msra.mxu0 0
      %3078 = vmatprep.subr.bf16.mxu0 0
      %3079 = vmatpush1.bf16.msra.mxu0 0
      %3080 = vmatprep.subr.bf16.mxu0 0
      %3081 = vmatpush1.bf16.msra.mxu0 0
      %3082 = vmatprep.subr.bf16.mxu0 0
      %3083 = vmatpush1.bf16.msra.mxu0 0
      %3084 = vmatprep.subr.bf16.mxu0 0
      %3085 = vmatpush1.bf16.msra.mxu0 0
      %3086 = vmatprep.subr.bf16.mxu0 0
      %3087 = vmatpush1.bf16.msra.mxu0 0
      %3088 = vmatprep.subr.bf16.mxu0 0
      %3089 = vmatpush1.bf16.msra.mxu0 0
      %3090 = vmatprep.subr.bf16.mxu0 0
      %3091 = vmatpush1.bf16.msra.mxu0 0
      %3092 = vmatprep.subr.bf16.mxu0 0
      %3093 = vmatpush1.bf16.msra.mxu0 0
      %3094 = vmatprep.subr.bf16.mxu0 0
      %3095 = vmatpush1.bf16.msra.mxu0 0
      %3096 = vmatprep.subr.bf16.mxu0 0
      %3097 = vmatpush1.bf16.msra.mxu0 0
      %3098 = vmatprep.subr.bf16.mxu0 0
      %3099 = vmatpush1.bf16.msra.mxu0 0
      %3100 = vmatprep.subr.bf16.mxu0 0
      %3101 = vmatpush1.bf16.msra.mxu0 0
      %3102 = vmatprep.subr.bf16.mxu0 0
      %3103 = vmatpush1.bf16.msra.mxu0 0
      %3104 = vmatprep.mubr.bf16.mxu0 0
      %3105 = vmatmul.mubr.bf16.gmra.mrb[0].mxu0 %v3067
      %v3106 = vpop.f32.mrb[0].mxu0
      %v3107 = vadd.f32 0.0, %v3106
      %v3108 = vpop.f32.mrb[0].mxu0
      %v3109 = vpop.f32.mrb[0].mxu0
      %v3110 = vpop.f32.mrb[0].mxu0
      %3111 = vdwg.mxu0
      %v3112 = vpack.c.bf16 %v3107, %v3107
      %s3113 = scalar_lea.vmem %s43, 4
      %v3114 = vld [vmem:[%s3113] sm:$0xf]
      %v3116 = vsel %vm1231, %v3112, 0
      %v3119 = vsel %vm1297, %v3114, 0
      %3121 = vmatprep.subr.bf16.mxu0 0
      %3122 = vmatpush1.bf16.msra.mxu0 %v3119
      %3123 = vmatprep.subr.bf16.mxu0 0
      %3124 = vmatpush1.bf16.msra.mxu0 0
      %3125 = vmatprep.subr.bf16.mxu0 0
      %3126 = vmatpush1.bf16.msra.mxu0 0
      %3127 = vmatprep.subr.bf16.mxu0 0
      %3128 = vmatpush1.bf16.msra.mxu0 0
      %3129 = vmatprep.subr.bf16.mxu0 0
      %3130 = vmatpush1.bf16.msra.mxu0 0
      %3131 = vmatprep.subr.bf16.mxu0 0
      %3132 = vmatpush1.bf16.msra.mxu0 0
      %3133 = vmatprep.subr.bf16.mxu0 0
      %3134 = vmatpush1.bf16.msra.mxu0 0
      %3135 = vmatprep.subr.bf16.mxu0 0
      %3136 = vmatpush1.bf16.msra.mxu0 0
      %3137 = vmatprep.subr.bf16.mxu0 0
      %3138 = vmatpush1.bf16.msra.mxu0 0
      %3139 = vmatprep.subr.bf16.mxu0 0
      %3140 = vmatpush1.bf16.msra.mxu0 0
      %3141 = vmatprep.subr.bf16.mxu0 0
      %3142 = vmatpush1.bf16.msra.mxu0 0
      %3143 = vmatprep.subr.bf16.mxu0 0
      %3144 = vmatpush1.bf16.msra.mxu0 0
      %3145 = vmatprep.subr.bf16.mxu0 0
      %3146 = vmatpush1.bf16.msra.mxu0 0
      %3147 = vmatprep.subr.bf16.mxu0 0
      %3148 = vmatpush1.bf16.msra.mxu0 0
      %3149 = vmatprep.subr.bf16.mxu0 0
      %3150 = vmatpush1.bf16.msra.mxu0 0
      %3151 = vmatprep.subr.bf16.mxu0 0
      %3152 = vmatpush1.bf16.msra.mxu0 0
      %3153 = vmatprep.mubr.bf16.mxu0 0
      %3154 = vmatmul.mubr.bf16.gmra.mrb[0].mxu0 %v3116
      %v3155 = vpop.f32.mrb[0].mxu0
      %v3156 = vadd.f32 0.0, %v3155
      %v3157 = vpop.f32.mrb[0].mxu0
      %v3158 = vpop.f32.mrb[0].mxu0
      %v3159 = vpop.f32.mrb[0].mxu0
      %3160 = vdwg.mxu0
      %v3162 = vsel %vm1231, %v2807, 0
      %v3165 = vsel %vm1297, %v2808, 0
      %3167 = vmatprep.subr.bf16.mxu0 0
      %3168 = vmatpush1.bf16.msra.mxu0 %v3165
      %3169 = vmatprep.subr.bf16.mxu0 0
      %3170 = vmatpush1.bf16.msra.mxu0 0
      %3171 = vmatprep.subr.bf16.mxu0 0
      %3172 = vmatpush1.bf16.msra.mxu0 0
      %3173 = vmatprep.subr.bf16.mxu0 0
      %3174 = vmatpush1.bf16.msra.mxu0 0
      %3175 = vmatprep.subr.bf16.mxu0 0
      %3176 = vmatpush1.bf16.msra.mxu0 0
      %3177 = vmatprep.subr.bf16.mxu0 0
      %3178 = vmatpush1.bf16.msra.mxu0 0
      %3179 = vmatprep.subr.bf16.mxu0 0
      %3180 = vmatpush1.bf16.msra.mxu0 0
      %3181 = vmatprep.subr.bf16.mxu0 0
      %3182 = vmatpush1.bf16.msra.mxu0 0
      %3183 = vmatprep.subr.bf16.mxu0 0
      %3184 = vmatpush1.bf16.msra.mxu0 0
      %3185 = vmatprep.subr.bf16.mxu0 0
      %3186 = vmatpush1.bf16.msra.mxu0 0
      %3187 = vmatprep.subr.bf16.mxu0 0
      %3188 = vmatpush1.bf16.msra.mxu0 0
      %3189 = vmatprep.subr.bf16.mxu0 0
      %3190 = vmatpush1.bf16.msra.mxu0 0
      %3191 = vmatprep.subr.bf16.mxu0 0
      %3192 = vmatpush1.bf16.msra.mxu0 0
      %3193 = vmatprep.subr.bf16.mxu0 0
      %3194 = vmatpush1.bf16.msra.mxu0 0
      %3195 = vmatprep.subr.bf16.mxu0 0
      %3196 = vmatpush1.bf16.msra.mxu0 0
      %3197 = vmatprep.subr.bf16.mxu0 0
      %3198 = vmatpush1.bf16.msra.mxu0 0
      %3199 = vmatprep.mubr.bf16.mxu0 0
      %3200 = vmatmul.mubr.bf16.gmra.mrb[0].mxu0 %v3162
      %v3201 = vpop.f32.mrb[0].mxu0
      %v3202 = vadd.f32 %v3156, %v3201
      %v3203 = vpop.f32.mrb[0].mxu0
      %v3204 = vpop.f32.mrb[0].mxu0
      %v3205 = vpop.f32.mrb[0].mxu0
      %3206 = vdwg.mxu0
      %s3207 = scalar_lea.vmem %s31, 32
      %v3208 = vld [vmem:[%s3207] sm:$0xf]
      %v3209 = vld [vmem:[%s3207 + $0x4] sm:$0xf]
      %v3210 = vld [vmem:[%s3207 + $0x8] sm:$0xf]
      %v3211 = vld [vmem:[%s3207 + $0xc] sm:$0xf]
      %s3212 = scalar_lea.vmem %s33, 2
      %v3213 = vld [vmem:[%s3212] sm:$0x1]
      %v3215 = vlaneseq
      %v3216 = vshrl.u32 %v3215, 7
      %v3217 = vsub.s32 0, %v3216
      %v3218 = vrot.slane %v3213, %v3217
      %v3224 = vunpack.c.l.b16 %v3208
      %v3225 = vunpack.c.l.b16 %v3209
      %v3226 = vunpack.c.l.b16 %v3210
      %v3227 = vunpack.c.l.b16 %v3211
      %v3228 = vpack.c.b16 %v3225, %v3224
      %v3229 = vpack.c.b16 %v3227, %v3226
      %3232 = vmatprep.subr.bf16.mxu0 0
      %3233 = vmatpush1.bf16.msra.mxu0 %v3228
      %3234 = vmatprep.subr.bf16.mxu0 0
      %3235 = vmatpush1.bf16.msra.mxu0 %v3229
      %3236 = vmatprep.subr.bf16.mxu0 0
      %3237 = vmatpush1.bf16.msra.mxu0 0
      %3238 = vmatprep.subr.bf16.mxu0 0
      %3239 = vmatpush1.bf16.msra.mxu0 0
      %3240 = vmatprep.subr.bf16.mxu0 0
      %3241 = vmatpush1.bf16.msra.mxu0 0
      %3242 = vmatprep.subr.bf16.mxu0 0
      %3243 = vmatpush1.bf16.msra.mxu0 0
      %3244 = vmatprep.subr.bf16.mxu0 0
      %3245 = vmatpush1.bf16.msra.mxu0 0
      %3246 = vmatprep.subr.bf16.mxu0 0
      %3247 = vmatpush1.bf16.msra.mxu0 0
      %3248 = vmatprep.subr.bf16.mxu0 0
      %3249 = vmatpush1.bf16.msra.mxu0 0
      %3250 = vmatprep.subr.bf16.mxu0 0
      %3251 = vmatpush1.bf16.msra.mxu0 0
      %3252 = vmatprep.subr.bf16.mxu0 0
      %3253 = vmatpush1.bf16.msra.mxu0 0
      %3254 = vmatprep.subr.bf16.mxu0 0
      %3255 = vmatpush1.bf16.msra.mxu0 0
      %3256 = vmatprep.subr.bf16.mxu0 0
      %3257 = vmatpush1.bf16.msra.mxu0 0
      %3258 = vmatprep.subr.bf16.mxu0 0
      %3259 = vmatpush1.bf16.msra.mxu0 0
      %3260 = vmatprep.subr.bf16.mxu0 0
      %3261 = vmatpush1.bf16.msra.mxu0 0
      %3262 = vmatprep.subr.bf16.mxu0 0
      %3263 = vmatpush1.bf16.msra.mxu0 0
      %3264 = vmatprep.mubr.bf16.mxu0 0
      %3265 = vmatmul.mubr.bf16.gmra.mrb[0].mxu0 %v2521
      %v3266 = vpop.f32.mrb[0].mxu0
      %v3267 = vadd.f32 %v3218, %v3266
      %v3268 = vpop.f32.mrb[0].mxu0
      %v3269 = vpop.f32.mrb[0].mxu0
      %v3270 = vpop.f32.mrb[0].mxu0
      %3271 = vdwg.mxu0
      %v3272 = vmul.f32 %v3267, 0.35355338
      %s3273 = scalar_lea.vmem %s35, 32
      %v3274 = vld [vmem:[%s3273] sm:$0xf]
      %v3275 = vld [vmem:[%s3273 + $0x4] sm:$0xf]
      %v3276 = vld [vmem:[%s3273 + $0x8] sm:$0xf]
      %v3277 = vld [vmem:[%s3273 + $0xc] sm:$0xf]
      %s3278 = scalar_lea.vmem %s37, 2
      %v3279 = vld [vmem:[%s3278] sm:$0x1]
      %v3281 = vlaneseq
      %v3282 = vshrl.u32 %v3281, 7
      %v3283 = vsub.s32 0, %v3282
      %v3284 = vrot.slane %v3279, %v3283
      %v3290 = vunpack.c.l.b16 %v3274
      %v3291 = vunpack.c.l.b16 %v3275
      %v3292 = vunpack.c.l.b16 %v3276
      %v3293 = vunpack.c.l.b16 %v3277
      %v3294 = vpack.c.b16 %v3291, %v3290
      %v3295 = vpack.c.b16 %v3293, %v3292
      %3298 = vmatprep.subr.bf16.mxu0 0
      %3299 = vmatpush1.bf16.msra.mxu0 %v3294
      %3300 = vmatprep.subr.bf16.mxu0 0
      %3301 = vmatpush1.bf16.msra.mxu0 %v3295
      %3302 = vmatprep.subr.bf16.mxu0 0
      %3303 = vmatpush1.bf16.msra.mxu0 0
      %3304 = vmatprep.subr.bf16.mxu0 0
      %3305 = vmatpush1.bf16.msra.mxu0 0
      %3306 = vmatprep.subr.bf16.mxu0 0
      %3307 = vmatpush1.bf16.msra.mxu0 0
      %3308 = vmatprep.subr.bf16.mxu0 0
      %3309 = vmatpush1.bf16.msra.mxu0 0
      %3310 = vmatprep.subr.bf16.mxu0 0
      %3311 = vmatpush1.bf16.msra.mxu0 0
      %3312 = vmatprep.subr.bf16.mxu0 0
      %3313 = vmatpush1.bf16.msra.mxu0 0
      %3314 = vmatprep.subr.bf16.mxu0 0
      %3315 = vmatpush1.bf16.msra.mxu0 0
      %3316 = vmatprep.subr.bf16.mxu0 0
      %3317 = vmatpush1.bf16.msra.mxu0 0
      %3318 = vmatprep.subr.bf16.mxu0 0
      %3319 = vmatpush1.bf16.msra.mxu0 0
      %3320 = vmatprep.subr.bf16.mxu0 0
      %3321 = vmatpush1.bf16.msra.mxu0 0
      %3322 = vmatprep.subr.bf16.mxu0 0
      %3323 = vmatpush1.bf16.msra.mxu0 0
      %3324 = vmatprep.subr.bf16.mxu0 0
      %3325 = vmatpush1.bf16.msra.mxu0 0
      %3326 = vmatprep.subr.bf16.mxu0 0
      %3327 = vmatpush1.bf16.msra.mxu0 0
      %3328 = vmatprep.subr.bf16.mxu0 0
      %3329 = vmatpush1.bf16.msra.mxu0 0
      %3330 = vmatprep.mubr.bf16.mxu0 0
      %3331 = vmatmul.mubr.bf16.gmra.mrb[0].mxu0 %v2588
      %v3332 = vpop.f32.mrb[0].mxu0
      %v3333 = vadd.f32 %v3284, %v3332
      %v3334 = vpop.f32.mrb[0].mxu0
      %v3335 = vpop.f32.mrb[0].mxu0
      %v3336 = vpop.f32.mrb[0].mxu0
      %3337 = vdwg.mxu0
      %s3338 = scalar_lea.vmem %s39, 32
      %v3339 = vld [vmem:[%s3338] sm:$0xf]
      %v3340 = vld [vmem:[%s3338 + $0x4] sm:$0xf]
      %v3341 = vld [vmem:[%s3338 + $0x8] sm:$0xf]
      %v3342 = vld [vmem:[%s3338 + $0xc] sm:$0xf]
      %s3343 = scalar_lea.vmem %s41, 2
      %v3344 = vld [vmem:[%s3343] sm:$0x1]
      %v3346 = vlaneseq
      %v3347 = vshrl.u32 %v3346, 7
      %v3348 = vsub.s32 0, %v3347
      %v3349 = vrot.slane %v3344, %v3348
      %v3355 = vunpack.c.l.b16 %v3339
      %v3356 = vunpack.c.l.b16 %v3340
      %v3357 = vunpack.c.l.b16 %v3341
      %v3358 = vunpack.c.l.b16 %v3342
      %v3359 = vpack.c.b16 %v3356, %v3355
      %v3360 = vpack.c.b16 %v3358, %v3357
      %3363 = vmatprep.subr.bf16.mxu0 0
      %3364 = vmatpush1.bf16.msra.mxu0 %v3359
      %3365 = vmatprep.subr.bf16.mxu0 0
      %3366 = vmatpush1.bf16.msra.mxu0 %v3360
      %3367 = vmatprep.subr.bf16.mxu0 0
      %3368 = vmatpush1.bf16.msra.mxu0 0
      %3369 = vmatprep.subr.bf16.mxu0 0
      %3370 = vmatpush1.bf16.msra.mxu0 0
      %3371 = vmatprep.subr.bf16.mxu0 0
      %3372 = vmatpush1.bf16.msra.mxu0 0
      %3373 = vmatprep.subr.bf16.mxu0 0
      %3374 = vmatpush1.bf16.msra.mxu0 0
      %3375 = vmatprep.subr.bf16.mxu0 0
      %3376 = vmatpush1.bf16.msra.mxu0 0
      %3377 = vmatprep.subr.bf16.mxu0 0
      %3378 = vmatpush1.bf16.msra.mxu0 0
      %3379 = vmatprep.subr.bf16.mxu0 0
      %3380 = vmatpush1.bf16.msra.mxu0 0
      %3381 = vmatprep.subr.bf16.mxu0 0
      %3382 = vmatpush1.bf16.msra.mxu0 0
      %3383 = vmatprep.subr.bf16.mxu0 0
      %3384 = vmatpush1.bf16.msra.mxu0 0
      %3385 = vmatprep.subr.bf16.mxu0 0
      %3386 = vmatpush1.bf16.msra.mxu0 0
      %3387 = vmatprep.subr.bf16.mxu0 0
      %3388 = vmatpush1.bf16.msra.mxu0 0
      %3389 = vmatprep.subr.bf16.mxu0 0
      %3390 = vmatpush1.bf16.msra.mxu0 0
      %3391 = vmatprep.subr.bf16.mxu0 0
      %3392 = vmatpush1.bf16.msra.mxu0 0
      %3393 = vmatprep.subr.bf16.mxu0 0
      %3394 = vmatpush1.bf16.msra.mxu0 0
      %3395 = vmatprep.mubr.bf16.mxu0 0
      %3396 = vmatmul.mubr.bf16.gmra.mrb[0].mxu0 %v2588
      %v3397 = vpop.f32.mrb[0].mxu0
      %v3398 = vadd.f32 %v3349, %v3397
      %v3399 = vpop.f32.mrb[0].mxu0
      %v3400 = vpop.f32.mrb[0].mxu0
      %v3401 = vpop.f32.mrb[0].mxu0
      %3402 = vdwg.mxu0
      %v3403 = vpack.c.bf16 %v3272, %v3272
      %v3404 = vpack.c.bf16 %v3333, %v3333
      %v3406 = vsel %vm1231, %v3403, 0
      %v3409 = vsel %vm1231, %v3404, 0
      %3411 = vmatprep.subr.bf16.mxu0 0
      %3412 = vmatpush1.bf16.xpose.msra.mxu0 %v3409
      %3413 = vmatprep.subr.bf16.mxu0 0
      %3414 = vmatpush1.bf16.xpose.msra.mxu0 0
      %3415 = vmatprep.subr.bf16.mxu0 0
      %3416 = vmatpush1.bf16.xpose.msra.mxu0 0
      %3417 = vmatprep.subr.bf16.mxu0 0
      %3418 = vmatpush1.bf16.xpose.msra.mxu0 0
      %3419 = vmatprep.subr.bf16.mxu0 0
      %3420 = vmatpush1.bf16.xpose.msra.mxu0 0
      %3421 = vmatprep.subr.bf16.mxu0 0
      %3422 = vmatpush1.bf16.xpose.msra.mxu0 0
      %3423 = vmatprep.subr.bf16.mxu0 0
      %3424 = vmatpush1.bf16.xpose.msra.mxu0 0
      %3425 = vmatprep.subr.bf16.mxu0 0
      %3426 = vmatpush1.bf16.xpose.msra.mxu0 0
      %3427 = vmatprep.subr.bf16.mxu0 0
      %3428 = vmatpush1.bf16.xpose.msra.mxu0 0
      %3429 = vmatprep.subr.bf16.mxu0 0
      %3430 = vmatpush1.bf16.xpose.msra.mxu0 0
      %3431 = vmatprep.subr.bf16.mxu0 0
      %3432 = vmatpush1.bf16.xpose.msra.mxu0 0
      %3433 = vmatprep.subr.bf16.mxu0 0
      %3434 = vmatpush1.bf16.xpose.msra.mxu0 0
      %3435 = vmatprep.subr.bf16.mxu0 0
      %3436 = vmatpush1.bf16.xpose.msra.mxu0 0
      %3437 = vmatprep.subr.bf16.mxu0 0
      %3438 = vmatpush1.bf16.xpose.msra.mxu0 0
      %3439 = vmatprep.subr.bf16.mxu0 0
      %3440 = vmatpush1.bf16.xpose.msra.mxu0 0
      %3441 = vmatprep.subr.bf16.mxu0 0
      %3442 = vmatpush1.bf16.xpose.msra.mxu0 0
      %3443 = vmatprep.mubr.bf16.mxu0 0
      %3444 = vmatmul.mubr.bf16.gmra.mrb[0].mxu0 %v3406
      %v3445 = vpop.f32.mrb[0].mxu0
      %v3446 = vadd.f32 %v2699, %v3445
      %v3447 = vpop.f32.mrb[0].mxu0
      %v3448 = vpop.f32.mrb[0].mxu0
      %v3449 = vpop.f32.mrb[0].mxu0
      %3450 = vdwg.mxu0
      %v3451 = vsel %vm2747, %v3446, -inf
      %3452 = vmax.xlane.f32.xlu0 %v3451
      %v3453 = vpop.xlane.xlu0 %3452
      %v3454 = vsub.f32 %v3446, %v3453
      %v3455 = vmul.f32 %v3454, 1.442695
      %v3456 = vpow.pop %v3455
      %v3457 = vsel %vm2747, %v3456, 0.0
      %3458 = vadd.xlane.f32.xlu0 %v3457
      %v3459 = vpop.xlane.xlu0 %3458
      %v3460 = vrcp.pop %v3459
      %v3461 = vmul.f32 %v3456, %v3460
      %v3462 = vpack.c.bf16 %v3461, %v3461
      %v3463 = vpack.c.bf16 %v3398, %v3398
      %v3465 = vsel %vm1231, %v3462, 0
      %v3468 = vsel %vm1297, %v3463, 0
      %3470 = vmatprep.subr.bf16.mxu0 0
      %3471 = vmatpush1.bf16.msra.mxu0 %v3468
      %3472 = vmatprep.subr.bf16.mxu0 0
      %3473 = vmatpush1.bf16.msra.mxu0 0
      %3474 = vmatprep.subr.bf16.mxu0 0
      %3475 = vmatpush1.bf16.msra.mxu0 0
      %3476 = vmatprep.subr.bf16.mxu0 0
      %3477 = vmatpush1.bf16.msra.mxu0 0
      %3478 = vmatprep.subr.bf16.mxu0 0
      %3479 = vmatpush1.bf16.msra.mxu0 0
      %3480 = vmatprep.subr.bf16.mxu0 0
      %3481 = vmatpush1.bf16.msra.mxu0 0
      %3482 = vmatprep.subr.bf16.mxu0 0
      %3483 = vmatpush1.bf16.msra.mxu0 0
      %3484 = vmatprep.subr.bf16.mxu0 0
      %3485 = vmatpush1.bf16.msra.mxu0 0
      %3486 = vmatprep.subr.bf16.mxu0 0
      %3487 = vmatpush1.bf16.msra.mxu0 0
      %3488 = vmatprep.subr.bf16.mxu0 0
      %3489 = vmatpush1.bf16.msra.mxu0 0
      %3490 = vmatprep.subr.bf16.mxu0 0
      %3491 = vmatpush1.bf16.msra.mxu0 0
      %3492 = vmatprep.subr.bf16.mxu0 0
      %3493 = vmatpush1.bf16.msra.mxu0 0
      %3494 = vmatprep.subr.bf16.mxu0 0
      %3495 = vmatpush1.bf16.msra.mxu0 0
      %3496 = vmatprep.subr.bf16.mxu0 0
      %3497 = vmatpush1.bf16.msra.mxu0 0
      %3498 = vmatprep.subr.bf16.mxu0 0
      %3499 = vmatpush1.bf16.msra.mxu0 0
      %3500 = vmatprep.subr.bf16.mxu0 0
      %3501 = vmatpush1.bf16.msra.mxu0 0
      %3502 = vmatprep.mubr.bf16.mxu0 0
      %3503 = vmatmul.mubr.bf16.gmra.mrb[0].mxu0 %v3465
      %v3504 = vpop.f32.mrb[0].mxu0
      %v3505 = vadd.f32 0.0, %v3504
      %v3506 = vpop.f32.mrb[0].mxu0
      %v3507 = vpop.f32.mrb[0].mxu0
      %v3508 = vpop.f32.mrb[0].mxu0
      %3509 = vdwg.mxu0
      %v3510 = vpack.c.bf16 %v3505, %v3505
      %s3511 = scalar_lea.vmem %s43, 8
      %v3512 = vld [vmem:[%s3511] sm:$0xf]
      %v3514 = vsel %vm1231, %v3510, 0
      %v3517 = vsel %vm1297, %v3512, 0
      %3519 = vmatprep.subr.bf16.mxu0 0
      %3520 = vmatpush1.bf16.msra.mxu0 %v3517
      %3521 = vmatprep.subr.bf16.mxu0 0
      %3522 = vmatpush1.bf16.msra.mxu0 0
      %3523 = vmatprep.subr.bf16.mxu0 0
      %3524 = vmatpush1.bf16.msra.mxu0 0
      %3525 = vmatprep.subr.bf16.mxu0 0
      %3526 = vmatpush1.bf16.msra.mxu0 0
      %3527 = vmatprep.subr.bf16.mxu0 0
      %3528 = vmatpush1.bf16.msra.mxu0 0
      %3529 = vmatprep.subr.bf16.mxu0 0
      %3530 = vmatpush1.bf16.msra.mxu0 0
      %3531 = vmatprep.subr.bf16.mxu0 0
      %3532 = vmatpush1.bf16.msra.mxu0 0
      %3533 = vmatprep.subr.bf16.mxu0 0
      %3534 = vmatpush1.bf16.msra.mxu0 0
      %3535 = vmatprep.subr.bf16.mxu0 0
      %3536 = vmatpush1.bf16.msra.mxu0 0
      %3537 = vmatprep.subr.bf16.mxu0 0
      %3538 = vmatpush1.bf16.msra.mxu0 0
      %3539 = vmatprep.subr.bf16.mxu0 0
      %3540 = vmatpush1.bf16.msra.mxu0 0
      %3541 = vmatprep.subr.bf16.mxu0 0
      %3542 = vmatpush1.bf16.msra.mxu0 0
      %3543 = vmatprep.subr.bf16.mxu0 0
      %3544 = vmatpush1.bf16.msra.mxu0 0
      %3545 = vmatprep.subr.bf16.mxu0 0
      %3546 = vmatpush1.bf16.msra.mxu0 0
      %3547 = vmatprep.subr.bf16.mxu0 0
      %3548 = vmatpush1.bf16.msra.mxu0 0
      %3549 = vmatprep.subr.bf16.mxu0 0
      %3550 = vmatpush1.bf16.msra.mxu0 0
      %3551 = vmatprep.mubr.bf16.mxu0 0
      %3552 = vmatmul.mubr.bf16.gmra.mrb[0].mxu0 %v3514
      %v3553 = vpop.f32.mrb[0].mxu0
      %v3554 = vadd.f32 0.0, %v3553
      %v3555 = vpop.f32.mrb[0].mxu0
      %v3556 = vpop.f32.mrb[0].mxu0
      %v3557 = vpop.f32.mrb[0].mxu0
      %3558 = vdwg.mxu0
      %v3559 = vadd.f32 %v3202, %v3554
      %s3560 = scalar_lea.vmem %s31, 48
      %v3561 = vld [vmem:[%s3560] sm:$0xf]
      %v3562 = vld [vmem:[%s3560 + $0x4] sm:$0xf]
      %v3563 = vld [vmem:[%s3560 + $0x8] sm:$0xf]
      %v3564 = vld [vmem:[%s3560 + $0xc] sm:$0xf]
      %s3565 = scalar_lea.vmem %s33, 3
      %v3566 = vld [vmem:[%s3565] sm:$0x1]
      %v3568 = vlaneseq
      %v3569 = vshrl.u32 %v3568, 7
      %v3570 = vsub.s32 0, %v3569
      %v3571 = vrot.slane %v3566, %v3570
      %v3577 = vunpack.c.l.b16 %v3561
      %v3578 = vunpack.c.l.b16 %v3562
      %v3579 = vunpack.c.l.b16 %v3563
      %v3580 = vunpack.c.l.b16 %v3564
      %v3581 = vpack.c.b16 %v3578, %v3577
      %v3582 = vpack.c.b16 %v3580, %v3579
      %3585 = vmatprep.subr.bf16.mxu0 0
      %3586 = vmatpush1.bf16.msra.mxu0 %v3581
      %3587 = vmatprep.subr.bf16.mxu0 0
      %3588 = vmatpush1.bf16.msra.mxu0 %v3582
      %3589 = vmatprep.subr.bf16.mxu0 0
      %3590 = vmatpush1.bf16.msra.mxu0 0
      %3591 = vmatprep.subr.bf16.mxu0 0
      %3592 = vmatpush1.bf16.msra.mxu0 0
      %3593 = vmatprep.subr.bf16.mxu0 0
      %3594 = vmatpush1.bf16.msra.mxu0 0
      %3595 = vmatprep.subr.bf16.mxu0 0
      %3596 = vmatpush1.bf16.msra.mxu0 0
      %3597 = vmatprep.subr.bf16.mxu0 0
      %3598 = vmatpush1.bf16.msra.mxu0 0
      %3599 = vmatprep.subr.bf16.mxu0 0
      %3600 = vmatpush1.bf16.msra.mxu0 0
      %3601 = vmatprep.subr.bf16.mxu0 0
      %3602 = vmatpush1.bf16.msra.mxu0 0
      %3603 = vmatprep.subr.bf16.mxu0 0
      %3604 = vmatpush1.bf16.msra.mxu0 0
      %3605 = vmatprep.subr.bf16.mxu0 0
      %3606 = vmatpush1.bf16.msra.mxu0 0
      %3607 = vmatprep.subr.bf16.mxu0 0
      %3608 = vmatpush1.bf16.msra.mxu0 0
      %3609 = vmatprep.subr.bf16.mxu0 0
      %3610 = vmatpush1.bf16.msra.mxu0 0
      %3611 = vmatprep.subr.bf16.mxu0 0
      %3612 = vmatpush1.bf16.msra.mxu0 0
      %3613 = vmatprep.subr.bf16.mxu0 0
      %3614 = vmatpush1.bf16.msra.mxu0 0
      %3615 = vmatprep.subr.bf16.mxu0 0
      %3616 = vmatpush1.bf16.msra.mxu0 0
      %3617 = vmatprep.mubr.bf16.mxu0 0
      %3618 = vmatmul.mubr.bf16.gmra.mrb[0].mxu0 %v2521
      %v3619 = vpop.f32.mrb[0].mxu0
      %v3620 = vadd.f32 %v3571, %v3619
      %v3621 = vpop.f32.mrb[0].mxu0
      %v3622 = vpop.f32.mrb[0].mxu0
      %v3623 = vpop.f32.mrb[0].mxu0
      %3624 = vdwg.mxu0
      %v3625 = vmul.f32 %v3620, 0.35355338
      %s3626 = scalar_lea.vmem %s35, 48
      %v3627 = vld [vmem:[%s3626] sm:$0xf]
      %v3628 = vld [vmem:[%s3626 + $0x4] sm:$0xf]
      %v3629 = vld [vmem:[%s3626 + $0x8] sm:$0xf]
      %v3630 = vld [vmem:[%s3626 + $0xc] sm:$0xf]
      %s3631 = scalar_lea.vmem %s37, 3
      %v3632 = vld [vmem:[%s3631] sm:$0x1]
      %v3634 = vlaneseq
      %v3635 = vshrl.u32 %v3634, 7
      %v3636 = vsub.s32 0, %v3635
      %v3637 = vrot.slane %v3632, %v3636
      %v3643 = vunpack.c.l.b16 %v3627
      %v3644 = vunpack.c.l.b16 %v3628
      %v3645 = vunpack.c.l.b16 %v3629
      %v3646 = vunpack.c.l.b16 %v3630
      %v3647 = vpack.c.b16 %v3644, %v3643
      %v3648 = vpack.c.b16 %v3646, %v3645
      %3651 = vmatprep.subr.bf16.mxu0 0
      %3652 = vmatpush1.bf16.msra.mxu0 %v3647
      %3653 = vmatprep.subr.bf16.mxu0 0
      %3654 = vmatpush1.bf16.msra.mxu0 %v3648
      %3655 = vmatprep.subr.bf16.mxu0 0
      %3656 = vmatpush1.bf16.msra.mxu0 0
      %3657 = vmatprep.subr.bf16.mxu0 0
      %3658 = vmatpush1.bf16.msra.mxu0 0
      %3659 = vmatprep.subr.bf16.mxu0 0
      %3660 = vmatpush1.bf16.msra.mxu0 0
      %3661 = vmatprep.subr.bf16.mxu0 0
      %3662 = vmatpush1.bf16.msra.mxu0 0
      %3663 = vmatprep.subr.bf16.mxu0 0
      %3664 = vmatpush1.bf16.msra.mxu0 0
      %3665 = vmatprep.subr.bf16.mxu0 0
      %3666 = vmatpush1.bf16.msra.mxu0 0
      %3667 = vmatprep.subr.bf16.mxu0 0
      %3668 = vmatpush1.bf16.msra.mxu0 0
      %3669 = vmatprep.subr.bf16.mxu0 0
      %3670 = vmatpush1.bf16.msra.mxu0 0
      %3671 = vmatprep.subr.bf16.mxu0 0
      %3672 = vmatpush1.bf16.msra.mxu0 0
      %3673 = vmatprep.subr.bf16.mxu0 0
      %3674 = vmatpush1.bf16.msra.mxu0 0
      %3675 = vmatprep.subr.bf16.mxu0 0
      %3676 = vmatpush1.bf16.msra.mxu0 0
      %3677 = vmatprep.subr.bf16.mxu0 0
      %3678 = vmatpush1.bf16.msra.mxu0 0
      %3679 = vmatprep.subr.bf16.mxu0 0
      %3680 = vmatpush1.bf16.msra.mxu0 0
      %3681 = vmatprep.subr.bf16.mxu0 0
      %3682 = vmatpush1.bf16.msra.mxu0 0
      %3683 = vmatprep.mubr.bf16.mxu0 0
      %3684 = vmatmul.mubr.bf16.gmra.mrb[0].mxu0 %v2588
      %v3685 = vpop.f32.mrb[0].mxu0
      %v3686 = vadd.f32 %v3637, %v3685
      %v3687 = vpop.f32.mrb[0].mxu0
      %v3688 = vpop.f32.mrb[0].mxu0
      %v3689 = vpop.f32.mrb[0].mxu0
      %3690 = vdwg.mxu0
      %s3691 = scalar_lea.vmem %s39, 48
      %v3692 = vld [vmem:[%s3691] sm:$0xf]
      %v3693 = vld [vmem:[%s3691 + $0x4] sm:$0xf]
      %v3694 = vld [vmem:[%s3691 + $0x8] sm:$0xf]
      %v3695 = vld [vmem:[%s3691 + $0xc] sm:$0xf]
      %s3696 = scalar_lea.vmem %s41, 3
      %v3697 = vld [vmem:[%s3696] sm:$0x1]
      %v3699 = vlaneseq
      %v3700 = vshrl.u32 %v3699, 7
      %v3701 = vsub.s32 0, %v3700
      %v3702 = vrot.slane %v3697, %v3701
      %v3708 = vunpack.c.l.b16 %v3692
      %v3709 = vunpack.c.l.b16 %v3693
      %v3710 = vunpack.c.l.b16 %v3694
      %v3711 = vunpack.c.l.b16 %v3695
      %v3712 = vpack.c.b16 %v3709, %v3708
      %v3713 = vpack.c.b16 %v3711, %v3710
      %3716 = vmatprep.subr.bf16.mxu0 0
      %3717 = vmatpush1.bf16.msra.mxu0 %v3712
      %3718 = vmatprep.subr.bf16.mxu0 0
      %3719 = vmatpush1.bf16.msra.mxu0 %v3713
      %3720 = vmatprep.subr.bf16.mxu0 0
      %3721 = vmatpush1.bf16.msra.mxu0 0
      %3722 = vmatprep.subr.bf16.mxu0 0
      %3723 = vmatpush1.bf16.msra.mxu0 0
      %3724 = vmatprep.subr.bf16.mxu0 0
      %3725 = vmatpush1.bf16.msra.mxu0 0
      %3726 = vmatprep.subr.bf16.mxu0 0
      %3727 = vmatpush1.bf16.msra.mxu0 0
      %3728 = vmatprep.subr.bf16.mxu0 0
      %3729 = vmatpush1.bf16.msra.mxu0 0
      %3730 = vmatprep.subr.bf16.mxu0 0
      %3731 = vmatpush1.bf16.msra.mxu0 0
      %3732 = vmatprep.subr.bf16.mxu0 0
      %3733 = vmatpush1.bf16.msra.mxu0 0
      %3734 = vmatprep.subr.bf16.mxu0 0
      %3735 = vmatpush1.bf16.msra.mxu0 0
      %3736 = vmatprep.subr.bf16.mxu0 0
      %3737 = vmatpush1.bf16.msra.mxu0 0
      %3738 = vmatprep.subr.bf16.mxu0 0
      %3739 = vmatpush1.bf16.msra.mxu0 0
      %3740 = vmatprep.subr.bf16.mxu0 0
      %3741 = vmatpush1.bf16.msra.mxu0 0
      %3742 = vmatprep.subr.bf16.mxu0 0
      %3743 = vmatpush1.bf16.msra.mxu0 0
      %3744 = vmatprep.subr.bf16.mxu0 0
      %3745 = vmatpush1.bf16.msra.mxu0 0
      %3746 = vmatprep.subr.bf16.mxu0 0
      %3747 = vmatpush1.bf16.msra.mxu0 0
      %3748 = vmatprep.mubr.bf16.mxu0 0
      %3749 = vmatmul.mubr.bf16.gmra.mrb[0].mxu0 %v2588
      %v3750 = vpop.f32.mrb[0].mxu0
      %v3751 = vadd.f32 %v3702, %v3750
      %v3752 = vpop.f32.mrb[0].mxu0
      %v3753 = vpop.f32.mrb[0].mxu0
      %v3754 = vpop.f32.mrb[0].mxu0
      %3755 = vdwg.mxu0
      %v3756 = vpack.c.bf16 %v3625, %v3625
      %v3757 = vpack.c.bf16 %v3686, %v3686
      %v3759 = vsel %vm1231, %v3756, 0
      %v3762 = vsel %vm1231, %v3757, 0
      %3764 = vmatprep.subr.bf16.mxu0 0
      %3765 = vmatpush1.bf16.xpose.msra.mxu0 %v3762
      %3766 = vmatprep.subr.bf16.mxu0 0
      %3767 = vmatpush1.bf16.xpose.msra.mxu0 0
      %3768 = vmatprep.subr.bf16.mxu0 0
      %3769 = vmatpush1.bf16.xpose.msra.mxu0 0
      %3770 = vmatprep.subr.bf16.mxu0 0
      %3771 = vmatpush1.bf16.xpose.msra.mxu0 0
      %3772 = vmatprep.subr.bf16.mxu0 0
      %3773 = vmatpush1.bf16.xpose.msra.mxu0 0
      %3774 = vmatprep.subr.bf16.mxu0 0
      %3775 = vmatpush1.bf16.xpose.msra.mxu0 0
      %3776 = vmatprep.subr.bf16.mxu0 0
      %3777 = vmatpush1.bf16.xpose.msra.mxu0 0
      %3778 = vmatprep.subr.bf16.mxu0 0
      %3779 = vmatpush1.bf16.xpose.msra.mxu0 0
      %3780 = vmatprep.subr.bf16.mxu0 0
      %3781 = vmatpush1.bf16.xpose.msra.mxu0 0
      %3782 = vmatprep.subr.bf16.mxu0 0
      %3783 = vmatpush1.bf16.xpose.msra.mxu0 0
      %3784 = vmatprep.subr.bf16.mxu0 0
      %3785 = vmatpush1.bf16.xpose.msra.mxu0 0
      %3786 = vmatprep.subr.bf16.mxu0 0
      %3787 = vmatpush1.bf16.xpose.msra.mxu0 0
      %3788 = vmatprep.subr.bf16.mxu0 0
      %3789 = vmatpush1.bf16.xpose.msra.mxu0 0
      %3790 = vmatprep.subr.bf16.mxu0 0
      %3791 = vmatpush1.bf16.xpose.msra.mxu0 0
      %3792 = vmatprep.subr.bf16.mxu0 0
      %3793 = vmatpush1.bf16.xpose.msra.mxu0 0
      %3794 = vmatprep.subr.bf16.mxu0 0
      %3795 = vmatpush1.bf16.xpose.msra.mxu0 0
      %3796 = vmatprep.mubr.bf16.mxu0 0
      %3797 = vmatmul.mubr.bf16.gmra.mrb[0].mxu0 %v3759
      %v3798 = vpop.f32.mrb[0].mxu0
      %v3799 = vadd.f32 %v2699, %v3798
      %v3800 = vpop.f32.mrb[0].mxu0
      %v3801 = vpop.f32.mrb[0].mxu0
      %v3802 = vpop.f32.mrb[0].mxu0
      %3803 = vdwg.mxu0
      %v3804 = vsel %vm2747, %v3799, -inf
      %3805 = vmax.xlane.f32.xlu0 %v3804
      %v3806 = vpop.xlane.xlu0 %3805
      %v3807 = vsub.f32 %v3799, %v3806
      %v3808 = vmul.f32 %v3807, 1.442695
      %v3809 = vpow.pop %v3808
      %v3810 = vsel %vm2747, %v3809, 0.0
      %3811 = vadd.xlane.f32.xlu0 %v3810
      %v3812 = vpop.xlane.xlu0 %3811
      %v3813 = vrcp.pop %v3812
      %v3814 = vmul.f32 %v3809, %v3813
      %v3815 = vpack.c.bf16 %v3814, %v3814
      %v3816 = vpack.c.bf16 %v3751, %v3751
      %v3818 = vsel %vm1231, %v3815, 0
      %v3821 = vsel %vm1297, %v3816, 0
      %3823 = vmatprep.subr.bf16.mxu0 0
      %3824 = vmatpush1.bf16.msra.mxu0 %v3821
      %3825 = vmatprep.subr.bf16.mxu0 0
      %3826 = vmatpush1.bf16.msra.mxu0 0
      %3827 = vmatprep.subr.bf16.mxu0 0
      %3828 = vmatpush1.bf16.msra.mxu0 0
      %3829 = vmatprep.subr.bf16.mxu0 0
      %3830 = vmatpush1.bf16.msra.mxu0 0
      %3831 = vmatprep.subr.bf16.mxu0 0
      %3832 = vmatpush1.bf16.msra.mxu0 0
      %3833 = vmatprep.subr.bf16.mxu0 0
      %3834 = vmatpush1.bf16.msra.mxu0 0
      %3835 = vmatprep.subr.bf16.mxu0 0
      %3836 = vmatpush1.bf16.msra.mxu0 0
      %3837 = vmatprep.subr.bf16.mxu0 0
      %3838 = vmatpush1.bf16.msra.mxu0 0
      %3839 = vmatprep.subr.bf16.mxu0 0
      %3840 = vmatpush1.bf16.msra.mxu0 0
      %3841 = vmatprep.subr.bf16.mxu0 0
      %3842 = vmatpush1.bf16.msra.mxu0 0
      %3843 = vmatprep.subr.bf16.mxu0 0
      %3844 = vmatpush1.bf16.msra.mxu0 0
      %3845 = vmatprep.subr.bf16.mxu0 0
      %3846 = vmatpush1.bf16.msra.mxu0 0
      %3847 = vmatprep.subr.bf16.mxu0 0
      %3848 = vmatpush1.bf16.msra.mxu0 0
      %3849 = vmatprep.subr.bf16.mxu0 0
      %3850 = vmatpush1.bf16.msra.mxu0 0
      %3851 = vmatprep.subr.bf16.mxu0 0
      %3852 = vmatpush1.bf16.msra.mxu0 0
      %3853 = vmatprep.subr.bf16.mxu0 0
      %3854 = vmatpush1.bf16.msra.mxu0 0
      %3855 = vmatprep.mubr.bf16.mxu0 0
      %3856 = vmatmul.mubr.bf16.gmra.mrb[0].mxu0 %v3818
      %v3857 = vpop.f32.mrb[0].mxu0
      %v3858 = vadd.f32 0.0, %v3857
      %v3859 = vpop.f32.mrb[0].mxu0
      %v3860 = vpop.f32.mrb[0].mxu0
      %v3861 = vpop.f32.mrb[0].mxu0
      %3862 = vdwg.mxu0
      %v3863 = vpack.c.bf16 %v3858, %v3858
      %s3864 = scalar_lea.vmem %s43, 12
      %v3865 = vld [vmem:[%s3864] sm:$0xf]
      %v3867 = vsel %vm1231, %v3863, 0
      %v3870 = vsel %vm1297, %v3865, 0
      %3872 = vmatprep.subr.bf16.mxu0 0
      %3873 = vmatpush1.bf16.msra.mxu0 %v3870
      %3874 = vmatprep.subr.bf16.mxu0 0
      %3875 = vmatpush1.bf16.msra.mxu0 0
      %3876 = vmatprep.subr.bf16.mxu0 0
      %3877 = vmatpush1.bf16.msra.mxu0 0
      %3878 = vmatprep.subr.bf16.mxu0 0
      %3879 = vmatpush1.bf16.msra.mxu0 0
      %3880 = vmatprep.subr.bf16.mxu0 0
      %3881 = vmatpush1.bf16.msra.mxu0 0
      %3882 = vmatprep.subr.bf16.mxu0 0
      %3883 = vmatpush1.bf16.msra.mxu0 0
      %3884 = vmatprep.subr.bf16.mxu0 0
      %3885 = vmatpush1.bf16.msra.mxu0 0
      %3886 = vmatprep.subr.bf16.mxu0 0
      %3887 = vmatpush1.bf16.msra.mxu0 0
      %3888 = vmatprep.subr.bf16.mxu0 0
      %3889 = vmatpush1.bf16.msra.mxu0 0
      %3890 = vmatprep.subr.bf16.mxu0 0
      %3891 = vmatpush1.bf16.msra.mxu0 0
      %3892 = vmatprep.subr.bf16.mxu0 0
      %3893 = vmatpush1.bf16.msra.mxu0 0
      %3894 = vmatprep.subr.bf16.mxu0 0
      %3895 = vmatpush1.bf16.msra.mxu0 0
      %3896 = vmatprep.subr.bf16.mxu0 0
      %3897 = vmatpush1.bf16.msra.mxu0 0
      %3898 = vmatprep.subr.bf16.mxu0 0
      %3899 = vmatpush1.bf16.msra.mxu0 0
      %3900 = vmatprep.subr.bf16.mxu0 0
      %3901 = vmatpush1.bf16.msra.mxu0 0
      %3902 = vmatprep.subr.bf16.mxu0 0
      %3903 = vmatpush1.bf16.msra.mxu0 0
      %3904 = vmatprep.mubr.bf16.mxu0 0
      %3905 = vmatmul.mubr.bf16.gmra.mrb[0].mxu0 %v3867
      %v3906 = vpop.f32.mrb[0].mxu0
      %v3907 = vadd.f32 0.0, %v3906
      %v3908 = vpop.f32.mrb[0].mxu0
      %v3909 = vpop.f32.mrb[0].mxu0
      %v3910 = vpop.f32.mrb[0].mxu0
      %3911 = vdwg.mxu0
      %v3912 = vadd.f32 %v3559, %v3907
      %v3913 = vld [vmem:[%s45] sm:$0x1]
      %v3915 = vlaneseq
      %v3916 = vshrl.u32 %v3915, 7
      %v3917 = vsub.s32 0, %v3916
      %v3918 = vrot.slane %v3913, %v3917
      %v3920 = vadd.f32 %v3912, %v3918
      %v3921 = vadd.f32 %v3920, %v2494
      %v3922 = vsel %vm2458, %v3921, 0.0
      %3923 = vadd.xlane.f32.xlu0 %v3922
      %v3924 = vpop.xlane.xlu0 %3923
      %v3925 = vmul.f32 %v3924, %v2462
      %v3926 = vsub.f32 %v3921, %v3925
      %v3927 = vmul.f32 %v3926, %v3926
      %v3928 = vsel %vm2458, %v3927, 0.0
      %3929 = vadd.xlane.f32.xlu0 %v3928
      %v3930 = vpop.xlane.xlu0 %3929
      %v3931 = vmul.f32 %v3930, %v2462
      %v3932 = vadd.f32 %v3931, 1e-05
      %v3933 = vrsqrt.pop %v3932
      %v3934 = vmul.f32 %v3926, %v3933
      %v3935 = vld [vmem:[%s47] sm:$0x1]
      %v3937 = vlaneseq
      %v3938 = vshrl.u32 %v3937, 7
      %v3939 = vsub.s32 0, %v3938
      %v3940 = vrot.slane %v3935, %v3939
      %v3942 = vmul.f32 %v3934, %v3940
      %v3943 = vld [vmem:[%s49] sm:$0x1]
      %v3945 = vlaneseq
      %v3946 = vshrl.u32 %v3945, 7
      %v3947 = vsub.s32 0, %v3946
      %v3948 = vrot.slane %v3943, %v3947
      %v3950 = vadd.f32 %v3942, %v3948
      %v3951 = vmul.f32 %v3950, %v2492
      %v3952 = vpack.c.bf16 %v3951, %v3951
      %v3953 = vld [vmem:[%s51] sm:$0xf]
      %v3954 = vld [vmem:[%s51 + $0x4] sm:$0xf]
      %v3955 = vld [vmem:[%s51 + $0x8] sm:$0xf]
      %v3956 = vld [vmem:[%s51 + $0xc] sm:$0xf]
      %v3957 = vld [vmem:[%s53] sm:$0x1]
      %v3959 = vlaneseq
      %v3960 = vshrl.u32 %v3959, 7
      %v3961 = vsub.s32 0, %v3960
      %v3962 = vrot.slane %v3957, %v3961
      %v3968 = vunpack.c.l.b16 %v3953
      %v3969 = vunpack.c.l.b16 %v3954
      %v3970 = vunpack.c.l.b16 %v3955
      %v3971 = vunpack.c.l.b16 %v3956
      %v3972 = vpack.c.b16 %v3969, %v3968
      %v3973 = vpack.c.b16 %v3971, %v3970
      %v3977 = vsel %vm1058, %v3952, 0
      %3979 = vmatprep.subr.bf16.mxu0 0
      %3980 = vmatpush1.bf16.msra.mxu0 %v3972
      %3981 = vmatprep.subr.bf16.mxu0 0
      %3982 = vmatpush1.bf16.msra.mxu0 %v3973
      %3983 = vmatprep.subr.bf16.mxu0 0
      %3984 = vmatpush1.bf16.msra.mxu0 0
      %3985 = vmatprep.subr.bf16.mxu0 0
      %3986 = vmatpush1.bf16.msra.mxu0 0
      %3987 = vmatprep.subr.bf16.mxu0 0
      %3988 = vmatpush1.bf16.msra.mxu0 0
      %3989 = vmatprep.subr.bf16.mxu0 0
      %3990 = vmatpush1.bf16.msra.mxu0 0
      %3991 = vmatprep.subr.bf16.mxu0 0
      %3992 = vmatpush1.bf16.msra.mxu0 0
      %3993 = vmatprep.subr.bf16.mxu0 0
      %3994 = vmatpush1.bf16.msra.mxu0 0
      %3995 = vmatprep.subr.bf16.mxu0 0
      %3996 = vmatpush1.bf16.msra.mxu0 0
      %3997 = vmatprep.subr.bf16.mxu0 0
      %3998 = vmatpush1.bf16.msra.mxu0 0
      %3999 = vmatprep.subr.bf16.mxu0 0
      %4000 = vmatpush1.bf16.msra.mxu0 0
      %4001 = vmatprep.subr.bf16.mxu0 0
      %4002 = vmatpush1.bf16.msra.mxu0 0
      %4003 = vmatprep.subr.bf16.mxu0 0
      %4004 = vmatpush1.bf16.msra.mxu0 0
      %4005 = vmatprep.subr.bf16.mxu0 0
      %4006 = vmatpush1.bf16.msra.mxu0 0
      %4007 = vmatprep.subr.bf16.mxu0 0
      %4008 = vmatpush1.bf16.msra.mxu0 0
      %4009 = vmatprep.subr.bf16.mxu0 0
      %4010 = vmatpush1.bf16.msra.mxu0 0
      %4011 = vmatprep.mubr.bf16.mxu0 0
      %4012 = vmatmul.mubr.bf16.gmra.mrb[0].mxu0 %v3977
      %v4013 = vpop.f32.mrb[0].mxu0
      %v4014 = vadd.f32 %v3962, %v4013
      %v4015 = vpop.f32.mrb[0].mxu0
      %v4016 = vpop.f32.mrb[0].mxu0
      %v4017 = vpop.f32.mrb[0].mxu0
      %4018 = vdwg.mxu0
      %v4019 = vmax.f32 %v4014, 0.0
      %v4020 = vpack.c.bf16 %v4019, %v4019
      %v4021 = vld [vmem:[%s55] sm:$0xf]
      %v4022 = vld [vmem:[%s55 + $0x4] sm:$0xf]
      %v4023 = vld [vmem:[%s55 + $0x8] sm:$0xf]
      %v4024 = vld [vmem:[%s55 + $0xc] sm:$0xf]
      %v4025 = vld [vmem:[%s55 + $0x10] sm:$0xf]
      %v4026 = vld [vmem:[%s55 + $0x14] sm:$0xf]
      %v4027 = vld [vmem:[%s55 + $0x18] sm:$0xf]
      %v4028 = vld [vmem:[%s55 + $0x1c] sm:$0xf]
      %v4029 = vld [vmem:[%s57] sm:$0x1]
      %v4031 = vlaneseq
      %v4032 = vshrl.u32 %v4031, 7
      %v4033 = vsub.s32 0, %v4032
      %v4034 = vrot.slane %v4029, %v4033
      %v4044 = vunpack.c.l.b16 %v4021
      %v4045 = vunpack.c.l.b16 %v4022
      %v4046 = vunpack.c.l.b16 %v4023
      %v4047 = vunpack.c.l.b16 %v4024
      %v4048 = vunpack.c.l.b16 %v4025
      %v4049 = vunpack.c.l.b16 %v4026
      %v4050 = vunpack.c.l.b16 %v4027
      %v4051 = vunpack.c.l.b16 %v4028
      %v4052 = vpack.c.b16 %v4045, %v4044
      %v4053 = vpack.c.b16 %v4047, %v4046
      %v4054 = vpack.c.b16 %v4049, %v4048
      %v4055 = vpack.c.b16 %v4051, %v4050
      %vm4060 = vcmask 523264
      %v4062 = vsel %vm4060, %v4020, 0
      %4064 = vmatprep.subr.bf16.mxu0 0
      %4065 = vmatpush1.bf16.msra.mxu0 %v4052
      %4066 = vmatprep.subr.bf16.mxu0 0
      %4067 = vmatpush1.bf16.msra.mxu0 %v4053
      %4068 = vmatprep.subr.bf16.mxu0 0
      %4069 = vmatpush1.bf16.msra.mxu0 %v4054
      %4070 = vmatprep.subr.bf16.mxu0 0
      %4071 = vmatpush1.bf16.msra.mxu0 %v4055
      %4072 = vmatprep.subr.bf16.mxu0 0
      %4073 = vmatpush1.bf16.msra.mxu0 0
      %4074 = vmatprep.subr.bf16.mxu0 0
      %4075 = vmatpush1.bf16.msra.mxu0 0
      %4076 = vmatprep.subr.bf16.mxu0 0
      %4077 = vmatpush1.bf16.msra.mxu0 0
      %4078 = vmatprep.subr.bf16.mxu0 0
      %4079 = vmatpush1.bf16.msra.mxu0 0
      %4080 = vmatprep.subr.bf16.mxu0 0
      %4081 = vmatpush1.bf16.msra.mxu0 0
      %4082 = vmatprep.subr.bf16.mxu0 0
      %4083 = vmatpush1.bf16.msra.mxu0 0
      %4084 = vmatprep.subr.bf16.mxu0 0
      %4085 = vmatpush1.bf16.msra.mxu0 0
      %4086 = vmatprep.subr.bf16.mxu0 0
      %4087 = vmatpush1.bf16.msra.mxu0 0
      %4088 = vmatprep.subr.bf16.mxu0 0
      %4089 = vmatpush1.bf16.msra.mxu0 0
      %4090 = vmatprep.subr.bf16.mxu0 0
      %4091 = vmatpush1.bf16.msra.mxu0 0
      %4092 = vmatprep.subr.bf16.mxu0 0
      %4093 = vmatpush1.bf16.msra.mxu0 0
      %4094 = vmatprep.subr.bf16.mxu0 0
      %4095 = vmatpush1.bf16.msra.mxu0 0
      %4096 = vmatprep.mubr.bf16.mxu0 0
      %4097 = vmatmul.mubr.bf16.gmra.mrb[0].mxu0 %v4062
      %v4098 = vpop.f32.mrb[0].mxu0
      %v4099 = vadd.f32 %v4034, %v4098
      %v4100 = vpop.f32.mrb[0].mxu0
      %v4101 = vpop.f32.mrb[0].mxu0
      %v4102 = vpop.f32.mrb[0].mxu0
      %4103 = vdwg.mxu0
      %v4104 = vadd.f32 %v4099, %v3951
      %v4105 = vsel %vm2458, %v4104, 0.0
      %4106 = vadd.xlane.f32.xlu0 %v4105
      %v4107 = vpop.xlane.xlu0 %4106
      %v4108 = vmul.f32 %v4107, %v2462
      %v4109 = vsub.f32 %v4104, %v4108
      %v4110 = vmul.f32 %v4109, %v4109
      %v4111 = vsel %vm2458, %v4110, 0.0
      %4112 = vadd.xlane.f32.xlu0 %v4111
      %v4113 = vpop.xlane.xlu0 %4112
      %v4114 = vmul.f32 %v4113, %v2462
      %v4115 = vadd.f32 %v4114, 1e-05
      %v4116 = vrsqrt.pop %v4115
      %v4117 = vmul.f32 %v4109, %v4116
      %v4118 = vld [vmem:[%s59] sm:$0x1]
      %v4120 = vlaneseq
      %v4121 = vshrl.u32 %v4120, 7
      %v4122 = vsub.s32 0, %v4121
      %v4123 = vrot.slane %v4118, %v4122
      %v4125 = vmul.f32 %v4117, %v4123
      %v4126 = vld [vmem:[%s61] sm:$0x1]
      %v4128 = vlaneseq
      %v4129 = vshrl.u32 %v4128, 7
      %v4130 = vsub.s32 0, %v4129
      %v4131 = vrot.slane %v4126, %v4130
      %v4133 = vadd.f32 %v4125, %v4131
      %v4134 = vmul.f32 %v4133, %v2492
      %v4135 = vpack.c.bf16 %v4134, %v4134
      %vm4136 = vcmask 257024
      %vm4137 = vsmask.f32 3328
      %vm4138 = vmand %vm4136, %vm4137
      %v4139 = vld [vmem:[%s1015] sm:$0xf]
      %v4140 = vsel %vm4138, %v4135, %v4139
      %4141 = vst [vmem:[%s1015] sm:$0xf] %v4140
      %p4142 = scmp.lt.s32.totalorder %s74, 1
      %s4143 = scalar_select %p4142, %s74, 1
      %s4144 = smul.addr %s4143, 4
      %s4145 = scalar_lea.vmem %s63, %s4144
      // Predicated region
      $region145: #{transformer_forward.7} parent=143 // pred_check
        %p4146 = pneg %p768
      $region146: #{transformer_forward.7} parent=143 // pred_check_branch
        %4148 = sbr.rel (%p4146) target = $region148
      $region147: #{transformer_forward.7} parent=143 // pred_region
        _
      $region148: #{transformer_forward.7} parent=143 // pred_fallthru
        _
    $region144: #{transformer_forward.7} parent=5 // pred_fallthru
      _
    %p4149 = scmp.le.s32.totalorder 2, %s69
    // Predicated region
    $region149: #{transformer_forward.7} parent=5 // pred_check
      %p4150 = pneg %p4149
    $region150: #{transformer_forward.7} parent=5 // pred_check_branch
      %4152 = sbr.rel (%p4150) target = $region152
    $region151: #{transformer_forward.7} parent=5 // pred_region
      %s4153 = ssub.s32 %s69, 2
      // Predicated region
      $region153: #{transformer_forward.7} parent=151 // pred_check
        %p4154 = pneg %p774
      $region154: #{transformer_forward.7} parent=151 // pred_check_branch
        %4156 = sbr.rel (%p4154) target = $region156
      $region155: #{transformer_forward.7} parent=151 // pred_region
        %p4157 = scmp.lt.s32.totalorder %s75, 1
        %s4158 = scalar_select %p4157, %s75, 1
        %s4159 = smul.addr %s4158, 4
        %s4160 = scalar_lea.vmem %s63, %s4159
      $region156: #{transformer_forward.7} parent=151 // pred_fallthru
        _
    $region152: #{transformer_forward.7} parent=5 // pred_fallthru
      _
  $region6: #{transformer_forward.7} parent=0 // loop_footer
    %s73 = sadd.s32 1, %s69
  $region7: #{transformer_forward.7} parent=0 // loop_footer_branch
    %68 = sbr.rel target = $region3
  $region8: #{transformer_forward.7} parent=0 // loop_exit
    _

</llo_original>
